<compile_context>
chip_gen: v7x
topology: tpu7x:2x2x1
jax: 0.10.0
libtpu: 0.0.40
codegen_flags: <defaults>
</compile_context>

<pallas_src>
import functools
import math

import jax
import jax.numpy as jnp
from jax import lax
from jax.experimental import pallas as pl
from jax.experimental.pallas import tpu as pltpu

LSTM_UNITS = 128
H = LSTM_UNITS
DENSE_HIDDEN_UNITS = 4 * LSTM_UNITS     # 512
IN_DIM = 300
NUM_CLASSES = 6

SUBLANE = 8
LANE = 128
IN_PAD = 384                            # 300 -> 3*128 lanes
OUT_PAD = 128                           # 6   -> 128 lanes


def _round_up(v, m):
    return (v + m - 1) // m * m


def toxic_kernel(
    x_ref,              # (T*Bp, IN_PAD) bf16  (zero-padded input, flattened)
    gwih_ref,           # (IN_PAD, 6H)  bf16   [fwd 3H | bwd 3H]
    gbih_ref,           # (1, 6H)       f32    b_ih with b_hh(r,z) folded in
    gwhhf_ref,          # (H, 3H)       bf16
    gbhnf_ref,          # (1, H)        f32    b_hh of n gate (fwd)
    gwhhb_ref,          # (H, 3H)       bf16
    gbhnb_ref,          # (1, H)        f32    b_hh of n gate (bwd)
    rwih_ref,           # (2H, 2H)      bf16   [fwd H | bwd H]
    rbih_ref,           # (1, 2H)       f32    b_ih + b_hh folded
    rwhhf_ref,          # (H, H)        bf16
    rwhhb_ref,          # (H, H)        bf16
    w1_ref, b1_ref,     # (512,512) bf16, (1,512) f32
    w2_ref, b2_ref,     # (512,512) bf16, (1,512) f32
    w3_ref, b3_ref,     # (512,OUT_PAD) bf16, (1,OUT_PAD) f32
    out_ref,            # (T, OUT_PAD) f32
    # scratch
    gxf, gxb,           # (T, Bp, 3H) f32   hoisted GRU input projections
    gruf, grub,         # (T, Bp, H)  f32   GRU output sequences
    rgxf, rgxb,         # (T, Bp, H)  f32   hoisted RNN input projections
    rnnf, rnnb,         # (T, Bp, H)  f32   RNN output sequences
    *, seq_len, batch, batch_pad,
):
    T, Bp = seq_len, batch_pad
    f32 = jnp.float32
    bf16 = jnp.bfloat16

    # ---- BiGRU input projection, both directions, one MXU matmul -----------
    gx = jnp.dot(x_ref[...], gwih_ref[...], preferred_element_type=f32) + gbih_ref[...]
    gxf[...] = gx[:, : 3 * H].reshape(T, Bp, 3 * H)
    gxb[...] = gx[:, 3 * H:].reshape(T, Bp, 3 * H)

    # ---- fused fwd/bwd GRU recurrence (only h-dependent work in the loop) --
    whh_f = gwhhf_ref[...]
    whh_b = gwhhb_ref[...]
    bhn_f = jnp.broadcast_to(gbhnf_ref[...], (Bp, H))   # hoisted broadcasts
    bhn_b = jnp.broadcast_to(gbhnb_ref[...], (Bp, H))

    def gru_cell(gx_t, h, whh, bhn):
        gh = jnp.dot(h.astype(bf16), whh, preferred_element_type=f32)
        r = jax.nn.sigmoid(gx_t[:, :H] + gh[:, :H])
        z = jax.nn.sigmoid(gx_t[:, H:2 * H] + gh[:, H:2 * H])
        n = jnp.tanh(gx_t[:, 2 * H:] + r * (gh[:, 2 * H:] + bhn))
        return (1.0 - z) * n + z * h

    def gru_step(i, carry):
        h_f, h_b = carry
        tb = T - 1 - i
        h_f = gru_cell(gxf[i], h_f, whh_f, bhn_f)
        gruf[i, :, :] = h_f
        h_b = gru_cell(gxb[tb], h_b, whh_b, bhn_b)
        grub[tb, :, :] = h_b
        return h_f, h_b

    h0 = jnp.zeros((Bp, H), f32)
    lax.fori_loop(0, T, gru_step, (h0, h0), unroll=True)

    # ---- BiRNN input projection, both directions, one MXU matmul -----------
    gcat = jnp.concatenate(
        [gruf[...].reshape(T * Bp, H), grub[...].reshape(T * Bp, H)], axis=-1
    ).astype(bf16)
    rgx = jnp.dot(gcat, rwih_ref[...], preferred_element_type=f32) + rbih_ref[...]
    rgxf[...] = rgx[:, :H].reshape(T, Bp, H)
    rgxb[...] = rgx[:, H:].reshape(T, Bp, H)

    # ---- fused fwd/bwd tanh-RNN recurrence ----------------------------------
    rwhh_f = rwhhf_ref[...]
    rwhh_b = rwhhb_ref[...]

    def rnn_step(i, carry):
        h_f, h_b = carry
        tb = T - 1 - i
        h_f = jnp.tanh(rgxf[i] + jnp.dot(h_f.astype(bf16), rwhh_f,
                                         preferred_element_type=f32))
        rnnf[i, :, :] = h_f
        h_b = jnp.tanh(rgxb[tb] + jnp.dot(h_b.astype(bf16), rwhh_b,
                                          preferred_element_type=f32))
        rnnb[tb, :, :] = h_b
        return h_f, h_b

    lax.fori_loop(0, T, rnn_step, (h0, h0), unroll=True)

    # ---- max/mean pooling over the batch axis (axis=1, as in the reference),
    #      fwd/bwd pooled separately (no (T,Bp,2H) concat materialized),
    #      padded batch rows masked out. -------------------------------------
    seq_f = rnnf[...]
    seq_b = rnnb[...]
    if batch == Bp:
        mx_f = jnp.max(seq_f, axis=1)
        mx_b = jnp.max(seq_b, axis=1)
        sm_f = jnp.sum(seq_f, axis=1)
        sm_b = jnp.sum(seq_b, axis=1)
    else:
        mask = lax.broadcasted_iota(jnp.int32, (T, Bp, H), 1) < batch
        neg = jnp.float32(-jnp.inf)
        mx_f = jnp.max(jnp.where(mask, seq_f, neg), axis=1)
        mx_b = jnp.max(jnp.where(mask, seq_b, neg), axis=1)
        sm_f = jnp.sum(jnp.where(mask, seq_f, 0.0), axis=1)
        sm_b = jnp.sum(jnp.where(mask, seq_b, 0.0), axis=1)
    inv_b = 1.0 / batch
    pooled = jnp.concatenate([mx_f, mx_b, sm_f * inv_b, sm_b * inv_b], axis=-1)  # (T, 4H)

    # ---- residual dense head + sigmoid --------------------------------------
    h1 = jax.nn.relu(jnp.dot(pooled.astype(bf16), w1_ref[...],
                             preferred_element_type=f32) + b1_ref[...])
    y = pooled + h1
    h2 = jax.nn.relu(jnp.dot(y.astype(bf16), w2_ref[...],
                             preferred_element_type=f32) + b2_ref[...])
    y = y + h2
    logits = jnp.dot(y.astype(bf16), w3_ref[...],
                     preferred_element_type=f32) + b3_ref[...]
    out_ref[...] = jax.nn.sigmoid(logits)          # (T, OUT_PAD); cols 6: padding


def toxic_classifier_forward(x, kernel_params):
    T, B, IN = x.shape
    Bp = _round_up(B, SUBLANE)

    # Zero-pad batch -> sublane multiple and feature 300 -> 384 lanes; flatten
    # (T, Bp) so the hoisted projection is one big, well-shaped matmul.
    x_pad = jnp.zeros((T, Bp, IN_PAD), jnp.bfloat16)
    x_pad = x_pad.at[:, :B, :IN].set(x.astype(jnp.bfloat16))
    x_flat = x_pad.reshape(T * Bp, IN_PAD)

    kernel = functools.partial(toxic_kernel, seq_len=T, batch=B, batch_pad=Bp)
    n_in = 1 + len(kernel_params)

    scratch_shapes = (
        [pltpu.VMEM((T, Bp, 3 * H), jnp.float32) for _ in range(2)]
        + [pltpu.VMEM((T, Bp, H), jnp.float32) for _ in range(6)]
    )

    # Explicit VMEM limit sized from the real footprint (with headroom).
    scratch_bytes = (2 * T * Bp * 3 * H + 6 * T * Bp * H) * 4
    io_bytes = (x_flat.size * x_flat.dtype.itemsize
                + sum(int(p.size) * p.dtype.itemsize for p in kernel_params)
                + T * OUT_PAD * 4)
    vmem_limit = int(min(max(4 * (scratch_bytes + io_bytes), 16 * 2**20), 56 * 2**20))

    out = pl.pallas_call(
        kernel,
        out_shape=jax.ShapeDtypeStruct((T, OUT_PAD), jnp.float32),
        in_specs=[pl.BlockSpec(memory_space=pltpu.MemorySpace.VMEM)] * n_in,
        out_specs=pl.BlockSpec(memory_space=pltpu.MemorySpace.VMEM),
        scratch_shapes=scratch_shapes,
        compiler_params=pltpu.CompilerParams(vmem_limit_bytes=vmem_limit),
    )(x_flat, *kernel_params)
    return out[:, :NUM_CLASSES]


def init_raw_params(key):
    """Deterministic synthetic init in PyTorch layout, uniform(-1/sqrt(fan), 1/sqrt(fan))."""
    keys = iter(jax.random.split(key, 24))
    rb = 1.0 / math.sqrt(H)
    lb = 1.0 / math.sqrt(DENSE_HIDDEN_UNITS)

    def u(shape, bound):
        return jax.random.uniform(next(keys), shape, jnp.float32, -bound, bound)

    p = {}
    for d in ("f", "b"):                     # BiGRU, per direction
        p[f"gru_wih_{d}"] = u((3 * H, IN_DIM), rb)
        p[f"gru_whh_{d}"] = u((3 * H, H), rb)
        p[f"gru_bih_{d}"] = u((3 * H,), rb)
        p[f"gru_bhh_{d}"] = u((3 * H,), rb)
    for d in ("f", "b"):                     # BiRNN, per direction
        p[f"rnn_wih_{d}"] = u((H, 2 * H), rb)
        p[f"rnn_whh_{d}"] = u((H, H), rb)
        p[f"rnn_bih_{d}"] = u((H,), rb)
        p[f"rnn_bhh_{d}"] = u((H,), rb)
    p["w1"] = u((DENSE_HIDDEN_UNITS, DENSE_HIDDEN_UNITS), lb)
    p["b1"] = u((DENSE_HIDDEN_UNITS,), lb)
    p["w2"] = u((DENSE_HIDDEN_UNITS, DENSE_HIDDEN_UNITS), lb)
    p["b2"] = u((DENSE_HIDDEN_UNITS,), lb)
    p["w3"] = u((NUM_CLASSES, DENSE_HIDDEN_UNITS), lb)
    p["b3"] = u((NUM_CLASSES,), lb)
    return p


def prepare_params(p):
    """Transpose / pad / fold / cast PyTorch-layout params into kernel layout."""
    bf16 = jnp.bfloat16

    def pad_in(w):                                   # (3H, 300) -> (IN_PAD, 3H)
        return jnp.zeros((IN_PAD, 3 * H), jnp.float32).at[:IN_DIM].set(w.T)

    gwih = jnp.concatenate([pad_in(p["gru_wih_f"]), pad_in(p["gru_wih_b"])],
                           axis=1).astype(bf16)      # (IN_PAD, 6H)

    def fold_gru_bias(bih, bhh):
        # b_hh of r,z gates can be folded into the hoisted projection bias;
        # b_hh of the n gate must stay inside the r*(...) term (kept separate).
        return bih.at[:2 * H].add(bhh[:2 * H]).reshape(1, 3 * H)

    gbih = jnp.concatenate([fold_gru_bias(p["gru_bih_f"], p["gru_bhh_f"]),
                            fold_gru_bias(p["gru_bih_b"], p["gru_bhh_b"])], axis=1)
    gwhhf = p["gru_whh_f"].T.astype(bf16)
    gwhhb = p["gru_whh_b"].T.astype(bf16)
    gbhnf = p["gru_bhh_f"][2 * H:].reshape(1, H)
    gbhnb = p["gru_bhh_b"][2 * H:].reshape(1, H)

    rwih = jnp.concatenate([p["rnn_wih_f"].T, p["rnn_wih_b"].T], axis=1).astype(bf16)  # (2H, 2H)
    rbih = jnp.concatenate([(p["rnn_bih_f"] + p["rnn_bhh_f"]).reshape(1, H),
                            (p["rnn_bih_b"] + p["rnn_bhh_b"]).reshape(1, H)], axis=1)
    rwhhf = p["rnn_whh_f"].T.astype(bf16)
    rwhhb = p["rnn_whh_b"].T.astype(bf16)

    w1 = p["w1"].T.astype(bf16)
    b1 = p["b1"].reshape(1, DENSE_HIDDEN_UNITS)
    w2 = p["w2"].T.astype(bf16)
    b2 = p["b2"].reshape(1, DENSE_HIDDEN_UNITS)
    w3 = jnp.zeros((DENSE_HIDDEN_UNITS, OUT_PAD), jnp.float32) \
            .at[:, :NUM_CLASSES].set(p["w3"].T).astype(bf16)
    b3 = jnp.zeros((1, OUT_PAD), jnp.float32).at[0, :NUM_CLASSES].set(p["b3"])

    return (gwih, gbih, gwhhf, gbhnf, gwhhb, gbhnb,
            rwih, rbih, rwhhf, rwhhb, w1, b1, w2, b2, w3, b3)


if __name__ == "__main__":
    key = jax.random.PRNGKey(0)
    kx, kp = jax.random.split(key)
    T, B = 8, 4                                  # small seq / batch
    x = jax.random.normal(kx, (T, B, IN_DIM), jnp.float32)
    params = prepare_params(init_raw_params(kp))

    out = toxic_classifier_forward(x, params)
    out = jax.block_until_ready(out)
    assert out.shape == (T, NUM_CLASSES)
    assert bool(jnp.all(jnp.isfinite(out)))
    print("KERNEL_OK")
</pallas_src>

<mosaic_0001>
module attributes {stable_mosaic.version = 11 : i64} {
  func.func @toxic_kernel(%arg0: memref<64x384xbf16, #tpu.memory_space<vmem>>, %arg1: memref<384x768xbf16, #tpu.memory_space<vmem>>, %arg2: memref<1x768xf32, #tpu.memory_space<vmem>>, %arg3: memref<128x384xbf16, #tpu.memory_space<vmem>>, %arg4: memref<1x128xf32, #tpu.memory_space<vmem>>, %arg5: memref<128x384xbf16, #tpu.memory_space<vmem>>, %arg6: memref<1x128xf32, #tpu.memory_space<vmem>>, %arg7: memref<256x256xbf16, #tpu.memory_space<vmem>>, %arg8: memref<1x256xf32, #tpu.memory_space<vmem>>, %arg9: memref<128x128xbf16, #tpu.memory_space<vmem>>, %arg10: memref<128x128xbf16, #tpu.memory_space<vmem>>, %arg11: memref<512x512xbf16, #tpu.memory_space<vmem>>, %arg12: memref<1x512xf32, #tpu.memory_space<vmem>>, %arg13: memref<512x512xbf16, #tpu.memory_space<vmem>>, %arg14: memref<1x512xf32, #tpu.memory_space<vmem>>, %arg15: memref<512x128xbf16, #tpu.memory_space<vmem>>, %arg16: memref<1x128xf32, #tpu.memory_space<vmem>>, %arg17: memref<8x128xf32, #tpu.memory_space<vmem>>, %arg18: memref<8x8x384xf32, #tpu.memory_space<vmem>>, %arg19: memref<8x8x384xf32, #tpu.memory_space<vmem>>, %arg20: memref<8x8x128xf32, #tpu.memory_space<vmem>>, %arg21: memref<8x8x128xf32, #tpu.memory_space<vmem>>, %arg22: memref<8x8x128xf32, #tpu.memory_space<vmem>>, %arg23: memref<8x8x128xf32, #tpu.memory_space<vmem>>, %arg24: memref<8x8x128xf32, #tpu.memory_space<vmem>>, %arg25: memref<8x8x128xf32, #tpu.memory_space<vmem>>) attributes {dimension_semantics = [], scalar_prefetch = 0 : i64, scratch_operands = 8 : i64, tpu.core_type = #tpu.core_type<tc>} {
    %c0 = arith.constant 0 : index
    %c0_0 = arith.constant 0 : index
    %0 = vector.load %arg0[%c0, %c0_0] : memref<64x384xbf16, #tpu.memory_space<vmem>>, vector<64x384xbf16>
    %c0_1 = arith.constant 0 : index
    %c0_2 = arith.constant 0 : index
    %1 = vector.load %arg1[%c0_1, %c0_2] : memref<384x768xbf16, #tpu.memory_space<vmem>>, vector<384x768xbf16>
    %cst = arith.constant dense<0.000000e+00> : vector<64x768xf32>
    %2 = tpu.matmul %0, %1, %cst {dimension_numbers = #tpu.dot_dimension_numbers<[1], [0], [0], [1], [0, 0, 1, 1], [], []>} : vector<64x384xbf16>, vector<384x768xbf16>, vector<64x768xf32> -> vector<64x768xf32>
    %c0_3 = arith.constant 0 : index
    %c0_4 = arith.constant 0 : index
    %3 = vector.load %arg2[%c0_3, %c0_4] : memref<1x768xf32, #tpu.memory_space<vmem>>, vector<1x768xf32>
    %4 = vector.broadcast %3 : vector<1x768xf32> to vector<64x768xf32>
    %5 = arith.addf %2, %4 : vector<64x768xf32>
    %6 = vector.extract_strided_slice %5 {offsets = [0, 0], sizes = [64, 384], strides = [1, 1]} : vector<64x768xf32> to vector<64x384xf32>
    %7 = vector.shape_cast %6 : vector<64x384xf32> to vector<8x8x384xf32>
    %c0_5 = arith.constant 0 : index
    %c0_6 = arith.constant 0 : index
    %c0_7 = arith.constant 0 : index
    %8 = vector.load %arg18[%c0_5, %c0_6, %c0_7] : memref<8x8x384xf32, #tpu.memory_space<vmem>>, vector<8x8x384xf32>
    tpu.vector_store %arg18[%c0_5, %c0_6, %c0_7], %7 {strides = array<i32>} : memref<8x8x384xf32, #tpu.memory_space<vmem>>, vector<8x8x384xf32>,
    %9 = vector.extract_strided_slice %5 {offsets = [0, 384], sizes = [64, 384], strides = [1, 1]} : vector<64x768xf32> to vector<64x384xf32>
    %10 = vector.shape_cast %9 : vector<64x384xf32> to vector<8x8x384xf32>
    %c0_8 = arith.constant 0 : index
    %c0_9 = arith.constant 0 : index
    %c0_10 = arith.constant 0 : index
    %11 = vector.load %arg19[%c0_8, %c0_9, %c0_10] : memref<8x8x384xf32, #tpu.memory_space<vmem>>, vector<8x8x384xf32>
    tpu.vector_store %arg19[%c0_8, %c0_9, %c0_10], %10 {strides = array<i32>} : memref<8x8x384xf32, #tpu.memory_space<vmem>>, vector<8x8x384xf32>,
    %c0_11 = arith.constant 0 : index
    %c0_12 = arith.constant 0 : index
    %12 = vector.load %arg3[%c0_11, %c0_12] : memref<128x384xbf16, #tpu.memory_space<vmem>>, vector<128x384xbf16>
    %c0_13 = arith.constant 0 : index
    %c0_14 = arith.constant 0 : index
    %13 = vector.load %arg5[%c0_13, %c0_14] : memref<128x384xbf16, #tpu.memory_space<vmem>>, vector<128x384xbf16>
    %c0_15 = arith.constant 0 : index
    %c0_16 = arith.constant 0 : index
    %14 = vector.load %arg4[%c0_15, %c0_16] : memref<1x128xf32, #tpu.memory_space<vmem>>, vector<1x128xf32>
    %15 = vector.shape_cast %14 : vector<1x128xf32> to vector<1x128xf32>
    %16 = vector.broadcast %15 : vector<1x128xf32> to vector<8x128xf32>
    %c0_17 = arith.constant 0 : index
    %c0_18 = arith.constant 0 : index
    %17 = vector.load %arg6[%c0_17, %c0_18] : memref<1x128xf32, #tpu.memory_space<vmem>>, vector<1x128xf32>
    %18 = vector.shape_cast %17 : vector<1x128xf32> to vector<1x128xf32>
    %19 = vector.broadcast %18 : vector<1x128xf32> to vector<8x128xf32>
    %cst_19 = arith.constant 0.000000e+00 : f32
    %20 = vector.broadcast %cst_19 : f32 to vector<8x128xf32>
    %c0_i32 = arith.constant 0 : i32
    %c7_i32 = arith.constant 7 : i32
    %21 = arith.subi %c7_i32, %c0_i32 : i32
    %22 = arith.index_cast %c0_i32 : i32 to index
    %c0_20 = arith.constant 0 : index
    %c0_21 = arith.constant 0 : index
    %23 = vector.load %arg18[%22, %c0_20, %c0_21] : memref<8x8x384xf32, #tpu.memory_space<vmem>>, vector<1x8x384xf32>
    %24 = vector.shape_cast %23 : vector<1x8x384xf32> to vector<8x384xf32>
    %25 = arith.truncf %20 : vector<8x128xf32> to vector<8x128xbf16>
    %cst_22 = arith.constant dense<0.000000e+00> : vector<8x384xf32>
    %26 = tpu.matmul %25, %12, %cst_22 {dimension_numbers = #tpu.dot_dimension_numbers<[1], [0], [0], [1], [0, 0, 1, 1], [], []>} : vector<8x128xbf16>, vector<128x384xbf16>, vector<8x384xf32> -> vector<8x384xf32>
    %27 = vector.extract_strided_slice %24 {offsets = [0, 0], sizes = [8, 128], strides = [1, 1]} : vector<8x384xf32> to vector<8x128xf32>
    %28 = vector.extract_strided_slice %26 {offsets = [0, 0], sizes = [8, 128], strides = [1, 1]} : vector<8x384xf32> to vector<8x128xf32>
    %29 = arith.addf %27, %28 : vector<8x128xf32>
    %30 = arith.negf %29 : vector<8x128xf32>
    %31 = math.exp %30 : vector<8x128xf32>
    %cst_23 = arith.constant 1.000000e+00 : f32
    %32 = vector.broadcast %cst_23 : f32 to vector<8x128xf32>
    %33 = arith.addf %32, %31 : vector<8x128xf32>
    %34 = arith.divf %32, %33 : vector<8x128xf32>
    %35 = vector.extract_strided_slice %24 {offsets = [0, 128], sizes = [8, 128], strides = [1, 1]} : vector<8x384xf32> to vector<8x128xf32>
    %36 = vector.extract_strided_slice %26 {offsets = [0, 128], sizes = [8, 128], strides = [1, 1]} : vector<8x384xf32> to vector<8x128xf32>
    %37 = arith.addf %35, %36 : vector<8x128xf32>
    %38 = arith.negf %37 : vector<8x128xf32>
    %39 = math.exp %38 : vector<8x128xf32>
    %cst_24 = arith.constant 1.000000e+00 : f32
    %40 = vector.broadcast %cst_24 : f32 to vector<8x128xf32>
    %41 = arith.addf %40, %39 : vector<8x128xf32>
    %42 = arith.divf %40, %41 : vector<8x128xf32>
    %43 = vector.extract_strided_slice %24 {offsets = [0, 256], sizes = [8, 128], strides = [1, 1]} : vector<8x384xf32> to vector<8x128xf32>
    %44 = vector.extract_strided_slice %26 {offsets = [0, 256], sizes = [8, 128], strides = [1, 1]} : vector<8x384xf32> to vector<8x128xf32>
    %45 = arith.addf %44, %16 : vector<8x128xf32>
    %46 = arith.mulf %34, %45 : vector<8x128xf32>
    %47 = arith.addf %43, %46 : vector<8x128xf32>
    %48 = math.tanh %47 : vector<8x128xf32>
    %cst_25 = arith.constant 1.000000e+00 : f32
    %49 = vector.broadcast %cst_25 : f32 to vector<8x128xf32>
    %50 = arith.subf %49, %42 : vector<8x128xf32>
    %51 = arith.mulf %50, %48 : vector<8x128xf32>
    %52 = arith.mulf %42, %20 : vector<8x128xf32>
    %53 = arith.addf %51, %52 : vector<8x128xf32>
    %54 = arith.index_cast %c0_i32 : i32 to index
    %c0_26 = arith.constant 0 : index
    %c0_27 = arith.constant 0 : index
    %55 = vector.load %arg20[%54, %c0_26, %c0_27] : memref<8x8x128xf32, #tpu.memory_space<vmem>>, vector<1x8x128xf32>
    %56 = vector.shape_cast %55 : vector<1x8x128xf32> to vector<8x128xf32>
    %57 = vector.shape_cast %53 : vector<8x128xf32> to vector<1x8x128xf32>
    tpu.vector_store %arg20[%54, %c0_26, %c0_27], %57 {strides = array<i32>} : memref<8x8x128xf32, #tpu.memory_space<vmem>>, vector<1x8x128xf32>,
    %58 = arith.index_cast %21 : i32 to index
    %c0_28 = arith.constant 0 : index
    %c0_29 = arith.constant 0 : index
    %59 = vector.load %arg19[%58, %c0_28, %c0_29] : memref<8x8x384xf32, #tpu.memory_space<vmem>>, vector<1x8x384xf32>
    %60 = vector.shape_cast %59 : vector<1x8x384xf32> to vector<8x384xf32>
    %61 = arith.truncf %20 : vector<8x128xf32> to vector<8x128xbf16>
    %cst_30 = arith.constant dense<0.000000e+00> : vector<8x384xf32>
    %62 = tpu.matmul %61, %13, %cst_30 {dimension_numbers = #tpu.dot_dimension_numbers<[1], [0], [0], [1], [0, 0, 1, 1], [], []>} : vector<8x128xbf16>, vector<128x384xbf16>, vector<8x384xf32> -> vector<8x384xf32>
    %63 = vector.extract_strided_slice %60 {offsets = [0, 0], sizes = [8, 128], strides = [1, 1]} : vector<8x384xf32> to vector<8x128xf32>
    %64 = vector.extract_strided_slice %62 {offsets = [0, 0], sizes = [8, 128], strides = [1, 1]} : vector<8x384xf32> to vector<8x128xf32>
    %65 = arith.addf %63, %64 : vector<8x128xf32>
    %66 = arith.negf %65 : vector<8x128xf32>
    %67 = math.exp %66 : vector<8x128xf32>
    %cst_31 = arith.constant 1.000000e+00 : f32
    %68 = vector.broadcast %cst_31 : f32 to vector<8x128xf32>
    %69 = arith.addf %68, %67 : vector<8x128xf32>
    %70 = arith.divf %68, %69 : vector<8x128xf32>
    %71 = vector.extract_strided_slice %60 {offsets = [0, 128], sizes = [8, 128], strides = [1, 1]} : vector<8x384xf32> to vector<8x128xf32>
    %72 = vector.extract_strided_slice %62 {offsets = [0, 128], sizes = [8, 128], strides = [1, 1]} : vector<8x384xf32> to vector<8x128xf32>
    %73 = arith.addf %71, %72 : vector<8x128xf32>
    %74 = arith.negf %73 : vector<8x128xf32>
    %75 = math.exp %74 : vector<8x128xf32>
    %cst_32 = arith.constant 1.000000e+00 : f32
    %76 = vector.broadcast %cst_32 : f32 to vector<8x128xf32>
    %77 = arith.addf %76, %75 : vector<8x128xf32>
    %78 = arith.divf %76, %77 : vector<8x128xf32>
    %79 = vector.extract_strided_slice %60 {offsets = [0, 256], sizes = [8, 128], strides = [1, 1]} : vector<8x384xf32> to vector<8x128xf32>
    %80 = vector.extract_strided_slice %62 {offsets = [0, 256], sizes = [8, 128], strides = [1, 1]} : vector<8x384xf32> to vector<8x128xf32>
    %81 = arith.addf %80, %19 : vector<8x128xf32>
    %82 = arith.mulf %70, %81 : vector<8x128xf32>
    %83 = arith.addf %79, %82 : vector<8x128xf32>
    %84 = math.tanh %83 : vector<8x128xf32>
    %cst_33 = arith.constant 1.000000e+00 : f32
    %85 = vector.broadcast %cst_33 : f32 to vector<8x128xf32>
    %86 = arith.subf %85, %78 : vector<8x128xf32>
    %87 = arith.mulf %86, %84 : vector<8x128xf32>
    %88 = arith.mulf %78, %20 : vector<8x128xf32>
    %89 = arith.addf %87, %88 : vector<8x128xf32>
    %90 = arith.index_cast %21 : i32 to index
    %c0_34 = arith.constant 0 : index
    %c0_35 = arith.constant 0 : index
    %91 = vector.load %arg21[%90, %c0_34, %c0_35] : memref<8x8x128xf32, #tpu.memory_space<vmem>>, vector<1x8x128xf32>
    %92 = vector.shape_cast %91 : vector<1x8x128xf32> to vector<8x128xf32>
    %93 = vector.shape_cast %89 : vector<8x128xf32> to vector<1x8x128xf32>
    tpu.vector_store %arg21[%90, %c0_34, %c0_35], %93 {strides = array<i32>} : memref<8x8x128xf32, #tpu.memory_space<vmem>>, vector<1x8x128xf32>,
    %c1_i32 = arith.constant 1 : i32
    %c7_i32_36 = arith.constant 7 : i32
    %94 = arith.subi %c7_i32_36, %c1_i32 : i32
    %95 = arith.index_cast %c1_i32 : i32 to index
    %c0_37 = arith.constant 0 : index
    %c0_38 = arith.constant 0 : index
    %96 = vector.load %arg18[%95, %c0_37, %c0_38] : memref<8x8x384xf32, #tpu.memory_space<vmem>>, vector<1x8x384xf32>
    %97 = vector.shape_cast %96 : vector<1x8x384xf32> to vector<8x384xf32>
    %98 = arith.truncf %53 : vector<8x128xf32> to vector<8x128xbf16>
    %cst_39 = arith.constant dense<0.000000e+00> : vector<8x384xf32>
    %99 = tpu.matmul %98, %12, %cst_39 {dimension_numbers = #tpu.dot_dimension_numbers<[1], [0], [0], [1], [0, 0, 1, 1], [], []>} : vector<8x128xbf16>, vector<128x384xbf16>, vector<8x384xf32> -> vector<8x384xf32>
    %100 = vector.extract_strided_slice %97 {offsets = [0, 0], sizes = [8, 128], strides = [1, 1]} : vector<8x384xf32> to vector<8x128xf32>
    %101 = vector.extract_strided_slice %99 {offsets = [0, 0], sizes = [8, 128], strides = [1, 1]} : vector<8x384xf32> to vector<8x128xf32>
    %102 = arith.addf %100, %101 : vector<8x128xf32>
    %103 = arith.negf %102 : vector<8x128xf32>
    %104 = math.exp %103 : vector<8x128xf32>
    %cst_40 = arith.constant 1.000000e+00 : f32
    %105 = vector.broadcast %cst_40 : f32 to vector<8x128xf32>
    %106 = arith.addf %105, %104 : vector<8x128xf32>
    %107 = arith.divf %105, %106 : vector<8x128xf32>
    %108 = vector.extract_strided_slice %97 {offsets = [0, 128], sizes = [8, 128], strides = [1, 1]} : vector<8x384xf32> to vector<8x128xf32>
    %109 = vector.extract_strided_slice %99 {offsets = [0, 128], sizes = [8, 128], strides = [1, 1]} : vector<8x384xf32> to vector<8x128xf32>
    %110 = arith.addf %108, %109 : vector<8x128xf32>
    %111 = arith.negf %110 : vector<8x128xf32>
    %112 = math.exp %111 : vector<8x128xf32>
    %cst_41 = arith.constant 1.000000e+00 : f32
    %113 = vector.broadcast %cst_41 : f32 to vector<8x128xf32>
    %114 = arith.addf %113, %112 : vector<8x128xf32>
    %115 = arith.divf %113, %114 : vector<8x128xf32>
    %116 = vector.extract_strided_slice %97 {offsets = [0, 256], sizes = [8, 128], strides = [1, 1]} : vector<8x384xf32> to vector<8x128xf32>
    %117 = vector.extract_strided_slice %99 {offsets = [0, 256], sizes = [8, 128], strides = [1, 1]} : vector<8x384xf32> to vector<8x128xf32>
    %118 = arith.addf %117, %16 : vector<8x128xf32>
    %119 = arith.mulf %107, %118 : vector<8x128xf32>
    %120 = arith.addf %116, %119 : vector<8x128xf32>
    %121 = math.tanh %120 : vector<8x128xf32>
    %cst_42 = arith.constant 1.000000e+00 : f32
    %122 = vector.broadcast %cst_42 : f32 to vector<8x128xf32>
    %123 = arith.subf %122, %115 : vector<8x128xf32>
    %124 = arith.mulf %123, %121 : vector<8x128xf32>
    %125 = arith.mulf %115, %53 : vector<8x128xf32>
    %126 = arith.addf %124, %125 : vector<8x128xf32>
    %127 = arith.index_cast %c1_i32 : i32 to index
    %c0_43 = arith.constant 0 : index
    %c0_44 = arith.constant 0 : index
    %128 = vector.load %arg20[%127, %c0_43, %c0_44] : memref<8x8x128xf32, #tpu.memory_space<vmem>>, vector<1x8x128xf32>
    %129 = vector.shape_cast %128 : vector<1x8x128xf32> to vector<8x128xf32>
    %130 = vector.shape_cast %126 : vector<8x128xf32> to vector<1x8x128xf32>
    tpu.vector_store %arg20[%127, %c0_43, %c0_44], %130 {strides = array<i32>} : memref<8x8x128xf32, #tpu.memory_space<vmem>>, vector<1x8x128xf32>,
    %131 = arith.index_cast %94 : i32 to index
    %c0_45 = arith.constant 0 : index
    %c0_46 = arith.constant 0 : index
    %132 = vector.load %arg19[%131, %c0_45, %c0_46] : memref<8x8x384xf32, #tpu.memory_space<vmem>>, vector<1x8x384xf32>
    %133 = vector.shape_cast %132 : vector<1x8x384xf32> to vector<8x384xf32>
    %134 = arith.truncf %89 : vector<8x128xf32> to vector<8x128xbf16>
    %cst_47 = arith.constant dense<0.000000e+00> : vector<8x384xf32>
    %135 = tpu.matmul %134, %13, %cst_47 {dimension_numbers = #tpu.dot_dimension_numbers<[1], [0], [0], [1], [0, 0, 1, 1], [], []>} : vector<8x128xbf16>, vector<128x384xbf16>, vector<8x384xf32> -> vector<8x384xf32>
    %136 = vector.extract_strided_slice %133 {offsets = [0, 0], sizes = [8, 128], strides = [1, 1]} : vector<8x384xf32> to vector<8x128xf32>
    %137 = vector.extract_strided_slice %135 {offsets = [0, 0], sizes = [8, 128], strides = [1, 1]} : vector<8x384xf32> to vector<8x128xf32>
    %138 = arith.addf %136, %137 : vector<8x128xf32>
    %139 = arith.negf %138 : vector<8x128xf32>
    %140 = math.exp %139 : vector<8x128xf32>
    %cst_48 = arith.constant 1.000000e+00 : f32
    %141 = vector.broadcast %cst_48 : f32 to vector<8x128xf32>
    %142 = arith.addf %141, %140 : vector<8x128xf32>
    %143 = arith.divf %141, %142 : vector<8x128xf32>
    %144 = vector.extract_strided_slice %133 {offsets = [0, 128], sizes = [8, 128], strides = [1, 1]} : vector<8x384xf32> to vector<8x128xf32>
    %145 = vector.extract_strided_slice %135 {offsets = [0, 128], sizes = [8, 128], strides = [1, 1]} : vector<8x384xf32> to vector<8x128xf32>
    %146 = arith.addf %144, %145 : vector<8x128xf32>
    %147 = arith.negf %146 : vector<8x128xf32>
    %148 = math.exp %147 : vector<8x128xf32>
    %cst_49 = arith.constant 1.000000e+00 : f32
    %149 = vector.broadcast %cst_49 : f32 to vector<8x128xf32>
    %150 = arith.addf %149, %148 : vector<8x128xf32>
    %151 = arith.divf %149, %150 : vector<8x128xf32>
    %152 = vector.extract_strided_slice %133 {offsets = [0, 256], sizes = [8, 128], strides = [1, 1]} : vector<8x384xf32> to vector<8x128xf32>
    %153 = vector.extract_strided_slice %135 {offsets = [0, 256], sizes = [8, 128], strides = [1, 1]} : vector<8x384xf32> to vector<8x128xf32>
    %154 = arith.addf %153, %19 : vector<8x128xf32>
    %155 = arith.mulf %143, %154 : vector<8x128xf32>
    %156 = arith.addf %152, %155 : vector<8x128xf32>
    %157 = math.tanh %156 : vector<8x128xf32>
    %cst_50 = arith.constant 1.000000e+00 : f32
    %158 = vector.broadcast %cst_50 : f32 to vector<8x128xf32>
    %159 = arith.subf %158, %151 : vector<8x128xf32>
    %160 = arith.mulf %159, %157 : vector<8x128xf32>
    %161 = arith.mulf %151, %89 : vector<8x128xf32>
    %162 = arith.addf %160, %161 : vector<8x128xf32>
    %163 = arith.index_cast %94 : i32 to index
    %c0_51 = arith.constant 0 : index
    %c0_52 = arith.constant 0 : index
    %164 = vector.load %arg21[%163, %c0_51, %c0_52] : memref<8x8x128xf32, #tpu.memory_space<vmem>>, vector<1x8x128xf32>
    %165 = vector.shape_cast %164 : vector<1x8x128xf32> to vector<8x128xf32>
    %166 = vector.shape_cast %162 : vector<8x128xf32> to vector<1x8x128xf32>
    tpu.vector_store %arg21[%163, %c0_51, %c0_52], %166 {strides = array<i32>} : memref<8x8x128xf32, #tpu.memory_space<vmem>>, vector<1x8x128xf32>,
    %c2_i32 = arith.constant 2 : i32
    %c7_i32_53 = arith.constant 7 : i32
    %167 = arith.subi %c7_i32_53, %c2_i32 : i32
    %168 = arith.index_cast %c2_i32 : i32 to index
    %c0_54 = arith.constant 0 : index
    %c0_55 = arith.constant 0 : index
    %169 = vector.load %arg18[%168, %c0_54, %c0_55] : memref<8x8x384xf32, #tpu.memory_space<vmem>>, vector<1x8x384xf32>
    %170 = vector.shape_cast %169 : vector<1x8x384xf32> to vector<8x384xf32>
    %171 = arith.truncf %126 : vector<8x128xf32> to vector<8x128xbf16>
    %cst_56 = arith.constant dense<0.000000e+00> : vector<8x384xf32>
    %172 = tpu.matmul %171, %12, %cst_56 {dimension_numbers = #tpu.dot_dimension_numbers<[1], [0], [0], [1], [0, 0, 1, 1], [], []>} : vector<8x128xbf16>, vector<128x384xbf16>, vector<8x384xf32> -> vector<8x384xf32>
    %173 = vector.extract_strided_slice %170 {offsets = [0, 0], sizes = [8, 128], strides = [1, 1]} : vector<8x384xf32> to vector<8x128xf32>
    %174 = vector.extract_strided_slice %172 {offsets = [0, 0], sizes = [8, 128], strides = [1, 1]} : vector<8x384xf32> to vector<8x128xf32>
    %175 = arith.addf %173, %174 : vector<8x128xf32>
    %176 = arith.negf %175 : vector<8x128xf32>
    %177 = math.exp %176 : vector<8x128xf32>
    %cst_57 = arith.constant 1.000000e+00 : f32
    %178 = vector.broadcast %cst_57 : f32 to vector<8x128xf32>
    %179 = arith.addf %178, %177 : vector<8x128xf32>
    %180 = arith.divf %178, %179 : vector<8x128xf32>
    %181 = vector.extract_strided_slice %170 {offsets = [0, 128], sizes = [8, 128], strides = [1, 1]} : vector<8x384xf32> to vector<8x128xf32>
    %182 = vector.extract_strided_slice %172 {offsets = [0, 128], sizes = [8, 128], strides = [1, 1]} : vector<8x384xf32> to vector<8x128xf32>
    %183 = arith.addf %181, %182 : vector<8x128xf32>
    %184 = arith.negf %183 : vector<8x128xf32>
    %185 = math.exp %184 : vector<8x128xf32>
    %cst_58 = arith.constant 1.000000e+00 : f32
    %186 = vector.broadcast %cst_58 : f32 to vector<8x128xf32>
    %187 = arith.addf %186, %185 : vector<8x128xf32>
    %188 = arith.divf %186, %187 : vector<8x128xf32>
    %189 = vector.extract_strided_slice %170 {offsets = [0, 256], sizes = [8, 128], strides = [1, 1]} : vector<8x384xf32> to vector<8x128xf32>
    %190 = vector.extract_strided_slice %172 {offsets = [0, 256], sizes = [8, 128], strides = [1, 1]} : vector<8x384xf32> to vector<8x128xf32>
    %191 = arith.addf %190, %16 : vector<8x128xf32>
    %192 = arith.mulf %180, %191 : vector<8x128xf32>
    %193 = arith.addf %189, %192 : vector<8x128xf32>
    %194 = math.tanh %193 : vector<8x128xf32>
    %cst_59 = arith.constant 1.000000e+00 : f32
    %195 = vector.broadcast %cst_59 : f32 to vector<8x128xf32>
    %196 = arith.subf %195, %188 : vector<8x128xf32>
    %197 = arith.mulf %196, %194 : vector<8x128xf32>
    %198 = arith.mulf %188, %126 : vector<8x128xf32>
    %199 = arith.addf %197, %198 : vector<8x128xf32>
    %200 = arith.index_cast %c2_i32 : i32 to index
    %c0_60 = arith.constant 0 : index
    %c0_61 = arith.constant 0 : index
    %201 = vector.load %arg20[%200, %c0_60, %c0_61] : memref<8x8x128xf32, #tpu.memory_space<vmem>>, vector<1x8x128xf32>
    %202 = vector.shape_cast %201 : vector<1x8x128xf32> to vector<8x128xf32>
    %203 = vector.shape_cast %199 : vector<8x128xf32> to vector<1x8x128xf32>
    tpu.vector_store %arg20[%200, %c0_60, %c0_61], %203 {strides = array<i32>} : memref<8x8x128xf32, #tpu.memory_space<vmem>>, vector<1x8x128xf32>,
    %204 = arith.index_cast %167 : i32 to index
    %c0_62 = arith.constant 0 : index
    %c0_63 = arith.constant 0 : index
    %205 = vector.load %arg19[%204, %c0_62, %c0_63] : memref<8x8x384xf32, #tpu.memory_space<vmem>>, vector<1x8x384xf32>
    %206 = vector.shape_cast %205 : vector<1x8x384xf32> to vector<8x384xf32>
    %207 = arith.truncf %162 : vector<8x128xf32> to vector<8x128xbf16>
    %cst_64 = arith.constant dense<0.000000e+00> : vector<8x384xf32>
    %208 = tpu.matmul %207, %13, %cst_64 {dimension_numbers = #tpu.dot_dimension_numbers<[1], [0], [0], [1], [0, 0, 1, 1], [], []>} : vector<8x128xbf16>, vector<128x384xbf16>, vector<8x384xf32> -> vector<8x384xf32>
    %209 = vector.extract_strided_slice %206 {offsets = [0, 0], sizes = [8, 128], strides = [1, 1]} : vector<8x384xf32> to vector<8x128xf32>
    %210 = vector.extract_strided_slice %208 {offsets = [0, 0], sizes = [8, 128], strides = [1, 1]} : vector<8x384xf32> to vector<8x128xf32>
    %211 = arith.addf %209, %210 : vector<8x128xf32>
    %212 = arith.negf %211 : vector<8x128xf32>
    %213 = math.exp %212 : vector<8x128xf32>
    %cst_65 = arith.constant 1.000000e+00 : f32
    %214 = vector.broadcast %cst_65 : f32 to vector<8x128xf32>
    %215 = arith.addf %214, %213 : vector<8x128xf32>
    %216 = arith.divf %214, %215 : vector<8x128xf32>
    %217 = vector.extract_strided_slice %206 {offsets = [0, 128], sizes = [8, 128], strides = [1, 1]} : vector<8x384xf32> to vector<8x128xf32>
    %218 = vector.extract_strided_slice %208 {offsets = [0, 128], sizes = [8, 128], strides = [1, 1]} : vector<8x384xf32> to vector<8x128xf32>
    %219 = arith.addf %217, %218 : vector<8x128xf32>
    %220 = arith.negf %219 : vector<8x128xf32>
    %221 = math.exp %220 : vector<8x128xf32>
    %cst_66 = arith.constant 1.000000e+00 : f32
    %222 = vector.broadcast %cst_66 : f32 to vector<8x128xf32>
    %223 = arith.addf %222, %221 : vector<8x128xf32>
    %224 = arith.divf %222, %223 : vector<8x128xf32>
    %225 = vector.extract_strided_slice %206 {offsets = [0, 256], sizes = [8, 128], strides = [1, 1]} : vector<8x384xf32> to vector<8x128xf32>
    %226 = vector.extract_strided_slice %208 {offsets = [0, 256], sizes = [8, 128], strides = [1, 1]} : vector<8x384xf32> to vector<8x128xf32>
    %227 = arith.addf %226, %19 : vector<8x128xf32>
    %228 = arith.mulf %216, %227 : vector<8x128xf32>
    %229 = arith.addf %225, %228 : vector<8x128xf32>
    %230 = math.tanh %229 : vector<8x128xf32>
    %cst_67 = arith.constant 1.000000e+00 : f32
    %231 = vector.broadcast %cst_67 : f32 to vector<8x128xf32>
    %232 = arith.subf %231, %224 : vector<8x128xf32>
    %233 = arith.mulf %232, %230 : vector<8x128xf32>
    %234 = arith.mulf %224, %162 : vector<8x128xf32>
    %235 = arith.addf %233, %234 : vector<8x128xf32>
    %236 = arith.index_cast %167 : i32 to index
    %c0_68 = arith.constant 0 : index
    %c0_69 = arith.constant 0 : index
    %237 = vector.load %arg21[%236, %c0_68, %c0_69] : memref<8x8x128xf32, #tpu.memory_space<vmem>>, vector<1x8x128xf32>
    %238 = vector.shape_cast %237 : vector<1x8x128xf32> to vector<8x128xf32>
    %239 = vector.shape_cast %235 : vector<8x128xf32> to vector<1x8x128xf32>
    tpu.vector_store %arg21[%236, %c0_68, %c0_69], %239 {strides = array<i32>} : memref<8x8x128xf32, #tpu.memory_space<vmem>>, vector<1x8x128xf32>,
    %c3_i32 = arith.constant 3 : i32
    %c7_i32_70 = arith.constant 7 : i32
    %240 = arith.subi %c7_i32_70, %c3_i32 : i32
    %241 = arith.index_cast %c3_i32 : i32 to index
    %c0_71 = arith.constant 0 : index
    %c0_72 = arith.constant 0 : index
    %242 = vector.load %arg18[%241, %c0_71, %c0_72] : memref<8x8x384xf32, #tpu.memory_space<vmem>>, vector<1x8x384xf32>
    %243 = vector.shape_cast %242 : vector<1x8x384xf32> to vector<8x384xf32>
    %244 = arith.truncf %199 : vector<8x128xf32> to vector<8x128xbf16>
    %cst_73 = arith.constant dense<0.000000e+00> : vector<8x384xf32>
    %245 = tpu.matmul %244, %12, %cst_73 {dimension_numbers = #tpu.dot_dimension_numbers<[1], [0], [0], [1], [0, 0, 1, 1], [], []>} : vector<8x128xbf16>, vector<128x384xbf16>, vector<8x384xf32> -> vector<8x384xf32>
    %246 = vector.extract_strided_slice %243 {offsets = [0, 0], sizes = [8, 128], strides = [1, 1]} : vector<8x384xf32> to vector<8x128xf32>
    %247 = vector.extract_strided_slice %245 {offsets = [0, 0], sizes = [8, 128], strides = [1, 1]} : vector<8x384xf32> to vector<8x128xf32>
    %248 = arith.addf %246, %247 : vector<8x128xf32>
    %249 = arith.negf %248 : vector<8x128xf32>
    %250 = math.exp %249 : vector<8x128xf32>
    %cst_74 = arith.constant 1.000000e+00 : f32
    %251 = vector.broadcast %cst_74 : f32 to vector<8x128xf32>
    %252 = arith.addf %251, %250 : vector<8x128xf32>
    %253 = arith.divf %251, %252 : vector<8x128xf32>
    %254 = vector.extract_strided_slice %243 {offsets = [0, 128], sizes = [8, 128], strides = [1, 1]} : vector<8x384xf32> to vector<8x128xf32>
    %255 = vector.extract_strided_slice %245 {offsets = [0, 128], sizes = [8, 128], strides = [1, 1]} : vector<8x384xf32> to vector<8x128xf32>
    %256 = arith.addf %254, %255 : vector<8x128xf32>
    %257 = arith.negf %256 : vector<8x128xf32>
    %258 = math.exp %257 : vector<8x128xf32>
    %cst_75 = arith.constant 1.000000e+00 : f32
    %259 = vector.broadcast %cst_75 : f32 to vector<8x128xf32>
    %260 = arith.addf %259, %258 : vector<8x128xf32>
    %261 = arith.divf %259, %260 : vector<8x128xf32>
    %262 = vector.extract_strided_slice %243 {offsets = [0, 256], sizes = [8, 128], strides = [1, 1]} : vector<8x384xf32> to vector<8x128xf32>
    %263 = vector.extract_strided_slice %245 {offsets = [0, 256], sizes = [8, 128], strides = [1, 1]} : vector<8x384xf32> to vector<8x128xf32>
    %264 = arith.addf %263, %16 : vector<8x128xf32>
    %265 = arith.mulf %253, %264 : vector<8x128xf32>
    %266 = arith.addf %262, %265 : vector<8x128xf32>
    %267 = math.tanh %266 : vector<8x128xf32>
    %cst_76 = arith.constant 1.000000e+00 : f32
    %268 = vector.broadcast %cst_76 : f32 to vector<8x128xf32>
    %269 = arith.subf %268, %261 : vector<8x128xf32>
    %270 = arith.mulf %269, %267 : vector<8x128xf32>
    %271 = arith.mulf %261, %199 : vector<8x128xf32>
    %272 = arith.addf %270, %271 : vector<8x128xf32>
    %273 = arith.index_cast %c3_i32 : i32 to index
    %c0_77 = arith.constant 0 : index
    %c0_78 = arith.constant 0 : index
    %274 = vector.load %arg20[%273, %c0_77, %c0_78] : memref<8x8x128xf32, #tpu.memory_space<vmem>>, vector<1x8x128xf32>
    %275 = vector.shape_cast %274 : vector<1x8x128xf32> to vector<8x128xf32>
    %276 = vector.shape_cast %272 : vector<8x128xf32> to vector<1x8x128xf32>
    tpu.vector_store %arg20[%273, %c0_77, %c0_78], %276 {strides = array<i32>} : memref<8x8x128xf32, #tpu.memory_space<vmem>>, vector<1x8x128xf32>,
    %277 = arith.index_cast %240 : i32 to index
    %c0_79 = arith.constant 0 : index
    %c0_80 = arith.constant 0 : index
    %278 = vector.load %arg19[%277, %c0_79, %c0_80] : memref<8x8x384xf32, #tpu.memory_space<vmem>>, vector<1x8x384xf32>
    %279 = vector.shape_cast %278 : vector<1x8x384xf32> to vector<8x384xf32>
    %280 = arith.truncf %235 : vector<8x128xf32> to vector<8x128xbf16>
    %cst_81 = arith.constant dense<0.000000e+00> : vector<8x384xf32>
    %281 = tpu.matmul %280, %13, %cst_81 {dimension_numbers = #tpu.dot_dimension_numbers<[1], [0], [0], [1], [0, 0, 1, 1], [], []>} : vector<8x128xbf16>, vector<128x384xbf16>, vector<8x384xf32> -> vector<8x384xf32>
    %282 = vector.extract_strided_slice %279 {offsets = [0, 0], sizes = [8, 128], strides = [1, 1]} : vector<8x384xf32> to vector<8x128xf32>
    %283 = vector.extract_strided_slice %281 {offsets = [0, 0], sizes = [8, 128], strides = [1, 1]} : vector<8x384xf32> to vector<8x128xf32>
    %284 = arith.addf %282, %283 : vector<8x128xf32>
    %285 = arith.negf %284 : vector<8x128xf32>
    %286 = math.exp %285 : vector<8x128xf32>
    %cst_82 = arith.constant 1.000000e+00 : f32
    %287 = vector.broadcast %cst_82 : f32 to vector<8x128xf32>
    %288 = arith.addf %287, %286 : vector<8x128xf32>
    %289 = arith.divf %287, %288 : vector<8x128xf32>
    %290 = vector.extract_strided_slice %279 {offsets = [0, 128], sizes = [8, 128], strides = [1, 1]} : vector<8x384xf32> to vector<8x128xf32>
    %291 = vector.extract_strided_slice %281 {offsets = [0, 128], sizes = [8, 128], strides = [1, 1]} : vector<8x384xf32> to vector<8x128xf32>
    %292 = arith.addf %290, %291 : vector<8x128xf32>
    %293 = arith.negf %292 : vector<8x128xf32>
    %294 = math.exp %293 : vector<8x128xf32>
    %cst_83 = arith.constant 1.000000e+00 : f32
    %295 = vector.broadcast %cst_83 : f32 to vector<8x128xf32>
    %296 = arith.addf %295, %294 : vector<8x128xf32>
    %297 = arith.divf %295, %296 : vector<8x128xf32>
    %298 = vector.extract_strided_slice %279 {offsets = [0, 256], sizes = [8, 128], strides = [1, 1]} : vector<8x384xf32> to vector<8x128xf32>
    %299 = vector.extract_strided_slice %281 {offsets = [0, 256], sizes = [8, 128], strides = [1, 1]} : vector<8x384xf32> to vector<8x128xf32>
    %300 = arith.addf %299, %19 : vector<8x128xf32>
    %301 = arith.mulf %289, %300 : vector<8x128xf32>
    %302 = arith.addf %298, %301 : vector<8x128xf32>
    %303 = math.tanh %302 : vector<8x128xf32>
    %cst_84 = arith.constant 1.000000e+00 : f32
    %304 = vector.broadcast %cst_84 : f32 to vector<8x128xf32>
    %305 = arith.subf %304, %297 : vector<8x128xf32>
    %306 = arith.mulf %305, %303 : vector<8x128xf32>
    %307 = arith.mulf %297, %235 : vector<8x128xf32>
    %308 = arith.addf %306, %307 : vector<8x128xf32>
    %309 = arith.index_cast %240 : i32 to index
    %c0_85 = arith.constant 0 : index
    %c0_86 = arith.constant 0 : index
    %310 = vector.load %arg21[%309, %c0_85, %c0_86] : memref<8x8x128xf32, #tpu.memory_space<vmem>>, vector<1x8x128xf32>
    %311 = vector.shape_cast %310 : vector<1x8x128xf32> to vector<8x128xf32>
    %312 = vector.shape_cast %308 : vector<8x128xf32> to vector<1x8x128xf32>
    tpu.vector_store %arg21[%309, %c0_85, %c0_86], %312 {strides = array<i32>} : memref<8x8x128xf32, #tpu.memory_space<vmem>>, vector<1x8x128xf32>,
    %c4_i32 = arith.constant 4 : i32
    %c7_i32_87 = arith.constant 7 : i32
    %313 = arith.subi %c7_i32_87, %c4_i32 : i32
    %314 = arith.index_cast %c4_i32 : i32 to index
    %c0_88 = arith.constant 0 : index
    %c0_89 = arith.constant 0 : index
    %315 = vector.load %arg18[%314, %c0_88, %c0_89] : memref<8x8x384xf32, #tpu.memory_space<vmem>>, vector<1x8x384xf32>
    %316 = vector.shape_cast %315 : vector<1x8x384xf32> to vector<8x384xf32>
    %317 = arith.truncf %272 : vector<8x128xf32> to vector<8x128xbf16>
    %cst_90 = arith.constant dense<0.000000e+00> : vector<8x384xf32>
    %318 = tpu.matmul %317, %12, %cst_90 {dimension_numbers = #tpu.dot_dimension_numbers<[1], [0], [0], [1], [0, 0, 1, 1], [], []>} : vector<8x128xbf16>, vector<128x384xbf16>, vector<8x384xf32> -> vector<8x384xf32>
    %319 = vector.extract_strided_slice %316 {offsets = [0, 0], sizes = [8, 128], strides = [1, 1]} : vector<8x384xf32> to vector<8x128xf32>
    %320 = vector.extract_strided_slice %318 {offsets = [0, 0], sizes = [8, 128], strides = [1, 1]} : vector<8x384xf32> to vector<8x128xf32>
    %321 = arith.addf %319, %320 : vector<8x128xf32>
    %322 = arith.negf %321 : vector<8x128xf32>
    %323 = math.exp %322 : vector<8x128xf32>
    %cst_91 = arith.constant 1.000000e+00 : f32
    %324 = vector.broadcast %cst_91 : f32 to vector<8x128xf32>
    %325 = arith.addf %324, %323 : vector<8x128xf32>
    %326 = arith.divf %324, %325 : vector<8x128xf32>
    %327 = vector.extract_strided_slice %316 {offsets = [0, 128], sizes = [8, 128], strides = [1, 1]} : vector<8x384xf32> to vector<8x128xf32>
    %328 = vector.extract_strided_slice %318 {offsets = [0, 128], sizes = [8, 128], strides = [1, 1]} : vector<8x384xf32> to vector<8x128xf32>
    %329 = arith.addf %327, %328 : vector<8x128xf32>
    %330 = arith.negf %329 : vector<8x128xf32>
    %331 = math.exp %330 : vector<8x128xf32>
    %cst_92 = arith.constant 1.000000e+00 : f32
    %332 = vector.broadcast %cst_92 : f32 to vector<8x128xf32>
    %333 = arith.addf %332, %331 : vector<8x128xf32>
    %334 = arith.divf %332, %333 : vector<8x128xf32>
    %335 = vector.extract_strided_slice %316 {offsets = [0, 256], sizes = [8, 128], strides = [1, 1]} : vector<8x384xf32> to vector<8x128xf32>
    %336 = vector.extract_strided_slice %318 {offsets = [0, 256], sizes = [8, 128], strides = [1, 1]} : vector<8x384xf32> to vector<8x128xf32>
    %337 = arith.addf %336, %16 : vector<8x128xf32>
    %338 = arith.mulf %326, %337 : vector<8x128xf32>
    %339 = arith.addf %335, %338 : vector<8x128xf32>
    %340 = math.tanh %339 : vector<8x128xf32>
    %cst_93 = arith.constant 1.000000e+00 : f32
    %341 = vector.broadcast %cst_93 : f32 to vector<8x128xf32>
    %342 = arith.subf %341, %334 : vector<8x128xf32>
    %343 = arith.mulf %342, %340 : vector<8x128xf32>
    %344 = arith.mulf %334, %272 : vector<8x128xf32>
    %345 = arith.addf %343, %344 : vector<8x128xf32>
    %346 = arith.index_cast %c4_i32 : i32 to index
    %c0_94 = arith.constant 0 : index
    %c0_95 = arith.constant 0 : index
    %347 = vector.load %arg20[%346, %c0_94, %c0_95] : memref<8x8x128xf32, #tpu.memory_space<vmem>>, vector<1x8x128xf32>
    %348 = vector.shape_cast %347 : vector<1x8x128xf32> to vector<8x128xf32>
    %349 = vector.shape_cast %345 : vector<8x128xf32> to vector<1x8x128xf32>
    tpu.vector_store %arg20[%346, %c0_94, %c0_95], %349 {strides = array<i32>} : memref<8x8x128xf32, #tpu.memory_space<vmem>>, vector<1x8x128xf32>,
    %350 = arith.index_cast %313 : i32 to index
    %c0_96 = arith.constant 0 : index
    %c0_97 = arith.constant 0 : index
    %351 = vector.load %arg19[%350, %c0_96, %c0_97] : memref<8x8x384xf32, #tpu.memory_space<vmem>>, vector<1x8x384xf32>
    %352 = vector.shape_cast %351 : vector<1x8x384xf32> to vector<8x384xf32>
    %353 = arith.truncf %308 : vector<8x128xf32> to vector<8x128xbf16>
    %cst_98 = arith.constant dense<0.000000e+00> : vector<8x384xf32>
    %354 = tpu.matmul %353, %13, %cst_98 {dimension_numbers = #tpu.dot_dimension_numbers<[1], [0], [0], [1], [0, 0, 1, 1], [], []>} : vector<8x128xbf16>, vector<128x384xbf16>, vector<8x384xf32> -> vector<8x384xf32>
    %355 = vector.extract_strided_slice %352 {offsets = [0, 0], sizes = [8, 128], strides = [1, 1]} : vector<8x384xf32> to vector<8x128xf32>
    %356 = vector.extract_strided_slice %354 {offsets = [0, 0], sizes = [8, 128], strides = [1, 1]} : vector<8x384xf32> to vector<8x128xf32>
    %357 = arith.addf %355, %356 : vector<8x128xf32>
    %358 = arith.negf %357 : vector<8x128xf32>
    %359 = math.exp %358 : vector<8x128xf32>
    %cst_99 = arith.constant 1.000000e+00 : f32
    %360 = vector.broadcast %cst_99 : f32 to vector<8x128xf32>
    %361 = arith.addf %360, %359 : vector<8x128xf32>
    %362 = arith.divf %360, %361 : vector<8x128xf32>
    %363 = vector.extract_strided_slice %352 {offsets = [0, 128], sizes = [8, 128], strides = [1, 1]} : vector<8x384xf32> to vector<8x128xf32>
    %364 = vector.extract_strided_slice %354 {offsets = [0, 128], sizes = [8, 128], strides = [1, 1]} : vector<8x384xf32> to vector<8x128xf32>
    %365 = arith.addf %363, %364 : vector<8x128xf32>
    %366 = arith.negf %365 : vector<8x128xf32>
    %367 = math.exp %366 : vector<8x128xf32>
    %cst_100 = arith.constant 1.000000e+00 : f32
    %368 = vector.broadcast %cst_100 : f32 to vector<8x128xf32>
    %369 = arith.addf %368, %367 : vector<8x128xf32>
    %370 = arith.divf %368, %369 : vector<8x128xf32>
    %371 = vector.extract_strided_slice %352 {offsets = [0, 256], sizes = [8, 128], strides = [1, 1]} : vector<8x384xf32> to vector<8x128xf32>
    %372 = vector.extract_strided_slice %354 {offsets = [0, 256], sizes = [8, 128], strides = [1, 1]} : vector<8x384xf32> to vector<8x128xf32>
    %373 = arith.addf %372, %19 : vector<8x128xf32>
    %374 = arith.mulf %362, %373 : vector<8x128xf32>
    %375 = arith.addf %371, %374 : vector<8x128xf32>
    %376 = math.tanh %375 : vector<8x128xf32>
    %cst_101 = arith.constant 1.000000e+00 : f32
    %377 = vector.broadcast %cst_101 : f32 to vector<8x128xf32>
    %378 = arith.subf %377, %370 : vector<8x128xf32>
    %379 = arith.mulf %378, %376 : vector<8x128xf32>
    %380 = arith.mulf %370, %308 : vector<8x128xf32>
    %381 = arith.addf %379, %380 : vector<8x128xf32>
    %382 = arith.index_cast %313 : i32 to index
    %c0_102 = arith.constant 0 : index
    %c0_103 = arith.constant 0 : index
    %383 = vector.load %arg21[%382, %c0_102, %c0_103] : memref<8x8x128xf32, #tpu.memory_space<vmem>>, vector<1x8x128xf32>
    %384 = vector.shape_cast %383 : vector<1x8x128xf32> to vector<8x128xf32>
    %385 = vector.shape_cast %381 : vector<8x128xf32> to vector<1x8x128xf32>
    tpu.vector_store %arg21[%382, %c0_102, %c0_103], %385 {strides = array<i32>} : memref<8x8x128xf32, #tpu.memory_space<vmem>>, vector<1x8x128xf32>,
    %c5_i32 = arith.constant 5 : i32
    %c7_i32_104 = arith.constant 7 : i32
    %386 = arith.subi %c7_i32_104, %c5_i32 : i32
    %387 = arith.index_cast %c5_i32 : i32 to index
    %c0_105 = arith.constant 0 : index
    %c0_106 = arith.constant 0 : index
    %388 = vector.load %arg18[%387, %c0_105, %c0_106] : memref<8x8x384xf32, #tpu.memory_space<vmem>>, vector<1x8x384xf32>
    %389 = vector.shape_cast %388 : vector<1x8x384xf32> to vector<8x384xf32>
    %390 = arith.truncf %345 : vector<8x128xf32> to vector<8x128xbf16>
    %cst_107 = arith.constant dense<0.000000e+00> : vector<8x384xf32>
    %391 = tpu.matmul %390, %12, %cst_107 {dimension_numbers = #tpu.dot_dimension_numbers<[1], [0], [0], [1], [0, 0, 1, 1], [], []>} : vector<8x128xbf16>, vector<128x384xbf16>, vector<8x384xf32> -> vector<8x384xf32>
    %392 = vector.extract_strided_slice %389 {offsets = [0, 0], sizes = [8, 128], strides = [1, 1]} : vector<8x384xf32> to vector<8x128xf32>
    %393 = vector.extract_strided_slice %391 {offsets = [0, 0], sizes = [8, 128], strides = [1, 1]} : vector<8x384xf32> to vector<8x128xf32>
    %394 = arith.addf %392, %393 : vector<8x128xf32>
    %395 = arith.negf %394 : vector<8x128xf32>
    %396 = math.exp %395 : vector<8x128xf32>
    %cst_108 = arith.constant 1.000000e+00 : f32
    %397 = vector.broadcast %cst_108 : f32 to vector<8x128xf32>
    %398 = arith.addf %397, %396 : vector<8x128xf32>
    %399 = arith.divf %397, %398 : vector<8x128xf32>
    %400 = vector.extract_strided_slice %389 {offsets = [0, 128], sizes = [8, 128], strides = [1, 1]} : vector<8x384xf32> to vector<8x128xf32>
    %401 = vector.extract_strided_slice %391 {offsets = [0, 128], sizes = [8, 128], strides = [1, 1]} : vector<8x384xf32> to vector<8x128xf32>
    %402 = arith.addf %400, %401 : vector<8x128xf32>
    %403 = arith.negf %402 : vector<8x128xf32>
    %404 = math.exp %403 : vector<8x128xf32>
    %cst_109 = arith.constant 1.000000e+00 : f32
    %405 = vector.broadcast %cst_109 : f32 to vector<8x128xf32>
    %406 = arith.addf %405, %404 : vector<8x128xf32>
    %407 = arith.divf %405, %406 : vector<8x128xf32>
    %408 = vector.extract_strided_slice %389 {offsets = [0, 256], sizes = [8, 128], strides = [1, 1]} : vector<8x384xf32> to vector<8x128xf32>
    %409 = vector.extract_strided_slice %391 {offsets = [0, 256], sizes = [8, 128], strides = [1, 1]} : vector<8x384xf32> to vector<8x128xf32>
    %410 = arith.addf %409, %16 : vector<8x128xf32>
    %411 = arith.mulf %399, %410 : vector<8x128xf32>
    %412 = arith.addf %408, %411 : vector<8x128xf32>
    %413 = math.tanh %412 : vector<8x128xf32>
    %cst_110 = arith.constant 1.000000e+00 : f32
    %414 = vector.broadcast %cst_110 : f32 to vector<8x128xf32>
    %415 = arith.subf %414, %407 : vector<8x128xf32>
    %416 = arith.mulf %415, %413 : vector<8x128xf32>
    %417 = arith.mulf %407, %345 : vector<8x128xf32>
    %418 = arith.addf %416, %417 : vector<8x128xf32>
    %419 = arith.index_cast %c5_i32 : i32 to index
    %c0_111 = arith.constant 0 : index
    %c0_112 = arith.constant 0 : index
    %420 = vector.load %arg20[%419, %c0_111, %c0_112] : memref<8x8x128xf32, #tpu.memory_space<vmem>>, vector<1x8x128xf32>
    %421 = vector.shape_cast %420 : vector<1x8x128xf32> to vector<8x128xf32>
    %422 = vector.shape_cast %418 : vector<8x128xf32> to vector<1x8x128xf32>
    tpu.vector_store %arg20[%419, %c0_111, %c0_112], %422 {strides = array<i32>} : memref<8x8x128xf32, #tpu.memory_space<vmem>>, vector<1x8x128xf32>,
    %423 = arith.index_cast %386 : i32 to index
    %c0_113 = arith.constant 0 : index
    %c0_114 = arith.constant 0 : index
    %424 = vector.load %arg19[%423, %c0_113, %c0_114] : memref<8x8x384xf32, #tpu.memory_space<vmem>>, vector<1x8x384xf32>
    %425 = vector.shape_cast %424 : vector<1x8x384xf32> to vector<8x384xf32>
    %426 = arith.truncf %381 : vector<8x128xf32> to vector<8x128xbf16>
    %cst_115 = arith.constant dense<0.000000e+00> : vector<8x384xf32>
    %427 = tpu.matmul %426, %13, %cst_115 {dimension_numbers = #tpu.dot_dimension_numbers<[1], [0], [0], [1], [0, 0, 1, 1], [], []>} : vector<8x128xbf16>, vector<128x384xbf16>, vector<8x384xf32> -> vector<8x384xf32>
    %428 = vector.extract_strided_slice %425 {offsets = [0, 0], sizes = [8, 128], strides = [1, 1]} : vector<8x384xf32> to vector<8x128xf32>
    %429 = vector.extract_strided_slice %427 {offsets = [0, 0], sizes = [8, 128], strides = [1, 1]} : vector<8x384xf32> to vector<8x128xf32>
    %430 = arith.addf %428, %429 : vector<8x128xf32>
    %431 = arith.negf %430 : vector<8x128xf32>
    %432 = math.exp %431 : vector<8x128xf32>
    %cst_116 = arith.constant 1.000000e+00 : f32
    %433 = vector.broadcast %cst_116 : f32 to vector<8x128xf32>
    %434 = arith.addf %433, %432 : vector<8x128xf32>
    %435 = arith.divf %433, %434 : vector<8x128xf32>
    %436 = vector.extract_strided_slice %425 {offsets = [0, 128], sizes = [8, 128], strides = [1, 1]} : vector<8x384xf32> to vector<8x128xf32>
    %437 = vector.extract_strided_slice %427 {offsets = [0, 128], sizes = [8, 128], strides = [1, 1]} : vector<8x384xf32> to vector<8x128xf32>
    %438 = arith.addf %436, %437 : vector<8x128xf32>
    %439 = arith.negf %438 : vector<8x128xf32>
    %440 = math.exp %439 : vector<8x128xf32>
    %cst_117 = arith.constant 1.000000e+00 : f32
    %441 = vector.broadcast %cst_117 : f32 to vector<8x128xf32>
    %442 = arith.addf %441, %440 : vector<8x128xf32>
    %443 = arith.divf %441, %442 : vector<8x128xf32>
    %444 = vector.extract_strided_slice %425 {offsets = [0, 256], sizes = [8, 128], strides = [1, 1]} : vector<8x384xf32> to vector<8x128xf32>
    %445 = vector.extract_strided_slice %427 {offsets = [0, 256], sizes = [8, 128], strides = [1, 1]} : vector<8x384xf32> to vector<8x128xf32>
    %446 = arith.addf %445, %19 : vector<8x128xf32>
    %447 = arith.mulf %435, %446 : vector<8x128xf32>
    %448 = arith.addf %444, %447 : vector<8x128xf32>
    %449 = math.tanh %448 : vector<8x128xf32>
    %cst_118 = arith.constant 1.000000e+00 : f32
    %450 = vector.broadcast %cst_118 : f32 to vector<8x128xf32>
    %451 = arith.subf %450, %443 : vector<8x128xf32>
    %452 = arith.mulf %451, %449 : vector<8x128xf32>
    %453 = arith.mulf %443, %381 : vector<8x128xf32>
    %454 = arith.addf %452, %453 : vector<8x128xf32>
    %455 = arith.index_cast %386 : i32 to index
    %c0_119 = arith.constant 0 : index
    %c0_120 = arith.constant 0 : index
    %456 = vector.load %arg21[%455, %c0_119, %c0_120] : memref<8x8x128xf32, #tpu.memory_space<vmem>>, vector<1x8x128xf32>
    %457 = vector.shape_cast %456 : vector<1x8x128xf32> to vector<8x128xf32>
    %458 = vector.shape_cast %454 : vector<8x128xf32> to vector<1x8x128xf32>
    tpu.vector_store %arg21[%455, %c0_119, %c0_120], %458 {strides = array<i32>} : memref<8x8x128xf32, #tpu.memory_space<vmem>>, vector<1x8x128xf32>,
    %c6_i32 = arith.constant 6 : i32
    %c7_i32_121 = arith.constant 7 : i32
    %459 = arith.subi %c7_i32_121, %c6_i32 : i32
    %460 = arith.index_cast %c6_i32 : i32 to index
    %c0_122 = arith.constant 0 : index
    %c0_123 = arith.constant 0 : index
    %461 = vector.load %arg18[%460, %c0_122, %c0_123] : memref<8x8x384xf32, #tpu.memory_space<vmem>>, vector<1x8x384xf32>
    %462 = vector.shape_cast %461 : vector<1x8x384xf32> to vector<8x384xf32>
    %463 = arith.truncf %418 : vector<8x128xf32> to vector<8x128xbf16>
    %cst_124 = arith.constant dense<0.000000e+00> : vector<8x384xf32>
    %464 = tpu.matmul %463, %12, %cst_124 {dimension_numbers = #tpu.dot_dimension_numbers<[1], [0], [0], [1], [0, 0, 1, 1], [], []>} : vector<8x128xbf16>, vector<128x384xbf16>, vector<8x384xf32> -> vector<8x384xf32>
    %465 = vector.extract_strided_slice %462 {offsets = [0, 0], sizes = [8, 128], strides = [1, 1]} : vector<8x384xf32> to vector<8x128xf32>
    %466 = vector.extract_strided_slice %464 {offsets = [0, 0], sizes = [8, 128], strides = [1, 1]} : vector<8x384xf32> to vector<8x128xf32>
    %467 = arith.addf %465, %466 : vector<8x128xf32>
    %468 = arith.negf %467 : vector<8x128xf32>
    %469 = math.exp %468 : vector<8x128xf32>
    %cst_125 = arith.constant 1.000000e+00 : f32
    %470 = vector.broadcast %cst_125 : f32 to vector<8x128xf32>
    %471 = arith.addf %470, %469 : vector<8x128xf32>
    %472 = arith.divf %470, %471 : vector<8x128xf32>
    %473 = vector.extract_strided_slice %462 {offsets = [0, 128], sizes = [8, 128], strides = [1, 1]} : vector<8x384xf32> to vector<8x128xf32>
    %474 = vector.extract_strided_slice %464 {offsets = [0, 128], sizes = [8, 128], strides = [1, 1]} : vector<8x384xf32> to vector<8x128xf32>
    %475 = arith.addf %473, %474 : vector<8x128xf32>
    %476 = arith.negf %475 : vector<8x128xf32>
    %477 = math.exp %476 : vector<8x128xf32>
    %cst_126 = arith.constant 1.000000e+00 : f32
    %478 = vector.broadcast %cst_126 : f32 to vector<8x128xf32>
    %479 = arith.addf %478, %477 : vector<8x128xf32>
    %480 = arith.divf %478, %479 : vector<8x128xf32>
    %481 = vector.extract_strided_slice %462 {offsets = [0, 256], sizes = [8, 128], strides = [1, 1]} : vector<8x384xf32> to vector<8x128xf32>
    %482 = vector.extract_strided_slice %464 {offsets = [0, 256], sizes = [8, 128], strides = [1, 1]} : vector<8x384xf32> to vector<8x128xf32>
    %483 = arith.addf %482, %16 : vector<8x128xf32>
    %484 = arith.mulf %472, %483 : vector<8x128xf32>
    %485 = arith.addf %481, %484 : vector<8x128xf32>
    %486 = math.tanh %485 : vector<8x128xf32>
    %cst_127 = arith.constant 1.000000e+00 : f32
    %487 = vector.broadcast %cst_127 : f32 to vector<8x128xf32>
    %488 = arith.subf %487, %480 : vector<8x128xf32>
    %489 = arith.mulf %488, %486 : vector<8x128xf32>
    %490 = arith.mulf %480, %418 : vector<8x128xf32>
    %491 = arith.addf %489, %490 : vector<8x128xf32>
    %492 = arith.index_cast %c6_i32 : i32 to index
    %c0_128 = arith.constant 0 : index
    %c0_129 = arith.constant 0 : index
    %493 = vector.load %arg20[%492, %c0_128, %c0_129] : memref<8x8x128xf32, #tpu.memory_space<vmem>>, vector<1x8x128xf32>
    %494 = vector.shape_cast %493 : vector<1x8x128xf32> to vector<8x128xf32>
    %495 = vector.shape_cast %491 : vector<8x128xf32> to vector<1x8x128xf32>
    tpu.vector_store %arg20[%492, %c0_128, %c0_129], %495 {strides = array<i32>} : memref<8x8x128xf32, #tpu.memory_space<vmem>>, vector<1x8x128xf32>,
    %496 = arith.index_cast %459 : i32 to index
    %c0_130 = arith.constant 0 : index
    %c0_131 = arith.constant 0 : index
    %497 = vector.load %arg19[%496, %c0_130, %c0_131] : memref<8x8x384xf32, #tpu.memory_space<vmem>>, vector<1x8x384xf32>
    %498 = vector.shape_cast %497 : vector<1x8x384xf32> to vector<8x384xf32>
    %499 = arith.truncf %454 : vector<8x128xf32> to vector<8x128xbf16>
    %cst_132 = arith.constant dense<0.000000e+00> : vector<8x384xf32>
    %500 = tpu.matmul %499, %13, %cst_132 {dimension_numbers = #tpu.dot_dimension_numbers<[1], [0], [0], [1], [0, 0, 1, 1], [], []>} : vector<8x128xbf16>, vector<128x384xbf16>, vector<8x384xf32> -> vector<8x384xf32>
    %501 = vector.extract_strided_slice %498 {offsets = [0, 0], sizes = [8, 128], strides = [1, 1]} : vector<8x384xf32> to vector<8x128xf32>
    %502 = vector.extract_strided_slice %500 {offsets = [0, 0], sizes = [8, 128], strides = [1, 1]} : vector<8x384xf32> to vector<8x128xf32>
    %503 = arith.addf %501, %502 : vector<8x128xf32>
    %504 = arith.negf %503 : vector<8x128xf32>
    %505 = math.exp %504 : vector<8x128xf32>
    %cst_133 = arith.constant 1.000000e+00 : f32
    %506 = vector.broadcast %cst_133 : f32 to vector<8x128xf32>
    %507 = arith.addf %506, %505 : vector<8x128xf32>
    %508 = arith.divf %506, %507 : vector<8x128xf32>
    %509 = vector.extract_strided_slice %498 {offsets = [0, 128], sizes = [8, 128], strides = [1, 1]} : vector<8x384xf32> to vector<8x128xf32>
    %510 = vector.extract_strided_slice %500 {offsets = [0, 128], sizes = [8, 128], strides = [1, 1]} : vector<8x384xf32> to vector<8x128xf32>
    %511 = arith.addf %509, %510 : vector<8x128xf32>
    %512 = arith.negf %511 : vector<8x128xf32>
    %513 = math.exp %512 : vector<8x128xf32>
    %cst_134 = arith.constant 1.000000e+00 : f32
    %514 = vector.broadcast %cst_134 : f32 to vector<8x128xf32>
    %515 = arith.addf %514, %513 : vector<8x128xf32>
    %516 = arith.divf %514, %515 : vector<8x128xf32>
    %517 = vector.extract_strided_slice %498 {offsets = [0, 256], sizes = [8, 128], strides = [1, 1]} : vector<8x384xf32> to vector<8x128xf32>
    %518 = vector.extract_strided_slice %500 {offsets = [0, 256], sizes = [8, 128], strides = [1, 1]} : vector<8x384xf32> to vector<8x128xf32>
    %519 = arith.addf %518, %19 : vector<8x128xf32>
    %520 = arith.mulf %508, %519 : vector<8x128xf32>
    %521 = arith.addf %517, %520 : vector<8x128xf32>
    %522 = math.tanh %521 : vector<8x128xf32>
    %cst_135 = arith.constant 1.000000e+00 : f32
    %523 = vector.broadcast %cst_135 : f32 to vector<8x128xf32>
    %524 = arith.subf %523, %516 : vector<8x128xf32>
    %525 = arith.mulf %524, %522 : vector<8x128xf32>
    %526 = arith.mulf %516, %454 : vector<8x128xf32>
    %527 = arith.addf %525, %526 : vector<8x128xf32>
    %528 = arith.index_cast %459 : i32 to index
    %c0_136 = arith.constant 0 : index
    %c0_137 = arith.constant 0 : index
    %529 = vector.load %arg21[%528, %c0_136, %c0_137] : memref<8x8x128xf32, #tpu.memory_space<vmem>>, vector<1x8x128xf32>
    %530 = vector.shape_cast %529 : vector<1x8x128xf32> to vector<8x128xf32>
    %531 = vector.shape_cast %527 : vector<8x128xf32> to vector<1x8x128xf32>
    tpu.vector_store %arg21[%528, %c0_136, %c0_137], %531 {strides = array<i32>} : memref<8x8x128xf32, #tpu.memory_space<vmem>>, vector<1x8x128xf32>,
    %c7_i32_138 = arith.constant 7 : i32
    %c7_i32_139 = arith.constant 7 : i32
    %532 = arith.subi %c7_i32_139, %c7_i32_138 : i32
    %533 = arith.index_cast %c7_i32_138 : i32 to index
    %c0_140 = arith.constant 0 : index
    %c0_141 = arith.constant 0 : index
    %534 = vector.load %arg18[%533, %c0_140, %c0_141] : memref<8x8x384xf32, #tpu.memory_space<vmem>>, vector<1x8x384xf32>
    %535 = vector.shape_cast %534 : vector<1x8x384xf32> to vector<8x384xf32>
    %536 = arith.truncf %491 : vector<8x128xf32> to vector<8x128xbf16>
    %cst_142 = arith.constant dense<0.000000e+00> : vector<8x384xf32>
    %537 = tpu.matmul %536, %12, %cst_142 {dimension_numbers = #tpu.dot_dimension_numbers<[1], [0], [0], [1], [0, 0, 1, 1], [], []>} : vector<8x128xbf16>, vector<128x384xbf16>, vector<8x384xf32> -> vector<8x384xf32>
    %538 = vector.extract_strided_slice %535 {offsets = [0, 0], sizes = [8, 128], strides = [1, 1]} : vector<8x384xf32> to vector<8x128xf32>
    %539 = vector.extract_strided_slice %537 {offsets = [0, 0], sizes = [8, 128], strides = [1, 1]} : vector<8x384xf32> to vector<8x128xf32>
    %540 = arith.addf %538, %539 : vector<8x128xf32>
    %541 = arith.negf %540 : vector<8x128xf32>
    %542 = math.exp %541 : vector<8x128xf32>
    %cst_143 = arith.constant 1.000000e+00 : f32
    %543 = vector.broadcast %cst_143 : f32 to vector<8x128xf32>
    %544 = arith.addf %543, %542 : vector<8x128xf32>
    %545 = arith.divf %543, %544 : vector<8x128xf32>
    %546 = vector.extract_strided_slice %535 {offsets = [0, 128], sizes = [8, 128], strides = [1, 1]} : vector<8x384xf32> to vector<8x128xf32>
    %547 = vector.extract_strided_slice %537 {offsets = [0, 128], sizes = [8, 128], strides = [1, 1]} : vector<8x384xf32> to vector<8x128xf32>
    %548 = arith.addf %546, %547 : vector<8x128xf32>
    %549 = arith.negf %548 : vector<8x128xf32>
    %550 = math.exp %549 : vector<8x128xf32>
    %cst_144 = arith.constant 1.000000e+00 : f32
    %551 = vector.broadcast %cst_144 : f32 to vector<8x128xf32>
    %552 = arith.addf %551, %550 : vector<8x128xf32>
    %553 = arith.divf %551, %552 : vector<8x128xf32>
    %554 = vector.extract_strided_slice %535 {offsets = [0, 256], sizes = [8, 128], strides = [1, 1]} : vector<8x384xf32> to vector<8x128xf32>
    %555 = vector.extract_strided_slice %537 {offsets = [0, 256], sizes = [8, 128], strides = [1, 1]} : vector<8x384xf32> to vector<8x128xf32>
    %556 = arith.addf %555, %16 : vector<8x128xf32>
    %557 = arith.mulf %545, %556 : vector<8x128xf32>
    %558 = arith.addf %554, %557 : vector<8x128xf32>
    %559 = math.tanh %558 : vector<8x128xf32>
    %cst_145 = arith.constant 1.000000e+00 : f32
    %560 = vector.broadcast %cst_145 : f32 to vector<8x128xf32>
    %561 = arith.subf %560, %553 : vector<8x128xf32>
    %562 = arith.mulf %561, %559 : vector<8x128xf32>
    %563 = arith.mulf %553, %491 : vector<8x128xf32>
    %564 = arith.addf %562, %563 : vector<8x128xf32>
    %565 = arith.index_cast %c7_i32_138 : i32 to index
    %c0_146 = arith.constant 0 : index
    %c0_147 = arith.constant 0 : index
    %566 = vector.load %arg20[%565, %c0_146, %c0_147] : memref<8x8x128xf32, #tpu.memory_space<vmem>>, vector<1x8x128xf32>
    %567 = vector.shape_cast %566 : vector<1x8x128xf32> to vector<8x128xf32>
    %568 = vector.shape_cast %564 : vector<8x128xf32> to vector<1x8x128xf32>
    tpu.vector_store %arg20[%565, %c0_146, %c0_147], %568 {strides = array<i32>} : memref<8x8x128xf32, #tpu.memory_space<vmem>>, vector<1x8x128xf32>,
    %569 = arith.index_cast %532 : i32 to index
    %c0_148 = arith.constant 0 : index
    %c0_149 = arith.constant 0 : index
    %570 = vector.load %arg19[%569, %c0_148, %c0_149] : memref<8x8x384xf32, #tpu.memory_space<vmem>>, vector<1x8x384xf32>
    %571 = vector.shape_cast %570 : vector<1x8x384xf32> to vector<8x384xf32>
    %572 = arith.truncf %527 : vector<8x128xf32> to vector<8x128xbf16>
    %cst_150 = arith.constant dense<0.000000e+00> : vector<8x384xf32>
    %573 = tpu.matmul %572, %13, %cst_150 {dimension_numbers = #tpu.dot_dimension_numbers<[1], [0], [0], [1], [0, 0, 1, 1], [], []>} : vector<8x128xbf16>, vector<128x384xbf16>, vector<8x384xf32> -> vector<8x384xf32>
    %574 = vector.extract_strided_slice %571 {offsets = [0, 0], sizes = [8, 128], strides = [1, 1]} : vector<8x384xf32> to vector<8x128xf32>
    %575 = vector.extract_strided_slice %573 {offsets = [0, 0], sizes = [8, 128], strides = [1, 1]} : vector<8x384xf32> to vector<8x128xf32>
    %576 = arith.addf %574, %575 : vector<8x128xf32>
    %577 = arith.negf %576 : vector<8x128xf32>
    %578 = math.exp %577 : vector<8x128xf32>
    %cst_151 = arith.constant 1.000000e+00 : f32
    %579 = vector.broadcast %cst_151 : f32 to vector<8x128xf32>
    %580 = arith.addf %579, %578 : vector<8x128xf32>
    %581 = arith.divf %579, %580 : vector<8x128xf32>
    %582 = vector.extract_strided_slice %571 {offsets = [0, 128], sizes = [8, 128], strides = [1, 1]} : vector<8x384xf32> to vector<8x128xf32>
    %583 = vector.extract_strided_slice %573 {offsets = [0, 128], sizes = [8, 128], strides = [1, 1]} : vector<8x384xf32> to vector<8x128xf32>
    %584 = arith.addf %582, %583 : vector<8x128xf32>
    %585 = arith.negf %584 : vector<8x128xf32>
    %586 = math.exp %585 : vector<8x128xf32>
    %cst_152 = arith.constant 1.000000e+00 : f32
    %587 = vector.broadcast %cst_152 : f32 to vector<8x128xf32>
    %588 = arith.addf %587, %586 : vector<8x128xf32>
    %589 = arith.divf %587, %588 : vector<8x128xf32>
    %590 = vector.extract_strided_slice %571 {offsets = [0, 256], sizes = [8, 128], strides = [1, 1]} : vector<8x384xf32> to vector<8x128xf32>
    %591 = vector.extract_strided_slice %573 {offsets = [0, 256], sizes = [8, 128], strides = [1, 1]} : vector<8x384xf32> to vector<8x128xf32>
    %592 = arith.addf %591, %19 : vector<8x128xf32>
    %593 = arith.mulf %581, %592 : vector<8x128xf32>
    %594 = arith.addf %590, %593 : vector<8x128xf32>
    %595 = math.tanh %594 : vector<8x128xf32>
    %cst_153 = arith.constant 1.000000e+00 : f32
    %596 = vector.broadcast %cst_153 : f32 to vector<8x128xf32>
    %597 = arith.subf %596, %589 : vector<8x128xf32>
    %598 = arith.mulf %597, %595 : vector<8x128xf32>
    %599 = arith.mulf %589, %527 : vector<8x128xf32>
    %600 = arith.addf %598, %599 : vector<8x128xf32>
    %601 = arith.index_cast %532 : i32 to index
    %c0_154 = arith.constant 0 : index
    %c0_155 = arith.constant 0 : index
    %602 = vector.load %arg21[%601, %c0_154, %c0_155] : memref<8x8x128xf32, #tpu.memory_space<vmem>>, vector<1x8x128xf32>
    %603 = vector.shape_cast %602 : vector<1x8x128xf32> to vector<8x128xf32>
    %604 = vector.shape_cast %600 : vector<8x128xf32> to vector<1x8x128xf32>
    tpu.vector_store %arg21[%601, %c0_154, %c0_155], %604 {strides = array<i32>} : memref<8x8x128xf32, #tpu.memory_space<vmem>>, vector<1x8x128xf32>,
    %c8_i32 = arith.constant 8 : i32
    %c0_156 = arith.constant 0 : index
    %c0_157 = arith.constant 0 : index
    %c0_158 = arith.constant 0 : index
    %605 = vector.load %arg20[%c0_156, %c0_157, %c0_158] : memref<8x8x128xf32, #tpu.memory_space<vmem>>, vector<8x8x128xf32>
    %606 = vector.shape_cast %605 : vector<8x8x128xf32> to vector<64x128xf32>
    %c0_159 = arith.constant 0 : index
    %c0_160 = arith.constant 0 : index
    %c0_161 = arith.constant 0 : index
    %607 = vector.load %arg21[%c0_159, %c0_160, %c0_161] : memref<8x8x128xf32, #tpu.memory_space<vmem>>, vector<8x8x128xf32>
    %608 = vector.shape_cast %607 : vector<8x8x128xf32> to vector<64x128xf32>
    %609 = tpu.concatenate %606, %608 in 1 : vector<64x128xf32>, vector<64x128xf32> -> vector<64x256xf32>
    %610 = arith.truncf %609 : vector<64x256xf32> to vector<64x256xbf16>
    %c0_162 = arith.constant 0 : index
    %c0_163 = arith.constant 0 : index
    %611 = vector.load %arg7[%c0_162, %c0_163] : memref<256x256xbf16, #tpu.memory_space<vmem>>, vector<256x256xbf16>
    %cst_164 = arith.constant dense<0.000000e+00> : vector<64x256xf32>
    %612 = tpu.matmul %610, %611, %cst_164 {dimension_numbers = #tpu.dot_dimension_numbers<[1], [0], [0], [1], [0, 0, 1, 1], [], []>} : vector<64x256xbf16>, vector<256x256xbf16>, vector<64x256xf32> -> vector<64x256xf32>
    %c0_165 = arith.constant 0 : index
    %c0_166 = arith.constant 0 : index
    %613 = vector.load %arg8[%c0_165, %c0_166] : memref<1x256xf32, #tpu.memory_space<vmem>>, vector<1x256xf32>
    %614 = vector.broadcast %613 : vector<1x256xf32> to vector<64x256xf32>
    %615 = arith.addf %612, %614 : vector<64x256xf32>
    %616 = vector.extract_strided_slice %615 {offsets = [0, 0], sizes = [64, 128], strides = [1, 1]} : vector<64x256xf32> to vector<64x128xf32>
    %617 = vector.shape_cast %616 : vector<64x128xf32> to vector<8x8x128xf32>
    %c0_167 = arith.constant 0 : index
    %c0_168 = arith.constant 0 : index
    %c0_169 = arith.constant 0 : index
    %618 = vector.load %arg22[%c0_167, %c0_168, %c0_169] : memref<8x8x128xf32, #tpu.memory_space<vmem>>, vector<8x8x128xf32>
    tpu.vector_store %arg22[%c0_167, %c0_168, %c0_169], %617 {strides = array<i32>} : memref<8x8x128xf32, #tpu.memory_space<vmem>>, vector<8x8x128xf32>,
    %619 = vector.extract_strided_slice %615 {offsets = [0, 128], sizes = [64, 128], strides = [1, 1]} : vector<64x256xf32> to vector<64x128xf32>
    %620 = vector.shape_cast %619 : vector<64x128xf32> to vector<8x8x128xf32>
    %c0_170 = arith.constant 0 : index
    %c0_171 = arith.constant 0 : index
    %c0_172 = arith.constant 0 : index
    %621 = vector.load %arg23[%c0_170, %c0_171, %c0_172] : memref<8x8x128xf32, #tpu.memory_space<vmem>>, vector<8x8x128xf32>
    tpu.vector_store %arg23[%c0_170, %c0_171, %c0_172], %620 {strides = array<i32>} : memref<8x8x128xf32, #tpu.memory_space<vmem>>, vector<8x8x128xf32>,
    %c0_173 = arith.constant 0 : index
    %c0_174 = arith.constant 0 : index
    %622 = vector.load %arg9[%c0_173, %c0_174] : memref<128x128xbf16, #tpu.memory_space<vmem>>, vector<128x128xbf16>
    %c0_175 = arith.constant 0 : index
    %c0_176 = arith.constant 0 : index
    %623 = vector.load %arg10[%c0_175, %c0_176] : memref<128x128xbf16, #tpu.memory_space<vmem>>, vector<128x128xbf16>
    %c0_i32_177 = arith.constant 0 : i32
    %c7_i32_178 = arith.constant 7 : i32
    %624 = arith.subi %c7_i32_178, %c0_i32_177 : i32
    %625 = arith.index_cast %c0_i32_177 : i32 to index
    %c0_179 = arith.constant 0 : index
    %c0_180 = arith.constant 0 : index
    %626 = vector.load %arg22[%625, %c0_179, %c0_180] : memref<8x8x128xf32, #tpu.memory_space<vmem>>, vector<1x8x128xf32>
    %627 = vector.shape_cast %626 : vector<1x8x128xf32> to vector<8x128xf32>
    %628 = arith.truncf %20 : vector<8x128xf32> to vector<8x128xbf16>
    %cst_181 = arith.constant dense<0.000000e+00> : vector<8x128xf32>
    %629 = tpu.matmul %628, %622, %cst_181 {dimension_numbers = #tpu.dot_dimension_numbers<[1], [0], [0], [1], [0, 0, 1, 1], [], []>} : vector<8x128xbf16>, vector<128x128xbf16>, vector<8x128xf32> -> vector<8x128xf32>
    %630 = arith.addf %627, %629 : vector<8x128xf32>
    %631 = math.tanh %630 : vector<8x128xf32>
    %632 = arith.index_cast %c0_i32_177 : i32 to index
    %c0_182 = arith.constant 0 : index
    %c0_183 = arith.constant 0 : index
    %633 = vector.load %arg24[%632, %c0_182, %c0_183] : memref<8x8x128xf32, #tpu.memory_space<vmem>>, vector<1x8x128xf32>
    %634 = vector.shape_cast %633 : vector<1x8x128xf32> to vector<8x128xf32>
    %635 = vector.shape_cast %631 : vector<8x128xf32> to vector<1x8x128xf32>
    tpu.vector_store %arg24[%632, %c0_182, %c0_183], %635 {strides = array<i32>} : memref<8x8x128xf32, #tpu.memory_space<vmem>>, vector<1x8x128xf32>,
    %636 = arith.index_cast %624 : i32 to index
    %c0_184 = arith.constant 0 : index
    %c0_185 = arith.constant 0 : index
    %637 = vector.load %arg23[%636, %c0_184, %c0_185] : memref<8x8x128xf32, #tpu.memory_space<vmem>>, vector<1x8x128xf32>
    %638 = vector.shape_cast %637 : vector<1x8x128xf32> to vector<8x128xf32>
    %639 = arith.truncf %20 : vector<8x128xf32> to vector<8x128xbf16>
    %cst_186 = arith.constant dense<0.000000e+00> : vector<8x128xf32>
    %640 = tpu.matmul %639, %623, %cst_186 {dimension_numbers = #tpu.dot_dimension_numbers<[1], [0], [0], [1], [0, 0, 1, 1], [], []>} : vector<8x128xbf16>, vector<128x128xbf16>, vector<8x128xf32> -> vector<8x128xf32>
    %641 = arith.addf %638, %640 : vector<8x128xf32>
    %642 = math.tanh %641 : vector<8x128xf32>
    %643 = arith.index_cast %624 : i32 to index
    %c0_187 = arith.constant 0 : index
    %c0_188 = arith.constant 0 : index
    %644 = vector.load %arg25[%643, %c0_187, %c0_188] : memref<8x8x128xf32, #tpu.memory_space<vmem>>, vector<1x8x128xf32>
    %645 = vector.shape_cast %644 : vector<1x8x128xf32> to vector<8x128xf32>
    %646 = vector.shape_cast %642 : vector<8x128xf32> to vector<1x8x128xf32>
    tpu.vector_store %arg25[%643, %c0_187, %c0_188], %646 {strides = array<i32>} : memref<8x8x128xf32, #tpu.memory_space<vmem>>, vector<1x8x128xf32>,
    %c1_i32_189 = arith.constant 1 : i32
    %c7_i32_190 = arith.constant 7 : i32
    %647 = arith.subi %c7_i32_190, %c1_i32_189 : i32
    %648 = arith.index_cast %c1_i32_189 : i32 to index
    %c0_191 = arith.constant 0 : index
    %c0_192 = arith.constant 0 : index
    %649 = vector.load %arg22[%648, %c0_191, %c0_192] : memref<8x8x128xf32, #tpu.memory_space<vmem>>, vector<1x8x128xf32>
    %650 = vector.shape_cast %649 : vector<1x8x128xf32> to vector<8x128xf32>
    %651 = arith.truncf %631 : vector<8x128xf32> to vector<8x128xbf16>
    %cst_193 = arith.constant dense<0.000000e+00> : vector<8x128xf32>
    %652 = tpu.matmul %651, %622, %cst_193 {dimension_numbers = #tpu.dot_dimension_numbers<[1], [0], [0], [1], [0, 0, 1, 1], [], []>} : vector<8x128xbf16>, vector<128x128xbf16>, vector<8x128xf32> -> vector<8x128xf32>
    %653 = arith.addf %650, %652 : vector<8x128xf32>
    %654 = math.tanh %653 : vector<8x128xf32>
    %655 = arith.index_cast %c1_i32_189 : i32 to index
    %c0_194 = arith.constant 0 : index
    %c0_195 = arith.constant 0 : index
    %656 = vector.load %arg24[%655, %c0_194, %c0_195] : memref<8x8x128xf32, #tpu.memory_space<vmem>>, vector<1x8x128xf32>
    %657 = vector.shape_cast %656 : vector<1x8x128xf32> to vector<8x128xf32>
    %658 = vector.shape_cast %654 : vector<8x128xf32> to vector<1x8x128xf32>
    tpu.vector_store %arg24[%655, %c0_194, %c0_195], %658 {strides = array<i32>} : memref<8x8x128xf32, #tpu.memory_space<vmem>>, vector<1x8x128xf32>,
    %659 = arith.index_cast %647 : i32 to index
    %c0_196 = arith.constant 0 : index
    %c0_197 = arith.constant 0 : index
    %660 = vector.load %arg23[%659, %c0_196, %c0_197] : memref<8x8x128xf32, #tpu.memory_space<vmem>>, vector<1x8x128xf32>
    %661 = vector.shape_cast %660 : vector<1x8x128xf32> to vector<8x128xf32>
    %662 = arith.truncf %642 : vector<8x128xf32> to vector<8x128xbf16>
    %cst_198 = arith.constant dense<0.000000e+00> : vector<8x128xf32>
    %663 = tpu.matmul %662, %623, %cst_198 {dimension_numbers = #tpu.dot_dimension_numbers<[1], [0], [0], [1], [0, 0, 1, 1], [], []>} : vector<8x128xbf16>, vector<128x128xbf16>, vector<8x128xf32> -> vector<8x128xf32>
    %664 = arith.addf %661, %663 : vector<8x128xf32>
    %665 = math.tanh %664 : vector<8x128xf32>
    %666 = arith.index_cast %647 : i32 to index
    %c0_199 = arith.constant 0 : index
    %c0_200 = arith.constant 0 : index
    %667 = vector.load %arg25[%666, %c0_199, %c0_200] : memref<8x8x128xf32, #tpu.memory_space<vmem>>, vector<1x8x128xf32>
    %668 = vector.shape_cast %667 : vector<1x8x128xf32> to vector<8x128xf32>
    %669 = vector.shape_cast %665 : vector<8x128xf32> to vector<1x8x128xf32>
    tpu.vector_store %arg25[%666, %c0_199, %c0_200], %669 {strides = array<i32>} : memref<8x8x128xf32, #tpu.memory_space<vmem>>, vector<1x8x128xf32>,
    %c2_i32_201 = arith.constant 2 : i32
    %c7_i32_202 = arith.constant 7 : i32
    %670 = arith.subi %c7_i32_202, %c2_i32_201 : i32
    %671 = arith.index_cast %c2_i32_201 : i32 to index
    %c0_203 = arith.constant 0 : index
    %c0_204 = arith.constant 0 : index
    %672 = vector.load %arg22[%671, %c0_203, %c0_204] : memref<8x8x128xf32, #tpu.memory_space<vmem>>, vector<1x8x128xf32>
    %673 = vector.shape_cast %672 : vector<1x8x128xf32> to vector<8x128xf32>
    %674 = arith.truncf %654 : vector<8x128xf32> to vector<8x128xbf16>
    %cst_205 = arith.constant dense<0.000000e+00> : vector<8x128xf32>
    %675 = tpu.matmul %674, %622, %cst_205 {dimension_numbers = #tpu.dot_dimension_numbers<[1], [0], [0], [1], [0, 0, 1, 1], [], []>} : vector<8x128xbf16>, vector<128x128xbf16>, vector<8x128xf32> -> vector<8x128xf32>
    %676 = arith.addf %673, %675 : vector<8x128xf32>
    %677 = math.tanh %676 : vector<8x128xf32>
    %678 = arith.index_cast %c2_i32_201 : i32 to index
    %c0_206 = arith.constant 0 : index
    %c0_207 = arith.constant 0 : index
    %679 = vector.load %arg24[%678, %c0_206, %c0_207] : memref<8x8x128xf32, #tpu.memory_space<vmem>>, vector<1x8x128xf32>
    %680 = vector.shape_cast %679 : vector<1x8x128xf32> to vector<8x128xf32>
    %681 = vector.shape_cast %677 : vector<8x128xf32> to vector<1x8x128xf32>
    tpu.vector_store %arg24[%678, %c0_206, %c0_207], %681 {strides = array<i32>} : memref<8x8x128xf32, #tpu.memory_space<vmem>>, vector<1x8x128xf32>,
    %682 = arith.index_cast %670 : i32 to index
    %c0_208 = arith.constant 0 : index
    %c0_209 = arith.constant 0 : index
    %683 = vector.load %arg23[%682, %c0_208, %c0_209] : memref<8x8x128xf32, #tpu.memory_space<vmem>>, vector<1x8x128xf32>
    %684 = vector.shape_cast %683 : vector<1x8x128xf32> to vector<8x128xf32>
    %685 = arith.truncf %665 : vector<8x128xf32> to vector<8x128xbf16>
    %cst_210 = arith.constant dense<0.000000e+00> : vector<8x128xf32>
    %686 = tpu.matmul %685, %623, %cst_210 {dimension_numbers = #tpu.dot_dimension_numbers<[1], [0], [0], [1], [0, 0, 1, 1], [], []>} : vector<8x128xbf16>, vector<128x128xbf16>, vector<8x128xf32> -> vector<8x128xf32>
    %687 = arith.addf %684, %686 : vector<8x128xf32>
    %688 = math.tanh %687 : vector<8x128xf32>
    %689 = arith.index_cast %670 : i32 to index
    %c0_211 = arith.constant 0 : index
    %c0_212 = arith.constant 0 : index
    %690 = vector.load %arg25[%689, %c0_211, %c0_212] : memref<8x8x128xf32, #tpu.memory_space<vmem>>, vector<1x8x128xf32>
    %691 = vector.shape_cast %690 : vector<1x8x128xf32> to vector<8x128xf32>
    %692 = vector.shape_cast %688 : vector<8x128xf32> to vector<1x8x128xf32>
    tpu.vector_store %arg25[%689, %c0_211, %c0_212], %692 {strides = array<i32>} : memref<8x8x128xf32, #tpu.memory_space<vmem>>, vector<1x8x128xf32>,
    %c3_i32_213 = arith.constant 3 : i32
    %c7_i32_214 = arith.constant 7 : i32
    %693 = arith.subi %c7_i32_214, %c3_i32_213 : i32
    %694 = arith.index_cast %c3_i32_213 : i32 to index
    %c0_215 = arith.constant 0 : index
    %c0_216 = arith.constant 0 : index
    %695 = vector.load %arg22[%694, %c0_215, %c0_216] : memref<8x8x128xf32, #tpu.memory_space<vmem>>, vector<1x8x128xf32>
    %696 = vector.shape_cast %695 : vector<1x8x128xf32> to vector<8x128xf32>
    %697 = arith.truncf %677 : vector<8x128xf32> to vector<8x128xbf16>
    %cst_217 = arith.constant dense<0.000000e+00> : vector<8x128xf32>
    %698 = tpu.matmul %697, %622, %cst_217 {dimension_numbers = #tpu.dot_dimension_numbers<[1], [0], [0], [1], [0, 0, 1, 1], [], []>} : vector<8x128xbf16>, vector<128x128xbf16>, vector<8x128xf32> -> vector<8x128xf32>
    %699 = arith.addf %696, %698 : vector<8x128xf32>
    %700 = math.tanh %699 : vector<8x128xf32>
    %701 = arith.index_cast %c3_i32_213 : i32 to index
    %c0_218 = arith.constant 0 : index
    %c0_219 = arith.constant 0 : index
    %702 = vector.load %arg24[%701, %c0_218, %c0_219] : memref<8x8x128xf32, #tpu.memory_space<vmem>>, vector<1x8x128xf32>
    %703 = vector.shape_cast %702 : vector<1x8x128xf32> to vector<8x128xf32>
    %704 = vector.shape_cast %700 : vector<8x128xf32> to vector<1x8x128xf32>
    tpu.vector_store %arg24[%701, %c0_218, %c0_219], %704 {strides = array<i32>} : memref<8x8x128xf32, #tpu.memory_space<vmem>>, vector<1x8x128xf32>,
    %705 = arith.index_cast %693 : i32 to index
    %c0_220 = arith.constant 0 : index
    %c0_221 = arith.constant 0 : index
    %706 = vector.load %arg23[%705, %c0_220, %c0_221] : memref<8x8x128xf32, #tpu.memory_space<vmem>>, vector<1x8x128xf32>
    %707 = vector.shape_cast %706 : vector<1x8x128xf32> to vector<8x128xf32>
    %708 = arith.truncf %688 : vector<8x128xf32> to vector<8x128xbf16>
    %cst_222 = arith.constant dense<0.000000e+00> : vector<8x128xf32>
    %709 = tpu.matmul %708, %623, %cst_222 {dimension_numbers = #tpu.dot_dimension_numbers<[1], [0], [0], [1], [0, 0, 1, 1], [], []>} : vector<8x128xbf16>, vector<128x128xbf16>, vector<8x128xf32> -> vector<8x128xf32>
    %710 = arith.addf %707, %709 : vector<8x128xf32>
    %711 = math.tanh %710 : vector<8x128xf32>
    %712 = arith.index_cast %693 : i32 to index
    %c0_223 = arith.constant 0 : index
    %c0_224 = arith.constant 0 : index
    %713 = vector.load %arg25[%712, %c0_223, %c0_224] : memref<8x8x128xf32, #tpu.memory_space<vmem>>, vector<1x8x128xf32>
    %714 = vector.shape_cast %713 : vector<1x8x128xf32> to vector<8x128xf32>
    %715 = vector.shape_cast %711 : vector<8x128xf32> to vector<1x8x128xf32>
    tpu.vector_store %arg25[%712, %c0_223, %c0_224], %715 {strides = array<i32>} : memref<8x8x128xf32, #tpu.memory_space<vmem>>, vector<1x8x128xf32>,
    %c4_i32_225 = arith.constant 4 : i32
    %c7_i32_226 = arith.constant 7 : i32
    %716 = arith.subi %c7_i32_226, %c4_i32_225 : i32
    %717 = arith.index_cast %c4_i32_225 : i32 to index
    %c0_227 = arith.constant 0 : index
    %c0_228 = arith.constant 0 : index
    %718 = vector.load %arg22[%717, %c0_227, %c0_228] : memref<8x8x128xf32, #tpu.memory_space<vmem>>, vector<1x8x128xf32>
    %719 = vector.shape_cast %718 : vector<1x8x128xf32> to vector<8x128xf32>
    %720 = arith.truncf %700 : vector<8x128xf32> to vector<8x128xbf16>
    %cst_229 = arith.constant dense<0.000000e+00> : vector<8x128xf32>
    %721 = tpu.matmul %720, %622, %cst_229 {dimension_numbers = #tpu.dot_dimension_numbers<[1], [0], [0], [1], [0, 0, 1, 1], [], []>} : vector<8x128xbf16>, vector<128x128xbf16>, vector<8x128xf32> -> vector<8x128xf32>
    %722 = arith.addf %719, %721 : vector<8x128xf32>
    %723 = math.tanh %722 : vector<8x128xf32>
    %724 = arith.index_cast %c4_i32_225 : i32 to index
    %c0_230 = arith.constant 0 : index
    %c0_231 = arith.constant 0 : index
    %725 = vector.load %arg24[%724, %c0_230, %c0_231] : memref<8x8x128xf32, #tpu.memory_space<vmem>>, vector<1x8x128xf32>
    %726 = vector.shape_cast %725 : vector<1x8x128xf32> to vector<8x128xf32>
    %727 = vector.shape_cast %723 : vector<8x128xf32> to vector<1x8x128xf32>
    tpu.vector_store %arg24[%724, %c0_230, %c0_231], %727 {strides = array<i32>} : memref<8x8x128xf32, #tpu.memory_space<vmem>>, vector<1x8x128xf32>,
    %728 = arith.index_cast %716 : i32 to index
    %c0_232 = arith.constant 0 : index
    %c0_233 = arith.constant 0 : index
    %729 = vector.load %arg23[%728, %c0_232, %c0_233] : memref<8x8x128xf32, #tpu.memory_space<vmem>>, vector<1x8x128xf32>
    %730 = vector.shape_cast %729 : vector<1x8x128xf32> to vector<8x128xf32>
    %731 = arith.truncf %711 : vector<8x128xf32> to vector<8x128xbf16>
    %cst_234 = arith.constant dense<0.000000e+00> : vector<8x128xf32>
    %732 = tpu.matmul %731, %623, %cst_234 {dimension_numbers = #tpu.dot_dimension_numbers<[1], [0], [0], [1], [0, 0, 1, 1], [], []>} : vector<8x128xbf16>, vector<128x128xbf16>, vector<8x128xf32> -> vector<8x128xf32>
    %733 = arith.addf %730, %732 : vector<8x128xf32>
    %734 = math.tanh %733 : vector<8x128xf32>
    %735 = arith.index_cast %716 : i32 to index
    %c0_235 = arith.constant 0 : index
    %c0_236 = arith.constant 0 : index
    %736 = vector.load %arg25[%735, %c0_235, %c0_236] : memref<8x8x128xf32, #tpu.memory_space<vmem>>, vector<1x8x128xf32>
    %737 = vector.shape_cast %736 : vector<1x8x128xf32> to vector<8x128xf32>
    %738 = vector.shape_cast %734 : vector<8x128xf32> to vector<1x8x128xf32>
    tpu.vector_store %arg25[%735, %c0_235, %c0_236], %738 {strides = array<i32>} : memref<8x8x128xf32, #tpu.memory_space<vmem>>, vector<1x8x128xf32>,
    %c5_i32_237 = arith.constant 5 : i32
    %c7_i32_238 = arith.constant 7 : i32
    %739 = arith.subi %c7_i32_238, %c5_i32_237 : i32
    %740 = arith.index_cast %c5_i32_237 : i32 to index
    %c0_239 = arith.constant 0 : index
    %c0_240 = arith.constant 0 : index
    %741 = vector.load %arg22[%740, %c0_239, %c0_240] : memref<8x8x128xf32, #tpu.memory_space<vmem>>, vector<1x8x128xf32>
    %742 = vector.shape_cast %741 : vector<1x8x128xf32> to vector<8x128xf32>
    %743 = arith.truncf %723 : vector<8x128xf32> to vector<8x128xbf16>
    %cst_241 = arith.constant dense<0.000000e+00> : vector<8x128xf32>
    %744 = tpu.matmul %743, %622, %cst_241 {dimension_numbers = #tpu.dot_dimension_numbers<[1], [0], [0], [1], [0, 0, 1, 1], [], []>} : vector<8x128xbf16>, vector<128x128xbf16>, vector<8x128xf32> -> vector<8x128xf32>
    %745 = arith.addf %742, %744 : vector<8x128xf32>
    %746 = math.tanh %745 : vector<8x128xf32>
    %747 = arith.index_cast %c5_i32_237 : i32 to index
    %c0_242 = arith.constant 0 : index
    %c0_243 = arith.constant 0 : index
    %748 = vector.load %arg24[%747, %c0_242, %c0_243] : memref<8x8x128xf32, #tpu.memory_space<vmem>>, vector<1x8x128xf32>
    %749 = vector.shape_cast %748 : vector<1x8x128xf32> to vector<8x128xf32>
    %750 = vector.shape_cast %746 : vector<8x128xf32> to vector<1x8x128xf32>
    tpu.vector_store %arg24[%747, %c0_242, %c0_243], %750 {strides = array<i32>} : memref<8x8x128xf32, #tpu.memory_space<vmem>>, vector<1x8x128xf32>,
    %751 = arith.index_cast %739 : i32 to index
    %c0_244 = arith.constant 0 : index
    %c0_245 = arith.constant 0 : index
    %752 = vector.load %arg23[%751, %c0_244, %c0_245] : memref<8x8x128xf32, #tpu.memory_space<vmem>>, vector<1x8x128xf32>
    %753 = vector.shape_cast %752 : vector<1x8x128xf32> to vector<8x128xf32>
    %754 = arith.truncf %734 : vector<8x128xf32> to vector<8x128xbf16>
    %cst_246 = arith.constant dense<0.000000e+00> : vector<8x128xf32>
    %755 = tpu.matmul %754, %623, %cst_246 {dimension_numbers = #tpu.dot_dimension_numbers<[1], [0], [0], [1], [0, 0, 1, 1], [], []>} : vector<8x128xbf16>, vector<128x128xbf16>, vector<8x128xf32> -> vector<8x128xf32>
    %756 = arith.addf %753, %755 : vector<8x128xf32>
    %757 = math.tanh %756 : vector<8x128xf32>
    %758 = arith.index_cast %739 : i32 to index
    %c0_247 = arith.constant 0 : index
    %c0_248 = arith.constant 0 : index
    %759 = vector.load %arg25[%758, %c0_247, %c0_248] : memref<8x8x128xf32, #tpu.memory_space<vmem>>, vector<1x8x128xf32>
    %760 = vector.shape_cast %759 : vector<1x8x128xf32> to vector<8x128xf32>
    %761 = vector.shape_cast %757 : vector<8x128xf32> to vector<1x8x128xf32>
    tpu.vector_store %arg25[%758, %c0_247, %c0_248], %761 {strides = array<i32>} : memref<8x8x128xf32, #tpu.memory_space<vmem>>, vector<1x8x128xf32>,
    %c6_i32_249 = arith.constant 6 : i32
    %c7_i32_250 = arith.constant 7 : i32
    %762 = arith.subi %c7_i32_250, %c6_i32_249 : i32
    %763 = arith.index_cast %c6_i32_249 : i32 to index
    %c0_251 = arith.constant 0 : index
    %c0_252 = arith.constant 0 : index
    %764 = vector.load %arg22[%763, %c0_251, %c0_252] : memref<8x8x128xf32, #tpu.memory_space<vmem>>, vector<1x8x128xf32>
    %765 = vector.shape_cast %764 : vector<1x8x128xf32> to vector<8x128xf32>
    %766 = arith.truncf %746 : vector<8x128xf32> to vector<8x128xbf16>
    %cst_253 = arith.constant dense<0.000000e+00> : vector<8x128xf32>
    %767 = tpu.matmul %766, %622, %cst_253 {dimension_numbers = #tpu.dot_dimension_numbers<[1], [0], [0], [1], [0, 0, 1, 1], [], []>} : vector<8x128xbf16>, vector<128x128xbf16>, vector<8x128xf32> -> vector<8x128xf32>
    %768 = arith.addf %765, %767 : vector<8x128xf32>
    %769 = math.tanh %768 : vector<8x128xf32>
    %770 = arith.index_cast %c6_i32_249 : i32 to index
    %c0_254 = arith.constant 0 : index
    %c0_255 = arith.constant 0 : index
    %771 = vector.load %arg24[%770, %c0_254, %c0_255] : memref<8x8x128xf32, #tpu.memory_space<vmem>>, vector<1x8x128xf32>
    %772 = vector.shape_cast %771 : vector<1x8x128xf32> to vector<8x128xf32>
    %773 = vector.shape_cast %769 : vector<8x128xf32> to vector<1x8x128xf32>
    tpu.vector_store %arg24[%770, %c0_254, %c0_255], %773 {strides = array<i32>} : memref<8x8x128xf32, #tpu.memory_space<vmem>>, vector<1x8x128xf32>,
    %774 = arith.index_cast %762 : i32 to index
    %c0_256 = arith.constant 0 : index
    %c0_257 = arith.constant 0 : index
    %775 = vector.load %arg23[%774, %c0_256, %c0_257] : memref<8x8x128xf32, #tpu.memory_space<vmem>>, vector<1x8x128xf32>
    %776 = vector.shape_cast %775 : vector<1x8x128xf32> to vector<8x128xf32>
    %777 = arith.truncf %757 : vector<8x128xf32> to vector<8x128xbf16>
    %cst_258 = arith.constant dense<0.000000e+00> : vector<8x128xf32>
    %778 = tpu.matmul %777, %623, %cst_258 {dimension_numbers = #tpu.dot_dimension_numbers<[1], [0], [0], [1], [0, 0, 1, 1], [], []>} : vector<8x128xbf16>, vector<128x128xbf16>, vector<8x128xf32> -> vector<8x128xf32>
    %779 = arith.addf %776, %778 : vector<8x128xf32>
    %780 = math.tanh %779 : vector<8x128xf32>
    %781 = arith.index_cast %762 : i32 to index
    %c0_259 = arith.constant 0 : index
    %c0_260 = arith.constant 0 : index
    %782 = vector.load %arg25[%781, %c0_259, %c0_260] : memref<8x8x128xf32, #tpu.memory_space<vmem>>, vector<1x8x128xf32>
    %783 = vector.shape_cast %782 : vector<1x8x128xf32> to vector<8x128xf32>
    %784 = vector.shape_cast %780 : vector<8x128xf32> to vector<1x8x128xf32>
    tpu.vector_store %arg25[%781, %c0_259, %c0_260], %784 {strides = array<i32>} : memref<8x8x128xf32, #tpu.memory_space<vmem>>, vector<1x8x128xf32>,
    %c7_i32_261 = arith.constant 7 : i32
    %c7_i32_262 = arith.constant 7 : i32
    %785 = arith.subi %c7_i32_262, %c7_i32_261 : i32
    %786 = arith.index_cast %c7_i32_261 : i32 to index
    %c0_263 = arith.constant 0 : index
    %c0_264 = arith.constant 0 : index
    %787 = vector.load %arg22[%786, %c0_263, %c0_264] : memref<8x8x128xf32, #tpu.memory_space<vmem>>, vector<1x8x128xf32>
    %788 = vector.shape_cast %787 : vector<1x8x128xf32> to vector<8x128xf32>
    %789 = arith.truncf %769 : vector<8x128xf32> to vector<8x128xbf16>
    %cst_265 = arith.constant dense<0.000000e+00> : vector<8x128xf32>
    %790 = tpu.matmul %789, %622, %cst_265 {dimension_numbers = #tpu.dot_dimension_numbers<[1], [0], [0], [1], [0, 0, 1, 1], [], []>} : vector<8x128xbf16>, vector<128x128xbf16>, vector<8x128xf32> -> vector<8x128xf32>
    %791 = arith.addf %788, %790 : vector<8x128xf32>
    %792 = math.tanh %791 : vector<8x128xf32>
    %793 = arith.index_cast %c7_i32_261 : i32 to index
    %c0_266 = arith.constant 0 : index
    %c0_267 = arith.constant 0 : index
    %794 = vector.load %arg24[%793, %c0_266, %c0_267] : memref<8x8x128xf32, #tpu.memory_space<vmem>>, vector<1x8x128xf32>
    %795 = vector.shape_cast %794 : vector<1x8x128xf32> to vector<8x128xf32>
    %796 = vector.shape_cast %792 : vector<8x128xf32> to vector<1x8x128xf32>
    tpu.vector_store %arg24[%793, %c0_266, %c0_267], %796 {strides = array<i32>} : memref<8x8x128xf32, #tpu.memory_space<vmem>>, vector<1x8x128xf32>,
    %797 = arith.index_cast %785 : i32 to index
    %c0_268 = arith.constant 0 : index
    %c0_269 = arith.constant 0 : index
    %798 = vector.load %arg23[%797, %c0_268, %c0_269] : memref<8x8x128xf32, #tpu.memory_space<vmem>>, vector<1x8x128xf32>
    %799 = vector.shape_cast %798 : vector<1x8x128xf32> to vector<8x128xf32>
    %800 = arith.truncf %780 : vector<8x128xf32> to vector<8x128xbf16>
    %cst_270 = arith.constant dense<0.000000e+00> : vector<8x128xf32>
    %801 = tpu.matmul %800, %623, %cst_270 {dimension_numbers = #tpu.dot_dimension_numbers<[1], [0], [0], [1], [0, 0, 1, 1], [], []>} : vector<8x128xbf16>, vector<128x128xbf16>, vector<8x128xf32> -> vector<8x128xf32>
    %802 = arith.addf %799, %801 : vector<8x128xf32>
    %803 = math.tanh %802 : vector<8x128xf32>
    %804 = arith.index_cast %785 : i32 to index
    %c0_271 = arith.constant 0 : index
    %c0_272 = arith.constant 0 : index
    %805 = vector.load %arg25[%804, %c0_271, %c0_272] : memref<8x8x128xf32, #tpu.memory_space<vmem>>, vector<1x8x128xf32>
    %806 = vector.shape_cast %805 : vector<1x8x128xf32> to vector<8x128xf32>
    %807 = vector.shape_cast %803 : vector<8x128xf32> to vector<1x8x128xf32>
    tpu.vector_store %arg25[%804, %c0_271, %c0_272], %807 {strides = array<i32>} : memref<8x8x128xf32, #tpu.memory_space<vmem>>, vector<1x8x128xf32>,
    %c8_i32_273 = arith.constant 8 : i32
    %c0_274 = arith.constant 0 : index
    %c0_275 = arith.constant 0 : index
    %c0_276 = arith.constant 0 : index
    %808 = vector.load %arg24[%c0_274, %c0_275, %c0_276] : memref<8x8x128xf32, #tpu.memory_space<vmem>>, vector<8x8x128xf32>
    %c0_277 = arith.constant 0 : index
    %c0_278 = arith.constant 0 : index
    %c0_279 = arith.constant 0 : index
    %809 = vector.load %arg25[%c0_277, %c0_278, %c0_279] : memref<8x8x128xf32, #tpu.memory_space<vmem>>, vector<8x8x128xf32>
    %810 = tpu.iota {dimensions = array<i32: 1>} : vector<8x8x128xi32>
    %c4_i32_280 = arith.constant 4 : i32
    %811 = vector.broadcast %c4_i32_280 : i32 to vector<8x8x128xi32>
    %812 = arith.cmpi slt, %810, %811 : vector<8x8x128xi32>
    %cst_281 = arith.constant 0xFF800000 : f32
    %813 = vector.broadcast %cst_281 : f32 to vector<8x8x128xf32>
    %814 = arith.select %812, %808, %813 : vector<8x8x128xi1>, vector<8x8x128xf32>
    %cst_282 = arith.constant dense<0xFF800000> : vector<8x128xf32>
    %815 = vector.multi_reduction <maximumf>, %814, %cst_282 [1] : vector<8x8x128xf32> to vector<8x128xf32>
    %cst_283 = arith.constant 0xFF800000 : f32
    %816 = vector.broadcast %cst_283 : f32 to vector<8x8x128xf32>
    %817 = arith.select %812, %809, %816 : vector<8x8x128xi1>, vector<8x8x128xf32>
    %cst_284 = arith.constant dense<0xFF800000> : vector<8x128xf32>
    %818 = vector.multi_reduction <maximumf>, %817, %cst_284 [1] : vector<8x8x128xf32> to vector<8x128xf32>
    %cst_285 = arith.constant 0.000000e+00 : f32
    %819 = vector.broadcast %cst_285 : f32 to vector<8x8x128xf32>
    %820 = arith.select %812, %808, %819 : vector<8x8x128xi1>, vector<8x8x128xf32>
    %cst_286 = arith.constant dense<0.000000e+00> : vector<8x128xf32>
    %821 = vector.multi_reduction <add>, %820, %cst_286 [1] : vector<8x8x128xf32> to vector<8x128xf32>
    %cst_287 = arith.constant 0.000000e+00 : f32
    %822 = vector.broadcast %cst_287 : f32 to vector<8x8x128xf32>
    %823 = arith.select %812, %809, %822 : vector<8x8x128xi1>, vector<8x8x128xf32>
    %cst_288 = arith.constant dense<0.000000e+00> : vector<8x128xf32>
    %824 = vector.multi_reduction <add>, %823, %cst_288 [1] : vector<8x8x128xf32> to vector<8x128xf32>
    %cst_289 = arith.constant 2.500000e-01 : f32
    %825 = vector.broadcast %cst_289 : f32 to vector<8x128xf32>
    %826 = arith.mulf %821, %825 : vector<8x128xf32>
    %cst_290 = arith.constant 2.500000e-01 : f32
    %827 = vector.broadcast %cst_290 : f32 to vector<8x128xf32>
    %828 = arith.mulf %824, %827 : vector<8x128xf32>
    %829 = tpu.concatenate %815, %818, %826, %828 in 1 : vector<8x128xf32>, vector<8x128xf32>, vector<8x128xf32>, vector<8x128xf32> -> vector<8x512xf32>
    %830 = arith.truncf %829 : vector<8x512xf32> to vector<8x512xbf16>
    %c0_291 = arith.constant 0 : index
    %c0_292 = arith.constant 0 : index
    %831 = vector.load %arg11[%c0_291, %c0_292] : memref<512x512xbf16, #tpu.memory_space<vmem>>, vector<512x512xbf16>
    %cst_293 = arith.constant dense<0.000000e+00> : vector<8x512xf32>
    %832 = tpu.matmul %830, %831, %cst_293 {dimension_numbers = #tpu.dot_dimension_numbers<[1], [0], [0], [1], [0, 0, 1, 1], [], []>} : vector<8x512xbf16>, vector<512x512xbf16>, vector<8x512xf32> -> vector<8x512xf32>
    %c0_294 = arith.constant 0 : index
    %c0_295 = arith.constant 0 : index
    %833 = vector.load %arg12[%c0_294, %c0_295] : memref<1x512xf32, #tpu.memory_space<vmem>>, vector<1x512xf32>
    %834 = vector.broadcast %833 : vector<1x512xf32> to vector<8x512xf32>
    %835 = arith.addf %832, %834 : vector<8x512xf32>
    %cst_296 = arith.constant 0.000000e+00 : f32
    %836 = vector.broadcast %cst_296 : f32 to vector<8x512xf32>
    %837 = arith.maximumf %835, %836 : vector<8x512xf32>
    %838 = arith.addf %829, %837 : vector<8x512xf32>
    %839 = arith.truncf %838 : vector<8x512xf32> to vector<8x512xbf16>
    %c0_297 = arith.constant 0 : index
    %c0_298 = arith.constant 0 : index
    %840 = vector.load %arg13[%c0_297, %c0_298] : memref<512x512xbf16, #tpu.memory_space<vmem>>, vector<512x512xbf16>
    %cst_299 = arith.constant dense<0.000000e+00> : vector<8x512xf32>
    %841 = tpu.matmul %839, %840, %cst_299 {dimension_numbers = #tpu.dot_dimension_numbers<[1], [0], [0], [1], [0, 0, 1, 1], [], []>} : vector<8x512xbf16>, vector<512x512xbf16>, vector<8x512xf32> -> vector<8x512xf32>
    %c0_300 = arith.constant 0 : index
    %c0_301 = arith.constant 0 : index
    %842 = vector.load %arg14[%c0_300, %c0_301] : memref<1x512xf32, #tpu.memory_space<vmem>>, vector<1x512xf32>
    %843 = vector.broadcast %842 : vector<1x512xf32> to vector<8x512xf32>
    %844 = arith.addf %841, %843 : vector<8x512xf32>
    %cst_302 = arith.constant 0.000000e+00 : f32
    %845 = vector.broadcast %cst_302 : f32 to vector<8x512xf32>
    %846 = arith.maximumf %844, %845 : vector<8x512xf32>
    %847 = arith.addf %838, %846 : vector<8x512xf32>
    %848 = arith.truncf %847 : vector<8x512xf32> to vector<8x512xbf16>
    %c0_303 = arith.constant 0 : index
    %c0_304 = arith.constant 0 : index
    %849 = vector.load %arg15[%c0_303, %c0_304] : memref<512x128xbf16, #tpu.memory_space<vmem>>, vector<512x128xbf16>
    %cst_305 = arith.constant dense<0.000000e+00> : vector<8x128xf32>
    %850 = tpu.matmul %848, %849, %cst_305 {dimension_numbers = #tpu.dot_dimension_numbers<[1], [0], [0], [1], [0, 0, 1, 1], [], []>} : vector<8x512xbf16>, vector<512x128xbf16>, vector<8x128xf32> -> vector<8x128xf32>
    %c0_306 = arith.constant 0 : index
    %c0_307 = arith.constant 0 : index
    %851 = vector.load %arg16[%c0_306, %c0_307] : memref<1x128xf32, #tpu.memory_space<vmem>>, vector<1x128xf32>
    %852 = vector.broadcast %851 : vector<1x128xf32> to vector<8x128xf32>
    %853 = arith.addf %850, %852 : vector<8x128xf32>
    %854 = arith.negf %853 : vector<8x128xf32>
    %855 = math.exp %854 : vector<8x128xf32>
    %cst_308 = arith.constant 1.000000e+00 : f32
    %856 = vector.broadcast %cst_308 : f32 to vector<8x128xf32>
    %857 = arith.addf %856, %855 : vector<8x128xf32>
    %858 = arith.divf %856, %857 : vector<8x128xf32>
    %c0_309 = arith.constant 0 : index
    %c0_310 = arith.constant 0 : index
    %859 = vector.load %arg17[%c0_309, %c0_310] : memref<8x128xf32, #tpu.memory_space<vmem>>, vector<8x128xf32>
    tpu.vector_store %arg17[%c0_309, %c0_310], %858 {strides = array<i32>} : memref<8x128xf32, #tpu.memory_space<vmem>>, vector<8x128xf32>,
    return
  }
}

</mosaic_0001>

<llo_original>
// kernel: tpu_custom_call.1
$region0: #{tpu_custom_call.1}
  #allocation0 [shape = 'u32[]', space=smem, size = 0x4, offset = 0x4, fixed_abs, tag = 'smem constant byte address 0x4 - core index']
  #allocation1 [shape = 'u32[144,128]{1,0:T(1,128)}', space=vmem, size = 0x12000, scoped, tag = 'internal scratch']
  #allocation2 [shape = 'f32[8,8,384]{2,1,0:T(8,128)}', space=vmem, size = 0x18000, scoped, tag = 'scratch operand']
  #allocation3 [shape = 'f32[8,8,384]{2,1,0:T(8,128)}', space=vmem, size = 0x18000, scoped, tag = 'scratch operand']
  #allocation4 [shape = 'f32[8,8,128]{2,1,0:T(8,128)}', space=vmem, size = 0x8000, scoped, tag = 'scratch operand']
  #allocation5 [shape = 'f32[8,8,128]{2,1,0:T(8,128)}', space=vmem, size = 0x8000, scoped, tag = 'scratch operand']
  #allocation6 [shape = 'f32[8,8,128]{2,1,0:T(8,128)}', space=vmem, size = 0x8000, scoped, tag = 'scratch operand']
  #allocation7 [shape = 'f32[8,8,128]{2,1,0:T(8,128)}', space=vmem, size = 0x8000, scoped, tag = 'scratch operand']
  #allocation8 [shape = 'f32[8,8,128]{2,1,0:T(8,128)}', space=vmem, size = 0x8000, scoped, tag = 'scratch operand']
  #allocation9 [shape = 'f32[8,8,128]{2,1,0:T(8,128)}', space=vmem, size = 0x8000, scoped, tag = 'scratch operand']
  %s0 = inlined_call_operand.hbm [shape: bf16[64,384], index: 0, kind: input, shape index: {}]
  %s1 = inlined_call_operand.hbm [shape: bf16[384,768], index: 1, kind: input, shape index: {}]
  %s2 = inlined_call_operand.vmem [shape: f32[1,768], index: 2, kind: input, shape index: {}]
  %s3 = inlined_call_operand.hbm [shape: bf16[128,384], index: 3, kind: input, shape index: {}]
  %s4 = inlined_call_operand.vmem [shape: f32[1,128], index: 4, kind: input, shape index: {}]
  %s5 = inlined_call_operand.hbm [shape: bf16[128,384], index: 5, kind: input, shape index: {}]
  %s6 = inlined_call_operand.vmem [shape: f32[1,128], index: 6, kind: input, shape index: {}]
  %s7 = inlined_call_operand.hbm [shape: bf16[256,256], index: 7, kind: input, shape index: {}]
  %s8 = inlined_call_operand.vmem [shape: f32[1,256], index: 8, kind: input, shape index: {}]
  %s9 = inlined_call_operand.hbm [shape: bf16[128,128], index: 9, kind: input, shape index: {}]
  %s10 = inlined_call_operand.hbm [shape: bf16[128,128], index: 10, kind: input, shape index: {}]
  %s11 = inlined_call_operand.hbm [shape: bf16[512,512], index: 11, kind: input, shape index: {}]
  %s12 = inlined_call_operand.vmem [shape: f32[1,512], index: 12, kind: input, shape index: {}]
  %s13 = inlined_call_operand.hbm [shape: bf16[512,512], index: 13, kind: input, shape index: {}]
  %s14 = inlined_call_operand.vmem [shape: f32[1,512], index: 14, kind: input, shape index: {}]
  %s15 = inlined_call_operand.hbm [shape: bf16[512,128], index: 15, kind: input, shape index: {}]
  %s16 = inlined_call_operand.vmem [shape: f32[1,128], index: 16, kind: input, shape index: {}]
  %s17 = inlined_call_operand.hbm [shape: f32[8,128], index: 17, kind: output, shape index: {}]
  %s18 = sld [smem:[#allocation0]]
  $region118: #{tpu_custom_call.1} parent=0
    _
  %s20 = ssub.s32 1, %s18
  %s21 = scalar_select 0, %s20, %s18
  $region1: #{tpu_custom_call.1} parent=0
    #allocation10 [shape = 'u8[49152]{0}', space=vmem, size = 0xc000, scoped, tag = 'input window, operand 0, single buffered']
    #allocation11 [shape = 's32[1]{0}', space=sflag, size = 0x4, scoped, tag = 'scoped memory for tpu_custom_call.1']
    #allocation12 [shape = 's32[1]{0}', space=sflag, size = 0x4, scoped, tag = 'scoped memory for tpu_custom_call.1']
    #allocation13 [shape = 'u8[589824]{0}', space=vmem, size = 0x90000, scoped, tag = 'input window, operand 1, single buffered']
    #allocation14 [shape = 's32[1]{0}', space=sflag, size = 0x4, scoped, tag = 'scoped memory for tpu_custom_call.1']
    #allocation15 [shape = 'u8[98304]{0}', space=vmem, size = 0x18000, scoped, tag = 'input window, operand 3, single buffered']
    #allocation16 [shape = 'u8[98304]{0}', space=vmem, size = 0x18000, scoped, tag = 'input window, operand 5, single buffered']
    #allocation17 [shape = 's32[1]{0}', space=sflag, size = 0x4, scoped, tag = 'scoped memory for tpu_custom_call.1']
    #allocation18 [shape = 'u8[131072]{0}', space=vmem, size = 0x20000, scoped, tag = 'input window, operand 7, single buffered']
    #allocation19 [shape = 'u8[32768]{0}', space=vmem, size = 0x8000, scoped, tag = 'input window, operand 9, single buffered']
    #allocation20 [shape = 's32[1]{0}', space=sflag, size = 0x4, scoped, tag = 'scoped memory for tpu_custom_call.1']
    #allocation21 [shape = 'u8[32768]{0}', space=vmem, size = 0x8000, scoped, tag = 'input window, operand 10, single buffered']
    #allocation22 [shape = 'u8[524288]{0}', space=vmem, size = 0x80000, scoped, tag = 'input window, operand 11, single buffered']
    #allocation23 [shape = 's32[1]{0}', space=sflag, size = 0x4, scoped, tag = 'scoped memory for tpu_custom_call.1']
    #allocation24 [shape = 'u8[524288]{0}', space=vmem, size = 0x80000, scoped, tag = 'input window, operand 13, single buffered']
    #allocation25 [shape = 'u8[131072]{0}', space=vmem, size = 0x20000, scoped, tag = 'input window, operand 15, single buffered']
    #allocation26 [shape = 's32[1]{0}', space=sflag, size = 0x4, scoped, tag = 'scoped memory for tpu_custom_call.1']
    #allocation27 [shape = 'u8[4096]{0}', space=vmem, size = 0x1000, scoped, tag = 'output window, operand 0, single buffered']
    %22 = vsyncpa [#allocation11], 0
    %23 = vsyncpa [#allocation14], 0
    %24 = vsyncpa [#allocation17], 0
    %25 = vsyncpa [#allocation20], 0
    %26 = vsyncpa [#allocation23], 0
    %27 = vsyncpa [#allocation26], 0
    %28 = vsyncpa [#allocation12], 0
    // Predicated region
    $region2: #{tpu_custom_call.1} parent=1 // pred_check
      _
    $region3: #{tpu_custom_call.1} parent=1 // pred_check_branch
      %30 = sbr.rel (0) target = $region5
    $region4: #{tpu_custom_call.1} parent=1 // pred_region
      %s32 = ssub.s32 1536, 1536
      %33 = vsyncadd [#allocation11], %s32
      %s34 = sshll.u32 [#allocation10], 4
      %s35 = int_to_ptr.vmem [resolvable:$true] %s34
      %40 = dma.hbm_to_vmem [thread:$0]  %s0, 1536, %s35, [#allocation11], 192, 192, 12
    $region5: #{tpu_custom_call.1} parent=1 // pred_fallthru
      _
    // Predicated region
    $region6: #{tpu_custom_call.1} parent=1 // pred_check
      _
    $region7: #{tpu_custom_call.1} parent=1 // pred_check_branch
      %42 = sbr.rel (0) target = $region9
    $region8: #{tpu_custom_call.1} parent=1 // pred_region
      %s44 = ssub.s32 18432, 18432
      %45 = vsyncadd [#allocation14], %s44
      %s46 = sshll.u32 [#allocation13], 4
      %s47 = int_to_ptr.vmem [resolvable:$true] %s46
      %52 = dma.hbm_to_vmem [thread:$0]  %s1, 18432, %s47, [#allocation14], 384, 384, 24
    $region9: #{tpu_custom_call.1} parent=1 // pred_fallthru
      _
    // Predicated region
    $region10: #{tpu_custom_call.1} parent=1 // pred_check
      _
    $region11: #{tpu_custom_call.1} parent=1 // pred_check_branch
      %54 = sbr.rel (0) target = $region13
    $region12: #{tpu_custom_call.1} parent=1 // pred_region
      _
    $region13: #{tpu_custom_call.1} parent=1 // pred_fallthru
      _
    // Predicated region
    $region14: #{tpu_custom_call.1} parent=1 // pred_check
      _
    $region15: #{tpu_custom_call.1} parent=1 // pred_check_branch
      %56 = sbr.rel (0) target = $region17
    $region16: #{tpu_custom_call.1} parent=1 // pred_region
      %s58 = ssub.s32 3072, 3072
      %59 = vsyncadd [#allocation14], %s58
      %s60 = sshll.u32 [#allocation15], 4
      %s61 = int_to_ptr.vmem [resolvable:$true] %s60
      %66 = dma.hbm_to_vmem [thread:$0]  %s3, 3072, %s61, [#allocation14], 192, 192, 12
    $region17: #{tpu_custom_call.1} parent=1 // pred_fallthru
      _
    // Predicated region
    $region18: #{tpu_custom_call.1} parent=1 // pred_check
      _
    $region19: #{tpu_custom_call.1} parent=1 // pred_check_branch
      %68 = sbr.rel (0) target = $region21
    $region20: #{tpu_custom_call.1} parent=1 // pred_region
      _
    $region21: #{tpu_custom_call.1} parent=1 // pred_fallthru
      _
    // Predicated region
    $region22: #{tpu_custom_call.1} parent=1 // pred_check
      _
    $region23: #{tpu_custom_call.1} parent=1 // pred_check_branch
      %70 = sbr.rel (0) target = $region25
    $region24: #{tpu_custom_call.1} parent=1 // pred_region
      %s72 = ssub.s32 3072, 3072
      %73 = vsyncadd [#allocation17], %s72
      %s74 = sshll.u32 [#allocation16], 4
      %s75 = int_to_ptr.vmem [resolvable:$true] %s74
      %80 = dma.hbm_to_vmem [thread:$0]  %s5, 3072, %s75, [#allocation17], 192, 192, 12
    $region25: #{tpu_custom_call.1} parent=1 // pred_fallthru
      _
    // Predicated region
    $region26: #{tpu_custom_call.1} parent=1 // pred_check
      _
    $region27: #{tpu_custom_call.1} parent=1 // pred_check_branch
      %82 = sbr.rel (0) target = $region29
    $region28: #{tpu_custom_call.1} parent=1 // pred_region
      _
    $region29: #{tpu_custom_call.1} parent=1 // pred_fallthru
      _
    // Predicated region
    $region30: #{tpu_custom_call.1} parent=1 // pred_check
      _
    $region31: #{tpu_custom_call.1} parent=1 // pred_check_branch
      %84 = sbr.rel (0) target = $region33
    $region32: #{tpu_custom_call.1} parent=1 // pred_region
      %s86 = ssub.s32 4096, 4096
      %87 = vsyncadd [#allocation17], %s86
      %s88 = sshll.u32 [#allocation18], 4
      %s89 = int_to_ptr.vmem [resolvable:$true] %s88
      %94 = dma.hbm_to_vmem [thread:$0]  %s7, 4096, %s89, [#allocation17], 128, 128, 8
    $region33: #{tpu_custom_call.1} parent=1 // pred_fallthru
      _
    // Predicated region
    $region34: #{tpu_custom_call.1} parent=1 // pred_check
      _
    $region35: #{tpu_custom_call.1} parent=1 // pred_check_branch
      %96 = sbr.rel (0) target = $region37
    $region36: #{tpu_custom_call.1} parent=1 // pred_region
      _
    $region37: #{tpu_custom_call.1} parent=1 // pred_fallthru
      _
    // Predicated region
    $region38: #{tpu_custom_call.1} parent=1 // pred_check
      _
    $region39: #{tpu_custom_call.1} parent=1 // pred_check_branch
      %98 = sbr.rel (0) target = $region41
    $region40: #{tpu_custom_call.1} parent=1 // pred_region
      %s100 = ssub.s32 1024, 1024
      %101 = vsyncadd [#allocation20], %s100
      %s102 = sshll.u32 [#allocation19], 4
      %s103 = int_to_ptr.vmem [resolvable:$true] %s102
      %108 = dma.hbm_to_vmem [thread:$0]  %s9, 1024, %s103, [#allocation20], 64, 64, 4
    $region41: #{tpu_custom_call.1} parent=1 // pred_fallthru
      _
    // Predicated region
    $region42: #{tpu_custom_call.1} parent=1 // pred_check
      _
    $region43: #{tpu_custom_call.1} parent=1 // pred_check_branch
      %110 = sbr.rel (0) target = $region45
    $region44: #{tpu_custom_call.1} parent=1 // pred_region
      %s112 = ssub.s32 1024, 1024
      %113 = vsyncadd [#allocation20], %s112
      %s114 = sshll.u32 [#allocation21], 4
      %s115 = int_to_ptr.vmem [resolvable:$true] %s114
      %120 = dma.hbm_to_vmem [thread:$0]  %s10, 1024, %s115, [#allocation20], 64, 64, 4
    $region45: #{tpu_custom_call.1} parent=1 // pred_fallthru
      _
    // Predicated region
    $region46: #{tpu_custom_call.1} parent=1 // pred_check
      _
    $region47: #{tpu_custom_call.1} parent=1 // pred_check_branch
      %122 = sbr.rel (0) target = $region49
    $region48: #{tpu_custom_call.1} parent=1 // pred_region
      %s124 = ssub.s32 16384, 16384
      %125 = vsyncadd [#allocation23], %s124
      %s126 = sshll.u32 [#allocation22], 4
      %s127 = int_to_ptr.vmem [resolvable:$true] %s126
      %132 = dma.hbm_to_vmem [thread:$0]  %s11, 16384, %s127, [#allocation23], 256, 256, 16
    $region49: #{tpu_custom_call.1} parent=1 // pred_fallthru
      _
    // Predicated region
    $region50: #{tpu_custom_call.1} parent=1 // pred_check
      _
    $region51: #{tpu_custom_call.1} parent=1 // pred_check_branch
      %134 = sbr.rel (0) target = $region53
    $region52: #{tpu_custom_call.1} parent=1 // pred_region
      _
    $region53: #{tpu_custom_call.1} parent=1 // pred_fallthru
      _
    // Predicated region
    $region54: #{tpu_custom_call.1} parent=1 // pred_check
      _
    $region55: #{tpu_custom_call.1} parent=1 // pred_check_branch
      %136 = sbr.rel (0) target = $region57
    $region56: #{tpu_custom_call.1} parent=1 // pred_region
      %s138 = ssub.s32 16384, 16384
      %139 = vsyncadd [#allocation23], %s138
      %s140 = sshll.u32 [#allocation24], 4
      %s141 = int_to_ptr.vmem [resolvable:$true] %s140
      %146 = dma.hbm_to_vmem [thread:$0]  %s13, 16384, %s141, [#allocation23], 256, 256, 16
    $region57: #{tpu_custom_call.1} parent=1 // pred_fallthru
      _
    // Predicated region
    $region58: #{tpu_custom_call.1} parent=1 // pred_check
      _
    $region59: #{tpu_custom_call.1} parent=1 // pred_check_branch
      %148 = sbr.rel (0) target = $region61
    $region60: #{tpu_custom_call.1} parent=1 // pred_region
      _
    $region61: #{tpu_custom_call.1} parent=1 // pred_fallthru
      _
    // Predicated region
    $region62: #{tpu_custom_call.1} parent=1 // pred_check
      _
    $region63: #{tpu_custom_call.1} parent=1 // pred_check_branch
      %150 = sbr.rel (0) target = $region65
    $region64: #{tpu_custom_call.1} parent=1 // pred_region
      %s152 = ssub.s32 4096, 4096
      %153 = vsyncadd [#allocation26], %s152
      %s154 = sshll.u32 [#allocation25], 4
      %s155 = int_to_ptr.vmem [resolvable:$true] %s154
      %160 = dma.hbm_to_vmem [thread:$0]  %s15, 4096, %s155, [#allocation26], 64, 64, 4
    $region65: #{tpu_custom_call.1} parent=1 // pred_fallthru
      _
    // Predicated region
    $region66: #{tpu_custom_call.1} parent=1 // pred_check
      _
    $region67: #{tpu_custom_call.1} parent=1 // pred_check_branch
      %162 = sbr.rel (0) target = $region69
    $region68: #{tpu_custom_call.1} parent=1 // pred_region
      _
    $region69: #{tpu_custom_call.1} parent=1 // pred_fallthru
      _
    // Predicated region
    $region70: #{tpu_custom_call.1} parent=1 // pred_check
      _
    $region71: #{tpu_custom_call.1} parent=1 // pred_check_branch
      %164 = sbr.rel (0) target = $region73
    $region72: #{tpu_custom_call.1} parent=1 // pred_region
      %165 = dma.done [#allocation11], 1536
    $region73: #{tpu_custom_call.1} parent=1 // pred_fallthru
      _
    // Predicated region
    $region74: #{tpu_custom_call.1} parent=1 // pred_check
      _
    $region75: #{tpu_custom_call.1} parent=1 // pred_check_branch
      %167 = sbr.rel (0) target = $region77
    $region76: #{tpu_custom_call.1} parent=1 // pred_region
      %168 = dma.done [#allocation14], 18432
    $region77: #{tpu_custom_call.1} parent=1 // pred_fallthru
      _
    // Predicated region
    $region78: #{tpu_custom_call.1} parent=1 // pred_check
      _
    $region79: #{tpu_custom_call.1} parent=1 // pred_check_branch
      %170 = sbr.rel (0) target = $region81
    $region80: #{tpu_custom_call.1} parent=1 // pred_region
      %171 = dma.done [#allocation14], 3072
    $region81: #{tpu_custom_call.1} parent=1 // pred_fallthru
      _
    // Predicated region
    $region82: #{tpu_custom_call.1} parent=1 // pred_check
      _
    $region83: #{tpu_custom_call.1} parent=1 // pred_check_branch
      %173 = sbr.rel (0) target = $region85
    $region84: #{tpu_custom_call.1} parent=1 // pred_region
      %174 = dma.done [#allocation17], 3072
    $region85: #{tpu_custom_call.1} parent=1 // pred_fallthru
      _
    // Predicated region
    $region86: #{tpu_custom_call.1} parent=1 // pred_check
      _
    $region87: #{tpu_custom_call.1} parent=1 // pred_check_branch
      %176 = sbr.rel (0) target = $region89
    $region88: #{tpu_custom_call.1} parent=1 // pred_region
      %177 = dma.done [#allocation17], 4096
    $region89: #{tpu_custom_call.1} parent=1 // pred_fallthru
      _
    // Predicated region
    $region90: #{tpu_custom_call.1} parent=1 // pred_check
      _
    $region91: #{tpu_custom_call.1} parent=1 // pred_check_branch
      %179 = sbr.rel (0) target = $region93
    $region92: #{tpu_custom_call.1} parent=1 // pred_region
      %180 = dma.done [#allocation20], 1024
    $region93: #{tpu_custom_call.1} parent=1 // pred_fallthru
      _
    // Predicated region
    $region94: #{tpu_custom_call.1} parent=1 // pred_check
      _
    $region95: #{tpu_custom_call.1} parent=1 // pred_check_branch
      %182 = sbr.rel (0) target = $region97
    $region96: #{tpu_custom_call.1} parent=1 // pred_region
      %183 = dma.done [#allocation20], 1024
    $region97: #{tpu_custom_call.1} parent=1 // pred_fallthru
      _
    // Predicated region
    $region98: #{tpu_custom_call.1} parent=1 // pred_check
      _
    $region99: #{tpu_custom_call.1} parent=1 // pred_check_branch
      %185 = sbr.rel (0) target = $region101
    $region100: #{tpu_custom_call.1} parent=1 // pred_region
      %186 = dma.done [#allocation23], 16384
    $region101: #{tpu_custom_call.1} parent=1 // pred_fallthru
      _
    // Predicated region
    $region102: #{tpu_custom_call.1} parent=1 // pred_check
      _
    $region103: #{tpu_custom_call.1} parent=1 // pred_check_branch
      %188 = sbr.rel (0) target = $region105
    $region104: #{tpu_custom_call.1} parent=1 // pred_region
      %189 = dma.done [#allocation23], 16384
    $region105: #{tpu_custom_call.1} parent=1 // pred_fallthru
      _
    // Predicated region
    $region106: #{tpu_custom_call.1} parent=1 // pred_check
      _
    $region107: #{tpu_custom_call.1} parent=1 // pred_check_branch
      %191 = sbr.rel (0) target = $region109
    $region108: #{tpu_custom_call.1} parent=1 // pred_region
      %192 = dma.done [#allocation26], 4096
    $region109: #{tpu_custom_call.1} parent=1 // pred_fallthru
      _
    %v194 = vld [vmem:[#allocation10] sm:$0xff]
    %v195 = vld [vmem:[#allocation10 + $0x8] sm:$0xf]
    %v196 = vld [vmem:[#allocation10 + $0xc] sm:$0xff]
    %v197 = vld [vmem:[#allocation10 + $0x14] sm:$0xf]
    %v198 = vld [vmem:[#allocation10 + $0x18] sm:$0xff]
    %v199 = vld [vmem:[#allocation10 + $0x20] sm:$0xf]
    %v200 = vld [vmem:[#allocation10 + $0x24] sm:$0xff]
    %v201 = vld [vmem:[#allocation10 + $0x2c] sm:$0xf]
    %v202 = vld [vmem:[#allocation10 + $0x30] sm:$0xff]
    %v203 = vld [vmem:[#allocation10 + $0x38] sm:$0xf]
    %v204 = vld [vmem:[#allocation10 + $0x3c] sm:$0xff]
    %v205 = vld [vmem:[#allocation10 + $0x44] sm:$0xf]
    %v206 = vld [vmem:[#allocation10 + $0x48] sm:$0xff]
    %v207 = vld [vmem:[#allocation10 + $0x50] sm:$0xf]
    %v208 = vld [vmem:[#allocation10 + $0x54] sm:$0xff]
    %v209 = vld [vmem:[#allocation10 + $0x5c] sm:$0xf]
    %v210 = vld [vmem:[#allocation13] sm:$0xff]
    %v211 = vld [vmem:[#allocation13 + $0x8] sm:$0xff]
    %v212 = vld [vmem:[#allocation13 + $0x10] sm:$0xff]
    %v213 = vld [vmem:[#allocation13 + $0x18] sm:$0xff]
    %v214 = vld [vmem:[#allocation13 + $0x20] sm:$0xff]
    %v215 = vld [vmem:[#allocation13 + $0x28] sm:$0xff]
    %v216 = vld [vmem:[#allocation13 + $0x30] sm:$0xff]
    %v217 = vld [vmem:[#allocation13 + $0x38] sm:$0xff]
    %v218 = vld [vmem:[#allocation13 + $0x40] sm:$0xff]
    %v219 = vld [vmem:[#allocation13 + $0x48] sm:$0xff]
    %v220 = vld [vmem:[#allocation13 + $0x50] sm:$0xff]
    %v221 = vld [vmem:[#allocation13 + $0x58] sm:$0xff]
    %v222 = vld [vmem:[#allocation13 + $0x60] sm:$0xff]
    %v223 = vld [vmem:[#allocation13 + $0x68] sm:$0xff]
    %v224 = vld [vmem:[#allocation13 + $0x70] sm:$0xff]
    %v225 = vld [vmem:[#allocation13 + $0x78] sm:$0xff]
    %v226 = vld [vmem:[#allocation13 + $0x80] sm:$0xff]
    %v227 = vld [vmem:[#allocation13 + $0x88] sm:$0xff]
    %v228 = vld [vmem:[#allocation13 + $0x90] sm:$0xff]
    %v229 = vld [vmem:[#allocation13 + $0x98] sm:$0xff]
    %v230 = vld [vmem:[#allocation13 + $0xa0] sm:$0xff]
    %v231 = vld [vmem:[#allocation13 + $0xa8] sm:$0xff]
    %v232 = vld [vmem:[#allocation13 + $0xb0] sm:$0xff]
    %v233 = vld [vmem:[#allocation13 + $0xb8] sm:$0xff]
    %v234 = vld [vmem:[#allocation13 + $0xc0] sm:$0xff]
    %v235 = vld [vmem:[#allocation13 + $0xc8] sm:$0xff]
    %v236 = vld [vmem:[#allocation13 + $0xd0] sm:$0xff]
    %v237 = vld [vmem:[#allocation13 + $0xd8] sm:$0xff]
    %v238 = vld [vmem:[#allocation13 + $0xe0] sm:$0xff]
    %v239 = vld [vmem:[#allocation13 + $0xe8] sm:$0xff]
    %v240 = vld [vmem:[#allocation13 + $0xf0] sm:$0xff]
    %v241 = vld [vmem:[#allocation13 + $0xf8] sm:$0xff]
    %v242 = vld [vmem:[#allocation13 + $0x100] sm:$0xff]
    %v243 = vld [vmem:[#allocation13 + $0x108] sm:$0xff]
    %v244 = vld [vmem:[#allocation13 + $0x110] sm:$0xff]
    %v245 = vld [vmem:[#allocation13 + $0x118] sm:$0xff]
    %v246 = vld [vmem:[#allocation13 + $0x120] sm:$0xff]
    %v247 = vld [vmem:[#allocation13 + $0x128] sm:$0xff]
    %v248 = vld [vmem:[#allocation13 + $0x130] sm:$0xff]
    %v249 = vld [vmem:[#allocation13 + $0x138] sm:$0xff]
    %v250 = vld [vmem:[#allocation13 + $0x140] sm:$0xff]
    %v251 = vld [vmem:[#allocation13 + $0x148] sm:$0xff]
    %v252 = vld [vmem:[#allocation13 + $0x150] sm:$0xff]
    %v253 = vld [vmem:[#allocation13 + $0x158] sm:$0xff]
    %v254 = vld [vmem:[#allocation13 + $0x160] sm:$0xff]
    %v255 = vld [vmem:[#allocation13 + $0x168] sm:$0xff]
    %v256 = vld [vmem:[#allocation13 + $0x170] sm:$0xff]
    %v257 = vld [vmem:[#allocation13 + $0x178] sm:$0xff]
    %v258 = vld [vmem:[#allocation13 + $0x180] sm:$0xff]
    %v259 = vld [vmem:[#allocation13 + $0x188] sm:$0xff]
    %v260 = vld [vmem:[#allocation13 + $0x190] sm:$0xff]
    %v261 = vld [vmem:[#allocation13 + $0x198] sm:$0xff]
    %v262 = vld [vmem:[#allocation13 + $0x1a0] sm:$0xff]
    %v263 = vld [vmem:[#allocation13 + $0x1a8] sm:$0xff]
    %v264 = vld [vmem:[#allocation13 + $0x1b0] sm:$0xff]
    %v265 = vld [vmem:[#allocation13 + $0x1b8] sm:$0xff]
    %v266 = vld [vmem:[#allocation13 + $0x1c0] sm:$0xff]
    %v267 = vld [vmem:[#allocation13 + $0x1c8] sm:$0xff]
    %v268 = vld [vmem:[#allocation13 + $0x1d0] sm:$0xff]
    %v269 = vld [vmem:[#allocation13 + $0x1d8] sm:$0xff]
    %v270 = vld [vmem:[#allocation13 + $0x1e0] sm:$0xff]
    %v271 = vld [vmem:[#allocation13 + $0x1e8] sm:$0xff]
    %v272 = vld [vmem:[#allocation13 + $0x1f0] sm:$0xff]
    %v273 = vld [vmem:[#allocation13 + $0x1f8] sm:$0xff]
    %v274 = vld [vmem:[#allocation13 + $0x200] sm:$0xff]
    %v275 = vld [vmem:[#allocation13 + $0x208] sm:$0xff]
    %v276 = vld [vmem:[#allocation13 + $0x210] sm:$0xff]
    %v277 = vld [vmem:[#allocation13 + $0x218] sm:$0xff]
    %v278 = vld [vmem:[#allocation13 + $0x220] sm:$0xff]
    %v279 = vld [vmem:[#allocation13 + $0x228] sm:$0xff]
    %v280 = vld [vmem:[#allocation13 + $0x230] sm:$0xff]
    %v281 = vld [vmem:[#allocation13 + $0x238] sm:$0xff]
    %v282 = vld [vmem:[#allocation13 + $0x240] sm:$0xff]
    %v283 = vld [vmem:[#allocation13 + $0x248] sm:$0xff]
    %v284 = vld [vmem:[#allocation13 + $0x250] sm:$0xff]
    %v285 = vld [vmem:[#allocation13 + $0x258] sm:$0xff]
    %v286 = vld [vmem:[#allocation13 + $0x260] sm:$0xff]
    %v287 = vld [vmem:[#allocation13 + $0x268] sm:$0xff]
    %v288 = vld [vmem:[#allocation13 + $0x270] sm:$0xff]
    %v289 = vld [vmem:[#allocation13 + $0x278] sm:$0xff]
    %v290 = vld [vmem:[#allocation13 + $0x280] sm:$0xff]
    %v291 = vld [vmem:[#allocation13 + $0x288] sm:$0xff]
    %v292 = vld [vmem:[#allocation13 + $0x290] sm:$0xff]
    %v293 = vld [vmem:[#allocation13 + $0x298] sm:$0xff]
    %v294 = vld [vmem:[#allocation13 + $0x2a0] sm:$0xff]
    %v295 = vld [vmem:[#allocation13 + $0x2a8] sm:$0xff]
    %v296 = vld [vmem:[#allocation13 + $0x2b0] sm:$0xff]
    %v297 = vld [vmem:[#allocation13 + $0x2b8] sm:$0xff]
    %v298 = vld [vmem:[#allocation13 + $0x2c0] sm:$0xff]
    %v299 = vld [vmem:[#allocation13 + $0x2c8] sm:$0xff]
    %v300 = vld [vmem:[#allocation13 + $0x2d0] sm:$0xff]
    %v301 = vld [vmem:[#allocation13 + $0x2d8] sm:$0xff]
    %v302 = vld [vmem:[#allocation13 + $0x2e0] sm:$0xff]
    %v303 = vld [vmem:[#allocation13 + $0x2e8] sm:$0xff]
    %v304 = vld [vmem:[#allocation13 + $0x2f0] sm:$0xff]
    %v305 = vld [vmem:[#allocation13 + $0x2f8] sm:$0xff]
    %v306 = vld [vmem:[#allocation13 + $0x300] sm:$0xff]
    %v307 = vld [vmem:[#allocation13 + $0x308] sm:$0xff]
    %v308 = vld [vmem:[#allocation13 + $0x310] sm:$0xff]
    %v309 = vld [vmem:[#allocation13 + $0x318] sm:$0xff]
    %v310 = vld [vmem:[#allocation13 + $0x320] sm:$0xff]
    %v311 = vld [vmem:[#allocation13 + $0x328] sm:$0xff]
    %v312 = vld [vmem:[#allocation13 + $0x330] sm:$0xff]
    %v313 = vld [vmem:[#allocation13 + $0x338] sm:$0xff]
    %v314 = vld [vmem:[#allocation13 + $0x340] sm:$0xff]
    %v315 = vld [vmem:[#allocation13 + $0x348] sm:$0xff]
    %v316 = vld [vmem:[#allocation13 + $0x350] sm:$0xff]
    %v317 = vld [vmem:[#allocation13 + $0x358] sm:$0xff]
    %v318 = vld [vmem:[#allocation13 + $0x360] sm:$0xff]
    %v319 = vld [vmem:[#allocation13 + $0x368] sm:$0xff]
    %v320 = vld [vmem:[#allocation13 + $0x370] sm:$0xff]
    %v321 = vld [vmem:[#allocation13 + $0x378] sm:$0xff]
    %v322 = vld [vmem:[#allocation13 + $0x380] sm:$0xff]
    %v323 = vld [vmem:[#allocation13 + $0x388] sm:$0xff]
    %v324 = vld [vmem:[#allocation13 + $0x390] sm:$0xff]
    %v325 = vld [vmem:[#allocation13 + $0x398] sm:$0xff]
    %v326 = vld [vmem:[#allocation13 + $0x3a0] sm:$0xff]
    %v327 = vld [vmem:[#allocation13 + $0x3a8] sm:$0xff]
    %v328 = vld [vmem:[#allocation13 + $0x3b0] sm:$0xff]
    %v329 = vld [vmem:[#allocation13 + $0x3b8] sm:$0xff]
    %v330 = vld [vmem:[#allocation13 + $0x3c0] sm:$0xff]
    %v331 = vld [vmem:[#allocation13 + $0x3c8] sm:$0xff]
    %v332 = vld [vmem:[#allocation13 + $0x3d0] sm:$0xff]
    %v333 = vld [vmem:[#allocation13 + $0x3d8] sm:$0xff]
    %v334 = vld [vmem:[#allocation13 + $0x3e0] sm:$0xff]
    %v335 = vld [vmem:[#allocation13 + $0x3e8] sm:$0xff]
    %v336 = vld [vmem:[#allocation13 + $0x3f0] sm:$0xff]
    %v337 = vld [vmem:[#allocation13 + $0x3f8] sm:$0xff]
    %v338 = vld [vmem:[#allocation13 + $0x400] sm:$0xff]
    %v339 = vld [vmem:[#allocation13 + $0x408] sm:$0xff]
    %v340 = vld [vmem:[#allocation13 + $0x410] sm:$0xff]
    %v341 = vld [vmem:[#allocation13 + $0x418] sm:$0xff]
    %v342 = vld [vmem:[#allocation13 + $0x420] sm:$0xff]
    %v343 = vld [vmem:[#allocation13 + $0x428] sm:$0xff]
    %v344 = vld [vmem:[#allocation13 + $0x430] sm:$0xff]
    %v345 = vld [vmem:[#allocation13 + $0x438] sm:$0xff]
    %v346 = vld [vmem:[#allocation13 + $0x440] sm:$0xff]
    %v347 = vld [vmem:[#allocation13 + $0x448] sm:$0xff]
    %v348 = vld [vmem:[#allocation13 + $0x450] sm:$0xff]
    %v349 = vld [vmem:[#allocation13 + $0x458] sm:$0xff]
    %v350 = vld [vmem:[#allocation13 + $0x460] sm:$0xff]
    %v351 = vld [vmem:[#allocation13 + $0x468] sm:$0xff]
    %v352 = vld [vmem:[#allocation13 + $0x470] sm:$0xff]
    %v353 = vld [vmem:[#allocation13 + $0x478] sm:$0xff]
    %v354 = vld [vmem:[%s2] sm:$0x3f]
    %v356 = vlaneseq
    %v357 = vshrl.u32 %v356, 7
    %v358 = vsub.s32 0, %v357
    %v359 = vrot.slane %v354, %v358
    %v360 = vlaneseq
    %v361 = vshrl.u32 %v360, 7
    %v362 = vsub.s32 1, %v361
    %v363 = vrot.slane %v354, %v362
    %v364 = vlaneseq
    %v365 = vshrl.u32 %v364, 7
    %v366 = vsub.s32 2, %v365
    %v367 = vrot.slane %v354, %v366
    %v368 = vlaneseq
    %v369 = vshrl.u32 %v368, 7
    %v370 = vsub.s32 3, %v369
    %v371 = vrot.slane %v354, %v370
    %v372 = vlaneseq
    %v373 = vshrl.u32 %v372, 7
    %v374 = vsub.s32 4, %v373
    %v375 = vrot.slane %v354, %v374
    %v376 = vlaneseq
    %v377 = vshrl.u32 %v376, 7
    %v378 = vsub.s32 5, %v377
    %v379 = vrot.slane %v354, %v378
    %v402 = vunpack.c.l.b16 %v194
    %v403 = vunpack.c.h.b16 %v194
    %v404 = vunpack.c.l.b16 %v195
    %v405 = vunpack.c.l.b16 %v196
    %v406 = vunpack.c.h.b16 %v196
    %v407 = vunpack.c.l.b16 %v197
    %v408 = vunpack.c.l.b16 %v198
    %v409 = vunpack.c.h.b16 %v198
    %v410 = vunpack.c.l.b16 %v199
    %v411 = vunpack.c.l.b16 %v200
    %v412 = vunpack.c.h.b16 %v200
    %v413 = vunpack.c.l.b16 %v201
    %v414 = vunpack.c.l.b16 %v202
    %v415 = vunpack.c.h.b16 %v202
    %v416 = vunpack.c.l.b16 %v203
    %v417 = vunpack.c.l.b16 %v204
    %v418 = vunpack.c.h.b16 %v204
    %v419 = vunpack.c.l.b16 %v205
    %v420 = vunpack.c.l.b16 %v206
    %v421 = vunpack.c.h.b16 %v206
    %v422 = vunpack.c.l.b16 %v207
    %v423 = vunpack.c.l.b16 %v208
    %v424 = vunpack.c.h.b16 %v208
    %v425 = vunpack.c.l.b16 %v209
    %v426 = vpack.c.b16 %v405, %v402
    %v427 = vpack.c.b16 %v406, %v403
    %v428 = vpack.c.b16 %v407, %v404
    %v429 = vpack.c.b16 %v411, %v408
    %v430 = vpack.c.b16 %v412, %v409
    %v431 = vpack.c.b16 %v413, %v410
    %v432 = vpack.c.b16 %v417, %v414
    %v433 = vpack.c.b16 %v418, %v415
    %v434 = vpack.c.b16 %v419, %v416
    %v435 = vpack.c.b16 %v423, %v420
    %v436 = vpack.c.b16 %v424, %v421
    %v437 = vpack.c.b16 %v425, %v422
    %v594 = vunpack.c.l.b16 %v210
    %v595 = vunpack.c.h.b16 %v210
    %v596 = vunpack.c.l.b16 %v211
    %v597 = vunpack.c.h.b16 %v211
    %v598 = vunpack.c.l.b16 %v212
    %v599 = vunpack.c.h.b16 %v212
    %v600 = vunpack.c.l.b16 %v213
    %v601 = vunpack.c.h.b16 %v213
    %v602 = vunpack.c.l.b16 %v214
    %v603 = vunpack.c.h.b16 %v214
    %v604 = vunpack.c.l.b16 %v215
    %v605 = vunpack.c.h.b16 %v215
    %v606 = vunpack.c.l.b16 %v216
    %v607 = vunpack.c.h.b16 %v216
    %v608 = vunpack.c.l.b16 %v217
    %v609 = vunpack.c.h.b16 %v217
    %v610 = vunpack.c.l.b16 %v218
    %v611 = vunpack.c.h.b16 %v218
    %v612 = vunpack.c.l.b16 %v219
    %v613 = vunpack.c.h.b16 %v219
    %v614 = vunpack.c.l.b16 %v220
    %v615 = vunpack.c.h.b16 %v220
    %v616 = vunpack.c.l.b16 %v221
    %v617 = vunpack.c.h.b16 %v221
    %v618 = vunpack.c.l.b16 %v222
    %v619 = vunpack.c.h.b16 %v222
    %v620 = vunpack.c.l.b16 %v223
    %v621 = vunpack.c.h.b16 %v223
    %v622 = vunpack.c.l.b16 %v224
    %v623 = vunpack.c.h.b16 %v224
    %v624 = vunpack.c.l.b16 %v225
    %v625 = vunpack.c.h.b16 %v225
    %v626 = vunpack.c.l.b16 %v226
    %v627 = vunpack.c.h.b16 %v226
    %v628 = vunpack.c.l.b16 %v227
    %v629 = vunpack.c.h.b16 %v227
    %v630 = vunpack.c.l.b16 %v228
    %v631 = vunpack.c.h.b16 %v228
    %v632 = vunpack.c.l.b16 %v229
    %v633 = vunpack.c.h.b16 %v229
    %v634 = vunpack.c.l.b16 %v230
    %v635 = vunpack.c.h.b16 %v230
    %v636 = vunpack.c.l.b16 %v231
    %v637 = vunpack.c.h.b16 %v231
    %v638 = vunpack.c.l.b16 %v232
    %v639 = vunpack.c.h.b16 %v232
    %v640 = vunpack.c.l.b16 %v233
    %v641 = vunpack.c.h.b16 %v233
    %v642 = vunpack.c.l.b16 %v234
    %v643 = vunpack.c.h.b16 %v234
    %v644 = vunpack.c.l.b16 %v235
    %v645 = vunpack.c.h.b16 %v235
    %v646 = vunpack.c.l.b16 %v236
    %v647 = vunpack.c.h.b16 %v236
    %v648 = vunpack.c.l.b16 %v237
    %v649 = vunpack.c.h.b16 %v237
    %v650 = vunpack.c.l.b16 %v238
    %v651 = vunpack.c.h.b16 %v238
    %v652 = vunpack.c.l.b16 %v239
    %v653 = vunpack.c.h.b16 %v239
    %v654 = vunpack.c.l.b16 %v240
    %v655 = vunpack.c.h.b16 %v240
    %v656 = vunpack.c.l.b16 %v241
    %v657 = vunpack.c.h.b16 %v241
    %v658 = vunpack.c.l.b16 %v242
    %v659 = vunpack.c.h.b16 %v242
    %v660 = vunpack.c.l.b16 %v243
    %v661 = vunpack.c.h.b16 %v243
    %v662 = vunpack.c.l.b16 %v244
    %v663 = vunpack.c.h.b16 %v244
    %v664 = vunpack.c.l.b16 %v245
    %v665 = vunpack.c.h.b16 %v245
    %v666 = vunpack.c.l.b16 %v246
    %v667 = vunpack.c.h.b16 %v246
    %v668 = vunpack.c.l.b16 %v247
    %v669 = vunpack.c.h.b16 %v247
    %v670 = vunpack.c.l.b16 %v248
    %v671 = vunpack.c.h.b16 %v248
    %v672 = vunpack.c.l.b16 %v249
    %v673 = vunpack.c.h.b16 %v249
    %v674 = vunpack.c.l.b16 %v250
    %v675 = vunpack.c.h.b16 %v250
    %v676 = vunpack.c.l.b16 %v251
    %v677 = vunpack.c.h.b16 %v251
    %v678 = vunpack.c.l.b16 %v252
    %v679 = vunpack.c.h.b16 %v252
    %v680 = vunpack.c.l.b16 %v253
    %v681 = vunpack.c.h.b16 %v253
    %v682 = vunpack.c.l.b16 %v254
    %v683 = vunpack.c.h.b16 %v254
    %v684 = vunpack.c.l.b16 %v255
    %v685 = vunpack.c.h.b16 %v255
    %v686 = vunpack.c.l.b16 %v256
    %v687 = vunpack.c.h.b16 %v256
    %v688 = vunpack.c.l.b16 %v257
    %v689 = vunpack.c.h.b16 %v257
    %v690 = vunpack.c.l.b16 %v258
    %v691 = vunpack.c.h.b16 %v258
    %v692 = vunpack.c.l.b16 %v259
    %v693 = vunpack.c.h.b16 %v259
    %v694 = vunpack.c.l.b16 %v260
    %v695 = vunpack.c.h.b16 %v260
    %v696 = vunpack.c.l.b16 %v261
    %v697 = vunpack.c.h.b16 %v261
    %v698 = vunpack.c.l.b16 %v262
    %v699 = vunpack.c.h.b16 %v262
    %v700 = vunpack.c.l.b16 %v263
    %v701 = vunpack.c.h.b16 %v263
    %v702 = vunpack.c.l.b16 %v264
    %v703 = vunpack.c.h.b16 %v264
    %v704 = vunpack.c.l.b16 %v265
    %v705 = vunpack.c.h.b16 %v265
    %v706 = vunpack.c.l.b16 %v266
    %v707 = vunpack.c.h.b16 %v266
    %v708 = vunpack.c.l.b16 %v267
    %v709 = vunpack.c.h.b16 %v267
    %v710 = vunpack.c.l.b16 %v268
    %v711 = vunpack.c.h.b16 %v268
    %v712 = vunpack.c.l.b16 %v269
    %v713 = vunpack.c.h.b16 %v269
    %v714 = vunpack.c.l.b16 %v270
    %v715 = vunpack.c.h.b16 %v270
    %v716 = vunpack.c.l.b16 %v271
    %v717 = vunpack.c.h.b16 %v271
    %v718 = vunpack.c.l.b16 %v272
    %v719 = vunpack.c.h.b16 %v272
    %v720 = vunpack.c.l.b16 %v273
    %v721 = vunpack.c.h.b16 %v273
    %v722 = vunpack.c.l.b16 %v274
    %v723 = vunpack.c.h.b16 %v274
    %v724 = vunpack.c.l.b16 %v275
    %v725 = vunpack.c.h.b16 %v275
    %v726 = vunpack.c.l.b16 %v276
    %v727 = vunpack.c.h.b16 %v276
    %v728 = vunpack.c.l.b16 %v277
    %v729 = vunpack.c.h.b16 %v277
    %v730 = vunpack.c.l.b16 %v278
    %v731 = vunpack.c.h.b16 %v278
    %v732 = vunpack.c.l.b16 %v279
    %v733 = vunpack.c.h.b16 %v279
    %v734 = vunpack.c.l.b16 %v280
    %v735 = vunpack.c.h.b16 %v280
    %v736 = vunpack.c.l.b16 %v281
    %v737 = vunpack.c.h.b16 %v281
    %v738 = vunpack.c.l.b16 %v282
    %v739 = vunpack.c.h.b16 %v282
    %v740 = vunpack.c.l.b16 %v283
    %v741 = vunpack.c.h.b16 %v283
    %v742 = vunpack.c.l.b16 %v284
    %v743 = vunpack.c.h.b16 %v284
    %v744 = vunpack.c.l.b16 %v285
    %v745 = vunpack.c.h.b16 %v285
    %v746 = vunpack.c.l.b16 %v286
    %v747 = vunpack.c.h.b16 %v286
    %v748 = vunpack.c.l.b16 %v287
    %v749 = vunpack.c.h.b16 %v287
    %v750 = vunpack.c.l.b16 %v288
    %v751 = vunpack.c.h.b16 %v288
    %v752 = vunpack.c.l.b16 %v289
    %v753 = vunpack.c.h.b16 %v289
    %v754 = vunpack.c.l.b16 %v290
    %v755 = vunpack.c.h.b16 %v290
    %v756 = vunpack.c.l.b16 %v291
    %v757 = vunpack.c.h.b16 %v291
    %v758 = vunpack.c.l.b16 %v292
    %v759 = vunpack.c.h.b16 %v292
    %v760 = vunpack.c.l.b16 %v293
    %v761 = vunpack.c.h.b16 %v293
    %v762 = vunpack.c.l.b16 %v294
    %v763 = vunpack.c.h.b16 %v294
    %v764 = vunpack.c.l.b16 %v295
    %v765 = vunpack.c.h.b16 %v295
    %v766 = vunpack.c.l.b16 %v296
    %v767 = vunpack.c.h.b16 %v296
    %v768 = vunpack.c.l.b16 %v297
    %v769 = vunpack.c.h.b16 %v297
    %v770 = vunpack.c.l.b16 %v298
    %v771 = vunpack.c.h.b16 %v298
    %v772 = vunpack.c.l.b16 %v299
    %v773 = vunpack.c.h.b16 %v299
    %v774 = vunpack.c.l.b16 %v300
    %v775 = vunpack.c.h.b16 %v300
    %v776 = vunpack.c.l.b16 %v301
    %v777 = vunpack.c.h.b16 %v301
    %v778 = vunpack.c.l.b16 %v302
    %v779 = vunpack.c.h.b16 %v302
    %v780 = vunpack.c.l.b16 %v303
    %v781 = vunpack.c.h.b16 %v303
    %v782 = vunpack.c.l.b16 %v304
    %v783 = vunpack.c.h.b16 %v304
    %v784 = vunpack.c.l.b16 %v305
    %v785 = vunpack.c.h.b16 %v305
    %v786 = vunpack.c.l.b16 %v306
    %v787 = vunpack.c.h.b16 %v306
    %v788 = vunpack.c.l.b16 %v307
    %v789 = vunpack.c.h.b16 %v307
    %v790 = vunpack.c.l.b16 %v308
    %v791 = vunpack.c.h.b16 %v308
    %v792 = vunpack.c.l.b16 %v309
    %v793 = vunpack.c.h.b16 %v309
    %v794 = vunpack.c.l.b16 %v310
    %v795 = vunpack.c.h.b16 %v310
    %v796 = vunpack.c.l.b16 %v311
    %v797 = vunpack.c.h.b16 %v311
    %v798 = vunpack.c.l.b16 %v312
    %v799 = vunpack.c.h.b16 %v312
    %v800 = vunpack.c.l.b16 %v313
    %v801 = vunpack.c.h.b16 %v313
    %v802 = vunpack.c.l.b16 %v314
    %v803 = vunpack.c.h.b16 %v314
    %v804 = vunpack.c.l.b16 %v315
    %v805 = vunpack.c.h.b16 %v315
    %v806 = vunpack.c.l.b16 %v316
    %v807 = vunpack.c.h.b16 %v316
    %v808 = vunpack.c.l.b16 %v317
    %v809 = vunpack.c.h.b16 %v317
    %v810 = vunpack.c.l.b16 %v318
    %v811 = vunpack.c.h.b16 %v318
    %v812 = vunpack.c.l.b16 %v319
    %v813 = vunpack.c.h.b16 %v319
    %v814 = vunpack.c.l.b16 %v320
    %v815 = vunpack.c.h.b16 %v320
    %v816 = vunpack.c.l.b16 %v321
    %v817 = vunpack.c.h.b16 %v321
    %v818 = vunpack.c.l.b16 %v322
    %v819 = vunpack.c.h.b16 %v322
    %v820 = vunpack.c.l.b16 %v323
    %v821 = vunpack.c.h.b16 %v323
    %v822 = vunpack.c.l.b16 %v324
    %v823 = vunpack.c.h.b16 %v324
    %v824 = vunpack.c.l.b16 %v325
    %v825 = vunpack.c.h.b16 %v325
    %v826 = vunpack.c.l.b16 %v326
    %v827 = vunpack.c.h.b16 %v326
    %v828 = vunpack.c.l.b16 %v327
    %v829 = vunpack.c.h.b16 %v327
    %v830 = vunpack.c.l.b16 %v328
    %v831 = vunpack.c.h.b16 %v328
    %v832 = vunpack.c.l.b16 %v329
    %v833 = vunpack.c.h.b16 %v329
    %v834 = vunpack.c.l.b16 %v330
    %v835 = vunpack.c.h.b16 %v330
    %v836 = vunpack.c.l.b16 %v331
    %v837 = vunpack.c.h.b16 %v331
    %v838 = vunpack.c.l.b16 %v332
    %v839 = vunpack.c.h.b16 %v332
    %v840 = vunpack.c.l.b16 %v333
    %v841 = vunpack.c.h.b16 %v333
    %v842 = vunpack.c.l.b16 %v334
    %v843 = vunpack.c.h.b16 %v334
    %v844 = vunpack.c.l.b16 %v335
    %v845 = vunpack.c.h.b16 %v335
    %v846 = vunpack.c.l.b16 %v336
    %v847 = vunpack.c.h.b16 %v336
    %v848 = vunpack.c.l.b16 %v337
    %v849 = vunpack.c.h.b16 %v337
    %v850 = vunpack.c.l.b16 %v338
    %v851 = vunpack.c.h.b16 %v338
    %v852 = vunpack.c.l.b16 %v339
    %v853 = vunpack.c.h.b16 %v339
    %v854 = vunpack.c.l.b16 %v340
    %v855 = vunpack.c.h.b16 %v340
    %v856 = vunpack.c.l.b16 %v341
    %v857 = vunpack.c.h.b16 %v341
    %v858 = vunpack.c.l.b16 %v342
    %v859 = vunpack.c.h.b16 %v342
    %v860 = vunpack.c.l.b16 %v343
    %v861 = vunpack.c.h.b16 %v343
    %v862 = vunpack.c.l.b16 %v344
    %v863 = vunpack.c.h.b16 %v344
    %v864 = vunpack.c.l.b16 %v345
    %v865 = vunpack.c.h.b16 %v345
    %v866 = vunpack.c.l.b16 %v346
    %v867 = vunpack.c.h.b16 %v346
    %v868 = vunpack.c.l.b16 %v347
    %v869 = vunpack.c.h.b16 %v347
    %v870 = vunpack.c.l.b16 %v348
    %v871 = vunpack.c.h.b16 %v348
    %v872 = vunpack.c.l.b16 %v349
    %v873 = vunpack.c.h.b16 %v349
    %v874 = vunpack.c.l.b16 %v350
    %v875 = vunpack.c.h.b16 %v350
    %v876 = vunpack.c.l.b16 %v351
    %v877 = vunpack.c.h.b16 %v351
    %v878 = vunpack.c.l.b16 %v352
    %v879 = vunpack.c.h.b16 %v352
    %v880 = vunpack.c.l.b16 %v353
    %v881 = vunpack.c.h.b16 %v353
    %v882 = vpack.c.b16 %v600, %v594
    %v883 = vpack.c.b16 %v601, %v595
    %v884 = vpack.c.b16 %v602, %v596
    %v885 = vpack.c.b16 %v603, %v597
    %v886 = vpack.c.b16 %v604, %v598
    %v887 = vpack.c.b16 %v605, %v599
    %v888 = vpack.c.b16 %v612, %v606
    %v889 = vpack.c.b16 %v613, %v607
    %v890 = vpack.c.b16 %v614, %v608
    %v891 = vpack.c.b16 %v615, %v609
    %v892 = vpack.c.b16 %v616, %v610
    %v893 = vpack.c.b16 %v617, %v611
    %v894 = vpack.c.b16 %v624, %v618
    %v895 = vpack.c.b16 %v625, %v619
    %v896 = vpack.c.b16 %v626, %v620
    %v897 = vpack.c.b16 %v627, %v621
    %v898 = vpack.c.b16 %v628, %v622
    %v899 = vpack.c.b16 %v629, %v623
    %v900 = vpack.c.b16 %v636, %v630
    %v901 = vpack.c.b16 %v637, %v631
    %v902 = vpack.c.b16 %v638, %v632
    %v903 = vpack.c.b16 %v639, %v633
    %v904 = vpack.c.b16 %v640, %v634
    %v905 = vpack.c.b16 %v641, %v635
    %v906 = vpack.c.b16 %v648, %v642
    %v907 = vpack.c.b16 %v649, %v643
    %v908 = vpack.c.b16 %v650, %v644
    %v909 = vpack.c.b16 %v651, %v645
    %v910 = vpack.c.b16 %v652, %v646
    %v911 = vpack.c.b16 %v653, %v647
    %v912 = vpack.c.b16 %v660, %v654
    %v913 = vpack.c.b16 %v661, %v655
    %v914 = vpack.c.b16 %v662, %v656
    %v915 = vpack.c.b16 %v663, %v657
    %v916 = vpack.c.b16 %v664, %v658
    %v917 = vpack.c.b16 %v665, %v659
    %v918 = vpack.c.b16 %v672, %v666
    %v919 = vpack.c.b16 %v673, %v667
    %v920 = vpack.c.b16 %v674, %v668
    %v921 = vpack.c.b16 %v675, %v669
    %v922 = vpack.c.b16 %v676, %v670
    %v923 = vpack.c.b16 %v677, %v671
    %v924 = vpack.c.b16 %v684, %v678
    %v925 = vpack.c.b16 %v685, %v679
    %v926 = vpack.c.b16 %v686, %v680
    %v927 = vpack.c.b16 %v687, %v681
    %v928 = vpack.c.b16 %v688, %v682
    %v929 = vpack.c.b16 %v689, %v683
    %v930 = vpack.c.b16 %v696, %v690
    %v931 = vpack.c.b16 %v697, %v691
    %v932 = vpack.c.b16 %v698, %v692
    %v933 = vpack.c.b16 %v699, %v693
    %v934 = vpack.c.b16 %v700, %v694
    %v935 = vpack.c.b16 %v701, %v695
    %v936 = vpack.c.b16 %v708, %v702
    %v937 = vpack.c.b16 %v709, %v703
    %v938 = vpack.c.b16 %v710, %v704
    %v939 = vpack.c.b16 %v711, %v705
    %v940 = vpack.c.b16 %v712, %v706
    %v941 = vpack.c.b16 %v713, %v707
    %v942 = vpack.c.b16 %v720, %v714
    %v943 = vpack.c.b16 %v721, %v715
    %v944 = vpack.c.b16 %v722, %v716
    %v945 = vpack.c.b16 %v723, %v717
    %v946 = vpack.c.b16 %v724, %v718
    %v947 = vpack.c.b16 %v725, %v719
    %v948 = vpack.c.b16 %v732, %v726
    %v949 = vpack.c.b16 %v733, %v727
    %v950 = vpack.c.b16 %v734, %v728
    %v951 = vpack.c.b16 %v735, %v729
    %v952 = vpack.c.b16 %v736, %v730
    %v953 = vpack.c.b16 %v737, %v731
    %v954 = vpack.c.b16 %v744, %v738
    %v955 = vpack.c.b16 %v745, %v739
    %v956 = vpack.c.b16 %v746, %v740
    %v957 = vpack.c.b16 %v747, %v741
    %v958 = vpack.c.b16 %v748, %v742
    %v959 = vpack.c.b16 %v749, %v743
    %v960 = vpack.c.b16 %v756, %v750
    %v961 = vpack.c.b16 %v757, %v751
    %v962 = vpack.c.b16 %v758, %v752
    %v963 = vpack.c.b16 %v759, %v753
    %v964 = vpack.c.b16 %v760, %v754
    %v965 = vpack.c.b16 %v761, %v755
    %v966 = vpack.c.b16 %v768, %v762
    %v967 = vpack.c.b16 %v769, %v763
    %v968 = vpack.c.b16 %v770, %v764
    %v969 = vpack.c.b16 %v771, %v765
    %v970 = vpack.c.b16 %v772, %v766
    %v971 = vpack.c.b16 %v773, %v767
    %v972 = vpack.c.b16 %v780, %v774
    %v973 = vpack.c.b16 %v781, %v775
    %v974 = vpack.c.b16 %v782, %v776
    %v975 = vpack.c.b16 %v783, %v777
    %v976 = vpack.c.b16 %v784, %v778
    %v977 = vpack.c.b16 %v785, %v779
    %v978 = vpack.c.b16 %v792, %v786
    %v979 = vpack.c.b16 %v793, %v787
    %v980 = vpack.c.b16 %v794, %v788
    %v981 = vpack.c.b16 %v795, %v789
    %v982 = vpack.c.b16 %v796, %v790
    %v983 = vpack.c.b16 %v797, %v791
    %v984 = vpack.c.b16 %v804, %v798
    %v985 = vpack.c.b16 %v805, %v799
    %v986 = vpack.c.b16 %v806, %v800
    %v987 = vpack.c.b16 %v807, %v801
    %v988 = vpack.c.b16 %v808, %v802
    %v989 = vpack.c.b16 %v809, %v803
    %v990 = vpack.c.b16 %v816, %v810
    %v991 = vpack.c.b16 %v817, %v811
    %v992 = vpack.c.b16 %v818, %v812
    %v993 = vpack.c.b16 %v819, %v813
    %v994 = vpack.c.b16 %v820, %v814
    %v995 = vpack.c.b16 %v821, %v815
    %v996 = vpack.c.b16 %v828, %v822
    %v997 = vpack.c.b16 %v829, %v823
    %v998 = vpack.c.b16 %v830, %v824
    %v999 = vpack.c.b16 %v831, %v825
    %v1000 = vpack.c.b16 %v832, %v826
    %v1001 = vpack.c.b16 %v833, %v827
    %v1002 = vpack.c.b16 %v840, %v834
    %v1003 = vpack.c.b16 %v841, %v835
    %v1004 = vpack.c.b16 %v842, %v836
    %v1005 = vpack.c.b16 %v843, %v837
    %v1006 = vpack.c.b16 %v844, %v838
    %v1007 = vpack.c.b16 %v845, %v839
    %v1008 = vpack.c.b16 %v852, %v846
    %v1009 = vpack.c.b16 %v853, %v847
    %v1010 = vpack.c.b16 %v854, %v848
    %v1011 = vpack.c.b16 %v855, %v849
    %v1012 = vpack.c.b16 %v856, %v850
    %v1013 = vpack.c.b16 %v857, %v851
    %v1014 = vpack.c.b16 %v864, %v858
    %v1015 = vpack.c.b16 %v865, %v859
    %v1016 = vpack.c.b16 %v866, %v860
    %v1017 = vpack.c.b16 %v867, %v861
    %v1018 = vpack.c.b16 %v868, %v862
    %v1019 = vpack.c.b16 %v869, %v863
    %v1020 = vpack.c.b16 %v876, %v870
    %v1021 = vpack.c.b16 %v877, %v871
    %v1022 = vpack.c.b16 %v878, %v872
    %v1023 = vpack.c.b16 %v879, %v873
    %v1024 = vpack.c.b16 %v880, %v874
    %v1025 = vpack.c.b16 %v881, %v875
    %1170 = vmatprep.subr.bf16.mxu0 %v883
    %1171 = vmatpush1.bf16.msra.mxu0 %v882
    %1172 = vmatprep.subr.bf16.mxu0 %v889
    %1173 = vmatpush1.bf16.msra.mxu0 %v888
    %1174 = vmatprep.subr.bf16.mxu0 %v895
    %1175 = vmatpush1.bf16.msra.mxu0 %v894
    %1176 = vmatprep.subr.bf16.mxu0 %v901
    %1177 = vmatpush1.bf16.msra.mxu0 %v900
    %1178 = vmatprep.subr.bf16.mxu0 %v907
    %1179 = vmatpush1.bf16.msra.mxu0 %v906
    %1180 = vmatprep.subr.bf16.mxu0 %v913
    %1181 = vmatpush1.bf16.msra.mxu0 %v912
    %1182 = vmatprep.subr.bf16.mxu0 %v919
    %1183 = vmatpush1.bf16.msra.mxu0 %v918
    %1184 = vmatprep.subr.bf16.mxu0 %v925
    %1185 = vmatpush1.bf16.msra.mxu0 %v924
    %1186 = vmatprep.subr.bf16.mxu0 %v931
    %1187 = vmatpush1.bf16.msra.mxu0 %v930
    %1188 = vmatprep.subr.bf16.mxu0 %v937
    %1189 = vmatpush1.bf16.msra.mxu0 %v936
    %1190 = vmatprep.subr.bf16.mxu0 %v943
    %1191 = vmatpush1.bf16.msra.mxu0 %v942
    %1192 = vmatprep.subr.bf16.mxu0 %v949
    %1193 = vmatpush1.bf16.msra.mxu0 %v948
    %1194 = vmatprep.subr.bf16.mxu0 %v955
    %1195 = vmatpush1.bf16.msra.mxu0 %v954
    %1196 = vmatprep.subr.bf16.mxu0 %v961
    %1197 = vmatpush1.bf16.msra.mxu0 %v960
    %1198 = vmatprep.subr.bf16.mxu0 %v967
    %1199 = vmatpush1.bf16.msra.mxu0 %v966
    %1200 = vmatprep.subr.bf16.mxu0 %v973
    %1201 = vmatpush1.bf16.msra.mxu0 %v972
    %1202 = vmatprep.mubr.bf16.mxu0 %v427
    %1203 = vmatmul.mubr.bf16.gmra.mrb[0].mxu0 %v426
    %v1204 = vpop.f32.mrb[0].mxu0
    %v1205 = vadd.f32 %v359, %v1204
    %v1206 = vpop.f32.mrb[0].mxu0
    %v1207 = vadd.f32 %v363, %v1206
    %v1208 = vpop.f32.mrb[0].mxu0
    %v1209 = vadd.f32 %v359, %v1208
    %v1210 = vpop.f32.mrb[0].mxu0
    %v1211 = vadd.f32 %v363, %v1210
    %1212 = vmatprep.mubr.bf16.mxu0 %v430
    %1213 = vmatmul.mubr.bf16.gmra.mrb[0].mxu0 %v429
    %v1214 = vpop.f32.mrb[0].mxu0
    %v1215 = vadd.f32 %v359, %v1214
    %v1216 = vpop.f32.mrb[0].mxu0
    %v1217 = vadd.f32 %v363, %v1216
    %v1218 = vpop.f32.mrb[0].mxu0
    %v1219 = vadd.f32 %v359, %v1218
    %v1220 = vpop.f32.mrb[0].mxu0
    %v1221 = vadd.f32 %v363, %v1220
    %1222 = vmatprep.mubr.bf16.mxu0 %v433
    %1223 = vmatmul.mubr.bf16.gmra.mrb[0].mxu0 %v432
    %v1224 = vpop.f32.mrb[0].mxu0
    %v1225 = vadd.f32 %v359, %v1224
    %v1226 = vpop.f32.mrb[0].mxu0
    %v1227 = vadd.f32 %v363, %v1226
    %v1228 = vpop.f32.mrb[0].mxu0
    %v1229 = vadd.f32 %v359, %v1228
    %v1230 = vpop.f32.mrb[0].mxu0
    %v1231 = vadd.f32 %v363, %v1230
    %1232 = vmatprep.mubr.bf16.mxu0 %v436
    %1233 = vmatmul.mubr.bf16.gmra.mrb[0].mxu0 %v435
    %v1234 = vpop.f32.mrb[0].mxu0
    %v1235 = vadd.f32 %v359, %v1234
    %v1236 = vpop.f32.mrb[0].mxu0
    %v1237 = vadd.f32 %v363, %v1236
    %v1238 = vpop.f32.mrb[0].mxu0
    %v1239 = vadd.f32 %v359, %v1238
    %v1240 = vpop.f32.mrb[0].mxu0
    %v1241 = vadd.f32 %v363, %v1240
    %1242 = vdwg.mxu0
    %1243 = vmatprep.subr.bf16.mxu0 %v979
    %1244 = vmatpush1.bf16.msra.mxu0 %v978
    %1245 = vmatprep.subr.bf16.mxu0 %v985
    %1246 = vmatpush1.bf16.msra.mxu0 %v984
    %1247 = vmatprep.subr.bf16.mxu0 %v991
    %1248 = vmatpush1.bf16.msra.mxu0 %v990
    %1249 = vmatprep.subr.bf16.mxu0 %v997
    %1250 = vmatpush1.bf16.msra.mxu0 %v996
    %1251 = vmatprep.subr.bf16.mxu0 %v1003
    %1252 = vmatpush1.bf16.msra.mxu0 %v1002
    %1253 = vmatprep.subr.bf16.mxu0 %v1009
    %1254 = vmatpush1.bf16.msra.mxu0 %v1008
    %1255 = vmatprep.subr.bf16.mxu0 %v1015
    %1256 = vmatpush1.bf16.msra.mxu0 %v1014
    %1257 = vmatprep.subr.bf16.mxu0 %v1021
    %1258 = vmatpush1.bf16.msra.mxu0 %v1020
    %1259 = vmatprep.subr.bf16.mxu0 0
    %1260 = vmatpush1.bf16.msra.mxu0 0
    %1261 = vmatprep.subr.bf16.mxu0 0
    %1262 = vmatpush1.bf16.msra.mxu0 0
    %1263 = vmatprep.subr.bf16.mxu0 0
    %1264 = vmatpush1.bf16.msra.mxu0 0
    %1265 = vmatprep.subr.bf16.mxu0 0
    %1266 = vmatpush1.bf16.msra.mxu0 0
    %1267 = vmatprep.subr.bf16.mxu0 0
    %1268 = vmatpush1.bf16.msra.mxu0 0
    %1269 = vmatprep.subr.bf16.mxu0 0
    %1270 = vmatpush1.bf16.msra.mxu0 0
    %1271 = vmatprep.subr.bf16.mxu0 0
    %1272 = vmatpush1.bf16.msra.mxu0 0
    %1273 = vmatprep.subr.bf16.mxu0 0
    %1274 = vmatpush1.bf16.msra.mxu0 0
    %1275 = vmatprep.mubr.bf16.mxu0 0
    %1276 = vmatmul.mubr.bf16.gmra.mrb[0].mxu0 %v428
    %v1277 = vpop.f32.mrb[0].mxu0
    %v1278 = vadd.f32 %v1205, %v1277
    %v1279 = vpop.f32.mrb[0].mxu0
    %v1280 = vadd.f32 %v1207, %v1279
    %v1281 = vpop.f32.mrb[0].mxu0
    %v1282 = vadd.f32 %v1209, %v1281
    %v1283 = vpop.f32.mrb[0].mxu0
    %v1284 = vadd.f32 %v1211, %v1283
    %1285 = vmatprep.mubr.bf16.mxu0 0
    %1286 = vmatmul.mubr.bf16.gmra.mrb[0].mxu0 %v431
    %v1287 = vpop.f32.mrb[0].mxu0
    %v1288 = vadd.f32 %v1215, %v1287
    %v1289 = vpop.f32.mrb[0].mxu0
    %v1290 = vadd.f32 %v1217, %v1289
    %v1291 = vpop.f32.mrb[0].mxu0
    %v1292 = vadd.f32 %v1219, %v1291
    %v1293 = vpop.f32.mrb[0].mxu0
    %v1294 = vadd.f32 %v1221, %v1293
    %1295 = vmatprep.mubr.bf16.mxu0 0
    %1296 = vmatmul.mubr.bf16.gmra.mrb[0].mxu0 %v434
    %v1297 = vpop.f32.mrb[0].mxu0
    %v1298 = vadd.f32 %v1225, %v1297
    %v1299 = vpop.f32.mrb[0].mxu0
    %v1300 = vadd.f32 %v1227, %v1299
    %v1301 = vpop.f32.mrb[0].mxu0
    %v1302 = vadd.f32 %v1229, %v1301
    %v1303 = vpop.f32.mrb[0].mxu0
    %v1304 = vadd.f32 %v1231, %v1303
    %1305 = vmatprep.mubr.bf16.mxu0 0
    %1306 = vmatmul.mubr.bf16.gmra.mrb[0].mxu0 %v437
    %v1307 = vpop.f32.mrb[0].mxu0
    %v1308 = vadd.f32 %v1235, %v1307
    %v1309 = vpop.f32.mrb[0].mxu0
    %v1310 = vadd.f32 %v1237, %v1309
    %v1311 = vpop.f32.mrb[0].mxu0
    %v1312 = vadd.f32 %v1239, %v1311
    %v1313 = vpop.f32.mrb[0].mxu0
    %v1314 = vadd.f32 %v1241, %v1313
    %1315 = vdwg.mxu0
    %1316 = vmatprep.subr.bf16.mxu0 %v885
    %1317 = vmatpush1.bf16.msra.mxu0 %v884
    %1318 = vmatprep.subr.bf16.mxu0 %v891
    %1319 = vmatpush1.bf16.msra.mxu0 %v890
    %1320 = vmatprep.subr.bf16.mxu0 %v897
    %1321 = vmatpush1.bf16.msra.mxu0 %v896
    %1322 = vmatprep.subr.bf16.mxu0 %v903
    %1323 = vmatpush1.bf16.msra.mxu0 %v902
    %1324 = vmatprep.subr.bf16.mxu0 %v909
    %1325 = vmatpush1.bf16.msra.mxu0 %v908
    %1326 = vmatprep.subr.bf16.mxu0 %v915
    %1327 = vmatpush1.bf16.msra.mxu0 %v914
    %1328 = vmatprep.subr.bf16.mxu0 %v921
    %1329 = vmatpush1.bf16.msra.mxu0 %v920
    %1330 = vmatprep.subr.bf16.mxu0 %v927
    %1331 = vmatpush1.bf16.msra.mxu0 %v926
    %1332 = vmatprep.subr.bf16.mxu0 %v933
    %1333 = vmatpush1.bf16.msra.mxu0 %v932
    %1334 = vmatprep.subr.bf16.mxu0 %v939
    %1335 = vmatpush1.bf16.msra.mxu0 %v938
    %1336 = vmatprep.subr.bf16.mxu0 %v945
    %1337 = vmatpush1.bf16.msra.mxu0 %v944
    %1338 = vmatprep.subr.bf16.mxu0 %v951
    %1339 = vmatpush1.bf16.msra.mxu0 %v950
    %1340 = vmatprep.subr.bf16.mxu0 %v957
    %1341 = vmatpush1.bf16.msra.mxu0 %v956
    %1342 = vmatprep.subr.bf16.mxu0 %v963
    %1343 = vmatpush1.bf16.msra.mxu0 %v962
    %1344 = vmatprep.subr.bf16.mxu0 %v969
    %1345 = vmatpush1.bf16.msra.mxu0 %v968
    %1346 = vmatprep.subr.bf16.mxu0 %v975
    %1347 = vmatpush1.bf16.msra.mxu0 %v974
    %1348 = vmatprep.mubr.bf16.mxu0 %v427
    %1349 = vmatmul.mubr.bf16.gmra.mrb[0].mxu0 %v426
    %v1350 = vpop.f32.mrb[0].mxu0
    %v1351 = vadd.f32 %v367, %v1350
    %v1352 = vpop.f32.mrb[0].mxu0
    %v1353 = vadd.f32 %v371, %v1352
    %v1354 = vpop.f32.mrb[0].mxu0
    %v1355 = vadd.f32 %v367, %v1354
    %v1356 = vpop.f32.mrb[0].mxu0
    %v1357 = vadd.f32 %v371, %v1356
    %1358 = vmatprep.mubr.bf16.mxu0 %v430
    %1359 = vmatmul.mubr.bf16.gmra.mrb[0].mxu0 %v429
    %v1360 = vpop.f32.mrb[0].mxu0
    %v1361 = vadd.f32 %v367, %v1360
    %v1362 = vpop.f32.mrb[0].mxu0
    %v1363 = vadd.f32 %v371, %v1362
    %v1364 = vpop.f32.mrb[0].mxu0
    %v1365 = vadd.f32 %v367, %v1364
    %v1366 = vpop.f32.mrb[0].mxu0
    %v1367 = vadd.f32 %v371, %v1366
    %1368 = vmatprep.mubr.bf16.mxu0 %v433
    %1369 = vmatmul.mubr.bf16.gmra.mrb[0].mxu0 %v432
    %v1370 = vpop.f32.mrb[0].mxu0
    %v1371 = vadd.f32 %v367, %v1370
    %v1372 = vpop.f32.mrb[0].mxu0
    %v1373 = vadd.f32 %v371, %v1372
    %v1374 = vpop.f32.mrb[0].mxu0
    %v1375 = vadd.f32 %v367, %v1374
    %v1376 = vpop.f32.mrb[0].mxu0
    %v1377 = vadd.f32 %v371, %v1376
    %1378 = vmatprep.mubr.bf16.mxu0 %v436
    %1379 = vmatmul.mubr.bf16.gmra.mrb[0].mxu0 %v435
    %v1380 = vpop.f32.mrb[0].mxu0
    %v1381 = vadd.f32 %v367, %v1380
    %v1382 = vpop.f32.mrb[0].mxu0
    %v1383 = vadd.f32 %v371, %v1382
    %v1384 = vpop.f32.mrb[0].mxu0
    %v1385 = vadd.f32 %v367, %v1384
    %v1386 = vpop.f32.mrb[0].mxu0
    %v1387 = vadd.f32 %v371, %v1386
    %1388 = vdwg.mxu0
    %1389 = vmatprep.subr.bf16.mxu0 %v981
    %1390 = vmatpush1.bf16.msra.mxu0 %v980
    %1391 = vmatprep.subr.bf16.mxu0 %v987
    %1392 = vmatpush1.bf16.msra.mxu0 %v986
    %1393 = vmatprep.subr.bf16.mxu0 %v993
    %1394 = vmatpush1.bf16.msra.mxu0 %v992
    %1395 = vmatprep.subr.bf16.mxu0 %v999
    %1396 = vmatpush1.bf16.msra.mxu0 %v998
    %1397 = vmatprep.subr.bf16.mxu0 %v1005
    %1398 = vmatpush1.bf16.msra.mxu0 %v1004
    %1399 = vmatprep.subr.bf16.mxu0 %v1011
    %1400 = vmatpush1.bf16.msra.mxu0 %v1010
    %1401 = vmatprep.subr.bf16.mxu0 %v1017
    %1402 = vmatpush1.bf16.msra.mxu0 %v1016
    %1403 = vmatprep.subr.bf16.mxu0 %v1023
    %1404 = vmatpush1.bf16.msra.mxu0 %v1022
    %1405 = vmatprep.subr.bf16.mxu0 0
    %1406 = vmatpush1.bf16.msra.mxu0 0
    %1407 = vmatprep.subr.bf16.mxu0 0
    %1408 = vmatpush1.bf16.msra.mxu0 0
    %1409 = vmatprep.subr.bf16.mxu0 0
    %1410 = vmatpush1.bf16.msra.mxu0 0
    %1411 = vmatprep.subr.bf16.mxu0 0
    %1412 = vmatpush1.bf16.msra.mxu0 0
    %1413 = vmatprep.subr.bf16.mxu0 0
    %1414 = vmatpush1.bf16.msra.mxu0 0
    %1415 = vmatprep.subr.bf16.mxu0 0
    %1416 = vmatpush1.bf16.msra.mxu0 0
    %1417 = vmatprep.subr.bf16.mxu0 0
    %1418 = vmatpush1.bf16.msra.mxu0 0
    %1419 = vmatprep.subr.bf16.mxu0 0
    %1420 = vmatpush1.bf16.msra.mxu0 0
    %1421 = vmatprep.mubr.bf16.mxu0 0
    %1422 = vmatmul.mubr.bf16.gmra.mrb[0].mxu0 %v428
    %v1423 = vpop.f32.mrb[0].mxu0
    %v1424 = vadd.f32 %v1351, %v1423
    %v1425 = vpop.f32.mrb[0].mxu0
    %v1426 = vadd.f32 %v1353, %v1425
    %v1427 = vpop.f32.mrb[0].mxu0
    %v1428 = vadd.f32 %v1355, %v1427
    %v1429 = vpop.f32.mrb[0].mxu0
    %v1430 = vadd.f32 %v1357, %v1429
    %1431 = vmatprep.mubr.bf16.mxu0 0
    %1432 = vmatmul.mubr.bf16.gmra.mrb[0].mxu0 %v431
    %v1433 = vpop.f32.mrb[0].mxu0
    %v1434 = vadd.f32 %v1361, %v1433
    %v1435 = vpop.f32.mrb[0].mxu0
    %v1436 = vadd.f32 %v1363, %v1435
    %v1437 = vpop.f32.mrb[0].mxu0
    %v1438 = vadd.f32 %v1365, %v1437
    %v1439 = vpop.f32.mrb[0].mxu0
    %v1440 = vadd.f32 %v1367, %v1439
    %1441 = vmatprep.mubr.bf16.mxu0 0
    %1442 = vmatmul.mubr.bf16.gmra.mrb[0].mxu0 %v434
    %v1443 = vpop.f32.mrb[0].mxu0
    %v1444 = vadd.f32 %v1371, %v1443
    %v1445 = vpop.f32.mrb[0].mxu0
    %v1446 = vadd.f32 %v1373, %v1445
    %v1447 = vpop.f32.mrb[0].mxu0
    %v1448 = vadd.f32 %v1375, %v1447
    %v1449 = vpop.f32.mrb[0].mxu0
    %v1450 = vadd.f32 %v1377, %v1449
    %1451 = vmatprep.mubr.bf16.mxu0 0
    %1452 = vmatmul.mubr.bf16.gmra.mrb[0].mxu0 %v437
    %v1453 = vpop.f32.mrb[0].mxu0
    %v1454 = vadd.f32 %v1381, %v1453
    %v1455 = vpop.f32.mrb[0].mxu0
    %v1456 = vadd.f32 %v1383, %v1455
    %v1457 = vpop.f32.mrb[0].mxu0
    %v1458 = vadd.f32 %v1385, %v1457
    %v1459 = vpop.f32.mrb[0].mxu0
    %v1460 = vadd.f32 %v1387, %v1459
    %1461 = vdwg.mxu0
    %1462 = vmatprep.subr.bf16.mxu0 %v887
    %1463 = vmatpush1.bf16.msra.mxu0 %v886
    %1464 = vmatprep.subr.bf16.mxu0 %v893
    %1465 = vmatpush1.bf16.msra.mxu0 %v892
    %1466 = vmatprep.subr.bf16.mxu0 %v899
    %1467 = vmatpush1.bf16.msra.mxu0 %v898
    %1468 = vmatprep.subr.bf16.mxu0 %v905
    %1469 = vmatpush1.bf16.msra.mxu0 %v904
    %1470 = vmatprep.subr.bf16.mxu0 %v911
    %1471 = vmatpush1.bf16.msra.mxu0 %v910
    %1472 = vmatprep.subr.bf16.mxu0 %v917
    %1473 = vmatpush1.bf16.msra.mxu0 %v916
    %1474 = vmatprep.subr.bf16.mxu0 %v923
    %1475 = vmatpush1.bf16.msra.mxu0 %v922
    %1476 = vmatprep.subr.bf16.mxu0 %v929
    %1477 = vmatpush1.bf16.msra.mxu0 %v928
    %1478 = vmatprep.subr.bf16.mxu0 %v935
    %1479 = vmatpush1.bf16.msra.mxu0 %v934
    %1480 = vmatprep.subr.bf16.mxu0 %v941
    %1481 = vmatpush1.bf16.msra.mxu0 %v940
    %1482 = vmatprep.subr.bf16.mxu0 %v947
    %1483 = vmatpush1.bf16.msra.mxu0 %v946
    %1484 = vmatprep.subr.bf16.mxu0 %v953
    %1485 = vmatpush1.bf16.msra.mxu0 %v952
    %1486 = vmatprep.subr.bf16.mxu0 %v959
    %1487 = vmatpush1.bf16.msra.mxu0 %v958
    %1488 = vmatprep.subr.bf16.mxu0 %v965
    %1489 = vmatpush1.bf16.msra.mxu0 %v964
    %1490 = vmatprep.subr.bf16.mxu0 %v971
    %1491 = vmatpush1.bf16.msra.mxu0 %v970
    %1492 = vmatprep.subr.bf16.mxu0 %v977
    %1493 = vmatpush1.bf16.msra.mxu0 %v976
    %1494 = vmatprep.mubr.bf16.mxu0 %v427
    %1495 = vmatmul.mubr.bf16.gmra.mrb[0].mxu0 %v426
    %v1496 = vpop.f32.mrb[0].mxu0
    %v1497 = vadd.f32 %v375, %v1496
    %v1498 = vpop.f32.mrb[0].mxu0
    %v1499 = vadd.f32 %v379, %v1498
    %v1500 = vpop.f32.mrb[0].mxu0
    %v1501 = vadd.f32 %v375, %v1500
    %v1502 = vpop.f32.mrb[0].mxu0
    %v1503 = vadd.f32 %v379, %v1502
    %1504 = vmatprep.mubr.bf16.mxu0 %v430
    %1505 = vmatmul.mubr.bf16.gmra.mrb[0].mxu0 %v429
    %v1506 = vpop.f32.mrb[0].mxu0
    %v1507 = vadd.f32 %v375, %v1506
    %v1508 = vpop.f32.mrb[0].mxu0
    %v1509 = vadd.f32 %v379, %v1508
    %v1510 = vpop.f32.mrb[0].mxu0
    %v1511 = vadd.f32 %v375, %v1510
    %v1512 = vpop.f32.mrb[0].mxu0
    %v1513 = vadd.f32 %v379, %v1512
    %1514 = vmatprep.mubr.bf16.mxu0 %v433
    %1515 = vmatmul.mubr.bf16.gmra.mrb[0].mxu0 %v432
    %v1516 = vpop.f32.mrb[0].mxu0
    %v1517 = vadd.f32 %v375, %v1516
    %v1518 = vpop.f32.mrb[0].mxu0
    %v1519 = vadd.f32 %v379, %v1518
    %v1520 = vpop.f32.mrb[0].mxu0
    %v1521 = vadd.f32 %v375, %v1520
    %v1522 = vpop.f32.mrb[0].mxu0
    %v1523 = vadd.f32 %v379, %v1522
    %1524 = vmatprep.mubr.bf16.mxu0 %v436
    %1525 = vmatmul.mubr.bf16.gmra.mrb[0].mxu0 %v435
    %v1526 = vpop.f32.mrb[0].mxu0
    %v1527 = vadd.f32 %v375, %v1526
    %v1528 = vpop.f32.mrb[0].mxu0
    %v1529 = vadd.f32 %v379, %v1528
    %v1530 = vpop.f32.mrb[0].mxu0
    %v1531 = vadd.f32 %v375, %v1530
    %v1532 = vpop.f32.mrb[0].mxu0
    %v1533 = vadd.f32 %v379, %v1532
    %1534 = vdwg.mxu0
    %1535 = vmatprep.subr.bf16.mxu0 %v983
    %1536 = vmatpush1.bf16.msra.mxu0 %v982
    %1537 = vmatprep.subr.bf16.mxu0 %v989
    %1538 = vmatpush1.bf16.msra.mxu0 %v988
    %1539 = vmatprep.subr.bf16.mxu0 %v995
    %1540 = vmatpush1.bf16.msra.mxu0 %v994
    %1541 = vmatprep.subr.bf16.mxu0 %v1001
    %1542 = vmatpush1.bf16.msra.mxu0 %v1000
    %1543 = vmatprep.subr.bf16.mxu0 %v1007
    %1544 = vmatpush1.bf16.msra.mxu0 %v1006
    %1545 = vmatprep.subr.bf16.mxu0 %v1013
    %1546 = vmatpush1.bf16.msra.mxu0 %v1012
    %1547 = vmatprep.subr.bf16.mxu0 %v1019
    %1548 = vmatpush1.bf16.msra.mxu0 %v1018
    %1549 = vmatprep.subr.bf16.mxu0 %v1025
    %1550 = vmatpush1.bf16.msra.mxu0 %v1024
    %1551 = vmatprep.subr.bf16.mxu0 0
    %1552 = vmatpush1.bf16.msra.mxu0 0
    %1553 = vmatprep.subr.bf16.mxu0 0
    %1554 = vmatpush1.bf16.msra.mxu0 0
    %1555 = vmatprep.subr.bf16.mxu0 0
    %1556 = vmatpush1.bf16.msra.mxu0 0
    %1557 = vmatprep.subr.bf16.mxu0 0
    %1558 = vmatpush1.bf16.msra.mxu0 0
    %1559 = vmatprep.subr.bf16.mxu0 0
    %1560 = vmatpush1.bf16.msra.mxu0 0
    %1561 = vmatprep.subr.bf16.mxu0 0
    %1562 = vmatpush1.bf16.msra.mxu0 0
    %1563 = vmatprep.subr.bf16.mxu0 0
    %1564 = vmatpush1.bf16.msra.mxu0 0
    %1565 = vmatprep.subr.bf16.mxu0 0
    %1566 = vmatpush1.bf16.msra.mxu0 0
    %1567 = vmatprep.mubr.bf16.mxu0 0
    %1568 = vmatmul.mubr.bf16.gmra.mrb[0].mxu0 %v428
    %v1569 = vpop.f32.mrb[0].mxu0
    %v1570 = vadd.f32 %v1497, %v1569
    %v1571 = vpop.f32.mrb[0].mxu0
    %v1572 = vadd.f32 %v1499, %v1571
    %v1573 = vpop.f32.mrb[0].mxu0
    %v1574 = vadd.f32 %v1501, %v1573
    %v1575 = vpop.f32.mrb[0].mxu0
    %v1576 = vadd.f32 %v1503, %v1575
    %1577 = vmatprep.mubr.bf16.mxu0 0
    %1578 = vmatmul.mubr.bf16.gmra.mrb[0].mxu0 %v431
    %v1579 = vpop.f32.mrb[0].mxu0
    %v1580 = vadd.f32 %v1507, %v1579
    %v1581 = vpop.f32.mrb[0].mxu0
    %v1582 = vadd.f32 %v1509, %v1581
    %v1583 = vpop.f32.mrb[0].mxu0
    %v1584 = vadd.f32 %v1511, %v1583
    %v1585 = vpop.f32.mrb[0].mxu0
    %v1586 = vadd.f32 %v1513, %v1585
    %1587 = vmatprep.mubr.bf16.mxu0 0
    %1588 = vmatmul.mubr.bf16.gmra.mrb[0].mxu0 %v434
    %v1589 = vpop.f32.mrb[0].mxu0
    %v1590 = vadd.f32 %v1517, %v1589
    %v1591 = vpop.f32.mrb[0].mxu0
    %v1592 = vadd.f32 %v1519, %v1591
    %v1593 = vpop.f32.mrb[0].mxu0
    %v1594 = vadd.f32 %v1521, %v1593
    %v1595 = vpop.f32.mrb[0].mxu0
    %v1596 = vadd.f32 %v1523, %v1595
    %1597 = vmatprep.mubr.bf16.mxu0 0
    %1598 = vmatmul.mubr.bf16.gmra.mrb[0].mxu0 %v437
    %v1599 = vpop.f32.mrb[0].mxu0
    %v1600 = vadd.f32 %v1527, %v1599
    %v1601 = vpop.f32.mrb[0].mxu0
    %v1602 = vadd.f32 %v1529, %v1601
    %v1603 = vpop.f32.mrb[0].mxu0
    %v1604 = vadd.f32 %v1531, %v1603
    %v1605 = vpop.f32.mrb[0].mxu0
    %v1606 = vadd.f32 %v1533, %v1605
    %1607 = vdwg.mxu0
    %1608 = vst [vmem:[#allocation2] sm:$0xff] %v1278
    %1609 = vst [vmem:[#allocation2 + $0x8] sm:$0xff] %v1280
    %1610 = vst [vmem:[#allocation2 + $0x10] sm:$0xff] %v1424
    %1611 = vst [vmem:[#allocation2 + $0x18] sm:$0xff] %v1282
    %1612 = vst [vmem:[#allocation2 + $0x20] sm:$0xff] %v1284
    %1613 = vst [vmem:[#allocation2 + $0x28] sm:$0xff] %v1428
    %1614 = vst [vmem:[#allocation2 + $0x30] sm:$0xff] %v1288
    %1615 = vst [vmem:[#allocation2 + $0x38] sm:$0xff] %v1290
    %1616 = vst [vmem:[#allocation2 + $0x40] sm:$0xff] %v1434
    %1617 = vst [vmem:[#allocation2 + $0x48] sm:$0xff] %v1292
    %1618 = vst [vmem:[#allocation2 + $0x50] sm:$0xff] %v1294
    %1619 = vst [vmem:[#allocation2 + $0x58] sm:$0xff] %v1438
    %1620 = vst [vmem:[#allocation2 + $0x60] sm:$0xff] %v1298
    %1621 = vst [vmem:[#allocation2 + $0x68] sm:$0xff] %v1300
    %1622 = vst [vmem:[#allocation2 + $0x70] sm:$0xff] %v1444
    %1623 = vst [vmem:[#allocation2 + $0x78] sm:$0xff] %v1302
    %1624 = vst [vmem:[#allocation2 + $0x80] sm:$0xff] %v1304
    %1625 = vst [vmem:[#allocation2 + $0x88] sm:$0xff] %v1448
    %1626 = vst [vmem:[#allocation2 + $0x90] sm:$0xff] %v1308
    %1627 = vst [vmem:[#allocation2 + $0x98] sm:$0xff] %v1310
    %1628 = vst [vmem:[#allocation2 + $0xa0] sm:$0xff] %v1454
    %1629 = vst [vmem:[#allocation2 + $0xa8] sm:$0xff] %v1312
    %1630 = vst [vmem:[#allocation2 + $0xb0] sm:$0xff] %v1314
    %1631 = vst [vmem:[#allocation2 + $0xb8] sm:$0xff] %v1458
    %1632 = vst [vmem:[#allocation3] sm:$0xff] %v1426
    %1633 = vst [vmem:[#allocation3 + $0x8] sm:$0xff] %v1570
    %1634 = vst [vmem:[#allocation3 + $0x10] sm:$0xff] %v1572
    %1635 = vst [vmem:[#allocation3 + $0x18] sm:$0xff] %v1430
    %1636 = vst [vmem:[#allocation3 + $0x20] sm:$0xff] %v1574
    %1637 = vst [vmem:[#allocation3 + $0x28] sm:$0xff] %v1576
    %1638 = vst [vmem:[#allocation3 + $0x30] sm:$0xff] %v1436
    %1639 = vst [vmem:[#allocation3 + $0x38] sm:$0xff] %v1580
    %1640 = vst [vmem:[#allocation3 + $0x40] sm:$0xff] %v1582
    %1641 = vst [vmem:[#allocation3 + $0x48] sm:$0xff] %v1440
    %1642 = vst [vmem:[#allocation3 + $0x50] sm:$0xff] %v1584
    %1643 = vst [vmem:[#allocation3 + $0x58] sm:$0xff] %v1586
    %1644 = vst [vmem:[#allocation3 + $0x60] sm:$0xff] %v1446
    %1645 = vst [vmem:[#allocation3 + $0x68] sm:$0xff] %v1590
    %1646 = vst [vmem:[#allocation3 + $0x70] sm:$0xff] %v1592
    %1647 = vst [vmem:[#allocation3 + $0x78] sm:$0xff] %v1450
    %1648 = vst [vmem:[#allocation3 + $0x80] sm:$0xff] %v1594
    %1649 = vst [vmem:[#allocation3 + $0x88] sm:$0xff] %v1596
    %1650 = vst [vmem:[#allocation3 + $0x90] sm:$0xff] %v1456
    %1651 = vst [vmem:[#allocation3 + $0x98] sm:$0xff] %v1600
    %1652 = vst [vmem:[#allocation3 + $0xa0] sm:$0xff] %v1602
    %1653 = vst [vmem:[#allocation3 + $0xa8] sm:$0xff] %v1460
    %1654 = vst [vmem:[#allocation3 + $0xb0] sm:$0xff] %v1604
    %1655 = vst [vmem:[#allocation3 + $0xb8] sm:$0xff] %v1606
    %v1656 = vld [vmem:[#allocation15] sm:$0xff]
    %v1657 = vld [vmem:[#allocation15 + $0x8] sm:$0xf]
    %v1658 = vld [vmem:[#allocation15 + $0xc] sm:$0xff]
    %v1659 = vld [vmem:[#allocation15 + $0x14] sm:$0xf]
    %v1660 = vld [vmem:[#allocation15 + $0x18] sm:$0xff]
    %v1661 = vld [vmem:[#allocation15 + $0x20] sm:$0xf]
    %v1662 = vld [vmem:[#allocation15 + $0x24] sm:$0xff]
    %v1663 = vld [vmem:[#allocation15 + $0x2c] sm:$0xf]
    %v1664 = vld [vmem:[#allocation15 + $0x30] sm:$0xff]
    %v1665 = vld [vmem:[#allocation15 + $0x38] sm:$0xf]
    %v1666 = vld [vmem:[#allocation15 + $0x3c] sm:$0xff]
    %v1667 = vld [vmem:[#allocation15 + $0x44] sm:$0xf]
    %v1668 = vld [vmem:[#allocation15 + $0x48] sm:$0xff]
    %v1669 = vld [vmem:[#allocation15 + $0x50] sm:$0xf]
    %v1670 = vld [vmem:[#allocation15 + $0x54] sm:$0xff]
    %v1671 = vld [vmem:[#allocation15 + $0x5c] sm:$0xf]
    %v1672 = vld [vmem:[#allocation15 + $0x60] sm:$0xff]
    %v1673 = vld [vmem:[#allocation15 + $0x68] sm:$0xf]
    %v1674 = vld [vmem:[#allocation15 + $0x6c] sm:$0xff]
    %v1675 = vld [vmem:[#allocation15 + $0x74] sm:$0xf]
    %v1676 = vld [vmem:[#allocation15 + $0x78] sm:$0xff]
    %v1677 = vld [vmem:[#allocation15 + $0x80] sm:$0xf]
    %v1678 = vld [vmem:[#allocation15 + $0x84] sm:$0xff]
    %v1679 = vld [vmem:[#allocation15 + $0x8c] sm:$0xf]
    %v1680 = vld [vmem:[#allocation15 + $0x90] sm:$0xff]
    %v1681 = vld [vmem:[#allocation15 + $0x98] sm:$0xf]
    %v1682 = vld [vmem:[#allocation15 + $0x9c] sm:$0xff]
    %v1683 = vld [vmem:[#allocation15 + $0xa4] sm:$0xf]
    %v1684 = vld [vmem:[#allocation15 + $0xa8] sm:$0xff]
    %v1685 = vld [vmem:[#allocation15 + $0xb0] sm:$0xf]
    %v1686 = vld [vmem:[#allocation15 + $0xb4] sm:$0xff]
    %v1687 = vld [vmem:[#allocation15 + $0xbc] sm:$0xf]
    %v1688 = vld [vmem:[#allocation16] sm:$0xff]
    %v1689 = vld [vmem:[#allocation16 + $0x8] sm:$0xf]
    %v1690 = vld [vmem:[#allocation16 + $0xc] sm:$0xff]
    %v1691 = vld [vmem:[#allocation16 + $0x14] sm:$0xf]
    %v1692 = vld [vmem:[#allocation16 + $0x18] sm:$0xff]
    %v1693 = vld [vmem:[#allocation16 + $0x20] sm:$0xf]
    %v1694 = vld [vmem:[#allocation16 + $0x24] sm:$0xff]
    %v1695 = vld [vmem:[#allocation16 + $0x2c] sm:$0xf]
    %v1696 = vld [vmem:[#allocation16 + $0x30] sm:$0xff]
    %v1697 = vld [vmem:[#allocation16 + $0x38] sm:$0xf]
    %v1698 = vld [vmem:[#allocation16 + $0x3c] sm:$0xff]
    %v1699 = vld [vmem:[#allocation16 + $0x44] sm:$0xf]
    %v1700 = vld [vmem:[#allocation16 + $0x48] sm:$0xff]
    %v1701 = vld [vmem:[#allocation16 + $0x50] sm:$0xf]
    %v1702 = vld [vmem:[#allocation16 + $0x54] sm:$0xff]
    %v1703 = vld [vmem:[#allocation16 + $0x5c] sm:$0xf]
    %v1704 = vld [vmem:[#allocation16 + $0x60] sm:$0xff]
    %v1705 = vld [vmem:[#allocation16 + $0x68] sm:$0xf]
    %v1706 = vld [vmem:[#allocation16 + $0x6c] sm:$0xff]
    %v1707 = vld [vmem:[#allocation16 + $0x74] sm:$0xf]
    %v1708 = vld [vmem:[#allocation16 + $0x78] sm:$0xff]
    %v1709 = vld [vmem:[#allocation16 + $0x80] sm:$0xf]
    %v1710 = vld [vmem:[#allocation16 + $0x84] sm:$0xff]
    %v1711 = vld [vmem:[#allocation16 + $0x8c] sm:$0xf]
    %v1712 = vld [vmem:[#allocation16 + $0x90] sm:$0xff]
    %v1713 = vld [vmem:[#allocation16 + $0x98] sm:$0xf]
    %v1714 = vld [vmem:[#allocation16 + $0x9c] sm:$0xff]
    %v1715 = vld [vmem:[#allocation16 + $0xa4] sm:$0xf]
    %v1716 = vld [vmem:[#allocation16 + $0xa8] sm:$0xff]
    %v1717 = vld [vmem:[#allocation16 + $0xb0] sm:$0xf]
    %v1718 = vld [vmem:[#allocation16 + $0xb4] sm:$0xff]
    %v1719 = vld [vmem:[#allocation16 + $0xbc] sm:$0xf]
    %v1720 = vld [vmem:[%s4] sm:$0x1]
    %v1722 = vlaneseq
    %v1723 = vshrl.u32 %v1722, 7
    %v1724 = vsub.s32 0, %v1723
    %v1725 = vrot.slane %v1720, %v1724
    %v1727 = vld [vmem:[%s6] sm:$0x1]
    %v1729 = vlaneseq
    %v1730 = vshrl.u32 %v1729, 7
    %v1731 = vsub.s32 0, %v1730
    %v1732 = vrot.slane %v1727, %v1731
    %v1734 = vld [vmem:[#allocation2] sm:$0xff]
    %v1735 = vld [vmem:[#allocation2 + $0x8] sm:$0xff]
    %v1736 = vld [vmem:[#allocation2 + $0x10] sm:$0xff]
    %v1769 = vunpack.c.l.b16 %v1656
    %v1770 = vunpack.c.h.b16 %v1656
    %v1771 = vunpack.c.l.b16 %v1657
    %v1772 = vunpack.c.l.b16 %v1658
    %v1773 = vunpack.c.h.b16 %v1658
    %v1774 = vunpack.c.l.b16 %v1659
    %v1775 = vunpack.c.l.b16 %v1660
    %v1776 = vunpack.c.h.b16 %v1660
    %v1777 = vunpack.c.l.b16 %v1661
    %v1778 = vunpack.c.l.b16 %v1662
    %v1779 = vunpack.c.h.b16 %v1662
    %v1780 = vunpack.c.l.b16 %v1663
    %v1781 = vunpack.c.l.b16 %v1664
    %v1782 = vunpack.c.h.b16 %v1664
    %v1783 = vunpack.c.l.b16 %v1665
    %v1784 = vunpack.c.l.b16 %v1666
    %v1785 = vunpack.c.h.b16 %v1666
    %v1786 = vunpack.c.l.b16 %v1667
    %v1787 = vunpack.c.l.b16 %v1668
    %v1788 = vunpack.c.h.b16 %v1668
    %v1789 = vunpack.c.l.b16 %v1669
    %v1790 = vunpack.c.l.b16 %v1670
    %v1791 = vunpack.c.h.b16 %v1670
    %v1792 = vunpack.c.l.b16 %v1671
    %v1793 = vunpack.c.l.b16 %v1672
    %v1794 = vunpack.c.h.b16 %v1672
    %v1795 = vunpack.c.l.b16 %v1673
    %v1796 = vunpack.c.l.b16 %v1674
    %v1797 = vunpack.c.h.b16 %v1674
    %v1798 = vunpack.c.l.b16 %v1675
    %v1799 = vunpack.c.l.b16 %v1676
    %v1800 = vunpack.c.h.b16 %v1676
    %v1801 = vunpack.c.l.b16 %v1677
    %v1802 = vunpack.c.l.b16 %v1678
    %v1803 = vunpack.c.h.b16 %v1678
    %v1804 = vunpack.c.l.b16 %v1679
    %v1805 = vunpack.c.l.b16 %v1680
    %v1806 = vunpack.c.h.b16 %v1680
    %v1807 = vunpack.c.l.b16 %v1681
    %v1808 = vunpack.c.l.b16 %v1682
    %v1809 = vunpack.c.h.b16 %v1682
    %v1810 = vunpack.c.l.b16 %v1683
    %v1811 = vunpack.c.l.b16 %v1684
    %v1812 = vunpack.c.h.b16 %v1684
    %v1813 = vunpack.c.l.b16 %v1685
    %v1814 = vunpack.c.l.b16 %v1686
    %v1815 = vunpack.c.h.b16 %v1686
    %v1816 = vunpack.c.l.b16 %v1687
    %v1817 = vpack.c.b16 %v1772, %v1769
    %v1818 = vpack.c.b16 %v1773, %v1770
    %v1819 = vpack.c.b16 %v1774, %v1771
    %v1820 = vpack.c.b16 %v1778, %v1775
    %v1821 = vpack.c.b16 %v1779, %v1776
    %v1822 = vpack.c.b16 %v1780, %v1777
    %v1823 = vpack.c.b16 %v1784, %v1781
    %v1824 = vpack.c.b16 %v1785, %v1782
    %v1825 = vpack.c.b16 %v1786, %v1783
    %v1826 = vpack.c.b16 %v1790, %v1787
    %v1827 = vpack.c.b16 %v1791, %v1788
    %v1828 = vpack.c.b16 %v1792, %v1789
    %v1829 = vpack.c.b16 %v1796, %v1793
    %v1830 = vpack.c.b16 %v1797, %v1794
    %v1831 = vpack.c.b16 %v1798, %v1795
    %v1832 = vpack.c.b16 %v1802, %v1799
    %v1833 = vpack.c.b16 %v1803, %v1800
    %v1834 = vpack.c.b16 %v1804, %v1801
    %v1835 = vpack.c.b16 %v1808, %v1805
    %v1836 = vpack.c.b16 %v1809, %v1806
    %v1837 = vpack.c.b16 %v1810, %v1807
    %v1838 = vpack.c.b16 %v1814, %v1811
    %v1839 = vpack.c.b16 %v1815, %v1812
    %v1840 = vpack.c.b16 %v1816, %v1813
    %1865 = vmatprep.subr.bf16.mxu0 %v1818
    %1866 = vmatpush1.bf16.msra.mxu0 %v1817
    %1867 = vmatprep.subr.bf16.mxu0 %v1821
    %1868 = vmatpush1.bf16.msra.mxu0 %v1820
    %1869 = vmatprep.subr.bf16.mxu0 %v1824
    %1870 = vmatpush1.bf16.msra.mxu0 %v1823
    %1871 = vmatprep.subr.bf16.mxu0 %v1827
    %1872 = vmatpush1.bf16.msra.mxu0 %v1826
    %1873 = vmatprep.subr.bf16.mxu0 %v1830
    %1874 = vmatpush1.bf16.msra.mxu0 %v1829
    %1875 = vmatprep.subr.bf16.mxu0 %v1833
    %1876 = vmatpush1.bf16.msra.mxu0 %v1832
    %1877 = vmatprep.subr.bf16.mxu0 %v1836
    %1878 = vmatpush1.bf16.msra.mxu0 %v1835
    %1879 = vmatprep.subr.bf16.mxu0 %v1839
    %1880 = vmatpush1.bf16.msra.mxu0 %v1838
    %1881 = vmatprep.subr.bf16.mxu0 0
    %1882 = vmatpush1.bf16.msra.mxu0 0
    %1883 = vmatprep.subr.bf16.mxu0 0
    %1884 = vmatpush1.bf16.msra.mxu0 0
    %1885 = vmatprep.subr.bf16.mxu0 0
    %1886 = vmatpush1.bf16.msra.mxu0 0
    %1887 = vmatprep.subr.bf16.mxu0 0
    %1888 = vmatpush1.bf16.msra.mxu0 0
    %1889 = vmatprep.subr.bf16.mxu0 0
    %1890 = vmatpush1.bf16.msra.mxu0 0
    %1891 = vmatprep.subr.bf16.mxu0 0
    %1892 = vmatpush1.bf16.msra.mxu0 0
    %1893 = vmatprep.subr.bf16.mxu0 0
    %1894 = vmatpush1.bf16.msra.mxu0 0
    %1895 = vmatprep.subr.bf16.mxu0 0
    %1896 = vmatpush1.bf16.msra.mxu0 0
    %1897 = vmatprep.mubr.bf16.mxu0 0
    %1898 = vmatmul.mubr.bf16.gmra.mrb[0].mxu0 0
    %v1899 = vpop.f32.mrb[0].mxu0
    %v1900 = vadd.f32 0.0, %v1899
    %v1901 = vpop.f32.mrb[0].mxu0
    %v1902 = vadd.f32 0.0, %v1901
    %v1903 = vpop.f32.mrb[0].mxu0
    %v1904 = vpop.f32.mrb[0].mxu0
    %1905 = vdwg.mxu0
    %1906 = vmatprep.subr.bf16.mxu0 0
    %1907 = vmatpush1.bf16.msra.mxu0 %v1819
    %1908 = vmatprep.subr.bf16.mxu0 0
    %1909 = vmatpush1.bf16.msra.mxu0 %v1822
    %1910 = vmatprep.subr.bf16.mxu0 0
    %1911 = vmatpush1.bf16.msra.mxu0 %v1825
    %1912 = vmatprep.subr.bf16.mxu0 0
    %1913 = vmatpush1.bf16.msra.mxu0 %v1828
    %1914 = vmatprep.subr.bf16.mxu0 0
    %1915 = vmatpush1.bf16.msra.mxu0 %v1831
    %1916 = vmatprep.subr.bf16.mxu0 0
    %1917 = vmatpush1.bf16.msra.mxu0 %v1834
    %1918 = vmatprep.subr.bf16.mxu0 0
    %1919 = vmatpush1.bf16.msra.mxu0 %v1837
    %1920 = vmatprep.subr.bf16.mxu0 0
    %1921 = vmatpush1.bf16.msra.mxu0 %v1840
    %1922 = vmatprep.subr.bf16.mxu0 0
    %1923 = vmatpush1.bf16.msra.mxu0 0
    %1924 = vmatprep.subr.bf16.mxu0 0
    %1925 = vmatpush1.bf16.msra.mxu0 0
    %1926 = vmatprep.subr.bf16.mxu0 0
    %1927 = vmatpush1.bf16.msra.mxu0 0
    %1928 = vmatprep.subr.bf16.mxu0 0
    %1929 = vmatpush1.bf16.msra.mxu0 0
    %1930 = vmatprep.subr.bf16.mxu0 0
    %1931 = vmatpush1.bf16.msra.mxu0 0
    %1932 = vmatprep.subr.bf16.mxu0 0
    %1933 = vmatpush1.bf16.msra.mxu0 0
    %1934 = vmatprep.subr.bf16.mxu0 0
    %1935 = vmatpush1.bf16.msra.mxu0 0
    %1936 = vmatprep.subr.bf16.mxu0 0
    %1937 = vmatpush1.bf16.msra.mxu0 0
    %1938 = vmatprep.mubr.bf16.mxu0 0
    %1939 = vmatmul.mubr.bf16.gmra.mrb[0].mxu0 0
    %v1940 = vpop.f32.mrb[0].mxu0
    %v1941 = vadd.f32 0.0, %v1940
    %v1942 = vpop.f32.mrb[0].mxu0
    %v1943 = vpop.f32.mrb[0].mxu0
    %v1944 = vpop.f32.mrb[0].mxu0
    %1945 = vdwg.mxu0
    %v1946 = vadd.f32 %v1734, %v1900
    %v1947 = vxor.u32 %v1946, 2147483648
    %v1948 = vmul.f32 %v1947, 1.442695
    %v1949 = vpow.pop %v1948
    %v1950 = vadd.f32 %v1949, 1.0
    %v1951 = vrcp.pop %v1950
    %v1952 = vmul.f32 1.0, %v1951
    %v1953 = vadd.f32 %v1735, %v1902
    %v1954 = vxor.u32 %v1953, 2147483648
    %v1955 = vmul.f32 %v1954, 1.442695
    %v1956 = vpow.pop %v1955
    %v1957 = vadd.f32 %v1956, 1.0
    %v1958 = vrcp.pop %v1957
    %v1959 = vmul.f32 1.0, %v1958
    %v1960 = vadd.f32 %v1941, %v1725
    %v1961 = vmul.f32 %v1952, %v1960
    %v1962 = vadd.f32 %v1736, %v1961
    %v1963 = vtanh.pop %v1962
    %v1964 = vsub.f32 1.0, %v1959
    %v1965 = vmul.f32 %v1964, %v1963
    %v1966 = vmul.f32 %v1959, 0.0
    %v1967 = vadd.f32 %v1965, %v1966
    %1968 = vst [vmem:[#allocation4] sm:$0xff] %v1967
    %s1969 = scalar_lea.vmem [#allocation3], 168
    %v1970 = vld [vmem:[%s1969] sm:$0xff]
    %v1971 = vld [vmem:[%s1969 + $0x8] sm:$0xff]
    %v1972 = vld [vmem:[%s1969 + $0x10] sm:$0xff]
    %v2005 = vunpack.c.l.b16 %v1688
    %v2006 = vunpack.c.h.b16 %v1688
    %v2007 = vunpack.c.l.b16 %v1689
    %v2008 = vunpack.c.l.b16 %v1690
    %v2009 = vunpack.c.h.b16 %v1690
    %v2010 = vunpack.c.l.b16 %v1691
    %v2011 = vunpack.c.l.b16 %v1692
    %v2012 = vunpack.c.h.b16 %v1692
    %v2013 = vunpack.c.l.b16 %v1693
    %v2014 = vunpack.c.l.b16 %v1694
    %v2015 = vunpack.c.h.b16 %v1694
    %v2016 = vunpack.c.l.b16 %v1695
    %v2017 = vunpack.c.l.b16 %v1696
    %v2018 = vunpack.c.h.b16 %v1696
    %v2019 = vunpack.c.l.b16 %v1697
    %v2020 = vunpack.c.l.b16 %v1698
    %v2021 = vunpack.c.h.b16 %v1698
    %v2022 = vunpack.c.l.b16 %v1699
    %v2023 = vunpack.c.l.b16 %v1700
    %v2024 = vunpack.c.h.b16 %v1700
    %v2025 = vunpack.c.l.b16 %v1701
    %v2026 = vunpack.c.l.b16 %v1702
    %v2027 = vunpack.c.h.b16 %v1702
    %v2028 = vunpack.c.l.b16 %v1703
    %v2029 = vunpack.c.l.b16 %v1704
    %v2030 = vunpack.c.h.b16 %v1704
    %v2031 = vunpack.c.l.b16 %v1705
    %v2032 = vunpack.c.l.b16 %v1706
    %v2033 = vunpack.c.h.b16 %v1706
    %v2034 = vunpack.c.l.b16 %v1707
    %v2035 = vunpack.c.l.b16 %v1708
    %v2036 = vunpack.c.h.b16 %v1708
    %v2037 = vunpack.c.l.b16 %v1709
    %v2038 = vunpack.c.l.b16 %v1710
    %v2039 = vunpack.c.h.b16 %v1710
    %v2040 = vunpack.c.l.b16 %v1711
    %v2041 = vunpack.c.l.b16 %v1712
    %v2042 = vunpack.c.h.b16 %v1712
    %v2043 = vunpack.c.l.b16 %v1713
    %v2044 = vunpack.c.l.b16 %v1714
    %v2045 = vunpack.c.h.b16 %v1714
    %v2046 = vunpack.c.l.b16 %v1715
    %v2047 = vunpack.c.l.b16 %v1716
    %v2048 = vunpack.c.h.b16 %v1716
    %v2049 = vunpack.c.l.b16 %v1717
    %v2050 = vunpack.c.l.b16 %v1718
    %v2051 = vunpack.c.h.b16 %v1718
    %v2052 = vunpack.c.l.b16 %v1719
    %v2053 = vpack.c.b16 %v2008, %v2005
    %v2054 = vpack.c.b16 %v2009, %v2006
    %v2055 = vpack.c.b16 %v2010, %v2007
    %v2056 = vpack.c.b16 %v2014, %v2011
    %v2057 = vpack.c.b16 %v2015, %v2012
    %v2058 = vpack.c.b16 %v2016, %v2013
    %v2059 = vpack.c.b16 %v2020, %v2017
    %v2060 = vpack.c.b16 %v2021, %v2018
    %v2061 = vpack.c.b16 %v2022, %v2019
    %v2062 = vpack.c.b16 %v2026, %v2023
    %v2063 = vpack.c.b16 %v2027, %v2024
    %v2064 = vpack.c.b16 %v2028, %v2025
    %v2065 = vpack.c.b16 %v2032, %v2029
    %v2066 = vpack.c.b16 %v2033, %v2030
    %v2067 = vpack.c.b16 %v2034, %v2031
    %v2068 = vpack.c.b16 %v2038, %v2035
    %v2069 = vpack.c.b16 %v2039, %v2036
    %v2070 = vpack.c.b16 %v2040, %v2037
    %v2071 = vpack.c.b16 %v2044, %v2041
    %v2072 = vpack.c.b16 %v2045, %v2042
    %v2073 = vpack.c.b16 %v2046, %v2043
    %v2074 = vpack.c.b16 %v2050, %v2047
    %v2075 = vpack.c.b16 %v2051, %v2048
    %v2076 = vpack.c.b16 %v2052, %v2049
    %2101 = vmatprep.subr.bf16.mxu0 %v2054
    %2102 = vmatpush1.bf16.msra.mxu0 %v2053
    %2103 = vmatprep.subr.bf16.mxu0 %v2057
    %2104 = vmatpush1.bf16.msra.mxu0 %v2056
    %2105 = vmatprep.subr.bf16.mxu0 %v2060
    %2106 = vmatpush1.bf16.msra.mxu0 %v2059
    %2107 = vmatprep.subr.bf16.mxu0 %v2063
    %2108 = vmatpush1.bf16.msra.mxu0 %v2062
    %2109 = vmatprep.subr.bf16.mxu0 %v2066
    %2110 = vmatpush1.bf16.msra.mxu0 %v2065
    %2111 = vmatprep.subr.bf16.mxu0 %v2069
    %2112 = vmatpush1.bf16.msra.mxu0 %v2068
    %2113 = vmatprep.subr.bf16.mxu0 %v2072
    %2114 = vmatpush1.bf16.msra.mxu0 %v2071
    %2115 = vmatprep.subr.bf16.mxu0 %v2075
    %2116 = vmatpush1.bf16.msra.mxu0 %v2074
    %2117 = vmatprep.subr.bf16.mxu0 0
    %2118 = vmatpush1.bf16.msra.mxu0 0
    %2119 = vmatprep.subr.bf16.mxu0 0
    %2120 = vmatpush1.bf16.msra.mxu0 0
    %2121 = vmatprep.subr.bf16.mxu0 0
    %2122 = vmatpush1.bf16.msra.mxu0 0
    %2123 = vmatprep.subr.bf16.mxu0 0
    %2124 = vmatpush1.bf16.msra.mxu0 0
    %2125 = vmatprep.subr.bf16.mxu0 0
    %2126 = vmatpush1.bf16.msra.mxu0 0
    %2127 = vmatprep.subr.bf16.mxu0 0
    %2128 = vmatpush1.bf16.msra.mxu0 0
    %2129 = vmatprep.subr.bf16.mxu0 0
    %2130 = vmatpush1.bf16.msra.mxu0 0
    %2131 = vmatprep.subr.bf16.mxu0 0
    %2132 = vmatpush1.bf16.msra.mxu0 0
    %2133 = vmatprep.mubr.bf16.mxu0 0
    %2134 = vmatmul.mubr.bf16.gmra.mrb[0].mxu0 0
    %v2135 = vpop.f32.mrb[0].mxu0
    %v2136 = vadd.f32 0.0, %v2135
    %v2137 = vpop.f32.mrb[0].mxu0
    %v2138 = vadd.f32 0.0, %v2137
    %v2139 = vpop.f32.mrb[0].mxu0
    %v2140 = vpop.f32.mrb[0].mxu0
    %2141 = vdwg.mxu0
    %2142 = vmatprep.subr.bf16.mxu0 0
    %2143 = vmatpush1.bf16.msra.mxu0 %v2055
    %2144 = vmatprep.subr.bf16.mxu0 0
    %2145 = vmatpush1.bf16.msra.mxu0 %v2058
    %2146 = vmatprep.subr.bf16.mxu0 0
    %2147 = vmatpush1.bf16.msra.mxu0 %v2061
    %2148 = vmatprep.subr.bf16.mxu0 0
    %2149 = vmatpush1.bf16.msra.mxu0 %v2064
    %2150 = vmatprep.subr.bf16.mxu0 0
    %2151 = vmatpush1.bf16.msra.mxu0 %v2067
    %2152 = vmatprep.subr.bf16.mxu0 0
    %2153 = vmatpush1.bf16.msra.mxu0 %v2070
    %2154 = vmatprep.subr.bf16.mxu0 0
    %2155 = vmatpush1.bf16.msra.mxu0 %v2073
    %2156 = vmatprep.subr.bf16.mxu0 0
    %2157 = vmatpush1.bf16.msra.mxu0 %v2076
    %2158 = vmatprep.subr.bf16.mxu0 0
    %2159 = vmatpush1.bf16.msra.mxu0 0
    %2160 = vmatprep.subr.bf16.mxu0 0
    %2161 = vmatpush1.bf16.msra.mxu0 0
    %2162 = vmatprep.subr.bf16.mxu0 0
    %2163 = vmatpush1.bf16.msra.mxu0 0
    %2164 = vmatprep.subr.bf16.mxu0 0
    %2165 = vmatpush1.bf16.msra.mxu0 0
    %2166 = vmatprep.subr.bf16.mxu0 0
    %2167 = vmatpush1.bf16.msra.mxu0 0
    %2168 = vmatprep.subr.bf16.mxu0 0
    %2169 = vmatpush1.bf16.msra.mxu0 0
    %2170 = vmatprep.subr.bf16.mxu0 0
    %2171 = vmatpush1.bf16.msra.mxu0 0
    %2172 = vmatprep.subr.bf16.mxu0 0
    %2173 = vmatpush1.bf16.msra.mxu0 0
    %2174 = vmatprep.mubr.bf16.mxu0 0
    %2175 = vmatmul.mubr.bf16.gmra.mrb[0].mxu0 0
    %v2176 = vpop.f32.mrb[0].mxu0
    %v2177 = vadd.f32 0.0, %v2176
    %v2178 = vpop.f32.mrb[0].mxu0
    %v2179 = vpop.f32.mrb[0].mxu0
    %v2180 = vpop.f32.mrb[0].mxu0
    %2181 = vdwg.mxu0
    %v2182 = vadd.f32 %v1970, %v2136
    %v2183 = vxor.u32 %v2182, 2147483648
    %v2184 = vmul.f32 %v2183, 1.442695
    %v2185 = vpow.pop %v2184
    %v2186 = vadd.f32 %v2185, 1.0
    %v2187 = vrcp.pop %v2186
    %v2188 = vmul.f32 1.0, %v2187
    %v2189 = vadd.f32 %v1971, %v2138
    %v2190 = vxor.u32 %v2189, 2147483648
    %v2191 = vmul.f32 %v2190, 1.442695
    %v2192 = vpow.pop %v2191
    %v2193 = vadd.f32 %v2192, 1.0
    %v2194 = vrcp.pop %v2193
    %v2195 = vmul.f32 1.0, %v2194
    %v2196 = vadd.f32 %v2177, %v1732
    %v2197 = vmul.f32 %v2188, %v2196
    %v2198 = vadd.f32 %v1972, %v2197
    %v2199 = vtanh.pop %v2198
    %v2200 = vsub.f32 1.0, %v2195
    %v2201 = vmul.f32 %v2200, %v2199
    %v2202 = vmul.f32 %v2195, 0.0
    %v2203 = vadd.f32 %v2201, %v2202
    %s2204 = scalar_lea.vmem [#allocation5], 56
    %2205 = vst [vmem:[%s2204] sm:$0xff] %v2203
    %s2206 = scalar_lea.vmem [#allocation2], 24
    %v2207 = vld [vmem:[%s2206] sm:$0xff]
    %v2208 = vld [vmem:[%s2206 + $0x8] sm:$0xff]
    %v2209 = vld [vmem:[%s2206 + $0x10] sm:$0xff]
    %v2210 = vpack.c.bf16 %v1967, %v1967
    %2211 = vmatprep.subr.bf16.mxu0 %v1818
    %2212 = vmatpush1.bf16.msra.mxu0 %v1817
    %2213 = vmatprep.subr.bf16.mxu0 %v1821
    %2214 = vmatpush1.bf16.msra.mxu0 %v1820
    %2215 = vmatprep.subr.bf16.mxu0 %v1824
    %2216 = vmatpush1.bf16.msra.mxu0 %v1823
    %2217 = vmatprep.subr.bf16.mxu0 %v1827
    %2218 = vmatpush1.bf16.msra.mxu0 %v1826
    %2219 = vmatprep.subr.bf16.mxu0 %v1830
    %2220 = vmatpush1.bf16.msra.mxu0 %v1829
    %2221 = vmatprep.subr.bf16.mxu0 %v1833
    %2222 = vmatpush1.bf16.msra.mxu0 %v1832
    %2223 = vmatprep.subr.bf16.mxu0 %v1836
    %2224 = vmatpush1.bf16.msra.mxu0 %v1835
    %2225 = vmatprep.subr.bf16.mxu0 %v1839
    %2226 = vmatpush1.bf16.msra.mxu0 %v1838
    %2227 = vmatprep.subr.bf16.mxu0 0
    %2228 = vmatpush1.bf16.msra.mxu0 0
    %2229 = vmatprep.subr.bf16.mxu0 0
    %2230 = vmatpush1.bf16.msra.mxu0 0
    %2231 = vmatprep.subr.bf16.mxu0 0
    %2232 = vmatpush1.bf16.msra.mxu0 0
    %2233 = vmatprep.subr.bf16.mxu0 0
    %2234 = vmatpush1.bf16.msra.mxu0 0
    %2235 = vmatprep.subr.bf16.mxu0 0
    %2236 = vmatpush1.bf16.msra.mxu0 0
    %2237 = vmatprep.subr.bf16.mxu0 0
    %2238 = vmatpush1.bf16.msra.mxu0 0
    %2239 = vmatprep.subr.bf16.mxu0 0
    %2240 = vmatpush1.bf16.msra.mxu0 0
    %2241 = vmatprep.subr.bf16.mxu0 0
    %2242 = vmatpush1.bf16.msra.mxu0 0
    %2243 = vmatprep.mubr.bf16.mxu0 0
    %2244 = vmatmul.mubr.bf16.gmra.mrb[0].mxu0 %v2210
    %v2245 = vpop.f32.mrb[0].mxu0
    %v2246 = vadd.f32 0.0, %v2245
    %v2247 = vpop.f32.mrb[0].mxu0
    %v2248 = vadd.f32 0.0, %v2247
    %v2249 = vpop.f32.mrb[0].mxu0
    %v2250 = vpop.f32.mrb[0].mxu0
    %2251 = vdwg.mxu0
    %2252 = vmatprep.subr.bf16.mxu0 0
    %2253 = vmatpush1.bf16.msra.mxu0 %v1819
    %2254 = vmatprep.subr.bf16.mxu0 0
    %2255 = vmatpush1.bf16.msra.mxu0 %v1822
    %2256 = vmatprep.subr.bf16.mxu0 0
    %2257 = vmatpush1.bf16.msra.mxu0 %v1825
    %2258 = vmatprep.subr.bf16.mxu0 0
    %2259 = vmatpush1.bf16.msra.mxu0 %v1828
    %2260 = vmatprep.subr.bf16.mxu0 0
    %2261 = vmatpush1.bf16.msra.mxu0 %v1831
    %2262 = vmatprep.subr.bf16.mxu0 0
    %2263 = vmatpush1.bf16.msra.mxu0 %v1834
    %2264 = vmatprep.subr.bf16.mxu0 0
    %2265 = vmatpush1.bf16.msra.mxu0 %v1837
    %2266 = vmatprep.subr.bf16.mxu0 0
    %2267 = vmatpush1.bf16.msra.mxu0 %v1840
    %2268 = vmatprep.subr.bf16.mxu0 0
    %2269 = vmatpush1.bf16.msra.mxu0 0
    %2270 = vmatprep.subr.bf16.mxu0 0
    %2271 = vmatpush1.bf16.msra.mxu0 0
    %2272 = vmatprep.subr.bf16.mxu0 0
    %2273 = vmatpush1.bf16.msra.mxu0 0
    %2274 = vmatprep.subr.bf16.mxu0 0
    %2275 = vmatpush1.bf16.msra.mxu0 0
    %2276 = vmatprep.subr.bf16.mxu0 0
    %2277 = vmatpush1.bf16.msra.mxu0 0
    %2278 = vmatprep.subr.bf16.mxu0 0
    %2279 = vmatpush1.bf16.msra.mxu0 0
    %2280 = vmatprep.subr.bf16.mxu0 0
    %2281 = vmatpush1.bf16.msra.mxu0 0
    %2282 = vmatprep.subr.bf16.mxu0 0
    %2283 = vmatpush1.bf16.msra.mxu0 0
    %2284 = vmatprep.mubr.bf16.mxu0 0
    %2285 = vmatmul.mubr.bf16.gmra.mrb[0].mxu0 %v2210
    %v2286 = vpop.f32.mrb[0].mxu0
    %v2287 = vadd.f32 0.0, %v2286
    %v2288 = vpop.f32.mrb[0].mxu0
    %v2289 = vpop.f32.mrb[0].mxu0
    %v2290 = vpop.f32.mrb[0].mxu0
    %2291 = vdwg.mxu0
    %v2292 = vadd.f32 %v2207, %v2246
    %v2293 = vxor.u32 %v2292, 2147483648
    %v2294 = vmul.f32 %v2293, 1.442695
    %v2295 = vpow.pop %v2294
    %v2296 = vadd.f32 %v2295, 1.0
    %v2297 = vrcp.pop %v2296
    %v2298 = vmul.f32 1.0, %v2297
    %v2299 = vadd.f32 %v2208, %v2248
    %v2300 = vxor.u32 %v2299, 2147483648
    %v2301 = vmul.f32 %v2300, 1.442695
    %v2302 = vpow.pop %v2301
    %v2303 = vadd.f32 %v2302, 1.0
    %v2304 = vrcp.pop %v2303
    %v2305 = vmul.f32 1.0, %v2304
    %v2306 = vadd.f32 %v2287, %v1725
    %v2307 = vmul.f32 %v2298, %v2306
    %v2308 = vadd.f32 %v2209, %v2307
    %v2309 = vtanh.pop %v2308
    %v2310 = vsub.f32 1.0, %v2305
    %v2311 = vmul.f32 %v2310, %v2309
    %v2312 = vmul.f32 %v2305, %v1967
    %v2313 = vadd.f32 %v2311, %v2312
    %s2314 = scalar_lea.vmem [#allocation4], 8
    %2315 = vst [vmem:[%s2314] sm:$0xff] %v2313
    %s2316 = scalar_lea.vmem [#allocation3], 144
    %v2317 = vld [vmem:[%s2316] sm:$0xff]
    %v2318 = vld [vmem:[%s2316 + $0x8] sm:$0xff]
    %v2319 = vld [vmem:[%s2316 + $0x10] sm:$0xff]
    %v2320 = vpack.c.bf16 %v2203, %v2203
    %2321 = vmatprep.subr.bf16.mxu0 %v2054
    %2322 = vmatpush1.bf16.msra.mxu0 %v2053
    %2323 = vmatprep.subr.bf16.mxu0 %v2057
    %2324 = vmatpush1.bf16.msra.mxu0 %v2056
    %2325 = vmatprep.subr.bf16.mxu0 %v2060
    %2326 = vmatpush1.bf16.msra.mxu0 %v2059
    %2327 = vmatprep.subr.bf16.mxu0 %v2063
    %2328 = vmatpush1.bf16.msra.mxu0 %v2062
    %2329 = vmatprep.subr.bf16.mxu0 %v2066
    %2330 = vmatpush1.bf16.msra.mxu0 %v2065
    %2331 = vmatprep.subr.bf16.mxu0 %v2069
    %2332 = vmatpush1.bf16.msra.mxu0 %v2068
    %2333 = vmatprep.subr.bf16.mxu0 %v2072
    %2334 = vmatpush1.bf16.msra.mxu0 %v2071
    %2335 = vmatprep.subr.bf16.mxu0 %v2075
    %2336 = vmatpush1.bf16.msra.mxu0 %v2074
    %2337 = vmatprep.subr.bf16.mxu0 0
    %2338 = vmatpush1.bf16.msra.mxu0 0
    %2339 = vmatprep.subr.bf16.mxu0 0
    %2340 = vmatpush1.bf16.msra.mxu0 0
    %2341 = vmatprep.subr.bf16.mxu0 0
    %2342 = vmatpush1.bf16.msra.mxu0 0
    %2343 = vmatprep.subr.bf16.mxu0 0
    %2344 = vmatpush1.bf16.msra.mxu0 0
    %2345 = vmatprep.subr.bf16.mxu0 0
    %2346 = vmatpush1.bf16.msra.mxu0 0
    %2347 = vmatprep.subr.bf16.mxu0 0
    %2348 = vmatpush1.bf16.msra.mxu0 0
    %2349 = vmatprep.subr.bf16.mxu0 0
    %2350 = vmatpush1.bf16.msra.mxu0 0
    %2351 = vmatprep.subr.bf16.mxu0 0
    %2352 = vmatpush1.bf16.msra.mxu0 0
    %2353 = vmatprep.mubr.bf16.mxu0 0
    %2354 = vmatmul.mubr.bf16.gmra.mrb[0].mxu0 %v2320
    %v2355 = vpop.f32.mrb[0].mxu0
    %v2356 = vadd.f32 0.0, %v2355
    %v2357 = vpop.f32.mrb[0].mxu0
    %v2358 = vadd.f32 0.0, %v2357
    %v2359 = vpop.f32.mrb[0].mxu0
    %v2360 = vpop.f32.mrb[0].mxu0
    %2361 = vdwg.mxu0
    %2362 = vmatprep.subr.bf16.mxu0 0
    %2363 = vmatpush1.bf16.msra.mxu0 %v2055
    %2364 = vmatprep.subr.bf16.mxu0 0
    %2365 = vmatpush1.bf16.msra.mxu0 %v2058
    %2366 = vmatprep.subr.bf16.mxu0 0
    %2367 = vmatpush1.bf16.msra.mxu0 %v2061
    %2368 = vmatprep.subr.bf16.mxu0 0
    %2369 = vmatpush1.bf16.msra.mxu0 %v2064
    %2370 = vmatprep.subr.bf16.mxu0 0
    %2371 = vmatpush1.bf16.msra.mxu0 %v2067
    %2372 = vmatprep.subr.bf16.mxu0 0
    %2373 = vmatpush1.bf16.msra.mxu0 %v2070
    %2374 = vmatprep.subr.bf16.mxu0 0
    %2375 = vmatpush1.bf16.msra.mxu0 %v2073
    %2376 = vmatprep.subr.bf16.mxu0 0
    %2377 = vmatpush1.bf16.msra.mxu0 %v2076
    %2378 = vmatprep.subr.bf16.mxu0 0
    %2379 = vmatpush1.bf16.msra.mxu0 0
    %2380 = vmatprep.subr.bf16.mxu0 0
    %2381 = vmatpush1.bf16.msra.mxu0 0
    %2382 = vmatprep.subr.bf16.mxu0 0
    %2383 = vmatpush1.bf16.msra.mxu0 0
    %2384 = vmatprep.subr.bf16.mxu0 0
    %2385 = vmatpush1.bf16.msra.mxu0 0
    %2386 = vmatprep.subr.bf16.mxu0 0
    %2387 = vmatpush1.bf16.msra.mxu0 0
    %2388 = vmatprep.subr.bf16.mxu0 0
    %2389 = vmatpush1.bf16.msra.mxu0 0
    %2390 = vmatprep.subr.bf16.mxu0 0
    %2391 = vmatpush1.bf16.msra.mxu0 0
    %2392 = vmatprep.subr.bf16.mxu0 0
    %2393 = vmatpush1.bf16.msra.mxu0 0
    %2394 = vmatprep.mubr.bf16.mxu0 0
    %2395 = vmatmul.mubr.bf16.gmra.mrb[0].mxu0 %v2320
    %v2396 = vpop.f32.mrb[0].mxu0
    %v2397 = vadd.f32 0.0, %v2396
    %v2398 = vpop.f32.mrb[0].mxu0
    %v2399 = vpop.f32.mrb[0].mxu0
    %v2400 = vpop.f32.mrb[0].mxu0
    %2401 = vdwg.mxu0
    %v2402 = vadd.f32 %v2317, %v2356
    %v2403 = vxor.u32 %v2402, 2147483648
    %v2404 = vmul.f32 %v2403, 1.442695
    %v2405 = vpow.pop %v2404
    %v2406 = vadd.f32 %v2405, 1.0
    %v2407 = vrcp.pop %v2406
    %v2408 = vmul.f32 1.0, %v2407
    %v2409 = vadd.f32 %v2318, %v2358
    %v2410 = vxor.u32 %v2409, 2147483648
    %v2411 = vmul.f32 %v2410, 1.442695
    %v2412 = vpow.pop %v2411
    %v2413 = vadd.f32 %v2412, 1.0
    %v2414 = vrcp.pop %v2413
    %v2415 = vmul.f32 1.0, %v2414
    %v2416 = vadd.f32 %v2397, %v1732
    %v2417 = vmul.f32 %v2408, %v2416
    %v2418 = vadd.f32 %v2319, %v2417
    %v2419 = vtanh.pop %v2418
    %v2420 = vsub.f32 1.0, %v2415
    %v2421 = vmul.f32 %v2420, %v2419
    %v2422 = vmul.f32 %v2415, %v2203
    %v2423 = vadd.f32 %v2421, %v2422
    %s2424 = scalar_lea.vmem [#allocation5], 48
    %2425 = vst [vmem:[%s2424] sm:$0xff] %v2423
    %s2426 = scalar_lea.vmem [#allocation2], 48
    %v2427 = vld [vmem:[%s2426] sm:$0xff]
    %v2428 = vld [vmem:[%s2426 + $0x8] sm:$0xff]
    %v2429 = vld [vmem:[%s2426 + $0x10] sm:$0xff]
    %v2430 = vpack.c.bf16 %v2313, %v2313
    %2431 = vmatprep.subr.bf16.mxu0 %v1818
    %2432 = vmatpush1.bf16.msra.mxu0 %v1817
    %2433 = vmatprep.subr.bf16.mxu0 %v1821
    %2434 = vmatpush1.bf16.msra.mxu0 %v1820
    %2435 = vmatprep.subr.bf16.mxu0 %v1824
    %2436 = vmatpush1.bf16.msra.mxu0 %v1823
    %2437 = vmatprep.subr.bf16.mxu0 %v1827
    %2438 = vmatpush1.bf16.msra.mxu0 %v1826
    %2439 = vmatprep.subr.bf16.mxu0 %v1830
    %2440 = vmatpush1.bf16.msra.mxu0 %v1829
    %2441 = vmatprep.subr.bf16.mxu0 %v1833
    %2442 = vmatpush1.bf16.msra.mxu0 %v1832
    %2443 = vmatprep.subr.bf16.mxu0 %v1836
    %2444 = vmatpush1.bf16.msra.mxu0 %v1835
    %2445 = vmatprep.subr.bf16.mxu0 %v1839
    %2446 = vmatpush1.bf16.msra.mxu0 %v1838
    %2447 = vmatprep.subr.bf16.mxu0 0
    %2448 = vmatpush1.bf16.msra.mxu0 0
    %2449 = vmatprep.subr.bf16.mxu0 0
    %2450 = vmatpush1.bf16.msra.mxu0 0
    %2451 = vmatprep.subr.bf16.mxu0 0
    %2452 = vmatpush1.bf16.msra.mxu0 0
    %2453 = vmatprep.subr.bf16.mxu0 0
    %2454 = vmatpush1.bf16.msra.mxu0 0
    %2455 = vmatprep.subr.bf16.mxu0 0
    %2456 = vmatpush1.bf16.msra.mxu0 0
    %2457 = vmatprep.subr.bf16.mxu0 0
    %2458 = vmatpush1.bf16.msra.mxu0 0
    %2459 = vmatprep.subr.bf16.mxu0 0
    %2460 = vmatpush1.bf16.msra.mxu0 0
    %2461 = vmatprep.subr.bf16.mxu0 0
    %2462 = vmatpush1.bf16.msra.mxu0 0
    %2463 = vmatprep.mubr.bf16.mxu0 0
    %2464 = vmatmul.mubr.bf16.gmra.mrb[0].mxu0 %v2430
    %v2465 = vpop.f32.mrb[0].mxu0
    %v2466 = vadd.f32 0.0, %v2465
    %v2467 = vpop.f32.mrb[0].mxu0
    %v2468 = vadd.f32 0.0, %v2467
    %v2469 = vpop.f32.mrb[0].mxu0
    %v2470 = vpop.f32.mrb[0].mxu0
    %2471 = vdwg.mxu0
    %2472 = vmatprep.subr.bf16.mxu0 0
    %2473 = vmatpush1.bf16.msra.mxu0 %v1819
    %2474 = vmatprep.subr.bf16.mxu0 0
    %2475 = vmatpush1.bf16.msra.mxu0 %v1822
    %2476 = vmatprep.subr.bf16.mxu0 0
    %2477 = vmatpush1.bf16.msra.mxu0 %v1825
    %2478 = vmatprep.subr.bf16.mxu0 0
    %2479 = vmatpush1.bf16.msra.mxu0 %v1828
    %2480 = vmatprep.subr.bf16.mxu0 0
    %2481 = vmatpush1.bf16.msra.mxu0 %v1831
    %2482 = vmatprep.subr.bf16.mxu0 0
    %2483 = vmatpush1.bf16.msra.mxu0 %v1834
    %2484 = vmatprep.subr.bf16.mxu0 0
    %2485 = vmatpush1.bf16.msra.mxu0 %v1837
    %2486 = vmatprep.subr.bf16.mxu0 0
    %2487 = vmatpush1.bf16.msra.mxu0 %v1840
    %2488 = vmatprep.subr.bf16.mxu0 0
    %2489 = vmatpush1.bf16.msra.mxu0 0
    %2490 = vmatprep.subr.bf16.mxu0 0
    %2491 = vmatpush1.bf16.msra.mxu0 0
    %2492 = vmatprep.subr.bf16.mxu0 0
    %2493 = vmatpush1.bf16.msra.mxu0 0
    %2494 = vmatprep.subr.bf16.mxu0 0
    %2495 = vmatpush1.bf16.msra.mxu0 0
    %2496 = vmatprep.subr.bf16.mxu0 0
    %2497 = vmatpush1.bf16.msra.mxu0 0
    %2498 = vmatprep.subr.bf16.mxu0 0
    %2499 = vmatpush1.bf16.msra.mxu0 0
    %2500 = vmatprep.subr.bf16.mxu0 0
    %2501 = vmatpush1.bf16.msra.mxu0 0
    %2502 = vmatprep.subr.bf16.mxu0 0
    %2503 = vmatpush1.bf16.msra.mxu0 0
    %2504 = vmatprep.mubr.bf16.mxu0 0
    %2505 = vmatmul.mubr.bf16.gmra.mrb[0].mxu0 %v2430
    %v2506 = vpop.f32.mrb[0].mxu0
    %v2507 = vadd.f32 0.0, %v2506
    %v2508 = vpop.f32.mrb[0].mxu0
    %v2509 = vpop.f32.mrb[0].mxu0
    %v2510 = vpop.f32.mrb[0].mxu0
    %2511 = vdwg.mxu0
    %v2512 = vadd.f32 %v2427, %v2466
    %v2513 = vxor.u32 %v2512, 2147483648
    %v2514 = vmul.f32 %v2513, 1.442695
    %v2515 = vpow.pop %v2514
    %v2516 = vadd.f32 %v2515, 1.0
    %v2517 = vrcp.pop %v2516
    %v2518 = vmul.f32 1.0, %v2517
    %v2519 = vadd.f32 %v2428, %v2468
    %v2520 = vxor.u32 %v2519, 2147483648
    %v2521 = vmul.f32 %v2520, 1.442695
    %v2522 = vpow.pop %v2521
    %v2523 = vadd.f32 %v2522, 1.0
    %v2524 = vrcp.pop %v2523
    %v2525 = vmul.f32 1.0, %v2524
    %v2526 = vadd.f32 %v2507, %v1725
    %v2527 = vmul.f32 %v2518, %v2526
    %v2528 = vadd.f32 %v2429, %v2527
    %v2529 = vtanh.pop %v2528
    %v2530 = vsub.f32 1.0, %v2525
    %v2531 = vmul.f32 %v2530, %v2529
    %v2532 = vmul.f32 %v2525, %v2313
    %v2533 = vadd.f32 %v2531, %v2532
    %s2534 = scalar_lea.vmem [#allocation4], 16
    %2535 = vst [vmem:[%s2534] sm:$0xff] %v2533
    %s2536 = scalar_lea.vmem [#allocation3], 120
    %v2537 = vld [vmem:[%s2536] sm:$0xff]
    %v2538 = vld [vmem:[%s2536 + $0x8] sm:$0xff]
    %v2539 = vld [vmem:[%s2536 + $0x10] sm:$0xff]
    %v2540 = vpack.c.bf16 %v2423, %v2423
    %2541 = vmatprep.subr.bf16.mxu0 %v2054
    %2542 = vmatpush1.bf16.msra.mxu0 %v2053
    %2543 = vmatprep.subr.bf16.mxu0 %v2057
    %2544 = vmatpush1.bf16.msra.mxu0 %v2056
    %2545 = vmatprep.subr.bf16.mxu0 %v2060
    %2546 = vmatpush1.bf16.msra.mxu0 %v2059
    %2547 = vmatprep.subr.bf16.mxu0 %v2063
    %2548 = vmatpush1.bf16.msra.mxu0 %v2062
    %2549 = vmatprep.subr.bf16.mxu0 %v2066
    %2550 = vmatpush1.bf16.msra.mxu0 %v2065
    %2551 = vmatprep.subr.bf16.mxu0 %v2069
    %2552 = vmatpush1.bf16.msra.mxu0 %v2068
    %2553 = vmatprep.subr.bf16.mxu0 %v2072
    %2554 = vmatpush1.bf16.msra.mxu0 %v2071
    %2555 = vmatprep.subr.bf16.mxu0 %v2075
    %2556 = vmatpush1.bf16.msra.mxu0 %v2074
    %2557 = vmatprep.subr.bf16.mxu0 0
    %2558 = vmatpush1.bf16.msra.mxu0 0
    %2559 = vmatprep.subr.bf16.mxu0 0
    %2560 = vmatpush1.bf16.msra.mxu0 0
    %2561 = vmatprep.subr.bf16.mxu0 0
    %2562 = vmatpush1.bf16.msra.mxu0 0
    %2563 = vmatprep.subr.bf16.mxu0 0
    %2564 = vmatpush1.bf16.msra.mxu0 0
    %2565 = vmatprep.subr.bf16.mxu0 0
    %2566 = vmatpush1.bf16.msra.mxu0 0
    %2567 = vmatprep.subr.bf16.mxu0 0
    %2568 = vmatpush1.bf16.msra.mxu0 0
    %2569 = vmatprep.subr.bf16.mxu0 0
    %2570 = vmatpush1.bf16.msra.mxu0 0
    %2571 = vmatprep.subr.bf16.mxu0 0
    %2572 = vmatpush1.bf16.msra.mxu0 0
    %2573 = vmatprep.mubr.bf16.mxu0 0
    %2574 = vmatmul.mubr.bf16.gmra.mrb[0].mxu0 %v2540
    %v2575 = vpop.f32.mrb[0].mxu0
    %v2576 = vadd.f32 0.0, %v2575
    %v2577 = vpop.f32.mrb[0].mxu0
    %v2578 = vadd.f32 0.0, %v2577
    %v2579 = vpop.f32.mrb[0].mxu0
    %v2580 = vpop.f32.mrb[0].mxu0
    %2581 = vdwg.mxu0
    %2582 = vmatprep.subr.bf16.mxu0 0
    %2583 = vmatpush1.bf16.msra.mxu0 %v2055
    %2584 = vmatprep.subr.bf16.mxu0 0
    %2585 = vmatpush1.bf16.msra.mxu0 %v2058
    %2586 = vmatprep.subr.bf16.mxu0 0
    %2587 = vmatpush1.bf16.msra.mxu0 %v2061
    %2588 = vmatprep.subr.bf16.mxu0 0
    %2589 = vmatpush1.bf16.msra.mxu0 %v2064
    %2590 = vmatprep.subr.bf16.mxu0 0
    %2591 = vmatpush1.bf16.msra.mxu0 %v2067
    %2592 = vmatprep.subr.bf16.mxu0 0
    %2593 = vmatpush1.bf16.msra.mxu0 %v2070
    %2594 = vmatprep.subr.bf16.mxu0 0
    %2595 = vmatpush1.bf16.msra.mxu0 %v2073
    %2596 = vmatprep.subr.bf16.mxu0 0
    %2597 = vmatpush1.bf16.msra.mxu0 %v2076
    %2598 = vmatprep.subr.bf16.mxu0 0
    %2599 = vmatpush1.bf16.msra.mxu0 0
    %2600 = vmatprep.subr.bf16.mxu0 0
    %2601 = vmatpush1.bf16.msra.mxu0 0
    %2602 = vmatprep.subr.bf16.mxu0 0
    %2603 = vmatpush1.bf16.msra.mxu0 0
    %2604 = vmatprep.subr.bf16.mxu0 0
    %2605 = vmatpush1.bf16.msra.mxu0 0
    %2606 = vmatprep.subr.bf16.mxu0 0
    %2607 = vmatpush1.bf16.msra.mxu0 0
    %2608 = vmatprep.subr.bf16.mxu0 0
    %2609 = vmatpush1.bf16.msra.mxu0 0
    %2610 = vmatprep.subr.bf16.mxu0 0
    %2611 = vmatpush1.bf16.msra.mxu0 0
    %2612 = vmatprep.subr.bf16.mxu0 0
    %2613 = vmatpush1.bf16.msra.mxu0 0
    %2614 = vmatprep.mubr.bf16.mxu0 0
    %2615 = vmatmul.mubr.bf16.gmra.mrb[0].mxu0 %v2540
    %v2616 = vpop.f32.mrb[0].mxu0
    %v2617 = vadd.f32 0.0, %v2616
    %v2618 = vpop.f32.mrb[0].mxu0
    %v2619 = vpop.f32.mrb[0].mxu0
    %v2620 = vpop.f32.mrb[0].mxu0
    %2621 = vdwg.mxu0
    %v2622 = vadd.f32 %v2537, %v2576
    %v2623 = vxor.u32 %v2622, 2147483648
    %v2624 = vmul.f32 %v2623, 1.442695
    %v2625 = vpow.pop %v2624
    %v2626 = vadd.f32 %v2625, 1.0
    %v2627 = vrcp.pop %v2626
    %v2628 = vmul.f32 1.0, %v2627
    %v2629 = vadd.f32 %v2538, %v2578
    %v2630 = vxor.u32 %v2629, 2147483648
    %v2631 = vmul.f32 %v2630, 1.442695
    %v2632 = vpow.pop %v2631
    %v2633 = vadd.f32 %v2632, 1.0
    %v2634 = vrcp.pop %v2633
    %v2635 = vmul.f32 1.0, %v2634
    %v2636 = vadd.f32 %v2617, %v1732
    %v2637 = vmul.f32 %v2628, %v2636
    %v2638 = vadd.f32 %v2539, %v2637
    %v2639 = vtanh.pop %v2638
    %v2640 = vsub.f32 1.0, %v2635
    %v2641 = vmul.f32 %v2640, %v2639
    %v2642 = vmul.f32 %v2635, %v2423
    %v2643 = vadd.f32 %v2641, %v2642
    %s2644 = scalar_lea.vmem [#allocation5], 40
    %2645 = vst [vmem:[%s2644] sm:$0xff] %v2643
    %s2646 = scalar_lea.vmem [#allocation2], 72
    %v2647 = vld [vmem:[%s2646] sm:$0xff]
    %v2648 = vld [vmem:[%s2646 + $0x8] sm:$0xff]
    %v2649 = vld [vmem:[%s2646 + $0x10] sm:$0xff]
    %v2650 = vpack.c.bf16 %v2533, %v2533
    %2651 = vmatprep.subr.bf16.mxu0 %v1818
    %2652 = vmatpush1.bf16.msra.mxu0 %v1817
    %2653 = vmatprep.subr.bf16.mxu0 %v1821
    %2654 = vmatpush1.bf16.msra.mxu0 %v1820
    %2655 = vmatprep.subr.bf16.mxu0 %v1824
    %2656 = vmatpush1.bf16.msra.mxu0 %v1823
    %2657 = vmatprep.subr.bf16.mxu0 %v1827
    %2658 = vmatpush1.bf16.msra.mxu0 %v1826
    %2659 = vmatprep.subr.bf16.mxu0 %v1830
    %2660 = vmatpush1.bf16.msra.mxu0 %v1829
    %2661 = vmatprep.subr.bf16.mxu0 %v1833
    %2662 = vmatpush1.bf16.msra.mxu0 %v1832
    %2663 = vmatprep.subr.bf16.mxu0 %v1836
    %2664 = vmatpush1.bf16.msra.mxu0 %v1835
    %2665 = vmatprep.subr.bf16.mxu0 %v1839
    %2666 = vmatpush1.bf16.msra.mxu0 %v1838
    %2667 = vmatprep.subr.bf16.mxu0 0
    %2668 = vmatpush1.bf16.msra.mxu0 0
    %2669 = vmatprep.subr.bf16.mxu0 0
    %2670 = vmatpush1.bf16.msra.mxu0 0
    %2671 = vmatprep.subr.bf16.mxu0 0
    %2672 = vmatpush1.bf16.msra.mxu0 0
    %2673 = vmatprep.subr.bf16.mxu0 0
    %2674 = vmatpush1.bf16.msra.mxu0 0
    %2675 = vmatprep.subr.bf16.mxu0 0
    %2676 = vmatpush1.bf16.msra.mxu0 0
    %2677 = vmatprep.subr.bf16.mxu0 0
    %2678 = vmatpush1.bf16.msra.mxu0 0
    %2679 = vmatprep.subr.bf16.mxu0 0
    %2680 = vmatpush1.bf16.msra.mxu0 0
    %2681 = vmatprep.subr.bf16.mxu0 0
    %2682 = vmatpush1.bf16.msra.mxu0 0
    %2683 = vmatprep.mubr.bf16.mxu0 0
    %2684 = vmatmul.mubr.bf16.gmra.mrb[0].mxu0 %v2650
    %v2685 = vpop.f32.mrb[0].mxu0
    %v2686 = vadd.f32 0.0, %v2685
    %v2687 = vpop.f32.mrb[0].mxu0
    %v2688 = vadd.f32 0.0, %v2687
    %v2689 = vpop.f32.mrb[0].mxu0
    %v2690 = vpop.f32.mrb[0].mxu0
    %2691 = vdwg.mxu0
    %2692 = vmatprep.subr.bf16.mxu0 0
    %2693 = vmatpush1.bf16.msra.mxu0 %v1819
    %2694 = vmatprep.subr.bf16.mxu0 0
    %2695 = vmatpush1.bf16.msra.mxu0 %v1822
    %2696 = vmatprep.subr.bf16.mxu0 0
    %2697 = vmatpush1.bf16.msra.mxu0 %v1825
    %2698 = vmatprep.subr.bf16.mxu0 0
    %2699 = vmatpush1.bf16.msra.mxu0 %v1828
    %2700 = vmatprep.subr.bf16.mxu0 0
    %2701 = vmatpush1.bf16.msra.mxu0 %v1831
    %2702 = vmatprep.subr.bf16.mxu0 0
    %2703 = vmatpush1.bf16.msra.mxu0 %v1834
    %2704 = vmatprep.subr.bf16.mxu0 0
    %2705 = vmatpush1.bf16.msra.mxu0 %v1837
    %2706 = vmatprep.subr.bf16.mxu0 0
    %2707 = vmatpush1.bf16.msra.mxu0 %v1840
    %2708 = vmatprep.subr.bf16.mxu0 0
    %2709 = vmatpush1.bf16.msra.mxu0 0
    %2710 = vmatprep.subr.bf16.mxu0 0
    %2711 = vmatpush1.bf16.msra.mxu0 0
    %2712 = vmatprep.subr.bf16.mxu0 0
    %2713 = vmatpush1.bf16.msra.mxu0 0
    %2714 = vmatprep.subr.bf16.mxu0 0
    %2715 = vmatpush1.bf16.msra.mxu0 0
    %2716 = vmatprep.subr.bf16.mxu0 0
    %2717 = vmatpush1.bf16.msra.mxu0 0
    %2718 = vmatprep.subr.bf16.mxu0 0
    %2719 = vmatpush1.bf16.msra.mxu0 0
    %2720 = vmatprep.subr.bf16.mxu0 0
    %2721 = vmatpush1.bf16.msra.mxu0 0
    %2722 = vmatprep.subr.bf16.mxu0 0
    %2723 = vmatpush1.bf16.msra.mxu0 0
    %2724 = vmatprep.mubr.bf16.mxu0 0
    %2725 = vmatmul.mubr.bf16.gmra.mrb[0].mxu0 %v2650
    %v2726 = vpop.f32.mrb[0].mxu0
    %v2727 = vadd.f32 0.0, %v2726
    %v2728 = vpop.f32.mrb[0].mxu0
    %v2729 = vpop.f32.mrb[0].mxu0
    %v2730 = vpop.f32.mrb[0].mxu0
    %2731 = vdwg.mxu0
    %v2732 = vadd.f32 %v2647, %v2686
    %v2733 = vxor.u32 %v2732, 2147483648
    %v2734 = vmul.f32 %v2733, 1.442695
    %v2735 = vpow.pop %v2734
    %v2736 = vadd.f32 %v2735, 1.0
    %v2737 = vrcp.pop %v2736
    %v2738 = vmul.f32 1.0, %v2737
    %v2739 = vadd.f32 %v2648, %v2688
    %v2740 = vxor.u32 %v2739, 2147483648
    %v2741 = vmul.f32 %v2740, 1.442695
    %v2742 = vpow.pop %v2741
    %v2743 = vadd.f32 %v2742, 1.0
    %v2744 = vrcp.pop %v2743
    %v2745 = vmul.f32 1.0, %v2744
    %v2746 = vadd.f32 %v2727, %v1725
    %v2747 = vmul.f32 %v2738, %v2746
    %v2748 = vadd.f32 %v2649, %v2747
    %v2749 = vtanh.pop %v2748
    %v2750 = vsub.f32 1.0, %v2745
    %v2751 = vmul.f32 %v2750, %v2749
    %v2752 = vmul.f32 %v2745, %v2533
    %v2753 = vadd.f32 %v2751, %v2752
    %s2754 = scalar_lea.vmem [#allocation4], 24
    %2755 = vst [vmem:[%s2754] sm:$0xff] %v2753
    %s2756 = scalar_lea.vmem [#allocation3], 96
    %v2757 = vld [vmem:[%s2756] sm:$0xff]
    %v2758 = vld [vmem:[%s2756 + $0x8] sm:$0xff]
    %v2759 = vld [vmem:[%s2756 + $0x10] sm:$0xff]
    %v2760 = vpack.c.bf16 %v2643, %v2643
    %2761 = vmatprep.subr.bf16.mxu0 %v2054
    %2762 = vmatpush1.bf16.msra.mxu0 %v2053
    %2763 = vmatprep.subr.bf16.mxu0 %v2057
    %2764 = vmatpush1.bf16.msra.mxu0 %v2056
    %2765 = vmatprep.subr.bf16.mxu0 %v2060
    %2766 = vmatpush1.bf16.msra.mxu0 %v2059
    %2767 = vmatprep.subr.bf16.mxu0 %v2063
    %2768 = vmatpush1.bf16.msra.mxu0 %v2062
    %2769 = vmatprep.subr.bf16.mxu0 %v2066
    %2770 = vmatpush1.bf16.msra.mxu0 %v2065
    %2771 = vmatprep.subr.bf16.mxu0 %v2069
    %2772 = vmatpush1.bf16.msra.mxu0 %v2068
    %2773 = vmatprep.subr.bf16.mxu0 %v2072
    %2774 = vmatpush1.bf16.msra.mxu0 %v2071
    %2775 = vmatprep.subr.bf16.mxu0 %v2075
    %2776 = vmatpush1.bf16.msra.mxu0 %v2074
    %2777 = vmatprep.subr.bf16.mxu0 0
    %2778 = vmatpush1.bf16.msra.mxu0 0
    %2779 = vmatprep.subr.bf16.mxu0 0
    %2780 = vmatpush1.bf16.msra.mxu0 0
    %2781 = vmatprep.subr.bf16.mxu0 0
    %2782 = vmatpush1.bf16.msra.mxu0 0
    %2783 = vmatprep.subr.bf16.mxu0 0
    %2784 = vmatpush1.bf16.msra.mxu0 0
    %2785 = vmatprep.subr.bf16.mxu0 0
    %2786 = vmatpush1.bf16.msra.mxu0 0
    %2787 = vmatprep.subr.bf16.mxu0 0
    %2788 = vmatpush1.bf16.msra.mxu0 0
    %2789 = vmatprep.subr.bf16.mxu0 0
    %2790 = vmatpush1.bf16.msra.mxu0 0
    %2791 = vmatprep.subr.bf16.mxu0 0
    %2792 = vmatpush1.bf16.msra.mxu0 0
    %2793 = vmatprep.mubr.bf16.mxu0 0
    %2794 = vmatmul.mubr.bf16.gmra.mrb[0].mxu0 %v2760
    %v2795 = vpop.f32.mrb[0].mxu0
    %v2796 = vadd.f32 0.0, %v2795
    %v2797 = vpop.f32.mrb[0].mxu0
    %v2798 = vadd.f32 0.0, %v2797
    %v2799 = vpop.f32.mrb[0].mxu0
    %v2800 = vpop.f32.mrb[0].mxu0
    %2801 = vdwg.mxu0
    %2802 = vmatprep.subr.bf16.mxu0 0
    %2803 = vmatpush1.bf16.msra.mxu0 %v2055
    %2804 = vmatprep.subr.bf16.mxu0 0
    %2805 = vmatpush1.bf16.msra.mxu0 %v2058
    %2806 = vmatprep.subr.bf16.mxu0 0
    %2807 = vmatpush1.bf16.msra.mxu0 %v2061
    %2808 = vmatprep.subr.bf16.mxu0 0
    %2809 = vmatpush1.bf16.msra.mxu0 %v2064
    %2810 = vmatprep.subr.bf16.mxu0 0
    %2811 = vmatpush1.bf16.msra.mxu0 %v2067
    %2812 = vmatprep.subr.bf16.mxu0 0
    %2813 = vmatpush1.bf16.msra.mxu0 %v2070
    %2814 = vmatprep.subr.bf16.mxu0 0
    %2815 = vmatpush1.bf16.msra.mxu0 %v2073
    %2816 = vmatprep.subr.bf16.mxu0 0
    %2817 = vmatpush1.bf16.msra.mxu0 %v2076
    %2818 = vmatprep.subr.bf16.mxu0 0
    %2819 = vmatpush1.bf16.msra.mxu0 0
    %2820 = vmatprep.subr.bf16.mxu0 0
    %2821 = vmatpush1.bf16.msra.mxu0 0
    %2822 = vmatprep.subr.bf16.mxu0 0
    %2823 = vmatpush1.bf16.msra.mxu0 0
    %2824 = vmatprep.subr.bf16.mxu0 0
    %2825 = vmatpush1.bf16.msra.mxu0 0
    %2826 = vmatprep.subr.bf16.mxu0 0
    %2827 = vmatpush1.bf16.msra.mxu0 0
    %2828 = vmatprep.subr.bf16.mxu0 0
    %2829 = vmatpush1.bf16.msra.mxu0 0
    %2830 = vmatprep.subr.bf16.mxu0 0
    %2831 = vmatpush1.bf16.msra.mxu0 0
    %2832 = vmatprep.subr.bf16.mxu0 0
    %2833 = vmatpush1.bf16.msra.mxu0 0
    %2834 = vmatprep.mubr.bf16.mxu0 0
    %2835 = vmatmul.mubr.bf16.gmra.mrb[0].mxu0 %v2760
    %v2836 = vpop.f32.mrb[0].mxu0
    %v2837 = vadd.f32 0.0, %v2836
    %v2838 = vpop.f32.mrb[0].mxu0
    %v2839 = vpop.f32.mrb[0].mxu0
    %v2840 = vpop.f32.mrb[0].mxu0
    %2841 = vdwg.mxu0
    %v2842 = vadd.f32 %v2757, %v2796
    %v2843 = vxor.u32 %v2842, 2147483648
    %v2844 = vmul.f32 %v2843, 1.442695
    %v2845 = vpow.pop %v2844
    %v2846 = vadd.f32 %v2845, 1.0
    %v2847 = vrcp.pop %v2846
    %v2848 = vmul.f32 1.0, %v2847
    %v2849 = vadd.f32 %v2758, %v2798
    %v2850 = vxor.u32 %v2849, 2147483648
    %v2851 = vmul.f32 %v2850, 1.442695
    %v2852 = vpow.pop %v2851
    %v2853 = vadd.f32 %v2852, 1.0
    %v2854 = vrcp.pop %v2853
    %v2855 = vmul.f32 1.0, %v2854
    %v2856 = vadd.f32 %v2837, %v1732
    %v2857 = vmul.f32 %v2848, %v2856
    %v2858 = vadd.f32 %v2759, %v2857
    %v2859 = vtanh.pop %v2858
    %v2860 = vsub.f32 1.0, %v2855
    %v2861 = vmul.f32 %v2860, %v2859
    %v2862 = vmul.f32 %v2855, %v2643
    %v2863 = vadd.f32 %v2861, %v2862
    %s2864 = scalar_lea.vmem [#allocation5], 32
    %2865 = vst [vmem:[%s2864] sm:$0xff] %v2863
    %s2866 = scalar_lea.vmem [#allocation2], 96
    %v2867 = vld [vmem:[%s2866] sm:$0xff]
    %v2868 = vld [vmem:[%s2866 + $0x8] sm:$0xff]
    %v2869 = vld [vmem:[%s2866 + $0x10] sm:$0xff]
    %v2870 = vpack.c.bf16 %v2753, %v2753
    %2871 = vmatprep.subr.bf16.mxu0 %v1818
    %2872 = vmatpush1.bf16.msra.mxu0 %v1817
    %2873 = vmatprep.subr.bf16.mxu0 %v1821
    %2874 = vmatpush1.bf16.msra.mxu0 %v1820
    %2875 = vmatprep.subr.bf16.mxu0 %v1824
    %2876 = vmatpush1.bf16.msra.mxu0 %v1823
    %2877 = vmatprep.subr.bf16.mxu0 %v1827
    %2878 = vmatpush1.bf16.msra.mxu0 %v1826
    %2879 = vmatprep.subr.bf16.mxu0 %v1830
    %2880 = vmatpush1.bf16.msra.mxu0 %v1829
    %2881 = vmatprep.subr.bf16.mxu0 %v1833
    %2882 = vmatpush1.bf16.msra.mxu0 %v1832
    %2883 = vmatprep.subr.bf16.mxu0 %v1836
    %2884 = vmatpush1.bf16.msra.mxu0 %v1835
    %2885 = vmatprep.subr.bf16.mxu0 %v1839
    %2886 = vmatpush1.bf16.msra.mxu0 %v1838
    %2887 = vmatprep.subr.bf16.mxu0 0
    %2888 = vmatpush1.bf16.msra.mxu0 0
    %2889 = vmatprep.subr.bf16.mxu0 0
    %2890 = vmatpush1.bf16.msra.mxu0 0
    %2891 = vmatprep.subr.bf16.mxu0 0
    %2892 = vmatpush1.bf16.msra.mxu0 0
    %2893 = vmatprep.subr.bf16.mxu0 0
    %2894 = vmatpush1.bf16.msra.mxu0 0
    %2895 = vmatprep.subr.bf16.mxu0 0
    %2896 = vmatpush1.bf16.msra.mxu0 0
    %2897 = vmatprep.subr.bf16.mxu0 0
    %2898 = vmatpush1.bf16.msra.mxu0 0
    %2899 = vmatprep.subr.bf16.mxu0 0
    %2900 = vmatpush1.bf16.msra.mxu0 0
    %2901 = vmatprep.subr.bf16.mxu0 0
    %2902 = vmatpush1.bf16.msra.mxu0 0
    %2903 = vmatprep.mubr.bf16.mxu0 0
    %2904 = vmatmul.mubr.bf16.gmra.mrb[0].mxu0 %v2870
    %v2905 = vpop.f32.mrb[0].mxu0
    %v2906 = vadd.f32 0.0, %v2905
    %v2907 = vpop.f32.mrb[0].mxu0
    %v2908 = vadd.f32 0.0, %v2907
    %v2909 = vpop.f32.mrb[0].mxu0
    %v2910 = vpop.f32.mrb[0].mxu0
    %2911 = vdwg.mxu0
    %2912 = vmatprep.subr.bf16.mxu0 0
    %2913 = vmatpush1.bf16.msra.mxu0 %v1819
    %2914 = vmatprep.subr.bf16.mxu0 0
    %2915 = vmatpush1.bf16.msra.mxu0 %v1822
    %2916 = vmatprep.subr.bf16.mxu0 0
    %2917 = vmatpush1.bf16.msra.mxu0 %v1825
    %2918 = vmatprep.subr.bf16.mxu0 0
    %2919 = vmatpush1.bf16.msra.mxu0 %v1828
    %2920 = vmatprep.subr.bf16.mxu0 0
    %2921 = vmatpush1.bf16.msra.mxu0 %v1831
    %2922 = vmatprep.subr.bf16.mxu0 0
    %2923 = vmatpush1.bf16.msra.mxu0 %v1834
    %2924 = vmatprep.subr.bf16.mxu0 0
    %2925 = vmatpush1.bf16.msra.mxu0 %v1837
    %2926 = vmatprep.subr.bf16.mxu0 0
    %2927 = vmatpush1.bf16.msra.mxu0 %v1840
    %2928 = vmatprep.subr.bf16.mxu0 0
    %2929 = vmatpush1.bf16.msra.mxu0 0
    %2930 = vmatprep.subr.bf16.mxu0 0
    %2931 = vmatpush1.bf16.msra.mxu0 0
    %2932 = vmatprep.subr.bf16.mxu0 0
    %2933 = vmatpush1.bf16.msra.mxu0 0
    %2934 = vmatprep.subr.bf16.mxu0 0
    %2935 = vmatpush1.bf16.msra.mxu0 0
    %2936 = vmatprep.subr.bf16.mxu0 0
    %2937 = vmatpush1.bf16.msra.mxu0 0
    %2938 = vmatprep.subr.bf16.mxu0 0
    %2939 = vmatpush1.bf16.msra.mxu0 0
    %2940 = vmatprep.subr.bf16.mxu0 0
    %2941 = vmatpush1.bf16.msra.mxu0 0
    %2942 = vmatprep.subr.bf16.mxu0 0
    %2943 = vmatpush1.bf16.msra.mxu0 0
    %2944 = vmatprep.mubr.bf16.mxu0 0
    %2945 = vmatmul.mubr.bf16.gmra.mrb[0].mxu0 %v2870
    %v2946 = vpop.f32.mrb[0].mxu0
    %v2947 = vadd.f32 0.0, %v2946
    %v2948 = vpop.f32.mrb[0].mxu0
    %v2949 = vpop.f32.mrb[0].mxu0
    %v2950 = vpop.f32.mrb[0].mxu0
    %2951 = vdwg.mxu0
    %v2952 = vadd.f32 %v2867, %v2906
    %v2953 = vxor.u32 %v2952, 2147483648
    %v2954 = vmul.f32 %v2953, 1.442695
    %v2955 = vpow.pop %v2954
    %v2956 = vadd.f32 %v2955, 1.0
    %v2957 = vrcp.pop %v2956
    %v2958 = vmul.f32 1.0, %v2957
    %v2959 = vadd.f32 %v2868, %v2908
    %v2960 = vxor.u32 %v2959, 2147483648
    %v2961 = vmul.f32 %v2960, 1.442695
    %v2962 = vpow.pop %v2961
    %v2963 = vadd.f32 %v2962, 1.0
    %v2964 = vrcp.pop %v2963
    %v2965 = vmul.f32 1.0, %v2964
    %v2966 = vadd.f32 %v2947, %v1725
    %v2967 = vmul.f32 %v2958, %v2966
    %v2968 = vadd.f32 %v2869, %v2967
    %v2969 = vtanh.pop %v2968
    %v2970 = vsub.f32 1.0, %v2965
    %v2971 = vmul.f32 %v2970, %v2969
    %v2972 = vmul.f32 %v2965, %v2753
    %v2973 = vadd.f32 %v2971, %v2972
    %s2974 = scalar_lea.vmem [#allocation4], 32
    %2975 = vst [vmem:[%s2974] sm:$0xff] %v2973
    %s2976 = scalar_lea.vmem [#allocation3], 72
    %v2977 = vld [vmem:[%s2976] sm:$0xff]
    %v2978 = vld [vmem:[%s2976 + $0x8] sm:$0xff]
    %v2979 = vld [vmem:[%s2976 + $0x10] sm:$0xff]
    %v2980 = vpack.c.bf16 %v2863, %v2863
    %2981 = vmatprep.subr.bf16.mxu0 %v2054
    %2982 = vmatpush1.bf16.msra.mxu0 %v2053
    %2983 = vmatprep.subr.bf16.mxu0 %v2057
    %2984 = vmatpush1.bf16.msra.mxu0 %v2056
    %2985 = vmatprep.subr.bf16.mxu0 %v2060
    %2986 = vmatpush1.bf16.msra.mxu0 %v2059
    %2987 = vmatprep.subr.bf16.mxu0 %v2063
    %2988 = vmatpush1.bf16.msra.mxu0 %v2062
    %2989 = vmatprep.subr.bf16.mxu0 %v2066
    %2990 = vmatpush1.bf16.msra.mxu0 %v2065
    %2991 = vmatprep.subr.bf16.mxu0 %v2069
    %2992 = vmatpush1.bf16.msra.mxu0 %v2068
    %2993 = vmatprep.subr.bf16.mxu0 %v2072
    %2994 = vmatpush1.bf16.msra.mxu0 %v2071
    %2995 = vmatprep.subr.bf16.mxu0 %v2075
    %2996 = vmatpush1.bf16.msra.mxu0 %v2074
    %2997 = vmatprep.subr.bf16.mxu0 0
    %2998 = vmatpush1.bf16.msra.mxu0 0
    %2999 = vmatprep.subr.bf16.mxu0 0
    %3000 = vmatpush1.bf16.msra.mxu0 0
    %3001 = vmatprep.subr.bf16.mxu0 0
    %3002 = vmatpush1.bf16.msra.mxu0 0
    %3003 = vmatprep.subr.bf16.mxu0 0
    %3004 = vmatpush1.bf16.msra.mxu0 0
    %3005 = vmatprep.subr.bf16.mxu0 0
    %3006 = vmatpush1.bf16.msra.mxu0 0
    %3007 = vmatprep.subr.bf16.mxu0 0
    %3008 = vmatpush1.bf16.msra.mxu0 0
    %3009 = vmatprep.subr.bf16.mxu0 0
    %3010 = vmatpush1.bf16.msra.mxu0 0
    %3011 = vmatprep.subr.bf16.mxu0 0
    %3012 = vmatpush1.bf16.msra.mxu0 0
    %3013 = vmatprep.mubr.bf16.mxu0 0
    %3014 = vmatmul.mubr.bf16.gmra.mrb[0].mxu0 %v2980
    %v3015 = vpop.f32.mrb[0].mxu0
    %v3016 = vadd.f32 0.0, %v3015
    %v3017 = vpop.f32.mrb[0].mxu0
    %v3018 = vadd.f32 0.0, %v3017
    %v3019 = vpop.f32.mrb[0].mxu0
    %v3020 = vpop.f32.mrb[0].mxu0
    %3021 = vdwg.mxu0
    %3022 = vmatprep.subr.bf16.mxu0 0
    %3023 = vmatpush1.bf16.msra.mxu0 %v2055
    %3024 = vmatprep.subr.bf16.mxu0 0
    %3025 = vmatpush1.bf16.msra.mxu0 %v2058
    %3026 = vmatprep.subr.bf16.mxu0 0
    %3027 = vmatpush1.bf16.msra.mxu0 %v2061
    %3028 = vmatprep.subr.bf16.mxu0 0
    %3029 = vmatpush1.bf16.msra.mxu0 %v2064
    %3030 = vmatprep.subr.bf16.mxu0 0
    %3031 = vmatpush1.bf16.msra.mxu0 %v2067
    %3032 = vmatprep.subr.bf16.mxu0 0
    %3033 = vmatpush1.bf16.msra.mxu0 %v2070
    %3034 = vmatprep.subr.bf16.mxu0 0
    %3035 = vmatpush1.bf16.msra.mxu0 %v2073
    %3036 = vmatprep.subr.bf16.mxu0 0
    %3037 = vmatpush1.bf16.msra.mxu0 %v2076
    %3038 = vmatprep.subr.bf16.mxu0 0
    %3039 = vmatpush1.bf16.msra.mxu0 0
    %3040 = vmatprep.subr.bf16.mxu0 0
    %3041 = vmatpush1.bf16.msra.mxu0 0
    %3042 = vmatprep.subr.bf16.mxu0 0
    %3043 = vmatpush1.bf16.msra.mxu0 0
    %3044 = vmatprep.subr.bf16.mxu0 0
    %3045 = vmatpush1.bf16.msra.mxu0 0
    %3046 = vmatprep.subr.bf16.mxu0 0
    %3047 = vmatpush1.bf16.msra.mxu0 0
    %3048 = vmatprep.subr.bf16.mxu0 0
    %3049 = vmatpush1.bf16.msra.mxu0 0
    %3050 = vmatprep.subr.bf16.mxu0 0
    %3051 = vmatpush1.bf16.msra.mxu0 0
    %3052 = vmatprep.subr.bf16.mxu0 0
    %3053 = vmatpush1.bf16.msra.mxu0 0
    %3054 = vmatprep.mubr.bf16.mxu0 0
    %3055 = vmatmul.mubr.bf16.gmra.mrb[0].mxu0 %v2980
    %v3056 = vpop.f32.mrb[0].mxu0
    %v3057 = vadd.f32 0.0, %v3056
    %v3058 = vpop.f32.mrb[0].mxu0
    %v3059 = vpop.f32.mrb[0].mxu0
    %v3060 = vpop.f32.mrb[0].mxu0
    %3061 = vdwg.mxu0
    %v3062 = vadd.f32 %v2977, %v3016
    %v3063 = vxor.u32 %v3062, 2147483648
    %v3064 = vmul.f32 %v3063, 1.442695
    %v3065 = vpow.pop %v3064
    %v3066 = vadd.f32 %v3065, 1.0
    %v3067 = vrcp.pop %v3066
    %v3068 = vmul.f32 1.0, %v3067
    %v3069 = vadd.f32 %v2978, %v3018
    %v3070 = vxor.u32 %v3069, 2147483648
    %v3071 = vmul.f32 %v3070, 1.442695
    %v3072 = vpow.pop %v3071
    %v3073 = vadd.f32 %v3072, 1.0
    %v3074 = vrcp.pop %v3073
    %v3075 = vmul.f32 1.0, %v3074
    %v3076 = vadd.f32 %v3057, %v1732
    %v3077 = vmul.f32 %v3068, %v3076
    %v3078 = vadd.f32 %v2979, %v3077
    %v3079 = vtanh.pop %v3078
    %v3080 = vsub.f32 1.0, %v3075
    %v3081 = vmul.f32 %v3080, %v3079
    %v3082 = vmul.f32 %v3075, %v2863
    %v3083 = vadd.f32 %v3081, %v3082
    %s3084 = scalar_lea.vmem [#allocation5], 24
    %3085 = vst [vmem:[%s3084] sm:$0xff] %v3083
    %s3086 = scalar_lea.vmem [#allocation2], 120
    %v3087 = vld [vmem:[%s3086] sm:$0xff]
    %v3088 = vld [vmem:[%s3086 + $0x8] sm:$0xff]
    %v3089 = vld [vmem:[%s3086 + $0x10] sm:$0xff]
    %v3090 = vpack.c.bf16 %v2973, %v2973
    %3091 = vmatprep.subr.bf16.mxu0 %v1818
    %3092 = vmatpush1.bf16.msra.mxu0 %v1817
    %3093 = vmatprep.subr.bf16.mxu0 %v1821
    %3094 = vmatpush1.bf16.msra.mxu0 %v1820
    %3095 = vmatprep.subr.bf16.mxu0 %v1824
    %3096 = vmatpush1.bf16.msra.mxu0 %v1823
    %3097 = vmatprep.subr.bf16.mxu0 %v1827
    %3098 = vmatpush1.bf16.msra.mxu0 %v1826
    %3099 = vmatprep.subr.bf16.mxu0 %v1830
    %3100 = vmatpush1.bf16.msra.mxu0 %v1829
    %3101 = vmatprep.subr.bf16.mxu0 %v1833
    %3102 = vmatpush1.bf16.msra.mxu0 %v1832
    %3103 = vmatprep.subr.bf16.mxu0 %v1836
    %3104 = vmatpush1.bf16.msra.mxu0 %v1835
    %3105 = vmatprep.subr.bf16.mxu0 %v1839
    %3106 = vmatpush1.bf16.msra.mxu0 %v1838
    %3107 = vmatprep.subr.bf16.mxu0 0
    %3108 = vmatpush1.bf16.msra.mxu0 0
    %3109 = vmatprep.subr.bf16.mxu0 0
    %3110 = vmatpush1.bf16.msra.mxu0 0
    %3111 = vmatprep.subr.bf16.mxu0 0
    %3112 = vmatpush1.bf16.msra.mxu0 0
    %3113 = vmatprep.subr.bf16.mxu0 0
    %3114 = vmatpush1.bf16.msra.mxu0 0
    %3115 = vmatprep.subr.bf16.mxu0 0
    %3116 = vmatpush1.bf16.msra.mxu0 0
    %3117 = vmatprep.subr.bf16.mxu0 0
    %3118 = vmatpush1.bf16.msra.mxu0 0
    %3119 = vmatprep.subr.bf16.mxu0 0
    %3120 = vmatpush1.bf16.msra.mxu0 0
    %3121 = vmatprep.subr.bf16.mxu0 0
    %3122 = vmatpush1.bf16.msra.mxu0 0
    %3123 = vmatprep.mubr.bf16.mxu0 0
    %3124 = vmatmul.mubr.bf16.gmra.mrb[0].mxu0 %v3090
    %v3125 = vpop.f32.mrb[0].mxu0
    %v3126 = vadd.f32 0.0, %v3125
    %v3127 = vpop.f32.mrb[0].mxu0
    %v3128 = vadd.f32 0.0, %v3127
    %v3129 = vpop.f32.mrb[0].mxu0
    %v3130 = vpop.f32.mrb[0].mxu0
    %3131 = vdwg.mxu0
    %3132 = vmatprep.subr.bf16.mxu0 0
    %3133 = vmatpush1.bf16.msra.mxu0 %v1819
    %3134 = vmatprep.subr.bf16.mxu0 0
    %3135 = vmatpush1.bf16.msra.mxu0 %v1822
    %3136 = vmatprep.subr.bf16.mxu0 0
    %3137 = vmatpush1.bf16.msra.mxu0 %v1825
    %3138 = vmatprep.subr.bf16.mxu0 0
    %3139 = vmatpush1.bf16.msra.mxu0 %v1828
    %3140 = vmatprep.subr.bf16.mxu0 0
    %3141 = vmatpush1.bf16.msra.mxu0 %v1831
    %3142 = vmatprep.subr.bf16.mxu0 0
    %3143 = vmatpush1.bf16.msra.mxu0 %v1834
    %3144 = vmatprep.subr.bf16.mxu0 0
    %3145 = vmatpush1.bf16.msra.mxu0 %v1837
    %3146 = vmatprep.subr.bf16.mxu0 0
    %3147 = vmatpush1.bf16.msra.mxu0 %v1840
    %3148 = vmatprep.subr.bf16.mxu0 0
    %3149 = vmatpush1.bf16.msra.mxu0 0
    %3150 = vmatprep.subr.bf16.mxu0 0
    %3151 = vmatpush1.bf16.msra.mxu0 0
    %3152 = vmatprep.subr.bf16.mxu0 0
    %3153 = vmatpush1.bf16.msra.mxu0 0
    %3154 = vmatprep.subr.bf16.mxu0 0
    %3155 = vmatpush1.bf16.msra.mxu0 0
    %3156 = vmatprep.subr.bf16.mxu0 0
    %3157 = vmatpush1.bf16.msra.mxu0 0
    %3158 = vmatprep.subr.bf16.mxu0 0
    %3159 = vmatpush1.bf16.msra.mxu0 0
    %3160 = vmatprep.subr.bf16.mxu0 0
    %3161 = vmatpush1.bf16.msra.mxu0 0
    %3162 = vmatprep.subr.bf16.mxu0 0
    %3163 = vmatpush1.bf16.msra.mxu0 0
    %3164 = vmatprep.mubr.bf16.mxu0 0
    %3165 = vmatmul.mubr.bf16.gmra.mrb[0].mxu0 %v3090
    %v3166 = vpop.f32.mrb[0].mxu0
    %v3167 = vadd.f32 0.0, %v3166
    %v3168 = vpop.f32.mrb[0].mxu0
    %v3169 = vpop.f32.mrb[0].mxu0
    %v3170 = vpop.f32.mrb[0].mxu0
    %3171 = vdwg.mxu0
    %v3172 = vadd.f32 %v3087, %v3126
    %v3173 = vxor.u32 %v3172, 2147483648
    %v3174 = vmul.f32 %v3173, 1.442695
    %v3175 = vpow.pop %v3174
    %v3176 = vadd.f32 %v3175, 1.0
    %v3177 = vrcp.pop %v3176
    %v3178 = vmul.f32 1.0, %v3177
    %v3179 = vadd.f32 %v3088, %v3128
    %v3180 = vxor.u32 %v3179, 2147483648
    %v3181 = vmul.f32 %v3180, 1.442695
    %v3182 = vpow.pop %v3181
    %v3183 = vadd.f32 %v3182, 1.0
    %v3184 = vrcp.pop %v3183
    %v3185 = vmul.f32 1.0, %v3184
    %v3186 = vadd.f32 %v3167, %v1725
    %v3187 = vmul.f32 %v3178, %v3186
    %v3188 = vadd.f32 %v3089, %v3187
    %v3189 = vtanh.pop %v3188
    %v3190 = vsub.f32 1.0, %v3185
    %v3191 = vmul.f32 %v3190, %v3189
    %v3192 = vmul.f32 %v3185, %v2973
    %v3193 = vadd.f32 %v3191, %v3192
    %s3194 = scalar_lea.vmem [#allocation4], 40
    %3195 = vst [vmem:[%s3194] sm:$0xff] %v3193
    %s3196 = scalar_lea.vmem [#allocation3], 48
    %v3197 = vld [vmem:[%s3196] sm:$0xff]
    %v3198 = vld [vmem:[%s3196 + $0x8] sm:$0xff]
    %v3199 = vld [vmem:[%s3196 + $0x10] sm:$0xff]
    %v3200 = vpack.c.bf16 %v3083, %v3083
    %3201 = vmatprep.subr.bf16.mxu0 %v2054
    %3202 = vmatpush1.bf16.msra.mxu0 %v2053
    %3203 = vmatprep.subr.bf16.mxu0 %v2057
    %3204 = vmatpush1.bf16.msra.mxu0 %v2056
    %3205 = vmatprep.subr.bf16.mxu0 %v2060
    %3206 = vmatpush1.bf16.msra.mxu0 %v2059
    %3207 = vmatprep.subr.bf16.mxu0 %v2063
    %3208 = vmatpush1.bf16.msra.mxu0 %v2062
    %3209 = vmatprep.subr.bf16.mxu0 %v2066
    %3210 = vmatpush1.bf16.msra.mxu0 %v2065
    %3211 = vmatprep.subr.bf16.mxu0 %v2069
    %3212 = vmatpush1.bf16.msra.mxu0 %v2068
    %3213 = vmatprep.subr.bf16.mxu0 %v2072
    %3214 = vmatpush1.bf16.msra.mxu0 %v2071
    %3215 = vmatprep.subr.bf16.mxu0 %v2075
    %3216 = vmatpush1.bf16.msra.mxu0 %v2074
    %3217 = vmatprep.subr.bf16.mxu0 0
    %3218 = vmatpush1.bf16.msra.mxu0 0
    %3219 = vmatprep.subr.bf16.mxu0 0
    %3220 = vmatpush1.bf16.msra.mxu0 0
    %3221 = vmatprep.subr.bf16.mxu0 0
    %3222 = vmatpush1.bf16.msra.mxu0 0
    %3223 = vmatprep.subr.bf16.mxu0 0
    %3224 = vmatpush1.bf16.msra.mxu0 0
    %3225 = vmatprep.subr.bf16.mxu0 0
    %3226 = vmatpush1.bf16.msra.mxu0 0
    %3227 = vmatprep.subr.bf16.mxu0 0
    %3228 = vmatpush1.bf16.msra.mxu0 0
    %3229 = vmatprep.subr.bf16.mxu0 0
    %3230 = vmatpush1.bf16.msra.mxu0 0
    %3231 = vmatprep.subr.bf16.mxu0 0
    %3232 = vmatpush1.bf16.msra.mxu0 0
    %3233 = vmatprep.mubr.bf16.mxu0 0
    %3234 = vmatmul.mubr.bf16.gmra.mrb[0].mxu0 %v3200
    %v3235 = vpop.f32.mrb[0].mxu0
    %v3236 = vadd.f32 0.0, %v3235
    %v3237 = vpop.f32.mrb[0].mxu0
    %v3238 = vadd.f32 0.0, %v3237
    %v3239 = vpop.f32.mrb[0].mxu0
    %v3240 = vpop.f32.mrb[0].mxu0
    %3241 = vdwg.mxu0
    %3242 = vmatprep.subr.bf16.mxu0 0
    %3243 = vmatpush1.bf16.msra.mxu0 %v2055
    %3244 = vmatprep.subr.bf16.mxu0 0
    %3245 = vmatpush1.bf16.msra.mxu0 %v2058
    %3246 = vmatprep.subr.bf16.mxu0 0
    %3247 = vmatpush1.bf16.msra.mxu0 %v2061
    %3248 = vmatprep.subr.bf16.mxu0 0
    %3249 = vmatpush1.bf16.msra.mxu0 %v2064
    %3250 = vmatprep.subr.bf16.mxu0 0
    %3251 = vmatpush1.bf16.msra.mxu0 %v2067
    %3252 = vmatprep.subr.bf16.mxu0 0
    %3253 = vmatpush1.bf16.msra.mxu0 %v2070
    %3254 = vmatprep.subr.bf16.mxu0 0
    %3255 = vmatpush1.bf16.msra.mxu0 %v2073
    %3256 = vmatprep.subr.bf16.mxu0 0
    %3257 = vmatpush1.bf16.msra.mxu0 %v2076
    %3258 = vmatprep.subr.bf16.mxu0 0
    %3259 = vmatpush1.bf16.msra.mxu0 0
    %3260 = vmatprep.subr.bf16.mxu0 0
    %3261 = vmatpush1.bf16.msra.mxu0 0
    %3262 = vmatprep.subr.bf16.mxu0 0
    %3263 = vmatpush1.bf16.msra.mxu0 0
    %3264 = vmatprep.subr.bf16.mxu0 0
    %3265 = vmatpush1.bf16.msra.mxu0 0
    %3266 = vmatprep.subr.bf16.mxu0 0
    %3267 = vmatpush1.bf16.msra.mxu0 0
    %3268 = vmatprep.subr.bf16.mxu0 0
    %3269 = vmatpush1.bf16.msra.mxu0 0
    %3270 = vmatprep.subr.bf16.mxu0 0
    %3271 = vmatpush1.bf16.msra.mxu0 0
    %3272 = vmatprep.subr.bf16.mxu0 0
    %3273 = vmatpush1.bf16.msra.mxu0 0
    %3274 = vmatprep.mubr.bf16.mxu0 0
    %3275 = vmatmul.mubr.bf16.gmra.mrb[0].mxu0 %v3200
    %v3276 = vpop.f32.mrb[0].mxu0
    %v3277 = vadd.f32 0.0, %v3276
    %v3278 = vpop.f32.mrb[0].mxu0
    %v3279 = vpop.f32.mrb[0].mxu0
    %v3280 = vpop.f32.mrb[0].mxu0
    %3281 = vdwg.mxu0
    %v3282 = vadd.f32 %v3197, %v3236
    %v3283 = vxor.u32 %v3282, 2147483648
    %v3284 = vmul.f32 %v3283, 1.442695
    %v3285 = vpow.pop %v3284
    %v3286 = vadd.f32 %v3285, 1.0
    %v3287 = vrcp.pop %v3286
    %v3288 = vmul.f32 1.0, %v3287
    %v3289 = vadd.f32 %v3198, %v3238
    %v3290 = vxor.u32 %v3289, 2147483648
    %v3291 = vmul.f32 %v3290, 1.442695
    %v3292 = vpow.pop %v3291
    %v3293 = vadd.f32 %v3292, 1.0
    %v3294 = vrcp.pop %v3293
    %v3295 = vmul.f32 1.0, %v3294
    %v3296 = vadd.f32 %v3277, %v1732
    %v3297 = vmul.f32 %v3288, %v3296
    %v3298 = vadd.f32 %v3199, %v3297
    %v3299 = vtanh.pop %v3298
    %v3300 = vsub.f32 1.0, %v3295
    %v3301 = vmul.f32 %v3300, %v3299
    %v3302 = vmul.f32 %v3295, %v3083
    %v3303 = vadd.f32 %v3301, %v3302
    %s3304 = scalar_lea.vmem [#allocation5], 16
    %3305 = vst [vmem:[%s3304] sm:$0xff] %v3303
    %s3306 = scalar_lea.vmem [#allocation2], 144
    %v3307 = vld [vmem:[%s3306] sm:$0xff]
    %v3308 = vld [vmem:[%s3306 + $0x8] sm:$0xff]
    %v3309 = vld [vmem:[%s3306 + $0x10] sm:$0xff]
    %v3310 = vpack.c.bf16 %v3193, %v3193
    %3311 = vmatprep.subr.bf16.mxu0 %v1818
    %3312 = vmatpush1.bf16.msra.mxu0 %v1817
    %3313 = vmatprep.subr.bf16.mxu0 %v1821
    %3314 = vmatpush1.bf16.msra.mxu0 %v1820
    %3315 = vmatprep.subr.bf16.mxu0 %v1824
    %3316 = vmatpush1.bf16.msra.mxu0 %v1823
    %3317 = vmatprep.subr.bf16.mxu0 %v1827
    %3318 = vmatpush1.bf16.msra.mxu0 %v1826
    %3319 = vmatprep.subr.bf16.mxu0 %v1830
    %3320 = vmatpush1.bf16.msra.mxu0 %v1829
    %3321 = vmatprep.subr.bf16.mxu0 %v1833
    %3322 = vmatpush1.bf16.msra.mxu0 %v1832
    %3323 = vmatprep.subr.bf16.mxu0 %v1836
    %3324 = vmatpush1.bf16.msra.mxu0 %v1835
    %3325 = vmatprep.subr.bf16.mxu0 %v1839
    %3326 = vmatpush1.bf16.msra.mxu0 %v1838
    %3327 = vmatprep.subr.bf16.mxu0 0
    %3328 = vmatpush1.bf16.msra.mxu0 0
    %3329 = vmatprep.subr.bf16.mxu0 0
    %3330 = vmatpush1.bf16.msra.mxu0 0
    %3331 = vmatprep.subr.bf16.mxu0 0
    %3332 = vmatpush1.bf16.msra.mxu0 0
    %3333 = vmatprep.subr.bf16.mxu0 0
    %3334 = vmatpush1.bf16.msra.mxu0 0
    %3335 = vmatprep.subr.bf16.mxu0 0
    %3336 = vmatpush1.bf16.msra.mxu0 0
    %3337 = vmatprep.subr.bf16.mxu0 0
    %3338 = vmatpush1.bf16.msra.mxu0 0
    %3339 = vmatprep.subr.bf16.mxu0 0
    %3340 = vmatpush1.bf16.msra.mxu0 0
    %3341 = vmatprep.subr.bf16.mxu0 0
    %3342 = vmatpush1.bf16.msra.mxu0 0
    %3343 = vmatprep.mubr.bf16.mxu0 0
    %3344 = vmatmul.mubr.bf16.gmra.mrb[0].mxu0 %v3310
    %v3345 = vpop.f32.mrb[0].mxu0
    %v3346 = vadd.f32 0.0, %v3345
    %v3347 = vpop.f32.mrb[0].mxu0
    %v3348 = vadd.f32 0.0, %v3347
    %v3349 = vpop.f32.mrb[0].mxu0
    %v3350 = vpop.f32.mrb[0].mxu0
    %3351 = vdwg.mxu0
    %3352 = vmatprep.subr.bf16.mxu0 0
    %3353 = vmatpush1.bf16.msra.mxu0 %v1819
    %3354 = vmatprep.subr.bf16.mxu0 0
    %3355 = vmatpush1.bf16.msra.mxu0 %v1822
    %3356 = vmatprep.subr.bf16.mxu0 0
    %3357 = vmatpush1.bf16.msra.mxu0 %v1825
    %3358 = vmatprep.subr.bf16.mxu0 0
    %3359 = vmatpush1.bf16.msra.mxu0 %v1828
    %3360 = vmatprep.subr.bf16.mxu0 0
    %3361 = vmatpush1.bf16.msra.mxu0 %v1831
    %3362 = vmatprep.subr.bf16.mxu0 0
    %3363 = vmatpush1.bf16.msra.mxu0 %v1834
    %3364 = vmatprep.subr.bf16.mxu0 0
    %3365 = vmatpush1.bf16.msra.mxu0 %v1837
    %3366 = vmatprep.subr.bf16.mxu0 0
    %3367 = vmatpush1.bf16.msra.mxu0 %v1840
    %3368 = vmatprep.subr.bf16.mxu0 0
    %3369 = vmatpush1.bf16.msra.mxu0 0
    %3370 = vmatprep.subr.bf16.mxu0 0
    %3371 = vmatpush1.bf16.msra.mxu0 0
    %3372 = vmatprep.subr.bf16.mxu0 0
    %3373 = vmatpush1.bf16.msra.mxu0 0
    %3374 = vmatprep.subr.bf16.mxu0 0
    %3375 = vmatpush1.bf16.msra.mxu0 0
    %3376 = vmatprep.subr.bf16.mxu0 0
    %3377 = vmatpush1.bf16.msra.mxu0 0
    %3378 = vmatprep.subr.bf16.mxu0 0
    %3379 = vmatpush1.bf16.msra.mxu0 0
    %3380 = vmatprep.subr.bf16.mxu0 0
    %3381 = vmatpush1.bf16.msra.mxu0 0
    %3382 = vmatprep.subr.bf16.mxu0 0
    %3383 = vmatpush1.bf16.msra.mxu0 0
    %3384 = vmatprep.mubr.bf16.mxu0 0
    %3385 = vmatmul.mubr.bf16.gmra.mrb[0].mxu0 %v3310
    %v3386 = vpop.f32.mrb[0].mxu0
    %v3387 = vadd.f32 0.0, %v3386
    %v3388 = vpop.f32.mrb[0].mxu0
    %v3389 = vpop.f32.mrb[0].mxu0
    %v3390 = vpop.f32.mrb[0].mxu0
    %3391 = vdwg.mxu0
    %v3392 = vadd.f32 %v3307, %v3346
    %v3393 = vxor.u32 %v3392, 2147483648
    %v3394 = vmul.f32 %v3393, 1.442695
    %v3395 = vpow.pop %v3394
    %v3396 = vadd.f32 %v3395, 1.0
    %v3397 = vrcp.pop %v3396
    %v3398 = vmul.f32 1.0, %v3397
    %v3399 = vadd.f32 %v3308, %v3348
    %v3400 = vxor.u32 %v3399, 2147483648
    %v3401 = vmul.f32 %v3400, 1.442695
    %v3402 = vpow.pop %v3401
    %v3403 = vadd.f32 %v3402, 1.0
    %v3404 = vrcp.pop %v3403
    %v3405 = vmul.f32 1.0, %v3404
    %v3406 = vadd.f32 %v3387, %v1725
    %v3407 = vmul.f32 %v3398, %v3406
    %v3408 = vadd.f32 %v3309, %v3407
    %v3409 = vtanh.pop %v3408
    %v3410 = vsub.f32 1.0, %v3405
    %v3411 = vmul.f32 %v3410, %v3409
    %v3412 = vmul.f32 %v3405, %v3193
    %v3413 = vadd.f32 %v3411, %v3412
    %s3414 = scalar_lea.vmem [#allocation4], 48
    %3415 = vst [vmem:[%s3414] sm:$0xff] %v3413
    %s3416 = scalar_lea.vmem [#allocation3], 24
    %v3417 = vld [vmem:[%s3416] sm:$0xff]
    %v3418 = vld [vmem:[%s3416 + $0x8] sm:$0xff]
    %v3419 = vld [vmem:[%s3416 + $0x10] sm:$0xff]
    %v3420 = vpack.c.bf16 %v3303, %v3303
    %3421 = vmatprep.subr.bf16.mxu0 %v2054
    %3422 = vmatpush1.bf16.msra.mxu0 %v2053
    %3423 = vmatprep.subr.bf16.mxu0 %v2057
    %3424 = vmatpush1.bf16.msra.mxu0 %v2056
    %3425 = vmatprep.subr.bf16.mxu0 %v2060
    %3426 = vmatpush1.bf16.msra.mxu0 %v2059
    %3427 = vmatprep.subr.bf16.mxu0 %v2063
    %3428 = vmatpush1.bf16.msra.mxu0 %v2062
    %3429 = vmatprep.subr.bf16.mxu0 %v2066
    %3430 = vmatpush1.bf16.msra.mxu0 %v2065
    %3431 = vmatprep.subr.bf16.mxu0 %v2069
    %3432 = vmatpush1.bf16.msra.mxu0 %v2068
    %3433 = vmatprep.subr.bf16.mxu0 %v2072
    %3434 = vmatpush1.bf16.msra.mxu0 %v2071
    %3435 = vmatprep.subr.bf16.mxu0 %v2075
    %3436 = vmatpush1.bf16.msra.mxu0 %v2074
    %3437 = vmatprep.subr.bf16.mxu0 0
    %3438 = vmatpush1.bf16.msra.mxu0 0
    %3439 = vmatprep.subr.bf16.mxu0 0
    %3440 = vmatpush1.bf16.msra.mxu0 0
    %3441 = vmatprep.subr.bf16.mxu0 0
    %3442 = vmatpush1.bf16.msra.mxu0 0
    %3443 = vmatprep.subr.bf16.mxu0 0
    %3444 = vmatpush1.bf16.msra.mxu0 0
    %3445 = vmatprep.subr.bf16.mxu0 0
    %3446 = vmatpush1.bf16.msra.mxu0 0
    %3447 = vmatprep.subr.bf16.mxu0 0
    %3448 = vmatpush1.bf16.msra.mxu0 0
    %3449 = vmatprep.subr.bf16.mxu0 0
    %3450 = vmatpush1.bf16.msra.mxu0 0
    %3451 = vmatprep.subr.bf16.mxu0 0
    %3452 = vmatpush1.bf16.msra.mxu0 0
    %3453 = vmatprep.mubr.bf16.mxu0 0
    %3454 = vmatmul.mubr.bf16.gmra.mrb[0].mxu0 %v3420
    %v3455 = vpop.f32.mrb[0].mxu0
    %v3456 = vadd.f32 0.0, %v3455
    %v3457 = vpop.f32.mrb[0].mxu0
    %v3458 = vadd.f32 0.0, %v3457
    %v3459 = vpop.f32.mrb[0].mxu0
    %v3460 = vpop.f32.mrb[0].mxu0
    %3461 = vdwg.mxu0
    %3462 = vmatprep.subr.bf16.mxu0 0
    %3463 = vmatpush1.bf16.msra.mxu0 %v2055
    %3464 = vmatprep.subr.bf16.mxu0 0
    %3465 = vmatpush1.bf16.msra.mxu0 %v2058
    %3466 = vmatprep.subr.bf16.mxu0 0
    %3467 = vmatpush1.bf16.msra.mxu0 %v2061
    %3468 = vmatprep.subr.bf16.mxu0 0
    %3469 = vmatpush1.bf16.msra.mxu0 %v2064
    %3470 = vmatprep.subr.bf16.mxu0 0
    %3471 = vmatpush1.bf16.msra.mxu0 %v2067
    %3472 = vmatprep.subr.bf16.mxu0 0
    %3473 = vmatpush1.bf16.msra.mxu0 %v2070
    %3474 = vmatprep.subr.bf16.mxu0 0
    %3475 = vmatpush1.bf16.msra.mxu0 %v2073
    %3476 = vmatprep.subr.bf16.mxu0 0
    %3477 = vmatpush1.bf16.msra.mxu0 %v2076
    %3478 = vmatprep.subr.bf16.mxu0 0
    %3479 = vmatpush1.bf16.msra.mxu0 0
    %3480 = vmatprep.subr.bf16.mxu0 0
    %3481 = vmatpush1.bf16.msra.mxu0 0
    %3482 = vmatprep.subr.bf16.mxu0 0
    %3483 = vmatpush1.bf16.msra.mxu0 0
    %3484 = vmatprep.subr.bf16.mxu0 0
    %3485 = vmatpush1.bf16.msra.mxu0 0
    %3486 = vmatprep.subr.bf16.mxu0 0
    %3487 = vmatpush1.bf16.msra.mxu0 0
    %3488 = vmatprep.subr.bf16.mxu0 0
    %3489 = vmatpush1.bf16.msra.mxu0 0
    %3490 = vmatprep.subr.bf16.mxu0 0
    %3491 = vmatpush1.bf16.msra.mxu0 0
    %3492 = vmatprep.subr.bf16.mxu0 0
    %3493 = vmatpush1.bf16.msra.mxu0 0
    %3494 = vmatprep.mubr.bf16.mxu0 0
    %3495 = vmatmul.mubr.bf16.gmra.mrb[0].mxu0 %v3420
    %v3496 = vpop.f32.mrb[0].mxu0
    %v3497 = vadd.f32 0.0, %v3496
    %v3498 = vpop.f32.mrb[0].mxu0
    %v3499 = vpop.f32.mrb[0].mxu0
    %v3500 = vpop.f32.mrb[0].mxu0
    %3501 = vdwg.mxu0
    %v3502 = vadd.f32 %v3417, %v3456
    %v3503 = vxor.u32 %v3502, 2147483648
    %v3504 = vmul.f32 %v3503, 1.442695
    %v3505 = vpow.pop %v3504
    %v3506 = vadd.f32 %v3505, 1.0
    %v3507 = vrcp.pop %v3506
    %v3508 = vmul.f32 1.0, %v3507
    %v3509 = vadd.f32 %v3418, %v3458
    %v3510 = vxor.u32 %v3509, 2147483648
    %v3511 = vmul.f32 %v3510, 1.442695
    %v3512 = vpow.pop %v3511
    %v3513 = vadd.f32 %v3512, 1.0
    %v3514 = vrcp.pop %v3513
    %v3515 = vmul.f32 1.0, %v3514
    %v3516 = vadd.f32 %v3497, %v1732
    %v3517 = vmul.f32 %v3508, %v3516
    %v3518 = vadd.f32 %v3419, %v3517
    %v3519 = vtanh.pop %v3518
    %v3520 = vsub.f32 1.0, %v3515
    %v3521 = vmul.f32 %v3520, %v3519
    %v3522 = vmul.f32 %v3515, %v3303
    %v3523 = vadd.f32 %v3521, %v3522
    %s3524 = scalar_lea.vmem [#allocation5], 8
    %3525 = vst [vmem:[%s3524] sm:$0xff] %v3523
    %s3526 = scalar_lea.vmem [#allocation2], 168
    %v3527 = vld [vmem:[%s3526] sm:$0xff]
    %v3528 = vld [vmem:[%s3526 + $0x8] sm:$0xff]
    %v3529 = vld [vmem:[%s3526 + $0x10] sm:$0xff]
    %v3530 = vpack.c.bf16 %v3413, %v3413
    %3531 = vmatprep.subr.bf16.mxu0 %v1818
    %3532 = vmatpush1.bf16.msra.mxu0 %v1817
    %3533 = vmatprep.subr.bf16.mxu0 %v1821
    %3534 = vmatpush1.bf16.msra.mxu0 %v1820
    %3535 = vmatprep.subr.bf16.mxu0 %v1824
    %3536 = vmatpush1.bf16.msra.mxu0 %v1823
    %3537 = vmatprep.subr.bf16.mxu0 %v1827
    %3538 = vmatpush1.bf16.msra.mxu0 %v1826
    %3539 = vmatprep.subr.bf16.mxu0 %v1830
    %3540 = vmatpush1.bf16.msra.mxu0 %v1829
    %3541 = vmatprep.subr.bf16.mxu0 %v1833
    %3542 = vmatpush1.bf16.msra.mxu0 %v1832
    %3543 = vmatprep.subr.bf16.mxu0 %v1836
    %3544 = vmatpush1.bf16.msra.mxu0 %v1835
    %3545 = vmatprep.subr.bf16.mxu0 %v1839
    %3546 = vmatpush1.bf16.msra.mxu0 %v1838
    %3547 = vmatprep.subr.bf16.mxu0 0
    %3548 = vmatpush1.bf16.msra.mxu0 0
    %3549 = vmatprep.subr.bf16.mxu0 0
    %3550 = vmatpush1.bf16.msra.mxu0 0
    %3551 = vmatprep.subr.bf16.mxu0 0
    %3552 = vmatpush1.bf16.msra.mxu0 0
    %3553 = vmatprep.subr.bf16.mxu0 0
    %3554 = vmatpush1.bf16.msra.mxu0 0
    %3555 = vmatprep.subr.bf16.mxu0 0
    %3556 = vmatpush1.bf16.msra.mxu0 0
    %3557 = vmatprep.subr.bf16.mxu0 0
    %3558 = vmatpush1.bf16.msra.mxu0 0
    %3559 = vmatprep.subr.bf16.mxu0 0
    %3560 = vmatpush1.bf16.msra.mxu0 0
    %3561 = vmatprep.subr.bf16.mxu0 0
    %3562 = vmatpush1.bf16.msra.mxu0 0
    %3563 = vmatprep.mubr.bf16.mxu0 0
    %3564 = vmatmul.mubr.bf16.gmra.mrb[0].mxu0 %v3530
    %v3565 = vpop.f32.mrb[0].mxu0
    %v3566 = vadd.f32 0.0, %v3565
    %v3567 = vpop.f32.mrb[0].mxu0
    %v3568 = vadd.f32 0.0, %v3567
    %v3569 = vpop.f32.mrb[0].mxu0
    %v3570 = vpop.f32.mrb[0].mxu0
    %3571 = vdwg.mxu0
    %3572 = vmatprep.subr.bf16.mxu0 0
    %3573 = vmatpush1.bf16.msra.mxu0 %v1819
    %3574 = vmatprep.subr.bf16.mxu0 0
    %3575 = vmatpush1.bf16.msra.mxu0 %v1822
    %3576 = vmatprep.subr.bf16.mxu0 0
    %3577 = vmatpush1.bf16.msra.mxu0 %v1825
    %3578 = vmatprep.subr.bf16.mxu0 0
    %3579 = vmatpush1.bf16.msra.mxu0 %v1828
    %3580 = vmatprep.subr.bf16.mxu0 0
    %3581 = vmatpush1.bf16.msra.mxu0 %v1831
    %3582 = vmatprep.subr.bf16.mxu0 0
    %3583 = vmatpush1.bf16.msra.mxu0 %v1834
    %3584 = vmatprep.subr.bf16.mxu0 0
    %3585 = vmatpush1.bf16.msra.mxu0 %v1837
    %3586 = vmatprep.subr.bf16.mxu0 0
    %3587 = vmatpush1.bf16.msra.mxu0 %v1840
    %3588 = vmatprep.subr.bf16.mxu0 0
    %3589 = vmatpush1.bf16.msra.mxu0 0
    %3590 = vmatprep.subr.bf16.mxu0 0
    %3591 = vmatpush1.bf16.msra.mxu0 0
    %3592 = vmatprep.subr.bf16.mxu0 0
    %3593 = vmatpush1.bf16.msra.mxu0 0
    %3594 = vmatprep.subr.bf16.mxu0 0
    %3595 = vmatpush1.bf16.msra.mxu0 0
    %3596 = vmatprep.subr.bf16.mxu0 0
    %3597 = vmatpush1.bf16.msra.mxu0 0
    %3598 = vmatprep.subr.bf16.mxu0 0
    %3599 = vmatpush1.bf16.msra.mxu0 0
    %3600 = vmatprep.subr.bf16.mxu0 0
    %3601 = vmatpush1.bf16.msra.mxu0 0
    %3602 = vmatprep.subr.bf16.mxu0 0
    %3603 = vmatpush1.bf16.msra.mxu0 0
    %3604 = vmatprep.mubr.bf16.mxu0 0
    %3605 = vmatmul.mubr.bf16.gmra.mrb[0].mxu0 %v3530
    %v3606 = vpop.f32.mrb[0].mxu0
    %v3607 = vadd.f32 0.0, %v3606
    %v3608 = vpop.f32.mrb[0].mxu0
    %v3609 = vpop.f32.mrb[0].mxu0
    %v3610 = vpop.f32.mrb[0].mxu0
    %3611 = vdwg.mxu0
    %v3612 = vadd.f32 %v3527, %v3566
    %v3613 = vxor.u32 %v3612, 2147483648
    %v3614 = vmul.f32 %v3613, 1.442695
    %v3615 = vpow.pop %v3614
    %v3616 = vadd.f32 %v3615, 1.0
    %v3617 = vrcp.pop %v3616
    %v3618 = vmul.f32 1.0, %v3617
    %v3619 = vadd.f32 %v3528, %v3568
    %v3620 = vxor.u32 %v3619, 2147483648
    %v3621 = vmul.f32 %v3620, 1.442695
    %v3622 = vpow.pop %v3621
    %v3623 = vadd.f32 %v3622, 1.0
    %v3624 = vrcp.pop %v3623
    %v3625 = vmul.f32 1.0, %v3624
    %v3626 = vadd.f32 %v3607, %v1725
    %v3627 = vmul.f32 %v3618, %v3626
    %v3628 = vadd.f32 %v3529, %v3627
    %v3629 = vtanh.pop %v3628
    %v3630 = vsub.f32 1.0, %v3625
    %v3631 = vmul.f32 %v3630, %v3629
    %v3632 = vmul.f32 %v3625, %v3413
    %v3633 = vadd.f32 %v3631, %v3632
    %s3634 = scalar_lea.vmem [#allocation4], 56
    %3635 = vst [vmem:[%s3634] sm:$0xff] %v3633
    %v3636 = vld [vmem:[#allocation3] sm:$0xff]
    %v3637 = vld [vmem:[#allocation3 + $0x8] sm:$0xff]
    %v3638 = vld [vmem:[#allocation3 + $0x10] sm:$0xff]
    %v3639 = vpack.c.bf16 %v3523, %v3523
    %3640 = vmatprep.subr.bf16.mxu0 %v2054
    %3641 = vmatpush1.bf16.msra.mxu0 %v2053
    %3642 = vmatprep.subr.bf16.mxu0 %v2057
    %3643 = vmatpush1.bf16.msra.mxu0 %v2056
    %3644 = vmatprep.subr.bf16.mxu0 %v2060
    %3645 = vmatpush1.bf16.msra.mxu0 %v2059
    %3646 = vmatprep.subr.bf16.mxu0 %v2063
    %3647 = vmatpush1.bf16.msra.mxu0 %v2062
    %3648 = vmatprep.subr.bf16.mxu0 %v2066
    %3649 = vmatpush1.bf16.msra.mxu0 %v2065
    %3650 = vmatprep.subr.bf16.mxu0 %v2069
    %3651 = vmatpush1.bf16.msra.mxu0 %v2068
    %3652 = vmatprep.subr.bf16.mxu0 %v2072
    %3653 = vmatpush1.bf16.msra.mxu0 %v2071
    %3654 = vmatprep.subr.bf16.mxu0 %v2075
    %3655 = vmatpush1.bf16.msra.mxu0 %v2074
    %3656 = vmatprep.subr.bf16.mxu0 0
    %3657 = vmatpush1.bf16.msra.mxu0 0
    %3658 = vmatprep.subr.bf16.mxu0 0
    %3659 = vmatpush1.bf16.msra.mxu0 0
    %3660 = vmatprep.subr.bf16.mxu0 0
    %3661 = vmatpush1.bf16.msra.mxu0 0
    %3662 = vmatprep.subr.bf16.mxu0 0
    %3663 = vmatpush1.bf16.msra.mxu0 0
    %3664 = vmatprep.subr.bf16.mxu0 0
    %3665 = vmatpush1.bf16.msra.mxu0 0
    %3666 = vmatprep.subr.bf16.mxu0 0
    %3667 = vmatpush1.bf16.msra.mxu0 0
    %3668 = vmatprep.subr.bf16.mxu0 0
    %3669 = vmatpush1.bf16.msra.mxu0 0
    %3670 = vmatprep.subr.bf16.mxu0 0
    %3671 = vmatpush1.bf16.msra.mxu0 0
    %3672 = vmatprep.mubr.bf16.mxu0 0
    %3673 = vmatmul.mubr.bf16.gmra.mrb[0].mxu0 %v3639
    %v3674 = vpop.f32.mrb[0].mxu0
    %v3675 = vadd.f32 0.0, %v3674
    %v3676 = vpop.f32.mrb[0].mxu0
    %v3677 = vadd.f32 0.0, %v3676
    %v3678 = vpop.f32.mrb[0].mxu0
    %v3679 = vpop.f32.mrb[0].mxu0
    %3680 = vdwg.mxu0
    %3681 = vmatprep.subr.bf16.mxu0 0
    %3682 = vmatpush1.bf16.msra.mxu0 %v2055
    %3683 = vmatprep.subr.bf16.mxu0 0
    %3684 = vmatpush1.bf16.msra.mxu0 %v2058
    %3685 = vmatprep.subr.bf16.mxu0 0
    %3686 = vmatpush1.bf16.msra.mxu0 %v2061
    %3687 = vmatprep.subr.bf16.mxu0 0
    %3688 = vmatpush1.bf16.msra.mxu0 %v2064
    %3689 = vmatprep.subr.bf16.mxu0 0
    %3690 = vmatpush1.bf16.msra.mxu0 %v2067
    %3691 = vmatprep.subr.bf16.mxu0 0
    %3692 = vmatpush1.bf16.msra.mxu0 %v2070
    %3693 = vmatprep.subr.bf16.mxu0 0
    %3694 = vmatpush1.bf16.msra.mxu0 %v2073
    %3695 = vmatprep.subr.bf16.mxu0 0
    %3696 = vmatpush1.bf16.msra.mxu0 %v2076
    %3697 = vmatprep.subr.bf16.mxu0 0
    %3698 = vmatpush1.bf16.msra.mxu0 0
    %3699 = vmatprep.subr.bf16.mxu0 0
    %3700 = vmatpush1.bf16.msra.mxu0 0
    %3701 = vmatprep.subr.bf16.mxu0 0
    %3702 = vmatpush1.bf16.msra.mxu0 0
    %3703 = vmatprep.subr.bf16.mxu0 0
    %3704 = vmatpush1.bf16.msra.mxu0 0
    %3705 = vmatprep.subr.bf16.mxu0 0
    %3706 = vmatpush1.bf16.msra.mxu0 0
    %3707 = vmatprep.subr.bf16.mxu0 0
    %3708 = vmatpush1.bf16.msra.mxu0 0
    %3709 = vmatprep.subr.bf16.mxu0 0
    %3710 = vmatpush1.bf16.msra.mxu0 0
    %3711 = vmatprep.subr.bf16.mxu0 0
    %3712 = vmatpush1.bf16.msra.mxu0 0
    %3713 = vmatprep.mubr.bf16.mxu0 0
    %3714 = vmatmul.mubr.bf16.gmra.mrb[0].mxu0 %v3639
    %v3715 = vpop.f32.mrb[0].mxu0
    %v3716 = vadd.f32 0.0, %v3715
    %v3717 = vpop.f32.mrb[0].mxu0
    %v3718 = vpop.f32.mrb[0].mxu0
    %v3719 = vpop.f32.mrb[0].mxu0
    %3720 = vdwg.mxu0
    %v3721 = vadd.f32 %v3636, %v3675
    %v3722 = vxor.u32 %v3721, 2147483648
    %v3723 = vmul.f32 %v3722, 1.442695
    %v3724 = vpow.pop %v3723
    %v3725 = vadd.f32 %v3724, 1.0
    %v3726 = vrcp.pop %v3725
    %v3727 = vmul.f32 1.0, %v3726
    %v3728 = vadd.f32 %v3637, %v3677
    %v3729 = vxor.u32 %v3728, 2147483648
    %v3730 = vmul.f32 %v3729, 1.442695
    %v3731 = vpow.pop %v3730
    %v3732 = vadd.f32 %v3731, 1.0
    %v3733 = vrcp.pop %v3732
    %v3734 = vmul.f32 1.0, %v3733
    %v3735 = vadd.f32 %v3716, %v1732
    %v3736 = vmul.f32 %v3727, %v3735
    %v3737 = vadd.f32 %v3638, %v3736
    %v3738 = vtanh.pop %v3737
    %v3739 = vsub.f32 1.0, %v3734
    %v3740 = vmul.f32 %v3739, %v3738
    %v3741 = vmul.f32 %v3734, %v3523
    %v3742 = vadd.f32 %v3740, %v3741
    %3743 = vst [vmem:[#allocation5] sm:$0xff] %v3742
    %v3744 = vld [vmem:[#allocation4] sm:$0xff]
    %v3745 = vld [vmem:[#allocation4 + $0x8] sm:$0xff]
    %v3746 = vld [vmem:[#allocation4 + $0x10] sm:$0xff]
    %v3747 = vld [vmem:[#allocation4 + $0x18] sm:$0xff]
    %v3748 = vld [vmem:[#allocation4 + $0x20] sm:$0xff]
    %v3749 = vld [vmem:[#allocation4 + $0x28] sm:$0xff]
    %v3750 = vld [vmem:[#allocation4 + $0x30] sm:$0xff]
    %v3751 = vld [vmem:[#allocation4 + $0x38] sm:$0xff]
    %v3752 = vld [vmem:[#allocation5] sm:$0xff]
    %v3753 = vld [vmem:[#allocation5 + $0x8] sm:$0xff]
    %v3754 = vld [vmem:[#allocation5 + $0x10] sm:$0xff]
    %v3755 = vld [vmem:[#allocation5 + $0x18] sm:$0xff]
    %v3756 = vld [vmem:[#allocation5 + $0x20] sm:$0xff]
    %v3757 = vld [vmem:[#allocation5 + $0x28] sm:$0xff]
    %v3758 = vld [vmem:[#allocation5 + $0x30] sm:$0xff]
    %v3759 = vld [vmem:[#allocation5 + $0x38] sm:$0xff]
    %v3760 = vpack.c.bf16 %v3745, %v3744
    %v3761 = vpack.c.bf16 %v3753, %v3752
    %v3762 = vpack.c.bf16 %v3747, %v3746
    %v3763 = vpack.c.bf16 %v3755, %v3754
    %v3764 = vpack.c.bf16 %v3749, %v3748
    %v3765 = vpack.c.bf16 %v3757, %v3756
    %v3766 = vpack.c.bf16 %v3751, %v3750
    %v3767 = vpack.c.bf16 %v3759, %v3758
    %v3768 = vld [vmem:[#allocation18] sm:$0xff]
    %v3769 = vld [vmem:[#allocation18 + $0x8] sm:$0xff]
    %v3770 = vld [vmem:[#allocation18 + $0x10] sm:$0xff]
    %v3771 = vld [vmem:[#allocation18 + $0x18] sm:$0xff]
    %v3772 = vld [vmem:[#allocation18 + $0x20] sm:$0xff]
    %v3773 = vld [vmem:[#allocation18 + $0x28] sm:$0xff]
    %v3774 = vld [vmem:[#allocation18 + $0x30] sm:$0xff]
    %v3775 = vld [vmem:[#allocation18 + $0x38] sm:$0xff]
    %v3776 = vld [vmem:[#allocation18 + $0x40] sm:$0xff]
    %v3777 = vld [vmem:[#allocation18 + $0x48] sm:$0xff]
    %v3778 = vld [vmem:[#allocation18 + $0x50] sm:$0xff]
    %v3779 = vld [vmem:[#allocation18 + $0x58] sm:$0xff]
    %v3780 = vld [vmem:[#allocation18 + $0x60] sm:$0xff]
    %v3781 = vld [vmem:[#allocation18 + $0x68] sm:$0xff]
    %v3782 = vld [vmem:[#allocation18 + $0x70] sm:$0xff]
    %v3783 = vld [vmem:[#allocation18 + $0x78] sm:$0xff]
    %v3784 = vld [vmem:[#allocation18 + $0x80] sm:$0xff]
    %v3785 = vld [vmem:[#allocation18 + $0x88] sm:$0xff]
    %v3786 = vld [vmem:[#allocation18 + $0x90] sm:$0xff]
    %v3787 = vld [vmem:[#allocation18 + $0x98] sm:$0xff]
    %v3788 = vld [vmem:[#allocation18 + $0xa0] sm:$0xff]
    %v3789 = vld [vmem:[#allocation18 + $0xa8] sm:$0xff]
    %v3790 = vld [vmem:[#allocation18 + $0xb0] sm:$0xff]
    %v3791 = vld [vmem:[#allocation18 + $0xb8] sm:$0xff]
    %v3792 = vld [vmem:[#allocation18 + $0xc0] sm:$0xff]
    %v3793 = vld [vmem:[#allocation18 + $0xc8] sm:$0xff]
    %v3794 = vld [vmem:[#allocation18 + $0xd0] sm:$0xff]
    %v3795 = vld [vmem:[#allocation18 + $0xd8] sm:$0xff]
    %v3796 = vld [vmem:[#allocation18 + $0xe0] sm:$0xff]
    %v3797 = vld [vmem:[#allocation18 + $0xe8] sm:$0xff]
    %v3798 = vld [vmem:[#allocation18 + $0xf0] sm:$0xff]
    %v3799 = vld [vmem:[#allocation18 + $0xf8] sm:$0xff]
    %v3800 = vld [vmem:[%s8] sm:$0x3]
    %v3802 = vlaneseq
    %v3803 = vshrl.u32 %v3802, 7
    %v3804 = vsub.s32 0, %v3803
    %v3805 = vrot.slane %v3800, %v3804
    %v3806 = vlaneseq
    %v3807 = vshrl.u32 %v3806, 7
    %v3808 = vsub.s32 1, %v3807
    %v3809 = vrot.slane %v3800, %v3808
    %v3844 = vunpack.c.l.b16 %v3768
    %v3845 = vunpack.c.h.b16 %v3768
    %v3846 = vunpack.c.l.b16 %v3769
    %v3847 = vunpack.c.h.b16 %v3769
    %v3848 = vunpack.c.l.b16 %v3770
    %v3849 = vunpack.c.h.b16 %v3770
    %v3850 = vunpack.c.l.b16 %v3771
    %v3851 = vunpack.c.h.b16 %v3771
    %v3852 = vunpack.c.l.b16 %v3772
    %v3853 = vunpack.c.h.b16 %v3772
    %v3854 = vunpack.c.l.b16 %v3773
    %v3855 = vunpack.c.h.b16 %v3773
    %v3856 = vunpack.c.l.b16 %v3774
    %v3857 = vunpack.c.h.b16 %v3774
    %v3858 = vunpack.c.l.b16 %v3775
    %v3859 = vunpack.c.h.b16 %v3775
    %v3860 = vunpack.c.l.b16 %v3776
    %v3861 = vunpack.c.h.b16 %v3776
    %v3862 = vunpack.c.l.b16 %v3777
    %v3863 = vunpack.c.h.b16 %v3777
    %v3864 = vunpack.c.l.b16 %v3778
    %v3865 = vunpack.c.h.b16 %v3778
    %v3866 = vunpack.c.l.b16 %v3779
    %v3867 = vunpack.c.h.b16 %v3779
    %v3868 = vunpack.c.l.b16 %v3780
    %v3869 = vunpack.c.h.b16 %v3780
    %v3870 = vunpack.c.l.b16 %v3781
    %v3871 = vunpack.c.h.b16 %v3781
    %v3872 = vunpack.c.l.b16 %v3782
    %v3873 = vunpack.c.h.b16 %v3782
    %v3874 = vunpack.c.l.b16 %v3783
    %v3875 = vunpack.c.h.b16 %v3783
    %v3876 = vunpack.c.l.b16 %v3784
    %v3877 = vunpack.c.h.b16 %v3784
    %v3878 = vunpack.c.l.b16 %v3785
    %v3879 = vunpack.c.h.b16 %v3785
    %v3880 = vunpack.c.l.b16 %v3786
    %v3881 = vunpack.c.h.b16 %v3786
    %v3882 = vunpack.c.l.b16 %v3787
    %v3883 = vunpack.c.h.b16 %v3787
    %v3884 = vunpack.c.l.b16 %v3788
    %v3885 = vunpack.c.h.b16 %v3788
    %v3886 = vunpack.c.l.b16 %v3789
    %v3887 = vunpack.c.h.b16 %v3789
    %v3888 = vunpack.c.l.b16 %v3790
    %v3889 = vunpack.c.h.b16 %v3790
    %v3890 = vunpack.c.l.b16 %v3791
    %v3891 = vunpack.c.h.b16 %v3791
    %v3892 = vunpack.c.l.b16 %v3792
    %v3893 = vunpack.c.h.b16 %v3792
    %v3894 = vunpack.c.l.b16 %v3793
    %v3895 = vunpack.c.h.b16 %v3793
    %v3896 = vunpack.c.l.b16 %v3794
    %v3897 = vunpack.c.h.b16 %v3794
    %v3898 = vunpack.c.l.b16 %v3795
    %v3899 = vunpack.c.h.b16 %v3795
    %v3900 = vunpack.c.l.b16 %v3796
    %v3901 = vunpack.c.h.b16 %v3796
    %v3902 = vunpack.c.l.b16 %v3797
    %v3903 = vunpack.c.h.b16 %v3797
    %v3904 = vunpack.c.l.b16 %v3798
    %v3905 = vunpack.c.h.b16 %v3798
    %v3906 = vunpack.c.l.b16 %v3799
    %v3907 = vunpack.c.h.b16 %v3799
    %v3908 = vpack.c.b16 %v3846, %v3844
    %v3909 = vpack.c.b16 %v3847, %v3845
    %v3910 = vpack.c.b16 %v3850, %v3848
    %v3911 = vpack.c.b16 %v3851, %v3849
    %v3912 = vpack.c.b16 %v3854, %v3852
    %v3913 = vpack.c.b16 %v3855, %v3853
    %v3914 = vpack.c.b16 %v3858, %v3856
    %v3915 = vpack.c.b16 %v3859, %v3857
    %v3916 = vpack.c.b16 %v3862, %v3860
    %v3917 = vpack.c.b16 %v3863, %v3861
    %v3918 = vpack.c.b16 %v3866, %v3864
    %v3919 = vpack.c.b16 %v3867, %v3865
    %v3920 = vpack.c.b16 %v3870, %v3868
    %v3921 = vpack.c.b16 %v3871, %v3869
    %v3922 = vpack.c.b16 %v3874, %v3872
    %v3923 = vpack.c.b16 %v3875, %v3873
    %v3924 = vpack.c.b16 %v3878, %v3876
    %v3925 = vpack.c.b16 %v3879, %v3877
    %v3926 = vpack.c.b16 %v3882, %v3880
    %v3927 = vpack.c.b16 %v3883, %v3881
    %v3928 = vpack.c.b16 %v3886, %v3884
    %v3929 = vpack.c.b16 %v3887, %v3885
    %v3930 = vpack.c.b16 %v3890, %v3888
    %v3931 = vpack.c.b16 %v3891, %v3889
    %v3932 = vpack.c.b16 %v3894, %v3892
    %v3933 = vpack.c.b16 %v3895, %v3893
    %v3934 = vpack.c.b16 %v3898, %v3896
    %v3935 = vpack.c.b16 %v3899, %v3897
    %v3936 = vpack.c.b16 %v3902, %v3900
    %v3937 = vpack.c.b16 %v3903, %v3901
    %v3938 = vpack.c.b16 %v3906, %v3904
    %v3939 = vpack.c.b16 %v3907, %v3905
    %3972 = vmatprep.subr.bf16.mxu0 %v3909
    %3973 = vmatpush1.bf16.msra.mxu0 %v3908
    %3974 = vmatprep.subr.bf16.mxu0 %v3911
    %3975 = vmatpush1.bf16.msra.mxu0 %v3910
    %3976 = vmatprep.subr.bf16.mxu0 %v3913
    %3977 = vmatpush1.bf16.msra.mxu0 %v3912
    %3978 = vmatprep.subr.bf16.mxu0 %v3915
    %3979 = vmatpush1.bf16.msra.mxu0 %v3914
    %3980 = vmatprep.subr.bf16.mxu0 %v3917
    %3981 = vmatpush1.bf16.msra.mxu0 %v3916
    %3982 = vmatprep.subr.bf16.mxu0 %v3919
    %3983 = vmatpush1.bf16.msra.mxu0 %v3918
    %3984 = vmatprep.subr.bf16.mxu0 %v3921
    %3985 = vmatpush1.bf16.msra.mxu0 %v3920
    %3986 = vmatprep.subr.bf16.mxu0 %v3923
    %3987 = vmatpush1.bf16.msra.mxu0 %v3922
    %3988 = vmatprep.subr.bf16.mxu0 %v3925
    %3989 = vmatpush1.bf16.msra.mxu0 %v3924
    %3990 = vmatprep.subr.bf16.mxu0 %v3927
    %3991 = vmatpush1.bf16.msra.mxu0 %v3926
    %3992 = vmatprep.subr.bf16.mxu0 %v3929
    %3993 = vmatpush1.bf16.msra.mxu0 %v3928
    %3994 = vmatprep.subr.bf16.mxu0 %v3931
    %3995 = vmatpush1.bf16.msra.mxu0 %v3930
    %3996 = vmatprep.subr.bf16.mxu0 %v3933
    %3997 = vmatpush1.bf16.msra.mxu0 %v3932
    %3998 = vmatprep.subr.bf16.mxu0 %v3935
    %3999 = vmatpush1.bf16.msra.mxu0 %v3934
    %4000 = vmatprep.subr.bf16.mxu0 %v3937
    %4001 = vmatpush1.bf16.msra.mxu0 %v3936
    %4002 = vmatprep.subr.bf16.mxu0 %v3939
    %4003 = vmatpush1.bf16.msra.mxu0 %v3938
    %4004 = vmatprep.mubr.bf16.mxu0 %v3761
    %4005 = vmatmul.mubr.bf16.gmra.mrb[0].mxu0 %v3760
    %v4006 = vpop.f32.mrb[0].mxu0
    %v4007 = vadd.f32 %v3805, %v4006
    %v4008 = vpop.f32.mrb[0].mxu0
    %v4009 = vadd.f32 %v3809, %v4008
    %v4010 = vpop.f32.mrb[0].mxu0
    %v4011 = vadd.f32 %v3805, %v4010
    %v4012 = vpop.f32.mrb[0].mxu0
    %v4013 = vadd.f32 %v3809, %v4012
    %4014 = vmatprep.mubr.bf16.mxu0 %v3763
    %4015 = vmatmul.mubr.bf16.gmra.mrb[0].mxu0 %v3762
    %v4016 = vpop.f32.mrb[0].mxu0
    %v4017 = vadd.f32 %v3805, %v4016
    %v4018 = vpop.f32.mrb[0].mxu0
    %v4019 = vadd.f32 %v3809, %v4018
    %v4020 = vpop.f32.mrb[0].mxu0
    %v4021 = vadd.f32 %v3805, %v4020
    %v4022 = vpop.f32.mrb[0].mxu0
    %v4023 = vadd.f32 %v3809, %v4022
    %4024 = vmatprep.mubr.bf16.mxu0 %v3765
    %4025 = vmatmul.mubr.bf16.gmra.mrb[0].mxu0 %v3764
    %v4026 = vpop.f32.mrb[0].mxu0
    %v4027 = vadd.f32 %v3805, %v4026
    %v4028 = vpop.f32.mrb[0].mxu0
    %v4029 = vadd.f32 %v3809, %v4028
    %v4030 = vpop.f32.mrb[0].mxu0
    %v4031 = vadd.f32 %v3805, %v4030
    %v4032 = vpop.f32.mrb[0].mxu0
    %v4033 = vadd.f32 %v3809, %v4032
    %4034 = vmatprep.mubr.bf16.mxu0 %v3767
    %4035 = vmatmul.mubr.bf16.gmra.mrb[0].mxu0 %v3766
    %v4036 = vpop.f32.mrb[0].mxu0
    %v4037 = vadd.f32 %v3805, %v4036
    %v4038 = vpop.f32.mrb[0].mxu0
    %v4039 = vadd.f32 %v3809, %v4038
    %v4040 = vpop.f32.mrb[0].mxu0
    %v4041 = vadd.f32 %v3805, %v4040
    %v4042 = vpop.f32.mrb[0].mxu0
    %v4043 = vadd.f32 %v3809, %v4042
    %4044 = vdwg.mxu0
    %4045 = vst [vmem:[#allocation6] sm:$0xff] %v4007
    %4046 = vst [vmem:[#allocation6 + $0x8] sm:$0xff] %v4011
    %4047 = vst [vmem:[#allocation6 + $0x10] sm:$0xff] %v4017
    %4048 = vst [vmem:[#allocation6 + $0x18] sm:$0xff] %v4021
    %4049 = vst [vmem:[#allocation6 + $0x20] sm:$0xff] %v4027
    %4050 = vst [vmem:[#allocation6 + $0x28] sm:$0xff] %v4031
    %4051 = vst [vmem:[#allocation6 + $0x30] sm:$0xff] %v4037
    %4052 = vst [vmem:[#allocation6 + $0x38] sm:$0xff] %v4041
    %4053 = vst [vmem:[#allocation7] sm:$0xff] %v4009
    %4054 = vst [vmem:[#allocation7 + $0x8] sm:$0xff] %v4013
    %4055 = vst [vmem:[#allocation7 + $0x10] sm:$0xff] %v4019
    %4056 = vst [vmem:[#allocation7 + $0x18] sm:$0xff] %v4023
    %4057 = vst [vmem:[#allocation7 + $0x20] sm:$0xff] %v4029
    %4058 = vst [vmem:[#allocation7 + $0x28] sm:$0xff] %v4033
    %4059 = vst [vmem:[#allocation7 + $0x30] sm:$0xff] %v4039
    %4060 = vst [vmem:[#allocation7 + $0x38] sm:$0xff] %v4043
    %v4061 = vld [vmem:[#allocation19] sm:$0xf]
    %v4062 = vld [vmem:[#allocation19 + $0x4] sm:$0xf]
    %v4063 = vld [vmem:[#allocation19 + $0x8] sm:$0xf]
    %v4064 = vld [vmem:[#allocation19 + $0xc] sm:$0xf]
    %v4065 = vld [vmem:[#allocation19 + $0x10] sm:$0xf]
    %v4066 = vld [vmem:[#allocation19 + $0x14] sm:$0xf]
    %v4067 = vld [vmem:[#allocation19 + $0x18] sm:$0xf]
    %v4068 = vld [vmem:[#allocation19 + $0x1c] sm:$0xf]
    %v4069 = vld [vmem:[#allocation19 + $0x20] sm:$0xf]
    %v4070 = vld [vmem:[#allocation19 + $0x24] sm:$0xf]
    %v4071 = vld [vmem:[#allocation19 + $0x28] sm:$0xf]
    %v4072 = vld [vmem:[#allocation19 + $0x2c] sm:$0xf]
    %v4073 = vld [vmem:[#allocation19 + $0x30] sm:$0xf]
    %v4074 = vld [vmem:[#allocation19 + $0x34] sm:$0xf]
    %v4075 = vld [vmem:[#allocation19 + $0x38] sm:$0xf]
    %v4076 = vld [vmem:[#allocation19 + $0x3c] sm:$0xf]
    %v4077 = vld [vmem:[#allocation21] sm:$0xf]
    %v4078 = vld [vmem:[#allocation21 + $0x4] sm:$0xf]
    %v4079 = vld [vmem:[#allocation21 + $0x8] sm:$0xf]
    %v4080 = vld [vmem:[#allocation21 + $0xc] sm:$0xf]
    %v4081 = vld [vmem:[#allocation21 + $0x10] sm:$0xf]
    %v4082 = vld [vmem:[#allocation21 + $0x14] sm:$0xf]
    %v4083 = vld [vmem:[#allocation21 + $0x18] sm:$0xf]
    %v4084 = vld [vmem:[#allocation21 + $0x1c] sm:$0xf]
    %v4085 = vld [vmem:[#allocation21 + $0x20] sm:$0xf]
    %v4086 = vld [vmem:[#allocation21 + $0x24] sm:$0xf]
    %v4087 = vld [vmem:[#allocation21 + $0x28] sm:$0xf]
    %v4088 = vld [vmem:[#allocation21 + $0x2c] sm:$0xf]
    %v4089 = vld [vmem:[#allocation21 + $0x30] sm:$0xf]
    %v4090 = vld [vmem:[#allocation21 + $0x34] sm:$0xf]
    %v4091 = vld [vmem:[#allocation21 + $0x38] sm:$0xf]
    %v4092 = vld [vmem:[#allocation21 + $0x3c] sm:$0xf]
    %v4093 = vld [vmem:[#allocation6] sm:$0xff]
    %v4110 = vunpack.c.l.b16 %v4061
    %v4111 = vunpack.c.l.b16 %v4062
    %v4112 = vunpack.c.l.b16 %v4063
    %v4113 = vunpack.c.l.b16 %v4064
    %v4114 = vunpack.c.l.b16 %v4065
    %v4115 = vunpack.c.l.b16 %v4066
    %v4116 = vunpack.c.l.b16 %v4067
    %v4117 = vunpack.c.l.b16 %v4068
    %v4118 = vunpack.c.l.b16 %v4069
    %v4119 = vunpack.c.l.b16 %v4070
    %v4120 = vunpack.c.l.b16 %v4071
    %v4121 = vunpack.c.l.b16 %v4072
    %v4122 = vunpack.c.l.b16 %v4073
    %v4123 = vunpack.c.l.b16 %v4074
    %v4124 = vunpack.c.l.b16 %v4075
    %v4125 = vunpack.c.l.b16 %v4076
    %v4126 = vpack.c.b16 %v4111, %v4110
    %v4127 = vpack.c.b16 %v4113, %v4112
    %v4128 = vpack.c.b16 %v4115, %v4114
    %v4129 = vpack.c.b16 %v4117, %v4116
    %v4130 = vpack.c.b16 %v4119, %v4118
    %v4131 = vpack.c.b16 %v4121, %v4120
    %v4132 = vpack.c.b16 %v4123, %v4122
    %v4133 = vpack.c.b16 %v4125, %v4124
    %4142 = vmatprep.subr.bf16.mxu0 0
    %4143 = vmatpush1.bf16.msra.mxu0 %v4126
    %4144 = vmatprep.subr.bf16.mxu0 0
    %4145 = vmatpush1.bf16.msra.mxu0 %v4127
    %4146 = vmatprep.subr.bf16.mxu0 0
    %4147 = vmatpush1.bf16.msra.mxu0 %v4128
    %4148 = vmatprep.subr.bf16.mxu0 0
    %4149 = vmatpush1.bf16.msra.mxu0 %v4129
    %4150 = vmatprep.subr.bf16.mxu0 0
    %4151 = vmatpush1.bf16.msra.mxu0 %v4130
    %4152 = vmatprep.subr.bf16.mxu0 0
    %4153 = vmatpush1.bf16.msra.mxu0 %v4131
    %4154 = vmatprep.subr.bf16.mxu0 0
    %4155 = vmatpush1.bf16.msra.mxu0 %v4132
    %4156 = vmatprep.subr.bf16.mxu0 0
    %4157 = vmatpush1.bf16.msra.mxu0 %v4133
    %4158 = vmatprep.subr.bf16.mxu0 0
    %4159 = vmatpush1.bf16.msra.mxu0 0
    %4160 = vmatprep.subr.bf16.mxu0 0
    %4161 = vmatpush1.bf16.msra.mxu0 0
    %4162 = vmatprep.subr.bf16.mxu0 0
    %4163 = vmatpush1.bf16.msra.mxu0 0
    %4164 = vmatprep.subr.bf16.mxu0 0
    %4165 = vmatpush1.bf16.msra.mxu0 0
    %4166 = vmatprep.subr.bf16.mxu0 0
    %4167 = vmatpush1.bf16.msra.mxu0 0
    %4168 = vmatprep.subr.bf16.mxu0 0
    %4169 = vmatpush1.bf16.msra.mxu0 0
    %4170 = vmatprep.subr.bf16.mxu0 0
    %4171 = vmatpush1.bf16.msra.mxu0 0
    %4172 = vmatprep.subr.bf16.mxu0 0
    %4173 = vmatpush1.bf16.msra.mxu0 0
    %4174 = vmatprep.mubr.bf16.mxu0 0
    %4175 = vmatmul.mubr.bf16.gmra.mrb[0].mxu0 0
    %v4176 = vpop.f32.mrb[0].mxu0
    %v4177 = vadd.f32 0.0, %v4176
    %v4178 = vpop.f32.mrb[0].mxu0
    %v4179 = vpop.f32.mrb[0].mxu0
    %v4180 = vpop.f32.mrb[0].mxu0
    %4181 = vdwg.mxu0
    %v4182 = vadd.f32 %v4093, %v4177
    %v4183 = vtanh.pop %v4182
    %4184 = vst [vmem:[#allocation8] sm:$0xff] %v4183
    %s4185 = scalar_lea.vmem [#allocation7], 56
    %v4186 = vld [vmem:[%s4185] sm:$0xff]
    %v4203 = vunpack.c.l.b16 %v4077
    %v4204 = vunpack.c.l.b16 %v4078
    %v4205 = vunpack.c.l.b16 %v4079
    %v4206 = vunpack.c.l.b16 %v4080
    %v4207 = vunpack.c.l.b16 %v4081
    %v4208 = vunpack.c.l.b16 %v4082
    %v4209 = vunpack.c.l.b16 %v4083
    %v4210 = vunpack.c.l.b16 %v4084
    %v4211 = vunpack.c.l.b16 %v4085
    %v4212 = vunpack.c.l.b16 %v4086
    %v4213 = vunpack.c.l.b16 %v4087
    %v4214 = vunpack.c.l.b16 %v4088
    %v4215 = vunpack.c.l.b16 %v4089
    %v4216 = vunpack.c.l.b16 %v4090
    %v4217 = vunpack.c.l.b16 %v4091
    %v4218 = vunpack.c.l.b16 %v4092
    %v4219 = vpack.c.b16 %v4204, %v4203
    %v4220 = vpack.c.b16 %v4206, %v4205
    %v4221 = vpack.c.b16 %v4208, %v4207
    %v4222 = vpack.c.b16 %v4210, %v4209
    %v4223 = vpack.c.b16 %v4212, %v4211
    %v4224 = vpack.c.b16 %v4214, %v4213
    %v4225 = vpack.c.b16 %v4216, %v4215
    %v4226 = vpack.c.b16 %v4218, %v4217
    %4235 = vmatprep.subr.bf16.mxu0 0
    %4236 = vmatpush1.bf16.msra.mxu0 %v4219
    %4237 = vmatprep.subr.bf16.mxu0 0
    %4238 = vmatpush1.bf16.msra.mxu0 %v4220
    %4239 = vmatprep.subr.bf16.mxu0 0
    %4240 = vmatpush1.bf16.msra.mxu0 %v4221
    %4241 = vmatprep.subr.bf16.mxu0 0
    %4242 = vmatpush1.bf16.msra.mxu0 %v4222
    %4243 = vmatprep.subr.bf16.mxu0 0
    %4244 = vmatpush1.bf16.msra.mxu0 %v4223
    %4245 = vmatprep.subr.bf16.mxu0 0
    %4246 = vmatpush1.bf16.msra.mxu0 %v4224
    %4247 = vmatprep.subr.bf16.mxu0 0
    %4248 = vmatpush1.bf16.msra.mxu0 %v4225
    %4249 = vmatprep.subr.bf16.mxu0 0
    %4250 = vmatpush1.bf16.msra.mxu0 %v4226
    %4251 = vmatprep.subr.bf16.mxu0 0
    %4252 = vmatpush1.bf16.msra.mxu0 0
    %4253 = vmatprep.subr.bf16.mxu0 0
    %4254 = vmatpush1.bf16.msra.mxu0 0
    %4255 = vmatprep.subr.bf16.mxu0 0
    %4256 = vmatpush1.bf16.msra.mxu0 0
    %4257 = vmatprep.subr.bf16.mxu0 0
    %4258 = vmatpush1.bf16.msra.mxu0 0
    %4259 = vmatprep.subr.bf16.mxu0 0
    %4260 = vmatpush1.bf16.msra.mxu0 0
    %4261 = vmatprep.subr.bf16.mxu0 0
    %4262 = vmatpush1.bf16.msra.mxu0 0
    %4263 = vmatprep.subr.bf16.mxu0 0
    %4264 = vmatpush1.bf16.msra.mxu0 0
    %4265 = vmatprep.subr.bf16.mxu0 0
    %4266 = vmatpush1.bf16.msra.mxu0 0
    %4267 = vmatprep.mubr.bf16.mxu0 0
    %4268 = vmatmul.mubr.bf16.gmra.mrb[0].mxu0 0
    %v4269 = vpop.f32.mrb[0].mxu0
    %v4270 = vadd.f32 0.0, %v4269
    %v4271 = vpop.f32.mrb[0].mxu0
    %v4272 = vpop.f32.mrb[0].mxu0
    %v4273 = vpop.f32.mrb[0].mxu0
    %4274 = vdwg.mxu0
    %v4275 = vadd.f32 %v4186, %v4270
    %v4276 = vtanh.pop %v4275
    %s4277 = scalar_lea.vmem [#allocation9], 56
    %4278 = vst [vmem:[%s4277] sm:$0xff] %v4276
    %s4279 = scalar_lea.vmem [#allocation6], 8
    %v4280 = vld [vmem:[%s4279] sm:$0xff]
    %v4281 = vpack.c.bf16 %v4183, %v4183
    %4282 = vmatprep.subr.bf16.mxu0 0
    %4283 = vmatpush1.bf16.msra.mxu0 %v4126
    %4284 = vmatprep.subr.bf16.mxu0 0
    %4285 = vmatpush1.bf16.msra.mxu0 %v4127
    %4286 = vmatprep.subr.bf16.mxu0 0
    %4287 = vmatpush1.bf16.msra.mxu0 %v4128
    %4288 = vmatprep.subr.bf16.mxu0 0
    %4289 = vmatpush1.bf16.msra.mxu0 %v4129
    %4290 = vmatprep.subr.bf16.mxu0 0
    %4291 = vmatpush1.bf16.msra.mxu0 %v4130
    %4292 = vmatprep.subr.bf16.mxu0 0
    %4293 = vmatpush1.bf16.msra.mxu0 %v4131
    %4294 = vmatprep.subr.bf16.mxu0 0
    %4295 = vmatpush1.bf16.msra.mxu0 %v4132
    %4296 = vmatprep.subr.bf16.mxu0 0
    %4297 = vmatpush1.bf16.msra.mxu0 %v4133
    %4298 = vmatprep.subr.bf16.mxu0 0
    %4299 = vmatpush1.bf16.msra.mxu0 0
    %4300 = vmatprep.subr.bf16.mxu0 0
    %4301 = vmatpush1.bf16.msra.mxu0 0
    %4302 = vmatprep.subr.bf16.mxu0 0
    %4303 = vmatpush1.bf16.msra.mxu0 0
    %4304 = vmatprep.subr.bf16.mxu0 0
    %4305 = vmatpush1.bf16.msra.mxu0 0
    %4306 = vmatprep.subr.bf16.mxu0 0
    %4307 = vmatpush1.bf16.msra.mxu0 0
    %4308 = vmatprep.subr.bf16.mxu0 0
    %4309 = vmatpush1.bf16.msra.mxu0 0
    %4310 = vmatprep.subr.bf16.mxu0 0
    %4311 = vmatpush1.bf16.msra.mxu0 0
    %4312 = vmatprep.subr.bf16.mxu0 0
    %4313 = vmatpush1.bf16.msra.mxu0 0
    %4314 = vmatprep.mubr.bf16.mxu0 0
    %4315 = vmatmul.mubr.bf16.gmra.mrb[0].mxu0 %v4281
    %v4316 = vpop.f32.mrb[0].mxu0
    %v4317 = vadd.f32 0.0, %v4316
    %v4318 = vpop.f32.mrb[0].mxu0
    %v4319 = vpop.f32.mrb[0].mxu0
    %v4320 = vpop.f32.mrb[0].mxu0
    %4321 = vdwg.mxu0
    %v4322 = vadd.f32 %v4280, %v4317
    %v4323 = vtanh.pop %v4322
    %s4324 = scalar_lea.vmem [#allocation8], 8
    %4325 = vst [vmem:[%s4324] sm:$0xff] %v4323
    %s4326 = scalar_lea.vmem [#allocation7], 48
    %v4327 = vld [vmem:[%s4326] sm:$0xff]
    %v4328 = vpack.c.bf16 %v4276, %v4276
    %4329 = vmatprep.subr.bf16.mxu0 0
    %4330 = vmatpush1.bf16.msra.mxu0 %v4219
    %4331 = vmatprep.subr.bf16.mxu0 0
    %4332 = vmatpush1.bf16.msra.mxu0 %v4220
    %4333 = vmatprep.subr.bf16.mxu0 0
    %4334 = vmatpush1.bf16.msra.mxu0 %v4221
    %4335 = vmatprep.subr.bf16.mxu0 0
    %4336 = vmatpush1.bf16.msra.mxu0 %v4222
    %4337 = vmatprep.subr.bf16.mxu0 0
    %4338 = vmatpush1.bf16.msra.mxu0 %v4223
    %4339 = vmatprep.subr.bf16.mxu0 0
    %4340 = vmatpush1.bf16.msra.mxu0 %v4224
    %4341 = vmatprep.subr.bf16.mxu0 0
    %4342 = vmatpush1.bf16.msra.mxu0 %v4225
    %4343 = vmatprep.subr.bf16.mxu0 0
    %4344 = vmatpush1.bf16.msra.mxu0 %v4226
    %4345 = vmatprep.subr.bf16.mxu0 0
    %4346 = vmatpush1.bf16.msra.mxu0 0
    %4347 = vmatprep.subr.bf16.mxu0 0
    %4348 = vmatpush1.bf16.msra.mxu0 0
    %4349 = vmatprep.subr.bf16.mxu0 0
    %4350 = vmatpush1.bf16.msra.mxu0 0
    %4351 = vmatprep.subr.bf16.mxu0 0
    %4352 = vmatpush1.bf16.msra.mxu0 0
    %4353 = vmatprep.subr.bf16.mxu0 0
    %4354 = vmatpush1.bf16.msra.mxu0 0
    %4355 = vmatprep.subr.bf16.mxu0 0
    %4356 = vmatpush1.bf16.msra.mxu0 0
    %4357 = vmatprep.subr.bf16.mxu0 0
    %4358 = vmatpush1.bf16.msra.mxu0 0
    %4359 = vmatprep.subr.bf16.mxu0 0
    %4360 = vmatpush1.bf16.msra.mxu0 0
    %4361 = vmatprep.mubr.bf16.mxu0 0
    %4362 = vmatmul.mubr.bf16.gmra.mrb[0].mxu0 %v4328
    %v4363 = vpop.f32.mrb[0].mxu0
    %v4364 = vadd.f32 0.0, %v4363
    %v4365 = vpop.f32.mrb[0].mxu0
    %v4366 = vpop.f32.mrb[0].mxu0
    %v4367 = vpop.f32.mrb[0].mxu0
    %4368 = vdwg.mxu0
    %v4369 = vadd.f32 %v4327, %v4364
    %v4370 = vtanh.pop %v4369
    %s4371 = scalar_lea.vmem [#allocation9], 48
    %4372 = vst [vmem:[%s4371] sm:$0xff] %v4370
    %s4373 = scalar_lea.vmem [#allocation6], 16
    %v4374 = vld [vmem:[%s4373] sm:$0xff]
    %v4375 = vpack.c.bf16 %v4323, %v4323
    %4376 = vmatprep.subr.bf16.mxu0 0
    %4377 = vmatpush1.bf16.msra.mxu0 %v4126
    %4378 = vmatprep.subr.bf16.mxu0 0
    %4379 = vmatpush1.bf16.msra.mxu0 %v4127
    %4380 = vmatprep.subr.bf16.mxu0 0
    %4381 = vmatpush1.bf16.msra.mxu0 %v4128
    %4382 = vmatprep.subr.bf16.mxu0 0
    %4383 = vmatpush1.bf16.msra.mxu0 %v4129
    %4384 = vmatprep.subr.bf16.mxu0 0
    %4385 = vmatpush1.bf16.msra.mxu0 %v4130
    %4386 = vmatprep.subr.bf16.mxu0 0
    %4387 = vmatpush1.bf16.msra.mxu0 %v4131
    %4388 = vmatprep.subr.bf16.mxu0 0
    %4389 = vmatpush1.bf16.msra.mxu0 %v4132
    %4390 = vmatprep.subr.bf16.mxu0 0
    %4391 = vmatpush1.bf16.msra.mxu0 %v4133
    %4392 = vmatprep.subr.bf16.mxu0 0
    %4393 = vmatpush1.bf16.msra.mxu0 0
    %4394 = vmatprep.subr.bf16.mxu0 0
    %4395 = vmatpush1.bf16.msra.mxu0 0
    %4396 = vmatprep.subr.bf16.mxu0 0
    %4397 = vmatpush1.bf16.msra.mxu0 0
    %4398 = vmatprep.subr.bf16.mxu0 0
    %4399 = vmatpush1.bf16.msra.mxu0 0
    %4400 = vmatprep.subr.bf16.mxu0 0
    %4401 = vmatpush1.bf16.msra.mxu0 0
    %4402 = vmatprep.subr.bf16.mxu0 0
    %4403 = vmatpush1.bf16.msra.mxu0 0
    %4404 = vmatprep.subr.bf16.mxu0 0
    %4405 = vmatpush1.bf16.msra.mxu0 0
    %4406 = vmatprep.subr.bf16.mxu0 0
    %4407 = vmatpush1.bf16.msra.mxu0 0
    %4408 = vmatprep.mubr.bf16.mxu0 0
    %4409 = vmatmul.mubr.bf16.gmra.mrb[0].mxu0 %v4375
    %v4410 = vpop.f32.mrb[0].mxu0
    %v4411 = vadd.f32 0.0, %v4410
    %v4412 = vpop.f32.mrb[0].mxu0
    %v4413 = vpop.f32.mrb[0].mxu0
    %v4414 = vpop.f32.mrb[0].mxu0
    %4415 = vdwg.mxu0
    %v4416 = vadd.f32 %v4374, %v4411
    %v4417 = vtanh.pop %v4416
    %s4418 = scalar_lea.vmem [#allocation8], 16
    %4419 = vst [vmem:[%s4418] sm:$0xff] %v4417
    %s4420 = scalar_lea.vmem [#allocation7], 40
    %v4421 = vld [vmem:[%s4420] sm:$0xff]
    %v4422 = vpack.c.bf16 %v4370, %v4370
    %4423 = vmatprep.subr.bf16.mxu0 0
    %4424 = vmatpush1.bf16.msra.mxu0 %v4219
    %4425 = vmatprep.subr.bf16.mxu0 0
    %4426 = vmatpush1.bf16.msra.mxu0 %v4220
    %4427 = vmatprep.subr.bf16.mxu0 0
    %4428 = vmatpush1.bf16.msra.mxu0 %v4221
    %4429 = vmatprep.subr.bf16.mxu0 0
    %4430 = vmatpush1.bf16.msra.mxu0 %v4222
    %4431 = vmatprep.subr.bf16.mxu0 0
    %4432 = vmatpush1.bf16.msra.mxu0 %v4223
    %4433 = vmatprep.subr.bf16.mxu0 0
    %4434 = vmatpush1.bf16.msra.mxu0 %v4224
    %4435 = vmatprep.subr.bf16.mxu0 0
    %4436 = vmatpush1.bf16.msra.mxu0 %v4225
    %4437 = vmatprep.subr.bf16.mxu0 0
    %4438 = vmatpush1.bf16.msra.mxu0 %v4226
    %4439 = vmatprep.subr.bf16.mxu0 0
    %4440 = vmatpush1.bf16.msra.mxu0 0
    %4441 = vmatprep.subr.bf16.mxu0 0
    %4442 = vmatpush1.bf16.msra.mxu0 0
    %4443 = vmatprep.subr.bf16.mxu0 0
    %4444 = vmatpush1.bf16.msra.mxu0 0
    %4445 = vmatprep.subr.bf16.mxu0 0
    %4446 = vmatpush1.bf16.msra.mxu0 0
    %4447 = vmatprep.subr.bf16.mxu0 0
    %4448 = vmatpush1.bf16.msra.mxu0 0
    %4449 = vmatprep.subr.bf16.mxu0 0
    %4450 = vmatpush1.bf16.msra.mxu0 0
    %4451 = vmatprep.subr.bf16.mxu0 0
    %4452 = vmatpush1.bf16.msra.mxu0 0
    %4453 = vmatprep.subr.bf16.mxu0 0
    %4454 = vmatpush1.bf16.msra.mxu0 0
    %4455 = vmatprep.mubr.bf16.mxu0 0
    %4456 = vmatmul.mubr.bf16.gmra.mrb[0].mxu0 %v4422
    %v4457 = vpop.f32.mrb[0].mxu0
    %v4458 = vadd.f32 0.0, %v4457
    %v4459 = vpop.f32.mrb[0].mxu0
    %v4460 = vpop.f32.mrb[0].mxu0
    %v4461 = vpop.f32.mrb[0].mxu0
    %4462 = vdwg.mxu0
    %v4463 = vadd.f32 %v4421, %v4458
    %v4464 = vtanh.pop %v4463
    %s4465 = scalar_lea.vmem [#allocation9], 40
    %4466 = vst [vmem:[%s4465] sm:$0xff] %v4464
    %s4467 = scalar_lea.vmem [#allocation6], 24
    %v4468 = vld [vmem:[%s4467] sm:$0xff]
    %v4469 = vpack.c.bf16 %v4417, %v4417
    %4470 = vmatprep.subr.bf16.mxu0 0
    %4471 = vmatpush1.bf16.msra.mxu0 %v4126
    %4472 = vmatprep.subr.bf16.mxu0 0
    %4473 = vmatpush1.bf16.msra.mxu0 %v4127
    %4474 = vmatprep.subr.bf16.mxu0 0
    %4475 = vmatpush1.bf16.msra.mxu0 %v4128
    %4476 = vmatprep.subr.bf16.mxu0 0
    %4477 = vmatpush1.bf16.msra.mxu0 %v4129
    %4478 = vmatprep.subr.bf16.mxu0 0
    %4479 = vmatpush1.bf16.msra.mxu0 %v4130
    %4480 = vmatprep.subr.bf16.mxu0 0
    %4481 = vmatpush1.bf16.msra.mxu0 %v4131
    %4482 = vmatprep.subr.bf16.mxu0 0
    %4483 = vmatpush1.bf16.msra.mxu0 %v4132
    %4484 = vmatprep.subr.bf16.mxu0 0
    %4485 = vmatpush1.bf16.msra.mxu0 %v4133
    %4486 = vmatprep.subr.bf16.mxu0 0
    %4487 = vmatpush1.bf16.msra.mxu0 0
    %4488 = vmatprep.subr.bf16.mxu0 0
    %4489 = vmatpush1.bf16.msra.mxu0 0
    %4490 = vmatprep.subr.bf16.mxu0 0
    %4491 = vmatpush1.bf16.msra.mxu0 0
    %4492 = vmatprep.subr.bf16.mxu0 0
    %4493 = vmatpush1.bf16.msra.mxu0 0
    %4494 = vmatprep.subr.bf16.mxu0 0
    %4495 = vmatpush1.bf16.msra.mxu0 0
    %4496 = vmatprep.subr.bf16.mxu0 0
    %4497 = vmatpush1.bf16.msra.mxu0 0
    %4498 = vmatprep.subr.bf16.mxu0 0
    %4499 = vmatpush1.bf16.msra.mxu0 0
    %4500 = vmatprep.subr.bf16.mxu0 0
    %4501 = vmatpush1.bf16.msra.mxu0 0
    %4502 = vmatprep.mubr.bf16.mxu0 0
    %4503 = vmatmul.mubr.bf16.gmra.mrb[0].mxu0 %v4469
    %v4504 = vpop.f32.mrb[0].mxu0
    %v4505 = vadd.f32 0.0, %v4504
    %v4506 = vpop.f32.mrb[0].mxu0
    %v4507 = vpop.f32.mrb[0].mxu0
    %v4508 = vpop.f32.mrb[0].mxu0
    %4509 = vdwg.mxu0
    %v4510 = vadd.f32 %v4468, %v4505
    %v4511 = vtanh.pop %v4510
    %s4512 = scalar_lea.vmem [#allocation8], 24
    %4513 = vst [vmem:[%s4512] sm:$0xff] %v4511
    %s4514 = scalar_lea.vmem [#allocation7], 32
    %v4515 = vld [vmem:[%s4514] sm:$0xff]
    %v4516 = vpack.c.bf16 %v4464, %v4464
    %4517 = vmatprep.subr.bf16.mxu0 0
    %4518 = vmatpush1.bf16.msra.mxu0 %v4219
    %4519 = vmatprep.subr.bf16.mxu0 0
    %4520 = vmatpush1.bf16.msra.mxu0 %v4220
    %4521 = vmatprep.subr.bf16.mxu0 0
    %4522 = vmatpush1.bf16.msra.mxu0 %v4221
    %4523 = vmatprep.subr.bf16.mxu0 0
    %4524 = vmatpush1.bf16.msra.mxu0 %v4222
    %4525 = vmatprep.subr.bf16.mxu0 0
    %4526 = vmatpush1.bf16.msra.mxu0 %v4223
    %4527 = vmatprep.subr.bf16.mxu0 0
    %4528 = vmatpush1.bf16.msra.mxu0 %v4224
    %4529 = vmatprep.subr.bf16.mxu0 0
    %4530 = vmatpush1.bf16.msra.mxu0 %v4225
    %4531 = vmatprep.subr.bf16.mxu0 0
    %4532 = vmatpush1.bf16.msra.mxu0 %v4226
    %4533 = vmatprep.subr.bf16.mxu0 0
    %4534 = vmatpush1.bf16.msra.mxu0 0
    %4535 = vmatprep.subr.bf16.mxu0 0
    %4536 = vmatpush1.bf16.msra.mxu0 0
    %4537 = vmatprep.subr.bf16.mxu0 0
    %4538 = vmatpush1.bf16.msra.mxu0 0
    %4539 = vmatprep.subr.bf16.mxu0 0
    %4540 = vmatpush1.bf16.msra.mxu0 0
    %4541 = vmatprep.subr.bf16.mxu0 0
    %4542 = vmatpush1.bf16.msra.mxu0 0
    %4543 = vmatprep.subr.bf16.mxu0 0
    %4544 = vmatpush1.bf16.msra.mxu0 0
    %4545 = vmatprep.subr.bf16.mxu0 0
    %4546 = vmatpush1.bf16.msra.mxu0 0
    %4547 = vmatprep.subr.bf16.mxu0 0
    %4548 = vmatpush1.bf16.msra.mxu0 0
    %4549 = vmatprep.mubr.bf16.mxu0 0
    %4550 = vmatmul.mubr.bf16.gmra.mrb[0].mxu0 %v4516
    %v4551 = vpop.f32.mrb[0].mxu0
    %v4552 = vadd.f32 0.0, %v4551
    %v4553 = vpop.f32.mrb[0].mxu0
    %v4554 = vpop.f32.mrb[0].mxu0
    %v4555 = vpop.f32.mrb[0].mxu0
    %4556 = vdwg.mxu0
    %v4557 = vadd.f32 %v4515, %v4552
    %v4558 = vtanh.pop %v4557
    %s4559 = scalar_lea.vmem [#allocation9], 32
    %4560 = vst [vmem:[%s4559] sm:$0xff] %v4558
    %s4561 = scalar_lea.vmem [#allocation6], 32
    %v4562 = vld [vmem:[%s4561] sm:$0xff]
    %v4563 = vpack.c.bf16 %v4511, %v4511
    %4564 = vmatprep.subr.bf16.mxu0 0
    %4565 = vmatpush1.bf16.msra.mxu0 %v4126
    %4566 = vmatprep.subr.bf16.mxu0 0
    %4567 = vmatpush1.bf16.msra.mxu0 %v4127
    %4568 = vmatprep.subr.bf16.mxu0 0
    %4569 = vmatpush1.bf16.msra.mxu0 %v4128
    %4570 = vmatprep.subr.bf16.mxu0 0
    %4571 = vmatpush1.bf16.msra.mxu0 %v4129
    %4572 = vmatprep.subr.bf16.mxu0 0
    %4573 = vmatpush1.bf16.msra.mxu0 %v4130
    %4574 = vmatprep.subr.bf16.mxu0 0
    %4575 = vmatpush1.bf16.msra.mxu0 %v4131
    %4576 = vmatprep.subr.bf16.mxu0 0
    %4577 = vmatpush1.bf16.msra.mxu0 %v4132
    %4578 = vmatprep.subr.bf16.mxu0 0
    %4579 = vmatpush1.bf16.msra.mxu0 %v4133
    %4580 = vmatprep.subr.bf16.mxu0 0
    %4581 = vmatpush1.bf16.msra.mxu0 0
    %4582 = vmatprep.subr.bf16.mxu0 0
    %4583 = vmatpush1.bf16.msra.mxu0 0
    %4584 = vmatprep.subr.bf16.mxu0 0
    %4585 = vmatpush1.bf16.msra.mxu0 0
    %4586 = vmatprep.subr.bf16.mxu0 0
    %4587 = vmatpush1.bf16.msra.mxu0 0
    %4588 = vmatprep.subr.bf16.mxu0 0
    %4589 = vmatpush1.bf16.msra.mxu0 0
    %4590 = vmatprep.subr.bf16.mxu0 0
    %4591 = vmatpush1.bf16.msra.mxu0 0
    %4592 = vmatprep.subr.bf16.mxu0 0
    %4593 = vmatpush1.bf16.msra.mxu0 0
    %4594 = vmatprep.subr.bf16.mxu0 0
    %4595 = vmatpush1.bf16.msra.mxu0 0
    %4596 = vmatprep.mubr.bf16.mxu0 0
    %4597 = vmatmul.mubr.bf16.gmra.mrb[0].mxu0 %v4563
    %v4598 = vpop.f32.mrb[0].mxu0
    %v4599 = vadd.f32 0.0, %v4598
    %v4600 = vpop.f32.mrb[0].mxu0
    %v4601 = vpop.f32.mrb[0].mxu0
    %v4602 = vpop.f32.mrb[0].mxu0
    %4603 = vdwg.mxu0
    %v4604 = vadd.f32 %v4562, %v4599
    %v4605 = vtanh.pop %v4604
    %s4606 = scalar_lea.vmem [#allocation8], 32
    %4607 = vst [vmem:[%s4606] sm:$0xff] %v4605
    %s4608 = scalar_lea.vmem [#allocation7], 24
    %v4609 = vld [vmem:[%s4608] sm:$0xff]
    %v4610 = vpack.c.bf16 %v4558, %v4558
    %4611 = vmatprep.subr.bf16.mxu0 0
    %4612 = vmatpush1.bf16.msra.mxu0 %v4219
    %4613 = vmatprep.subr.bf16.mxu0 0
    %4614 = vmatpush1.bf16.msra.mxu0 %v4220
    %4615 = vmatprep.subr.bf16.mxu0 0
    %4616 = vmatpush1.bf16.msra.mxu0 %v4221
    %4617 = vmatprep.subr.bf16.mxu0 0
    %4618 = vmatpush1.bf16.msra.mxu0 %v4222
    %4619 = vmatprep.subr.bf16.mxu0 0
    %4620 = vmatpush1.bf16.msra.mxu0 %v4223
    %4621 = vmatprep.subr.bf16.mxu0 0
    %4622 = vmatpush1.bf16.msra.mxu0 %v4224
    %4623 = vmatprep.subr.bf16.mxu0 0
    %4624 = vmatpush1.bf16.msra.mxu0 %v4225
    %4625 = vmatprep.subr.bf16.mxu0 0
    %4626 = vmatpush1.bf16.msra.mxu0 %v4226
    %4627 = vmatprep.subr.bf16.mxu0 0
    %4628 = vmatpush1.bf16.msra.mxu0 0
    %4629 = vmatprep.subr.bf16.mxu0 0
    %4630 = vmatpush1.bf16.msra.mxu0 0
    %4631 = vmatprep.subr.bf16.mxu0 0
    %4632 = vmatpush1.bf16.msra.mxu0 0
    %4633 = vmatprep.subr.bf16.mxu0 0
    %4634 = vmatpush1.bf16.msra.mxu0 0
    %4635 = vmatprep.subr.bf16.mxu0 0
    %4636 = vmatpush1.bf16.msra.mxu0 0
    %4637 = vmatprep.subr.bf16.mxu0 0
    %4638 = vmatpush1.bf16.msra.mxu0 0
    %4639 = vmatprep.subr.bf16.mxu0 0
    %4640 = vmatpush1.bf16.msra.mxu0 0
    %4641 = vmatprep.subr.bf16.mxu0 0
    %4642 = vmatpush1.bf16.msra.mxu0 0
    %4643 = vmatprep.mubr.bf16.mxu0 0
    %4644 = vmatmul.mubr.bf16.gmra.mrb[0].mxu0 %v4610
    %v4645 = vpop.f32.mrb[0].mxu0
    %v4646 = vadd.f32 0.0, %v4645
    %v4647 = vpop.f32.mrb[0].mxu0
    %v4648 = vpop.f32.mrb[0].mxu0
    %v4649 = vpop.f32.mrb[0].mxu0
    %4650 = vdwg.mxu0
    %v4651 = vadd.f32 %v4609, %v4646
    %v4652 = vtanh.pop %v4651
    %s4653 = scalar_lea.vmem [#allocation9], 24
    %4654 = vst [vmem:[%s4653] sm:$0xff] %v4652
    %s4655 = scalar_lea.vmem [#allocation6], 40
    %v4656 = vld [vmem:[%s4655] sm:$0xff]
    %v4657 = vpack.c.bf16 %v4605, %v4605
    %4658 = vmatprep.subr.bf16.mxu0 0
    %4659 = vmatpush1.bf16.msra.mxu0 %v4126
    %4660 = vmatprep.subr.bf16.mxu0 0
    %4661 = vmatpush1.bf16.msra.mxu0 %v4127
    %4662 = vmatprep.subr.bf16.mxu0 0
    %4663 = vmatpush1.bf16.msra.mxu0 %v4128
    %4664 = vmatprep.subr.bf16.mxu0 0
    %4665 = vmatpush1.bf16.msra.mxu0 %v4129
    %4666 = vmatprep.subr.bf16.mxu0 0
    %4667 = vmatpush1.bf16.msra.mxu0 %v4130
    %4668 = vmatprep.subr.bf16.mxu0 0
    %4669 = vmatpush1.bf16.msra.mxu0 %v4131
    %4670 = vmatprep.subr.bf16.mxu0 0
    %4671 = vmatpush1.bf16.msra.mxu0 %v4132
    %4672 = vmatprep.subr.bf16.mxu0 0
    %4673 = vmatpush1.bf16.msra.mxu0 %v4133
    %4674 = vmatprep.subr.bf16.mxu0 0
    %4675 = vmatpush1.bf16.msra.mxu0 0
    %4676 = vmatprep.subr.bf16.mxu0 0
    %4677 = vmatpush1.bf16.msra.mxu0 0
    %4678 = vmatprep.subr.bf16.mxu0 0
    %4679 = vmatpush1.bf16.msra.mxu0 0
    %4680 = vmatprep.subr.bf16.mxu0 0
    %4681 = vmatpush1.bf16.msra.mxu0 0
    %4682 = vmatprep.subr.bf16.mxu0 0
    %4683 = vmatpush1.bf16.msra.mxu0 0
    %4684 = vmatprep.subr.bf16.mxu0 0
    %4685 = vmatpush1.bf16.msra.mxu0 0
    %4686 = vmatprep.subr.bf16.mxu0 0
    %4687 = vmatpush1.bf16.msra.mxu0 0
    %4688 = vmatprep.subr.bf16.mxu0 0
    %4689 = vmatpush1.bf16.msra.mxu0 0
    %4690 = vmatprep.mubr.bf16.mxu0 0
    %4691 = vmatmul.mubr.bf16.gmra.mrb[0].mxu0 %v4657
    %v4692 = vpop.f32.mrb[0].mxu0
    %v4693 = vadd.f32 0.0, %v4692
    %v4694 = vpop.f32.mrb[0].mxu0
    %v4695 = vpop.f32.mrb[0].mxu0
    %v4696 = vpop.f32.mrb[0].mxu0
    %4697 = vdwg.mxu0
    %v4698 = vadd.f32 %v4656, %v4693
    %v4699 = vtanh.pop %v4698
    %s4700 = scalar_lea.vmem [#allocation8], 40
    %4701 = vst [vmem:[%s4700] sm:$0xff] %v4699
    %s4702 = scalar_lea.vmem [#allocation7], 16
    %v4703 = vld [vmem:[%s4702] sm:$0xff]
    %v4704 = vpack.c.bf16 %v4652, %v4652
    %4705 = vmatprep.subr.bf16.mxu0 0
    %4706 = vmatpush1.bf16.msra.mxu0 %v4219
    %4707 = vmatprep.subr.bf16.mxu0 0
    %4708 = vmatpush1.bf16.msra.mxu0 %v4220
    %4709 = vmatprep.subr.bf16.mxu0 0
    %4710 = vmatpush1.bf16.msra.mxu0 %v4221
    %4711 = vmatprep.subr.bf16.mxu0 0
    %4712 = vmatpush1.bf16.msra.mxu0 %v4222
    %4713 = vmatprep.subr.bf16.mxu0 0
    %4714 = vmatpush1.bf16.msra.mxu0 %v4223
    %4715 = vmatprep.subr.bf16.mxu0 0
    %4716 = vmatpush1.bf16.msra.mxu0 %v4224
    %4717 = vmatprep.subr.bf16.mxu0 0
    %4718 = vmatpush1.bf16.msra.mxu0 %v4225
    %4719 = vmatprep.subr.bf16.mxu0 0
    %4720 = vmatpush1.bf16.msra.mxu0 %v4226
    %4721 = vmatprep.subr.bf16.mxu0 0
    %4722 = vmatpush1.bf16.msra.mxu0 0
    %4723 = vmatprep.subr.bf16.mxu0 0
    %4724 = vmatpush1.bf16.msra.mxu0 0
    %4725 = vmatprep.subr.bf16.mxu0 0
    %4726 = vmatpush1.bf16.msra.mxu0 0
    %4727 = vmatprep.subr.bf16.mxu0 0
    %4728 = vmatpush1.bf16.msra.mxu0 0
    %4729 = vmatprep.subr.bf16.mxu0 0
    %4730 = vmatpush1.bf16.msra.mxu0 0
    %4731 = vmatprep.subr.bf16.mxu0 0
    %4732 = vmatpush1.bf16.msra.mxu0 0
    %4733 = vmatprep.subr.bf16.mxu0 0
    %4734 = vmatpush1.bf16.msra.mxu0 0
    %4735 = vmatprep.subr.bf16.mxu0 0
    %4736 = vmatpush1.bf16.msra.mxu0 0
    %4737 = vmatprep.mubr.bf16.mxu0 0
    %4738 = vmatmul.mubr.bf16.gmra.mrb[0].mxu0 %v4704
    %v4739 = vpop.f32.mrb[0].mxu0
    %v4740 = vadd.f32 0.0, %v4739
    %v4741 = vpop.f32.mrb[0].mxu0
    %v4742 = vpop.f32.mrb[0].mxu0
    %v4743 = vpop.f32.mrb[0].mxu0
    %4744 = vdwg.mxu0
    %v4745 = vadd.f32 %v4703, %v4740
    %v4746 = vtanh.pop %v4745
    %s4747 = scalar_lea.vmem [#allocation9], 16
    %4748 = vst [vmem:[%s4747] sm:$0xff] %v4746
    %s4749 = scalar_lea.vmem [#allocation6], 48
    %v4750 = vld [vmem:[%s4749] sm:$0xff]
    %v4751 = vpack.c.bf16 %v4699, %v4699
    %4752 = vmatprep.subr.bf16.mxu0 0
    %4753 = vmatpush1.bf16.msra.mxu0 %v4126
    %4754 = vmatprep.subr.bf16.mxu0 0
    %4755 = vmatpush1.bf16.msra.mxu0 %v4127
    %4756 = vmatprep.subr.bf16.mxu0 0
    %4757 = vmatpush1.bf16.msra.mxu0 %v4128
    %4758 = vmatprep.subr.bf16.mxu0 0
    %4759 = vmatpush1.bf16.msra.mxu0 %v4129
    %4760 = vmatprep.subr.bf16.mxu0 0
    %4761 = vmatpush1.bf16.msra.mxu0 %v4130
    %4762 = vmatprep.subr.bf16.mxu0 0
    %4763 = vmatpush1.bf16.msra.mxu0 %v4131
    %4764 = vmatprep.subr.bf16.mxu0 0
    %4765 = vmatpush1.bf16.msra.mxu0 %v4132
    %4766 = vmatprep.subr.bf16.mxu0 0
    %4767 = vmatpush1.bf16.msra.mxu0 %v4133
    %4768 = vmatprep.subr.bf16.mxu0 0
    %4769 = vmatpush1.bf16.msra.mxu0 0
    %4770 = vmatprep.subr.bf16.mxu0 0
    %4771 = vmatpush1.bf16.msra.mxu0 0
    %4772 = vmatprep.subr.bf16.mxu0 0
    %4773 = vmatpush1.bf16.msra.mxu0 0
    %4774 = vmatprep.subr.bf16.mxu0 0
    %4775 = vmatpush1.bf16.msra.mxu0 0
    %4776 = vmatprep.subr.bf16.mxu0 0
    %4777 = vmatpush1.bf16.msra.mxu0 0
    %4778 = vmatprep.subr.bf16.mxu0 0
    %4779 = vmatpush1.bf16.msra.mxu0 0
    %4780 = vmatprep.subr.bf16.mxu0 0
    %4781 = vmatpush1.bf16.msra.mxu0 0
    %4782 = vmatprep.subr.bf16.mxu0 0
    %4783 = vmatpush1.bf16.msra.mxu0 0
    %4784 = vmatprep.mubr.bf16.mxu0 0
    %4785 = vmatmul.mubr.bf16.gmra.mrb[0].mxu0 %v4751
    %v4786 = vpop.f32.mrb[0].mxu0
    %v4787 = vadd.f32 0.0, %v4786
    %v4788 = vpop.f32.mrb[0].mxu0
    %v4789 = vpop.f32.mrb[0].mxu0
    %v4790 = vpop.f32.mrb[0].mxu0
    %4791 = vdwg.mxu0
    %v4792 = vadd.f32 %v4750, %v4787
    %v4793 = vtanh.pop %v4792
    %s4794 = scalar_lea.vmem [#allocation8], 48
    %4795 = vst [vmem:[%s4794] sm:$0xff] %v4793
    %s4796 = scalar_lea.vmem [#allocation7], 8
    %v4797 = vld [vmem:[%s4796] sm:$0xff]
    %v4798 = vpack.c.bf16 %v4746, %v4746
    %4799 = vmatprep.subr.bf16.mxu0 0
    %4800 = vmatpush1.bf16.msra.mxu0 %v4219
    %4801 = vmatprep.subr.bf16.mxu0 0
    %4802 = vmatpush1.bf16.msra.mxu0 %v4220
    %4803 = vmatprep.subr.bf16.mxu0 0
    %4804 = vmatpush1.bf16.msra.mxu0 %v4221
    %4805 = vmatprep.subr.bf16.mxu0 0
    %4806 = vmatpush1.bf16.msra.mxu0 %v4222
    %4807 = vmatprep.subr.bf16.mxu0 0
    %4808 = vmatpush1.bf16.msra.mxu0 %v4223
    %4809 = vmatprep.subr.bf16.mxu0 0
    %4810 = vmatpush1.bf16.msra.mxu0 %v4224
    %4811 = vmatprep.subr.bf16.mxu0 0
    %4812 = vmatpush1.bf16.msra.mxu0 %v4225
    %4813 = vmatprep.subr.bf16.mxu0 0
    %4814 = vmatpush1.bf16.msra.mxu0 %v4226
    %4815 = vmatprep.subr.bf16.mxu0 0
    %4816 = vmatpush1.bf16.msra.mxu0 0
    %4817 = vmatprep.subr.bf16.mxu0 0
    %4818 = vmatpush1.bf16.msra.mxu0 0
    %4819 = vmatprep.subr.bf16.mxu0 0
    %4820 = vmatpush1.bf16.msra.mxu0 0
    %4821 = vmatprep.subr.bf16.mxu0 0
    %4822 = vmatpush1.bf16.msra.mxu0 0
    %4823 = vmatprep.subr.bf16.mxu0 0
    %4824 = vmatpush1.bf16.msra.mxu0 0
    %4825 = vmatprep.subr.bf16.mxu0 0
    %4826 = vmatpush1.bf16.msra.mxu0 0
    %4827 = vmatprep.subr.bf16.mxu0 0
    %4828 = vmatpush1.bf16.msra.mxu0 0
    %4829 = vmatprep.subr.bf16.mxu0 0
    %4830 = vmatpush1.bf16.msra.mxu0 0
    %4831 = vmatprep.mubr.bf16.mxu0 0
    %4832 = vmatmul.mubr.bf16.gmra.mrb[0].mxu0 %v4798
    %v4833 = vpop.f32.mrb[0].mxu0
    %v4834 = vadd.f32 0.0, %v4833
    %v4835 = vpop.f32.mrb[0].mxu0
    %v4836 = vpop.f32.mrb[0].mxu0
    %v4837 = vpop.f32.mrb[0].mxu0
    %4838 = vdwg.mxu0
    %v4839 = vadd.f32 %v4797, %v4834
    %v4840 = vtanh.pop %v4839
    %s4841 = scalar_lea.vmem [#allocation9], 8
    %4842 = vst [vmem:[%s4841] sm:$0xff] %v4840
    %s4843 = scalar_lea.vmem [#allocation6], 56
    %v4844 = vld [vmem:[%s4843] sm:$0xff]
    %v4845 = vpack.c.bf16 %v4793, %v4793
    %4846 = vmatprep.subr.bf16.mxu0 0
    %4847 = vmatpush1.bf16.msra.mxu0 %v4126
    %4848 = vmatprep.subr.bf16.mxu0 0
    %4849 = vmatpush1.bf16.msra.mxu0 %v4127
    %4850 = vmatprep.subr.bf16.mxu0 0
    %4851 = vmatpush1.bf16.msra.mxu0 %v4128
    %4852 = vmatprep.subr.bf16.mxu0 0
    %4853 = vmatpush1.bf16.msra.mxu0 %v4129
    %4854 = vmatprep.subr.bf16.mxu0 0
    %4855 = vmatpush1.bf16.msra.mxu0 %v4130
    %4856 = vmatprep.subr.bf16.mxu0 0
    %4857 = vmatpush1.bf16.msra.mxu0 %v4131
    %4858 = vmatprep.subr.bf16.mxu0 0
    %4859 = vmatpush1.bf16.msra.mxu0 %v4132
    %4860 = vmatprep.subr.bf16.mxu0 0
    %4861 = vmatpush1.bf16.msra.mxu0 %v4133
    %4862 = vmatprep.subr.bf16.mxu0 0
    %4863 = vmatpush1.bf16.msra.mxu0 0
    %4864 = vmatprep.subr.bf16.mxu0 0
    %4865 = vmatpush1.bf16.msra.mxu0 0
    %4866 = vmatprep.subr.bf16.mxu0 0
    %4867 = vmatpush1.bf16.msra.mxu0 0
    %4868 = vmatprep.subr.bf16.mxu0 0
    %4869 = vmatpush1.bf16.msra.mxu0 0
    %4870 = vmatprep.subr.bf16.mxu0 0
    %4871 = vmatpush1.bf16.msra.mxu0 0
    %4872 = vmatprep.subr.bf16.mxu0 0
    %4873 = vmatpush1.bf16.msra.mxu0 0
    %4874 = vmatprep.subr.bf16.mxu0 0
    %4875 = vmatpush1.bf16.msra.mxu0 0
    %4876 = vmatprep.subr.bf16.mxu0 0
    %4877 = vmatpush1.bf16.msra.mxu0 0
    %4878 = vmatprep.mubr.bf16.mxu0 0
    %4879 = vmatmul.mubr.bf16.gmra.mrb[0].mxu0 %v4845
    %v4880 = vpop.f32.mrb[0].mxu0
    %v4881 = vadd.f32 0.0, %v4880
    %v4882 = vpop.f32.mrb[0].mxu0
    %v4883 = vpop.f32.mrb[0].mxu0
    %v4884 = vpop.f32.mrb[0].mxu0
    %4885 = vdwg.mxu0
    %v4886 = vadd.f32 %v4844, %v4881
    %v4887 = vtanh.pop %v4886
    %s4888 = scalar_lea.vmem [#allocation8], 56
    %4889 = vst [vmem:[%s4888] sm:$0xff] %v4887
    %v4890 = vld [vmem:[#allocation7] sm:$0xff]
    %v4891 = vpack.c.bf16 %v4840, %v4840
    %4892 = vmatprep.subr.bf16.mxu0 0
    %4893 = vmatpush1.bf16.msra.mxu0 %v4219
    %4894 = vmatprep.subr.bf16.mxu0 0
    %4895 = vmatpush1.bf16.msra.mxu0 %v4220
    %4896 = vmatprep.subr.bf16.mxu0 0
    %4897 = vmatpush1.bf16.msra.mxu0 %v4221
    %4898 = vmatprep.subr.bf16.mxu0 0
    %4899 = vmatpush1.bf16.msra.mxu0 %v4222
    %4900 = vmatprep.subr.bf16.mxu0 0
    %4901 = vmatpush1.bf16.msra.mxu0 %v4223
    %4902 = vmatprep.subr.bf16.mxu0 0
    %4903 = vmatpush1.bf16.msra.mxu0 %v4224
    %4904 = vmatprep.subr.bf16.mxu0 0
    %4905 = vmatpush1.bf16.msra.mxu0 %v4225
    %4906 = vmatprep.subr.bf16.mxu0 0
    %4907 = vmatpush1.bf16.msra.mxu0 %v4226
    %4908 = vmatprep.subr.bf16.mxu0 0
    %4909 = vmatpush1.bf16.msra.mxu0 0
    %4910 = vmatprep.subr.bf16.mxu0 0
    %4911 = vmatpush1.bf16.msra.mxu0 0
    %4912 = vmatprep.subr.bf16.mxu0 0
    %4913 = vmatpush1.bf16.msra.mxu0 0
    %4914 = vmatprep.subr.bf16.mxu0 0
    %4915 = vmatpush1.bf16.msra.mxu0 0
    %4916 = vmatprep.subr.bf16.mxu0 0
    %4917 = vmatpush1.bf16.msra.mxu0 0
    %4918 = vmatprep.subr.bf16.mxu0 0
    %4919 = vmatpush1.bf16.msra.mxu0 0
    %4920 = vmatprep.subr.bf16.mxu0 0
    %4921 = vmatpush1.bf16.msra.mxu0 0
    %4922 = vmatprep.subr.bf16.mxu0 0
    %4923 = vmatpush1.bf16.msra.mxu0 0
    %4924 = vmatprep.mubr.bf16.mxu0 0
    %4925 = vmatmul.mubr.bf16.gmra.mrb[0].mxu0 %v4891
    %v4926 = vpop.f32.mrb[0].mxu0
    %v4927 = vadd.f32 0.0, %v4926
    %v4928 = vpop.f32.mrb[0].mxu0
    %v4929 = vpop.f32.mrb[0].mxu0
    %v4930 = vpop.f32.mrb[0].mxu0
    %4931 = vdwg.mxu0
    %v4932 = vadd.f32 %v4890, %v4927
    %v4933 = vtanh.pop %v4932
    %4934 = vst [vmem:[#allocation9] sm:$0xff] %v4933
    %v4935 = vld [vmem:[#allocation8] sm:$0xff]
    %v4936 = vld [vmem:[#allocation8 + $0x8] sm:$0xff]
    %v4937 = vld [vmem:[#allocation8 + $0x10] sm:$0xff]
    %v4938 = vld [vmem:[#allocation8 + $0x18] sm:$0xff]
    %v4939 = vld [vmem:[#allocation8 + $0x20] sm:$0xff]
    %v4940 = vld [vmem:[#allocation8 + $0x28] sm:$0xff]
    %v4941 = vld [vmem:[#allocation8 + $0x30] sm:$0xff]
    %v4942 = vld [vmem:[#allocation8 + $0x38] sm:$0xff]
    %v4943 = vld [vmem:[#allocation9] sm:$0xff]
    %v4944 = vld [vmem:[#allocation9 + $0x8] sm:$0xff]
    %v4945 = vld [vmem:[#allocation9 + $0x10] sm:$0xff]
    %v4946 = vld [vmem:[#allocation9 + $0x18] sm:$0xff]
    %v4947 = vld [vmem:[#allocation9 + $0x20] sm:$0xff]
    %v4948 = vld [vmem:[#allocation9 + $0x28] sm:$0xff]
    %v4949 = vld [vmem:[#allocation9 + $0x30] sm:$0xff]
    %v4950 = vld [vmem:[#allocation9 + $0x38] sm:$0xff]
    %v4951 = vlaneseq
    %v4952 = vshrl.u32 %v4951, 7
    %vm4953 = vcmp.lt.s32.totalorder %v4952, 4
    %v4954 = vsel %vm4953, %v4935, -inf
    %v4955 = vsel %vm4953, %v4936, -inf
    %v4956 = vsel %vm4953, %v4937, -inf
    %v4957 = vsel %vm4953, %v4938, -inf
    %v4958 = vsel %vm4953, %v4939, -inf
    %v4959 = vsel %vm4953, %v4940, -inf
    %v4960 = vsel %vm4953, %v4941, -inf
    %v4961 = vsel %vm4953, %v4942, -inf
    %v4962 = vrot.slane %v4954, 4
    %v4963 = vmax.f32 %v4954, %v4962
    %v4964 = vrot.slane %v4963, 2
    %v4965 = vmax.f32 %v4963, %v4964
    %v4966 = vrot.slane %v4965, 1
    %v4967 = vmax.f32 %v4965, %v4966
    %v4968 = vrot.slane %v4955, 4
    %v4969 = vmax.f32 %v4955, %v4968
    %v4970 = vrot.slane %v4969, 2
    %v4971 = vmax.f32 %v4969, %v4970
    %v4972 = vrot.slane %v4971, 1
    %v4973 = vmax.f32 %v4971, %v4972
    %v4974 = vrot.slane %v4956, 4
    %v4975 = vmax.f32 %v4956, %v4974
    %v4976 = vrot.slane %v4975, 2
    %v4977 = vmax.f32 %v4975, %v4976
    %v4978 = vrot.slane %v4977, 1
    %v4979 = vmax.f32 %v4977, %v4978
    %v4980 = vrot.slane %v4957, 4
    %v4981 = vmax.f32 %v4957, %v4980
    %v4982 = vrot.slane %v4981, 2
    %v4983 = vmax.f32 %v4981, %v4982
    %v4984 = vrot.slane %v4983, 1
    %v4985 = vmax.f32 %v4983, %v4984
    %v4986 = vrot.slane %v4958, 4
    %v4987 = vmax.f32 %v4958, %v4986
    %v4988 = vrot.slane %v4987, 2
    %v4989 = vmax.f32 %v4987, %v4988
    %v4990 = vrot.slane %v4989, 1
    %v4991 = vmax.f32 %v4989, %v4990
    %v4992 = vrot.slane %v4959, 4
    %v4993 = vmax.f32 %v4959, %v4992
    %v4994 = vrot.slane %v4993, 2
    %v4995 = vmax.f32 %v4993, %v4994
    %v4996 = vrot.slane %v4995, 1
    %v4997 = vmax.f32 %v4995, %v4996
    %v4998 = vrot.slane %v4960, 4
    %v4999 = vmax.f32 %v4960, %v4998
    %v5000 = vrot.slane %v4999, 2
    %v5001 = vmax.f32 %v4999, %v5000
    %v5002 = vrot.slane %v5001, 1
    %v5003 = vmax.f32 %v5001, %v5002
    %v5004 = vrot.slane %v4961, 4
    %v5005 = vmax.f32 %v4961, %v5004
    %v5006 = vrot.slane %v5005, 2
    %v5007 = vmax.f32 %v5005, %v5006
    %v5008 = vrot.slane %v5007, 1
    %v5009 = vmax.f32 %v5007, %v5008
    %v5010 = vsel %vm4953, %v4943, -inf
    %v5011 = vsel %vm4953, %v4944, -inf
    %v5012 = vsel %vm4953, %v4945, -inf
    %v5013 = vsel %vm4953, %v4946, -inf
    %v5014 = vsel %vm4953, %v4947, -inf
    %v5015 = vsel %vm4953, %v4948, -inf
    %v5016 = vsel %vm4953, %v4949, -inf
    %v5017 = vsel %vm4953, %v4950, -inf
    %v5018 = vrot.slane %v5010, 4
    %v5019 = vmax.f32 %v5010, %v5018
    %v5020 = vrot.slane %v5019, 2
    %v5021 = vmax.f32 %v5019, %v5020
    %v5022 = vrot.slane %v5021, 1
    %v5023 = vmax.f32 %v5021, %v5022
    %v5024 = vrot.slane %v5011, 4
    %v5025 = vmax.f32 %v5011, %v5024
    %v5026 = vrot.slane %v5025, 2
    %v5027 = vmax.f32 %v5025, %v5026
    %v5028 = vrot.slane %v5027, 1
    %v5029 = vmax.f32 %v5027, %v5028
    %v5030 = vrot.slane %v5012, 4
    %v5031 = vmax.f32 %v5012, %v5030
    %v5032 = vrot.slane %v5031, 2
    %v5033 = vmax.f32 %v5031, %v5032
    %v5034 = vrot.slane %v5033, 1
    %v5035 = vmax.f32 %v5033, %v5034
    %v5036 = vrot.slane %v5013, 4
    %v5037 = vmax.f32 %v5013, %v5036
    %v5038 = vrot.slane %v5037, 2
    %v5039 = vmax.f32 %v5037, %v5038
    %v5040 = vrot.slane %v5039, 1
    %v5041 = vmax.f32 %v5039, %v5040
    %v5042 = vrot.slane %v5014, 4
    %v5043 = vmax.f32 %v5014, %v5042
    %v5044 = vrot.slane %v5043, 2
    %v5045 = vmax.f32 %v5043, %v5044
    %v5046 = vrot.slane %v5045, 1
    %v5047 = vmax.f32 %v5045, %v5046
    %v5048 = vrot.slane %v5015, 4
    %v5049 = vmax.f32 %v5015, %v5048
    %v5050 = vrot.slane %v5049, 2
    %v5051 = vmax.f32 %v5049, %v5050
    %v5052 = vrot.slane %v5051, 1
    %v5053 = vmax.f32 %v5051, %v5052
    %v5054 = vrot.slane %v5016, 4
    %v5055 = vmax.f32 %v5016, %v5054
    %v5056 = vrot.slane %v5055, 2
    %v5057 = vmax.f32 %v5055, %v5056
    %v5058 = vrot.slane %v5057, 1
    %v5059 = vmax.f32 %v5057, %v5058
    %v5060 = vrot.slane %v5017, 4
    %v5061 = vmax.f32 %v5017, %v5060
    %v5062 = vrot.slane %v5061, 2
    %v5063 = vmax.f32 %v5061, %v5062
    %v5064 = vrot.slane %v5063, 1
    %v5065 = vmax.f32 %v5063, %v5064
    %v5066 = vsel %vm4953, %v4935, 0.0
    %v5067 = vsel %vm4953, %v4936, 0.0
    %v5068 = vsel %vm4953, %v4937, 0.0
    %v5069 = vsel %vm4953, %v4938, 0.0
    %v5070 = vsel %vm4953, %v4939, 0.0
    %v5071 = vsel %vm4953, %v4940, 0.0
    %v5072 = vsel %vm4953, %v4941, 0.0
    %v5073 = vsel %vm4953, %v4942, 0.0
    %v5074 = vrot.slane %v5066, 4
    %v5075 = vadd.f32 %v5066, %v5074
    %v5076 = vrot.slane %v5075, 2
    %v5077 = vadd.f32 %v5075, %v5076
    %v5078 = vrot.slane %v5077, 1
    %v5079 = vadd.f32 %v5077, %v5078
    %v5080 = vrot.slane %v5067, 4
    %v5081 = vadd.f32 %v5067, %v5080
    %v5082 = vrot.slane %v5081, 2
    %v5083 = vadd.f32 %v5081, %v5082
    %v5084 = vrot.slane %v5083, 1
    %v5085 = vadd.f32 %v5083, %v5084
    %v5086 = vrot.slane %v5068, 4
    %v5087 = vadd.f32 %v5068, %v5086
    %v5088 = vrot.slane %v5087, 2
    %v5089 = vadd.f32 %v5087, %v5088
    %v5090 = vrot.slane %v5089, 1
    %v5091 = vadd.f32 %v5089, %v5090
    %v5092 = vrot.slane %v5069, 4
    %v5093 = vadd.f32 %v5069, %v5092
    %v5094 = vrot.slane %v5093, 2
    %v5095 = vadd.f32 %v5093, %v5094
    %v5096 = vrot.slane %v5095, 1
    %v5097 = vadd.f32 %v5095, %v5096
    %v5098 = vrot.slane %v5070, 4
    %v5099 = vadd.f32 %v5070, %v5098
    %v5100 = vrot.slane %v5099, 2
    %v5101 = vadd.f32 %v5099, %v5100
    %v5102 = vrot.slane %v5101, 1
    %v5103 = vadd.f32 %v5101, %v5102
    %v5104 = vrot.slane %v5071, 4
    %v5105 = vadd.f32 %v5071, %v5104
    %v5106 = vrot.slane %v5105, 2
    %v5107 = vadd.f32 %v5105, %v5106
    %v5108 = vrot.slane %v5107, 1
    %v5109 = vadd.f32 %v5107, %v5108
    %v5110 = vrot.slane %v5072, 4
    %v5111 = vadd.f32 %v5072, %v5110
    %v5112 = vrot.slane %v5111, 2
    %v5113 = vadd.f32 %v5111, %v5112
    %v5114 = vrot.slane %v5113, 1
    %v5115 = vadd.f32 %v5113, %v5114
    %v5116 = vrot.slane %v5073, 4
    %v5117 = vadd.f32 %v5073, %v5116
    %v5118 = vrot.slane %v5117, 2
    %v5119 = vadd.f32 %v5117, %v5118
    %v5120 = vrot.slane %v5119, 1
    %v5121 = vadd.f32 %v5119, %v5120
    %v5122 = vsel %vm4953, %v4943, 0.0
    %v5123 = vsel %vm4953, %v4944, 0.0
    %v5124 = vsel %vm4953, %v4945, 0.0
    %v5125 = vsel %vm4953, %v4946, 0.0
    %v5126 = vsel %vm4953, %v4947, 0.0
    %v5127 = vsel %vm4953, %v4948, 0.0
    %v5128 = vsel %vm4953, %v4949, 0.0
    %v5129 = vsel %vm4953, %v4950, 0.0
    %v5130 = vrot.slane %v5122, 4
    %v5131 = vadd.f32 %v5122, %v5130
    %v5132 = vrot.slane %v5131, 2
    %v5133 = vadd.f32 %v5131, %v5132
    %v5134 = vrot.slane %v5133, 1
    %v5135 = vadd.f32 %v5133, %v5134
    %v5136 = vrot.slane %v5123, 4
    %v5137 = vadd.f32 %v5123, %v5136
    %v5138 = vrot.slane %v5137, 2
    %v5139 = vadd.f32 %v5137, %v5138
    %v5140 = vrot.slane %v5139, 1
    %v5141 = vadd.f32 %v5139, %v5140
    %v5142 = vrot.slane %v5124, 4
    %v5143 = vadd.f32 %v5124, %v5142
    %v5144 = vrot.slane %v5143, 2
    %v5145 = vadd.f32 %v5143, %v5144
    %v5146 = vrot.slane %v5145, 1
    %v5147 = vadd.f32 %v5145, %v5146
    %v5148 = vrot.slane %v5125, 4
    %v5149 = vadd.f32 %v5125, %v5148
    %v5150 = vrot.slane %v5149, 2
    %v5151 = vadd.f32 %v5149, %v5150
    %v5152 = vrot.slane %v5151, 1
    %v5153 = vadd.f32 %v5151, %v5152
    %v5154 = vrot.slane %v5126, 4
    %v5155 = vadd.f32 %v5126, %v5154
    %v5156 = vrot.slane %v5155, 2
    %v5157 = vadd.f32 %v5155, %v5156
    %v5158 = vrot.slane %v5157, 1
    %v5159 = vadd.f32 %v5157, %v5158
    %v5160 = vrot.slane %v5127, 4
    %v5161 = vadd.f32 %v5127, %v5160
    %v5162 = vrot.slane %v5161, 2
    %v5163 = vadd.f32 %v5161, %v5162
    %v5164 = vrot.slane %v5163, 1
    %v5165 = vadd.f32 %v5163, %v5164
    %v5166 = vrot.slane %v5128, 4
    %v5167 = vadd.f32 %v5128, %v5166
    %v5168 = vrot.slane %v5167, 2
    %v5169 = vadd.f32 %v5167, %v5168
    %v5170 = vrot.slane %v5169, 1
    %v5171 = vadd.f32 %v5169, %v5170
    %v5172 = vrot.slane %v5129, 4
    %v5173 = vadd.f32 %v5129, %v5172
    %v5174 = vrot.slane %v5173, 2
    %v5175 = vadd.f32 %v5173, %v5174
    %v5176 = vrot.slane %v5175, 1
    %v5177 = vadd.f32 %v5175, %v5176
    %v5178 = vmul.f32 %v5079, 0.25
    %v5179 = vmul.f32 %v5085, 0.25
    %v5180 = vmul.f32 %v5091, 0.25
    %v5181 = vmul.f32 %v5097, 0.25
    %v5182 = vmul.f32 %v5103, 0.25
    %v5183 = vmul.f32 %v5109, 0.25
    %v5184 = vmul.f32 %v5115, 0.25
    %v5185 = vmul.f32 %v5121, 0.25
    %v5186 = vmul.f32 %v5135, 0.25
    %v5187 = vmul.f32 %v5141, 0.25
    %v5188 = vmul.f32 %v5147, 0.25
    %v5189 = vmul.f32 %v5153, 0.25
    %v5190 = vmul.f32 %v5159, 0.25
    %v5191 = vmul.f32 %v5165, 0.25
    %v5192 = vmul.f32 %v5171, 0.25
    %v5193 = vmul.f32 %v5177, 0.25
    %vm5202 = vcmask 1041409
    %v5203 = vsel %vm5202, %v4973, %v4967
    %vm5204 = vcmask 1042434
    %v5205 = vsel %vm5204, %v4979, %v5203
    %vm5206 = vcmask 1043459
    %v5207 = vsel %vm5206, %v4985, %v5205
    %vm5208 = vcmask 1044484
    %v5209 = vsel %vm5208, %v4991, %v5207
    %vm5210 = vcmask 1045509
    %v5211 = vsel %vm5210, %v4997, %v5209
    %vm5212 = vcmask 1046534
    %v5213 = vsel %vm5212, %v5003, %v5211
    %vm5214 = vcmask 1047559
    %v5215 = vsel %vm5214, %v5009, %v5213
    %v5225 = vsel %vm5202, %v5029, %v5023
    %v5226 = vsel %vm5204, %v5035, %v5225
    %v5227 = vsel %vm5206, %v5041, %v5226
    %v5228 = vsel %vm5208, %v5047, %v5227
    %v5229 = vsel %vm5210, %v5053, %v5228
    %v5230 = vsel %vm5212, %v5059, %v5229
    %v5231 = vsel %vm5214, %v5065, %v5230
    %v5241 = vsel %vm5202, %v5179, %v5178
    %v5242 = vsel %vm5204, %v5180, %v5241
    %v5243 = vsel %vm5206, %v5181, %v5242
    %v5244 = vsel %vm5208, %v5182, %v5243
    %v5245 = vsel %vm5210, %v5183, %v5244
    %v5246 = vsel %vm5212, %v5184, %v5245
    %v5247 = vsel %vm5214, %v5185, %v5246
    %v5257 = vsel %vm5202, %v5187, %v5186
    %v5258 = vsel %vm5204, %v5188, %v5257
    %v5259 = vsel %vm5206, %v5189, %v5258
    %v5260 = vsel %vm5208, %v5190, %v5259
    %v5261 = vsel %vm5210, %v5191, %v5260
    %v5262 = vsel %vm5212, %v5192, %v5261
    %v5263 = vsel %vm5214, %v5193, %v5262
    %v5265 = vpack.c.bf16 %v5215, %v5215
    %v5266 = vpack.c.bf16 %v5231, %v5231
    %v5267 = vpack.c.bf16 %v5247, %v5247
    %v5268 = vpack.c.bf16 %v5263, %v5263
    %v5269 = vld [vmem:[#allocation22] sm:$0xff]
    %v5270 = vld [vmem:[#allocation22 + $0x8] sm:$0xff]
    %v5271 = vld [vmem:[#allocation22 + $0x10] sm:$0xff]
    %v5272 = vld [vmem:[#allocation22 + $0x18] sm:$0xff]
    %v5273 = vld [vmem:[#allocation22 + $0x20] sm:$0xff]
    %v5274 = vld [vmem:[#allocation22 + $0x28] sm:$0xff]
    %v5275 = vld [vmem:[#allocation22 + $0x30] sm:$0xff]
    %v5276 = vld [vmem:[#allocation22 + $0x38] sm:$0xff]
    %v5277 = vld [vmem:[#allocation22 + $0x40] sm:$0xff]
    %v5278 = vld [vmem:[#allocation22 + $0x48] sm:$0xff]
    %v5279 = vld [vmem:[#allocation22 + $0x50] sm:$0xff]
    %v5280 = vld [vmem:[#allocation22 + $0x58] sm:$0xff]
    %v5281 = vld [vmem:[#allocation22 + $0x60] sm:$0xff]
    %v5282 = vld [vmem:[#allocation22 + $0x68] sm:$0xff]
    %v5283 = vld [vmem:[#allocation22 + $0x70] sm:$0xff]
    %v5284 = vld [vmem:[#allocation22 + $0x78] sm:$0xff]
    %v5285 = vld [vmem:[#allocation22 + $0x80] sm:$0xff]
    %v5286 = vld [vmem:[#allocation22 + $0x88] sm:$0xff]
    %v5287 = vld [vmem:[#allocation22 + $0x90] sm:$0xff]
    %v5288 = vld [vmem:[#allocation22 + $0x98] sm:$0xff]
    %v5289 = vld [vmem:[#allocation22 + $0xa0] sm:$0xff]
    %v5290 = vld [vmem:[#allocation22 + $0xa8] sm:$0xff]
    %v5291 = vld [vmem:[#allocation22 + $0xb0] sm:$0xff]
    %v5292 = vld [vmem:[#allocation22 + $0xb8] sm:$0xff]
    %v5293 = vld [vmem:[#allocation22 + $0xc0] sm:$0xff]
    %v5294 = vld [vmem:[#allocation22 + $0xc8] sm:$0xff]
    %v5295 = vld [vmem:[#allocation22 + $0xd0] sm:$0xff]
    %v5296 = vld [vmem:[#allocation22 + $0xd8] sm:$0xff]
    %v5297 = vld [vmem:[#allocation22 + $0xe0] sm:$0xff]
    %v5298 = vld [vmem:[#allocation22 + $0xe8] sm:$0xff]
    %v5299 = vld [vmem:[#allocation22 + $0xf0] sm:$0xff]
    %v5300 = vld [vmem:[#allocation22 + $0xf8] sm:$0xff]
    %v5301 = vld [vmem:[#allocation22 + $0x100] sm:$0xff]
    %v5302 = vld [vmem:[#allocation22 + $0x108] sm:$0xff]
    %v5303 = vld [vmem:[#allocation22 + $0x110] sm:$0xff]
    %v5304 = vld [vmem:[#allocation22 + $0x118] sm:$0xff]
    %v5305 = vld [vmem:[#allocation22 + $0x120] sm:$0xff]
    %v5306 = vld [vmem:[#allocation22 + $0x128] sm:$0xff]
    %v5307 = vld [vmem:[#allocation22 + $0x130] sm:$0xff]
    %v5308 = vld [vmem:[#allocation22 + $0x138] sm:$0xff]
    %v5309 = vld [vmem:[#allocation22 + $0x140] sm:$0xff]
    %v5310 = vld [vmem:[#allocation22 + $0x148] sm:$0xff]
    %v5311 = vld [vmem:[#allocation22 + $0x150] sm:$0xff]
    %v5312 = vld [vmem:[#allocation22 + $0x158] sm:$0xff]
    %v5313 = vld [vmem:[#allocation22 + $0x160] sm:$0xff]
    %v5314 = vld [vmem:[#allocation22 + $0x168] sm:$0xff]
    %v5315 = vld [vmem:[#allocation22 + $0x170] sm:$0xff]
    %v5316 = vld [vmem:[#allocation22 + $0x178] sm:$0xff]
    %v5317 = vld [vmem:[#allocation22 + $0x180] sm:$0xff]
    %v5318 = vld [vmem:[#allocation22 + $0x188] sm:$0xff]
    %v5319 = vld [vmem:[#allocation22 + $0x190] sm:$0xff]
    %v5320 = vld [vmem:[#allocation22 + $0x198] sm:$0xff]
    %v5321 = vld [vmem:[#allocation22 + $0x1a0] sm:$0xff]
    %v5322 = vld [vmem:[#allocation22 + $0x1a8] sm:$0xff]
    %v5323 = vld [vmem:[#allocation22 + $0x1b0] sm:$0xff]
    %v5324 = vld [vmem:[#allocation22 + $0x1b8] sm:$0xff]
    %v5325 = vld [vmem:[#allocation22 + $0x1c0] sm:$0xff]
    %v5326 = vld [vmem:[#allocation22 + $0x1c8] sm:$0xff]
    %v5327 = vld [vmem:[#allocation22 + $0x1d0] sm:$0xff]
    %v5328 = vld [vmem:[#allocation22 + $0x1d8] sm:$0xff]
    %v5329 = vld [vmem:[#allocation22 + $0x1e0] sm:$0xff]
    %v5330 = vld [vmem:[#allocation22 + $0x1e8] sm:$0xff]
    %v5331 = vld [vmem:[#allocation22 + $0x1f0] sm:$0xff]
    %v5332 = vld [vmem:[#allocation22 + $0x1f8] sm:$0xff]
    %v5333 = vld [vmem:[#allocation22 + $0x200] sm:$0xff]
    %v5334 = vld [vmem:[#allocation22 + $0x208] sm:$0xff]
    %v5335 = vld [vmem:[#allocation22 + $0x210] sm:$0xff]
    %v5336 = vld [vmem:[#allocation22 + $0x218] sm:$0xff]
    %v5337 = vld [vmem:[#allocation22 + $0x220] sm:$0xff]
    %v5338 = vld [vmem:[#allocation22 + $0x228] sm:$0xff]
    %v5339 = vld [vmem:[#allocation22 + $0x230] sm:$0xff]
    %v5340 = vld [vmem:[#allocation22 + $0x238] sm:$0xff]
    %v5341 = vld [vmem:[#allocation22 + $0x240] sm:$0xff]
    %v5342 = vld [vmem:[#allocation22 + $0x248] sm:$0xff]
    %v5343 = vld [vmem:[#allocation22 + $0x250] sm:$0xff]
    %v5344 = vld [vmem:[#allocation22 + $0x258] sm:$0xff]
    %v5345 = vld [vmem:[#allocation22 + $0x260] sm:$0xff]
    %v5346 = vld [vmem:[#allocation22 + $0x268] sm:$0xff]
    %v5347 = vld [vmem:[#allocation22 + $0x270] sm:$0xff]
    %v5348 = vld [vmem:[#allocation22 + $0x278] sm:$0xff]
    %v5349 = vld [vmem:[#allocation22 + $0x280] sm:$0xff]
    %v5350 = vld [vmem:[#allocation22 + $0x288] sm:$0xff]
    %v5351 = vld [vmem:[#allocation22 + $0x290] sm:$0xff]
    %v5352 = vld [vmem:[#allocation22 + $0x298] sm:$0xff]
    %v5353 = vld [vmem:[#allocation22 + $0x2a0] sm:$0xff]
    %v5354 = vld [vmem:[#allocation22 + $0x2a8] sm:$0xff]
    %v5355 = vld [vmem:[#allocation22 + $0x2b0] sm:$0xff]
    %v5356 = vld [vmem:[#allocation22 + $0x2b8] sm:$0xff]
    %v5357 = vld [vmem:[#allocation22 + $0x2c0] sm:$0xff]
    %v5358 = vld [vmem:[#allocation22 + $0x2c8] sm:$0xff]
    %v5359 = vld [vmem:[#allocation22 + $0x2d0] sm:$0xff]
    %v5360 = vld [vmem:[#allocation22 + $0x2d8] sm:$0xff]
    %v5361 = vld [vmem:[#allocation22 + $0x2e0] sm:$0xff]
    %v5362 = vld [vmem:[#allocation22 + $0x2e8] sm:$0xff]
    %v5363 = vld [vmem:[#allocation22 + $0x2f0] sm:$0xff]
    %v5364 = vld [vmem:[#allocation22 + $0x2f8] sm:$0xff]
    %v5365 = vld [vmem:[#allocation22 + $0x300] sm:$0xff]
    %v5366 = vld [vmem:[#allocation22 + $0x308] sm:$0xff]
    %v5367 = vld [vmem:[#allocation22 + $0x310] sm:$0xff]
    %v5368 = vld [vmem:[#allocation22 + $0x318] sm:$0xff]
    %v5369 = vld [vmem:[#allocation22 + $0x320] sm:$0xff]
    %v5370 = vld [vmem:[#allocation22 + $0x328] sm:$0xff]
    %v5371 = vld [vmem:[#allocation22 + $0x330] sm:$0xff]
    %v5372 = vld [vmem:[#allocation22 + $0x338] sm:$0xff]
    %v5373 = vld [vmem:[#allocation22 + $0x340] sm:$0xff]
    %v5374 = vld [vmem:[#allocation22 + $0x348] sm:$0xff]
    %v5375 = vld [vmem:[#allocation22 + $0x350] sm:$0xff]
    %v5376 = vld [vmem:[#allocation22 + $0x358] sm:$0xff]
    %v5377 = vld [vmem:[#allocation22 + $0x360] sm:$0xff]
    %v5378 = vld [vmem:[#allocation22 + $0x368] sm:$0xff]
    %v5379 = vld [vmem:[#allocation22 + $0x370] sm:$0xff]
    %v5380 = vld [vmem:[#allocation22 + $0x378] sm:$0xff]
    %v5381 = vld [vmem:[#allocation22 + $0x380] sm:$0xff]
    %v5382 = vld [vmem:[#allocation22 + $0x388] sm:$0xff]
    %v5383 = vld [vmem:[#allocation22 + $0x390] sm:$0xff]
    %v5384 = vld [vmem:[#allocation22 + $0x398] sm:$0xff]
    %v5385 = vld [vmem:[#allocation22 + $0x3a0] sm:$0xff]
    %v5386 = vld [vmem:[#allocation22 + $0x3a8] sm:$0xff]
    %v5387 = vld [vmem:[#allocation22 + $0x3b0] sm:$0xff]
    %v5388 = vld [vmem:[#allocation22 + $0x3b8] sm:$0xff]
    %v5389 = vld [vmem:[#allocation22 + $0x3c0] sm:$0xff]
    %v5390 = vld [vmem:[#allocation22 + $0x3c8] sm:$0xff]
    %v5391 = vld [vmem:[#allocation22 + $0x3d0] sm:$0xff]
    %v5392 = vld [vmem:[#allocation22 + $0x3d8] sm:$0xff]
    %v5393 = vld [vmem:[#allocation22 + $0x3e0] sm:$0xff]
    %v5394 = vld [vmem:[#allocation22 + $0x3e8] sm:$0xff]
    %v5395 = vld [vmem:[#allocation22 + $0x3f0] sm:$0xff]
    %v5396 = vld [vmem:[#allocation22 + $0x3f8] sm:$0xff]
    %v5397 = vld [vmem:[%s12] sm:$0xf]
    %v5399 = vlaneseq
    %v5400 = vshrl.u32 %v5399, 7
    %v5401 = vsub.s32 0, %v5400
    %v5402 = vrot.slane %v5397, %v5401
    %v5403 = vlaneseq
    %v5404 = vshrl.u32 %v5403, 7
    %v5405 = vsub.s32 1, %v5404
    %v5406 = vrot.slane %v5397, %v5405
    %v5407 = vlaneseq
    %v5408 = vshrl.u32 %v5407, 7
    %v5409 = vsub.s32 2, %v5408
    %v5410 = vrot.slane %v5397, %v5409
    %v5411 = vlaneseq
    %v5412 = vshrl.u32 %v5411, 7
    %v5413 = vsub.s32 3, %v5412
    %v5414 = vrot.slane %v5397, %v5413
    %v5547 = vunpack.c.l.b16 %v5269
    %v5548 = vunpack.c.h.b16 %v5269
    %v5549 = vunpack.c.l.b16 %v5270
    %v5550 = vunpack.c.h.b16 %v5270
    %v5551 = vunpack.c.l.b16 %v5271
    %v5552 = vunpack.c.h.b16 %v5271
    %v5553 = vunpack.c.l.b16 %v5272
    %v5554 = vunpack.c.h.b16 %v5272
    %v5555 = vunpack.c.l.b16 %v5273
    %v5556 = vunpack.c.h.b16 %v5273
    %v5557 = vunpack.c.l.b16 %v5274
    %v5558 = vunpack.c.h.b16 %v5274
    %v5559 = vunpack.c.l.b16 %v5275
    %v5560 = vunpack.c.h.b16 %v5275
    %v5561 = vunpack.c.l.b16 %v5276
    %v5562 = vunpack.c.h.b16 %v5276
    %v5563 = vunpack.c.l.b16 %v5277
    %v5564 = vunpack.c.h.b16 %v5277
    %v5565 = vunpack.c.l.b16 %v5278
    %v5566 = vunpack.c.h.b16 %v5278
    %v5567 = vunpack.c.l.b16 %v5279
    %v5568 = vunpack.c.h.b16 %v5279
    %v5569 = vunpack.c.l.b16 %v5280
    %v5570 = vunpack.c.h.b16 %v5280
    %v5571 = vunpack.c.l.b16 %v5281
    %v5572 = vunpack.c.h.b16 %v5281
    %v5573 = vunpack.c.l.b16 %v5282
    %v5574 = vunpack.c.h.b16 %v5282
    %v5575 = vunpack.c.l.b16 %v5283
    %v5576 = vunpack.c.h.b16 %v5283
    %v5577 = vunpack.c.l.b16 %v5284
    %v5578 = vunpack.c.h.b16 %v5284
    %v5579 = vunpack.c.l.b16 %v5285
    %v5580 = vunpack.c.h.b16 %v5285
    %v5581 = vunpack.c.l.b16 %v5286
    %v5582 = vunpack.c.h.b16 %v5286
    %v5583 = vunpack.c.l.b16 %v5287
    %v5584 = vunpack.c.h.b16 %v5287
    %v5585 = vunpack.c.l.b16 %v5288
    %v5586 = vunpack.c.h.b16 %v5288
    %v5587 = vunpack.c.l.b16 %v5289
    %v5588 = vunpack.c.h.b16 %v5289
    %v5589 = vunpack.c.l.b16 %v5290
    %v5590 = vunpack.c.h.b16 %v5290
    %v5591 = vunpack.c.l.b16 %v5291
    %v5592 = vunpack.c.h.b16 %v5291
    %v5593 = vunpack.c.l.b16 %v5292
    %v5594 = vunpack.c.h.b16 %v5292
    %v5595 = vunpack.c.l.b16 %v5293
    %v5596 = vunpack.c.h.b16 %v5293
    %v5597 = vunpack.c.l.b16 %v5294
    %v5598 = vunpack.c.h.b16 %v5294
    %v5599 = vunpack.c.l.b16 %v5295
    %v5600 = vunpack.c.h.b16 %v5295
    %v5601 = vunpack.c.l.b16 %v5296
    %v5602 = vunpack.c.h.b16 %v5296
    %v5603 = vunpack.c.l.b16 %v5297
    %v5604 = vunpack.c.h.b16 %v5297
    %v5605 = vunpack.c.l.b16 %v5298
    %v5606 = vunpack.c.h.b16 %v5298
    %v5607 = vunpack.c.l.b16 %v5299
    %v5608 = vunpack.c.h.b16 %v5299
    %v5609 = vunpack.c.l.b16 %v5300
    %v5610 = vunpack.c.h.b16 %v5300
    %v5611 = vunpack.c.l.b16 %v5301
    %v5612 = vunpack.c.h.b16 %v5301
    %v5613 = vunpack.c.l.b16 %v5302
    %v5614 = vunpack.c.h.b16 %v5302
    %v5615 = vunpack.c.l.b16 %v5303
    %v5616 = vunpack.c.h.b16 %v5303
    %v5617 = vunpack.c.l.b16 %v5304
    %v5618 = vunpack.c.h.b16 %v5304
    %v5619 = vunpack.c.l.b16 %v5305
    %v5620 = vunpack.c.h.b16 %v5305
    %v5621 = vunpack.c.l.b16 %v5306
    %v5622 = vunpack.c.h.b16 %v5306
    %v5623 = vunpack.c.l.b16 %v5307
    %v5624 = vunpack.c.h.b16 %v5307
    %v5625 = vunpack.c.l.b16 %v5308
    %v5626 = vunpack.c.h.b16 %v5308
    %v5627 = vunpack.c.l.b16 %v5309
    %v5628 = vunpack.c.h.b16 %v5309
    %v5629 = vunpack.c.l.b16 %v5310
    %v5630 = vunpack.c.h.b16 %v5310
    %v5631 = vunpack.c.l.b16 %v5311
    %v5632 = vunpack.c.h.b16 %v5311
    %v5633 = vunpack.c.l.b16 %v5312
    %v5634 = vunpack.c.h.b16 %v5312
    %v5635 = vunpack.c.l.b16 %v5313
    %v5636 = vunpack.c.h.b16 %v5313
    %v5637 = vunpack.c.l.b16 %v5314
    %v5638 = vunpack.c.h.b16 %v5314
    %v5639 = vunpack.c.l.b16 %v5315
    %v5640 = vunpack.c.h.b16 %v5315
    %v5641 = vunpack.c.l.b16 %v5316
    %v5642 = vunpack.c.h.b16 %v5316
    %v5643 = vunpack.c.l.b16 %v5317
    %v5644 = vunpack.c.h.b16 %v5317
    %v5645 = vunpack.c.l.b16 %v5318
    %v5646 = vunpack.c.h.b16 %v5318
    %v5647 = vunpack.c.l.b16 %v5319
    %v5648 = vunpack.c.h.b16 %v5319
    %v5649 = vunpack.c.l.b16 %v5320
    %v5650 = vunpack.c.h.b16 %v5320
    %v5651 = vunpack.c.l.b16 %v5321
    %v5652 = vunpack.c.h.b16 %v5321
    %v5653 = vunpack.c.l.b16 %v5322
    %v5654 = vunpack.c.h.b16 %v5322
    %v5655 = vunpack.c.l.b16 %v5323
    %v5656 = vunpack.c.h.b16 %v5323
    %v5657 = vunpack.c.l.b16 %v5324
    %v5658 = vunpack.c.h.b16 %v5324
    %v5659 = vunpack.c.l.b16 %v5325
    %v5660 = vunpack.c.h.b16 %v5325
    %v5661 = vunpack.c.l.b16 %v5326
    %v5662 = vunpack.c.h.b16 %v5326
    %v5663 = vunpack.c.l.b16 %v5327
    %v5664 = vunpack.c.h.b16 %v5327
    %v5665 = vunpack.c.l.b16 %v5328
    %v5666 = vunpack.c.h.b16 %v5328
    %v5667 = vunpack.c.l.b16 %v5329
    %v5668 = vunpack.c.h.b16 %v5329
    %v5669 = vunpack.c.l.b16 %v5330
    %v5670 = vunpack.c.h.b16 %v5330
    %v5671 = vunpack.c.l.b16 %v5331
    %v5672 = vunpack.c.h.b16 %v5331
    %v5673 = vunpack.c.l.b16 %v5332
    %v5674 = vunpack.c.h.b16 %v5332
    %v5675 = vunpack.c.l.b16 %v5333
    %v5676 = vunpack.c.h.b16 %v5333
    %v5677 = vunpack.c.l.b16 %v5334
    %v5678 = vunpack.c.h.b16 %v5334
    %v5679 = vunpack.c.l.b16 %v5335
    %v5680 = vunpack.c.h.b16 %v5335
    %v5681 = vunpack.c.l.b16 %v5336
    %v5682 = vunpack.c.h.b16 %v5336
    %v5683 = vunpack.c.l.b16 %v5337
    %v5684 = vunpack.c.h.b16 %v5337
    %v5685 = vunpack.c.l.b16 %v5338
    %v5686 = vunpack.c.h.b16 %v5338
    %v5687 = vunpack.c.l.b16 %v5339
    %v5688 = vunpack.c.h.b16 %v5339
    %v5689 = vunpack.c.l.b16 %v5340
    %v5690 = vunpack.c.h.b16 %v5340
    %v5691 = vunpack.c.l.b16 %v5341
    %v5692 = vunpack.c.h.b16 %v5341
    %v5693 = vunpack.c.l.b16 %v5342
    %v5694 = vunpack.c.h.b16 %v5342
    %v5695 = vunpack.c.l.b16 %v5343
    %v5696 = vunpack.c.h.b16 %v5343
    %v5697 = vunpack.c.l.b16 %v5344
    %v5698 = vunpack.c.h.b16 %v5344
    %v5699 = vunpack.c.l.b16 %v5345
    %v5700 = vunpack.c.h.b16 %v5345
    %v5701 = vunpack.c.l.b16 %v5346
    %v5702 = vunpack.c.h.b16 %v5346
    %v5703 = vunpack.c.l.b16 %v5347
    %v5704 = vunpack.c.h.b16 %v5347
    %v5705 = vunpack.c.l.b16 %v5348
    %v5706 = vunpack.c.h.b16 %v5348
    %v5707 = vunpack.c.l.b16 %v5349
    %v5708 = vunpack.c.h.b16 %v5349
    %v5709 = vunpack.c.l.b16 %v5350
    %v5710 = vunpack.c.h.b16 %v5350
    %v5711 = vunpack.c.l.b16 %v5351
    %v5712 = vunpack.c.h.b16 %v5351
    %v5713 = vunpack.c.l.b16 %v5352
    %v5714 = vunpack.c.h.b16 %v5352
    %v5715 = vunpack.c.l.b16 %v5353
    %v5716 = vunpack.c.h.b16 %v5353
    %v5717 = vunpack.c.l.b16 %v5354
    %v5718 = vunpack.c.h.b16 %v5354
    %v5719 = vunpack.c.l.b16 %v5355
    %v5720 = vunpack.c.h.b16 %v5355
    %v5721 = vunpack.c.l.b16 %v5356
    %v5722 = vunpack.c.h.b16 %v5356
    %v5723 = vunpack.c.l.b16 %v5357
    %v5724 = vunpack.c.h.b16 %v5357
    %v5725 = vunpack.c.l.b16 %v5358
    %v5726 = vunpack.c.h.b16 %v5358
    %v5727 = vunpack.c.l.b16 %v5359
    %v5728 = vunpack.c.h.b16 %v5359
    %v5729 = vunpack.c.l.b16 %v5360
    %v5730 = vunpack.c.h.b16 %v5360
    %v5731 = vunpack.c.l.b16 %v5361
    %v5732 = vunpack.c.h.b16 %v5361
    %v5733 = vunpack.c.l.b16 %v5362
    %v5734 = vunpack.c.h.b16 %v5362
    %v5735 = vunpack.c.l.b16 %v5363
    %v5736 = vunpack.c.h.b16 %v5363
    %v5737 = vunpack.c.l.b16 %v5364
    %v5738 = vunpack.c.h.b16 %v5364
    %v5739 = vunpack.c.l.b16 %v5365
    %v5740 = vunpack.c.h.b16 %v5365
    %v5741 = vunpack.c.l.b16 %v5366
    %v5742 = vunpack.c.h.b16 %v5366
    %v5743 = vunpack.c.l.b16 %v5367
    %v5744 = vunpack.c.h.b16 %v5367
    %v5745 = vunpack.c.l.b16 %v5368
    %v5746 = vunpack.c.h.b16 %v5368
    %v5747 = vunpack.c.l.b16 %v5369
    %v5748 = vunpack.c.h.b16 %v5369
    %v5749 = vunpack.c.l.b16 %v5370
    %v5750 = vunpack.c.h.b16 %v5370
    %v5751 = vunpack.c.l.b16 %v5371
    %v5752 = vunpack.c.h.b16 %v5371
    %v5753 = vunpack.c.l.b16 %v5372
    %v5754 = vunpack.c.h.b16 %v5372
    %v5755 = vunpack.c.l.b16 %v5373
    %v5756 = vunpack.c.h.b16 %v5373
    %v5757 = vunpack.c.l.b16 %v5374
    %v5758 = vunpack.c.h.b16 %v5374
    %v5759 = vunpack.c.l.b16 %v5375
    %v5760 = vunpack.c.h.b16 %v5375
    %v5761 = vunpack.c.l.b16 %v5376
    %v5762 = vunpack.c.h.b16 %v5376
    %v5763 = vunpack.c.l.b16 %v5377
    %v5764 = vunpack.c.h.b16 %v5377
    %v5765 = vunpack.c.l.b16 %v5378
    %v5766 = vunpack.c.h.b16 %v5378
    %v5767 = vunpack.c.l.b16 %v5379
    %v5768 = vunpack.c.h.b16 %v5379
    %v5769 = vunpack.c.l.b16 %v5380
    %v5770 = vunpack.c.h.b16 %v5380
    %v5771 = vunpack.c.l.b16 %v5381
    %v5772 = vunpack.c.h.b16 %v5381
    %v5773 = vunpack.c.l.b16 %v5382
    %v5774 = vunpack.c.h.b16 %v5382
    %v5775 = vunpack.c.l.b16 %v5383
    %v5776 = vunpack.c.h.b16 %v5383
    %v5777 = vunpack.c.l.b16 %v5384
    %v5778 = vunpack.c.h.b16 %v5384
    %v5779 = vunpack.c.l.b16 %v5385
    %v5780 = vunpack.c.h.b16 %v5385
    %v5781 = vunpack.c.l.b16 %v5386
    %v5782 = vunpack.c.h.b16 %v5386
    %v5783 = vunpack.c.l.b16 %v5387
    %v5784 = vunpack.c.h.b16 %v5387
    %v5785 = vunpack.c.l.b16 %v5388
    %v5786 = vunpack.c.h.b16 %v5388
    %v5787 = vunpack.c.l.b16 %v5389
    %v5788 = vunpack.c.h.b16 %v5389
    %v5789 = vunpack.c.l.b16 %v5390
    %v5790 = vunpack.c.h.b16 %v5390
    %v5791 = vunpack.c.l.b16 %v5391
    %v5792 = vunpack.c.h.b16 %v5391
    %v5793 = vunpack.c.l.b16 %v5392
    %v5794 = vunpack.c.h.b16 %v5392
    %v5795 = vunpack.c.l.b16 %v5393
    %v5796 = vunpack.c.h.b16 %v5393
    %v5797 = vunpack.c.l.b16 %v5394
    %v5798 = vunpack.c.h.b16 %v5394
    %v5799 = vunpack.c.l.b16 %v5395
    %v5800 = vunpack.c.h.b16 %v5395
    %v5801 = vunpack.c.l.b16 %v5396
    %v5802 = vunpack.c.h.b16 %v5396
    %v5803 = vpack.c.b16 %v5551, %v5547
    %v5804 = vpack.c.b16 %v5552, %v5548
    %v5805 = vpack.c.b16 %v5553, %v5549
    %v5806 = vpack.c.b16 %v5554, %v5550
    %v5807 = vpack.c.b16 %v5559, %v5555
    %v5808 = vpack.c.b16 %v5560, %v5556
    %v5809 = vpack.c.b16 %v5561, %v5557
    %v5810 = vpack.c.b16 %v5562, %v5558
    %v5811 = vpack.c.b16 %v5567, %v5563
    %v5812 = vpack.c.b16 %v5568, %v5564
    %v5813 = vpack.c.b16 %v5569, %v5565
    %v5814 = vpack.c.b16 %v5570, %v5566
    %v5815 = vpack.c.b16 %v5575, %v5571
    %v5816 = vpack.c.b16 %v5576, %v5572
    %v5817 = vpack.c.b16 %v5577, %v5573
    %v5818 = vpack.c.b16 %v5578, %v5574
    %v5819 = vpack.c.b16 %v5583, %v5579
    %v5820 = vpack.c.b16 %v5584, %v5580
    %v5821 = vpack.c.b16 %v5585, %v5581
    %v5822 = vpack.c.b16 %v5586, %v5582
    %v5823 = vpack.c.b16 %v5591, %v5587
    %v5824 = vpack.c.b16 %v5592, %v5588
    %v5825 = vpack.c.b16 %v5593, %v5589
    %v5826 = vpack.c.b16 %v5594, %v5590
    %v5827 = vpack.c.b16 %v5599, %v5595
    %v5828 = vpack.c.b16 %v5600, %v5596
    %v5829 = vpack.c.b16 %v5601, %v5597
    %v5830 = vpack.c.b16 %v5602, %v5598
    %v5831 = vpack.c.b16 %v5607, %v5603
    %v5832 = vpack.c.b16 %v5608, %v5604
    %v5833 = vpack.c.b16 %v5609, %v5605
    %v5834 = vpack.c.b16 %v5610, %v5606
    %v5835 = vpack.c.b16 %v5615, %v5611
    %v5836 = vpack.c.b16 %v5616, %v5612
    %v5837 = vpack.c.b16 %v5617, %v5613
    %v5838 = vpack.c.b16 %v5618, %v5614
    %v5839 = vpack.c.b16 %v5623, %v5619
    %v5840 = vpack.c.b16 %v5624, %v5620
    %v5841 = vpack.c.b16 %v5625, %v5621
    %v5842 = vpack.c.b16 %v5626, %v5622
    %v5843 = vpack.c.b16 %v5631, %v5627
    %v5844 = vpack.c.b16 %v5632, %v5628
    %v5845 = vpack.c.b16 %v5633, %v5629
    %v5846 = vpack.c.b16 %v5634, %v5630
    %v5847 = vpack.c.b16 %v5639, %v5635
    %v5848 = vpack.c.b16 %v5640, %v5636
    %v5849 = vpack.c.b16 %v5641, %v5637
    %v5850 = vpack.c.b16 %v5642, %v5638
    %v5851 = vpack.c.b16 %v5647, %v5643
    %v5852 = vpack.c.b16 %v5648, %v5644
    %v5853 = vpack.c.b16 %v5649, %v5645
    %v5854 = vpack.c.b16 %v5650, %v5646
    %v5855 = vpack.c.b16 %v5655, %v5651
    %v5856 = vpack.c.b16 %v5656, %v5652
    %v5857 = vpack.c.b16 %v5657, %v5653
    %v5858 = vpack.c.b16 %v5658, %v5654
    %v5859 = vpack.c.b16 %v5663, %v5659
    %v5860 = vpack.c.b16 %v5664, %v5660
    %v5861 = vpack.c.b16 %v5665, %v5661
    %v5862 = vpack.c.b16 %v5666, %v5662
    %v5863 = vpack.c.b16 %v5671, %v5667
    %v5864 = vpack.c.b16 %v5672, %v5668
    %v5865 = vpack.c.b16 %v5673, %v5669
    %v5866 = vpack.c.b16 %v5674, %v5670
    %v5867 = vpack.c.b16 %v5679, %v5675
    %v5868 = vpack.c.b16 %v5680, %v5676
    %v5869 = vpack.c.b16 %v5681, %v5677
    %v5870 = vpack.c.b16 %v5682, %v5678
    %v5871 = vpack.c.b16 %v5687, %v5683
    %v5872 = vpack.c.b16 %v5688, %v5684
    %v5873 = vpack.c.b16 %v5689, %v5685
    %v5874 = vpack.c.b16 %v5690, %v5686
    %v5875 = vpack.c.b16 %v5695, %v5691
    %v5876 = vpack.c.b16 %v5696, %v5692
    %v5877 = vpack.c.b16 %v5697, %v5693
    %v5878 = vpack.c.b16 %v5698, %v5694
    %v5879 = vpack.c.b16 %v5703, %v5699
    %v5880 = vpack.c.b16 %v5704, %v5700
    %v5881 = vpack.c.b16 %v5705, %v5701
    %v5882 = vpack.c.b16 %v5706, %v5702
    %v5883 = vpack.c.b16 %v5711, %v5707
    %v5884 = vpack.c.b16 %v5712, %v5708
    %v5885 = vpack.c.b16 %v5713, %v5709
    %v5886 = vpack.c.b16 %v5714, %v5710
    %v5887 = vpack.c.b16 %v5719, %v5715
    %v5888 = vpack.c.b16 %v5720, %v5716
    %v5889 = vpack.c.b16 %v5721, %v5717
    %v5890 = vpack.c.b16 %v5722, %v5718
    %v5891 = vpack.c.b16 %v5727, %v5723
    %v5892 = vpack.c.b16 %v5728, %v5724
    %v5893 = vpack.c.b16 %v5729, %v5725
    %v5894 = vpack.c.b16 %v5730, %v5726
    %v5895 = vpack.c.b16 %v5735, %v5731
    %v5896 = vpack.c.b16 %v5736, %v5732
    %v5897 = vpack.c.b16 %v5737, %v5733
    %v5898 = vpack.c.b16 %v5738, %v5734
    %v5899 = vpack.c.b16 %v5743, %v5739
    %v5900 = vpack.c.b16 %v5744, %v5740
    %v5901 = vpack.c.b16 %v5745, %v5741
    %v5902 = vpack.c.b16 %v5746, %v5742
    %v5903 = vpack.c.b16 %v5751, %v5747
    %v5904 = vpack.c.b16 %v5752, %v5748
    %v5905 = vpack.c.b16 %v5753, %v5749
    %v5906 = vpack.c.b16 %v5754, %v5750
    %v5907 = vpack.c.b16 %v5759, %v5755
    %v5908 = vpack.c.b16 %v5760, %v5756
    %v5909 = vpack.c.b16 %v5761, %v5757
    %v5910 = vpack.c.b16 %v5762, %v5758
    %v5911 = vpack.c.b16 %v5767, %v5763
    %v5912 = vpack.c.b16 %v5768, %v5764
    %v5913 = vpack.c.b16 %v5769, %v5765
    %v5914 = vpack.c.b16 %v5770, %v5766
    %v5915 = vpack.c.b16 %v5775, %v5771
    %v5916 = vpack.c.b16 %v5776, %v5772
    %v5917 = vpack.c.b16 %v5777, %v5773
    %v5918 = vpack.c.b16 %v5778, %v5774
    %v5919 = vpack.c.b16 %v5783, %v5779
    %v5920 = vpack.c.b16 %v5784, %v5780
    %v5921 = vpack.c.b16 %v5785, %v5781
    %v5922 = vpack.c.b16 %v5786, %v5782
    %v5923 = vpack.c.b16 %v5791, %v5787
    %v5924 = vpack.c.b16 %v5792, %v5788
    %v5925 = vpack.c.b16 %v5793, %v5789
    %v5926 = vpack.c.b16 %v5794, %v5790
    %v5927 = vpack.c.b16 %v5799, %v5795
    %v5928 = vpack.c.b16 %v5800, %v5796
    %v5929 = vpack.c.b16 %v5801, %v5797
    %v5930 = vpack.c.b16 %v5802, %v5798
    %6059 = vmatprep.subr.bf16.mxu0 %v5804
    %6060 = vmatpush1.bf16.msra.mxu0 %v5803
    %6061 = vmatprep.subr.bf16.mxu0 %v5808
    %6062 = vmatpush1.bf16.msra.mxu0 %v5807
    %6063 = vmatprep.subr.bf16.mxu0 %v5812
    %6064 = vmatpush1.bf16.msra.mxu0 %v5811
    %6065 = vmatprep.subr.bf16.mxu0 %v5816
    %6066 = vmatpush1.bf16.msra.mxu0 %v5815
    %6067 = vmatprep.subr.bf16.mxu0 %v5820
    %6068 = vmatpush1.bf16.msra.mxu0 %v5819
    %6069 = vmatprep.subr.bf16.mxu0 %v5824
    %6070 = vmatpush1.bf16.msra.mxu0 %v5823
    %6071 = vmatprep.subr.bf16.mxu0 %v5828
    %6072 = vmatpush1.bf16.msra.mxu0 %v5827
    %6073 = vmatprep.subr.bf16.mxu0 %v5832
    %6074 = vmatpush1.bf16.msra.mxu0 %v5831
    %6075 = vmatprep.subr.bf16.mxu0 %v5836
    %6076 = vmatpush1.bf16.msra.mxu0 %v5835
    %6077 = vmatprep.subr.bf16.mxu0 %v5840
    %6078 = vmatpush1.bf16.msra.mxu0 %v5839
    %6079 = vmatprep.subr.bf16.mxu0 %v5844
    %6080 = vmatpush1.bf16.msra.mxu0 %v5843
    %6081 = vmatprep.subr.bf16.mxu0 %v5848
    %6082 = vmatpush1.bf16.msra.mxu0 %v5847
    %6083 = vmatprep.subr.bf16.mxu0 %v5852
    %6084 = vmatpush1.bf16.msra.mxu0 %v5851
    %6085 = vmatprep.subr.bf16.mxu0 %v5856
    %6086 = vmatpush1.bf16.msra.mxu0 %v5855
    %6087 = vmatprep.subr.bf16.mxu0 %v5860
    %6088 = vmatpush1.bf16.msra.mxu0 %v5859
    %6089 = vmatprep.subr.bf16.mxu0 %v5864
    %6090 = vmatpush1.bf16.msra.mxu0 %v5863
    %6091 = vmatprep.mubr.bf16.mxu0 %v5266
    %6092 = vmatmul.mubr.bf16.gmra.mrb[0].mxu0 %v5265
    %v6093 = vpop.f32.mrb[0].mxu0
    %v6094 = vadd.f32 %v5402, %v6093
    %v6095 = vpop.f32.mrb[0].mxu0
    %v6096 = vadd.f32 %v5406, %v6095
    %v6097 = vpop.f32.mrb[0].mxu0
    %v6098 = vpop.f32.mrb[0].mxu0
    %6099 = vdwg.mxu0
    %6100 = vmatprep.subr.bf16.mxu0 %v5868
    %6101 = vmatpush1.bf16.msra.mxu0 %v5867
    %6102 = vmatprep.subr.bf16.mxu0 %v5872
    %6103 = vmatpush1.bf16.msra.mxu0 %v5871
    %6104 = vmatprep.subr.bf16.mxu0 %v5876
    %6105 = vmatpush1.bf16.msra.mxu0 %v5875
    %6106 = vmatprep.subr.bf16.mxu0 %v5880
    %6107 = vmatpush1.bf16.msra.mxu0 %v5879
    %6108 = vmatprep.subr.bf16.mxu0 %v5884
    %6109 = vmatpush1.bf16.msra.mxu0 %v5883
    %6110 = vmatprep.subr.bf16.mxu0 %v5888
    %6111 = vmatpush1.bf16.msra.mxu0 %v5887
    %6112 = vmatprep.subr.bf16.mxu0 %v5892
    %6113 = vmatpush1.bf16.msra.mxu0 %v5891
    %6114 = vmatprep.subr.bf16.mxu0 %v5896
    %6115 = vmatpush1.bf16.msra.mxu0 %v5895
    %6116 = vmatprep.subr.bf16.mxu0 %v5900
    %6117 = vmatpush1.bf16.msra.mxu0 %v5899
    %6118 = vmatprep.subr.bf16.mxu0 %v5904
    %6119 = vmatpush1.bf16.msra.mxu0 %v5903
    %6120 = vmatprep.subr.bf16.mxu0 %v5908
    %6121 = vmatpush1.bf16.msra.mxu0 %v5907
    %6122 = vmatprep.subr.bf16.mxu0 %v5912
    %6123 = vmatpush1.bf16.msra.mxu0 %v5911
    %6124 = vmatprep.subr.bf16.mxu0 %v5916
    %6125 = vmatpush1.bf16.msra.mxu0 %v5915
    %6126 = vmatprep.subr.bf16.mxu0 %v5920
    %6127 = vmatpush1.bf16.msra.mxu0 %v5919
    %6128 = vmatprep.subr.bf16.mxu0 %v5924
    %6129 = vmatpush1.bf16.msra.mxu0 %v5923
    %6130 = vmatprep.subr.bf16.mxu0 %v5928
    %6131 = vmatpush1.bf16.msra.mxu0 %v5927
    %6132 = vmatprep.mubr.bf16.mxu0 %v5268
    %6133 = vmatmul.mubr.bf16.gmra.mrb[0].mxu0 %v5267
    %v6134 = vpop.f32.mrb[0].mxu0
    %v6135 = vadd.f32 %v6094, %v6134
    %v6136 = vpop.f32.mrb[0].mxu0
    %v6137 = vadd.f32 %v6096, %v6136
    %v6138 = vpop.f32.mrb[0].mxu0
    %v6139 = vpop.f32.mrb[0].mxu0
    %6140 = vdwg.mxu0
    %6141 = vmatprep.subr.bf16.mxu0 %v5806
    %6142 = vmatpush1.bf16.msra.mxu0 %v5805
    %6143 = vmatprep.subr.bf16.mxu0 %v5810
    %6144 = vmatpush1.bf16.msra.mxu0 %v5809
    %6145 = vmatprep.subr.bf16.mxu0 %v5814
    %6146 = vmatpush1.bf16.msra.mxu0 %v5813
    %6147 = vmatprep.subr.bf16.mxu0 %v5818
    %6148 = vmatpush1.bf16.msra.mxu0 %v5817
    %6149 = vmatprep.subr.bf16.mxu0 %v5822
    %6150 = vmatpush1.bf16.msra.mxu0 %v5821
    %6151 = vmatprep.subr.bf16.mxu0 %v5826
    %6152 = vmatpush1.bf16.msra.mxu0 %v5825
    %6153 = vmatprep.subr.bf16.mxu0 %v5830
    %6154 = vmatpush1.bf16.msra.mxu0 %v5829
    %6155 = vmatprep.subr.bf16.mxu0 %v5834
    %6156 = vmatpush1.bf16.msra.mxu0 %v5833
    %6157 = vmatprep.subr.bf16.mxu0 %v5838
    %6158 = vmatpush1.bf16.msra.mxu0 %v5837
    %6159 = vmatprep.subr.bf16.mxu0 %v5842
    %6160 = vmatpush1.bf16.msra.mxu0 %v5841
    %6161 = vmatprep.subr.bf16.mxu0 %v5846
    %6162 = vmatpush1.bf16.msra.mxu0 %v5845
    %6163 = vmatprep.subr.bf16.mxu0 %v5850
    %6164 = vmatpush1.bf16.msra.mxu0 %v5849
    %6165 = vmatprep.subr.bf16.mxu0 %v5854
    %6166 = vmatpush1.bf16.msra.mxu0 %v5853
    %6167 = vmatprep.subr.bf16.mxu0 %v5858
    %6168 = vmatpush1.bf16.msra.mxu0 %v5857
    %6169 = vmatprep.subr.bf16.mxu0 %v5862
    %6170 = vmatpush1.bf16.msra.mxu0 %v5861
    %6171 = vmatprep.subr.bf16.mxu0 %v5866
    %6172 = vmatpush1.bf16.msra.mxu0 %v5865
    %6173 = vmatprep.mubr.bf16.mxu0 %v5266
    %6174 = vmatmul.mubr.bf16.gmra.mrb[0].mxu0 %v5265
    %v6175 = vpop.f32.mrb[0].mxu0
    %v6176 = vadd.f32 %v5410, %v6175
    %v6177 = vpop.f32.mrb[0].mxu0
    %v6178 = vadd.f32 %v5414, %v6177
    %v6179 = vpop.f32.mrb[0].mxu0
    %v6180 = vpop.f32.mrb[0].mxu0
    %6181 = vdwg.mxu0
    %6182 = vmatprep.subr.bf16.mxu0 %v5870
    %6183 = vmatpush1.bf16.msra.mxu0 %v5869
    %6184 = vmatprep.subr.bf16.mxu0 %v5874
    %6185 = vmatpush1.bf16.msra.mxu0 %v5873
    %6186 = vmatprep.subr.bf16.mxu0 %v5878
    %6187 = vmatpush1.bf16.msra.mxu0 %v5877
    %6188 = vmatprep.subr.bf16.mxu0 %v5882
    %6189 = vmatpush1.bf16.msra.mxu0 %v5881
    %6190 = vmatprep.subr.bf16.mxu0 %v5886
    %6191 = vmatpush1.bf16.msra.mxu0 %v5885
    %6192 = vmatprep.subr.bf16.mxu0 %v5890
    %6193 = vmatpush1.bf16.msra.mxu0 %v5889
    %6194 = vmatprep.subr.bf16.mxu0 %v5894
    %6195 = vmatpush1.bf16.msra.mxu0 %v5893
    %6196 = vmatprep.subr.bf16.mxu0 %v5898
    %6197 = vmatpush1.bf16.msra.mxu0 %v5897
    %6198 = vmatprep.subr.bf16.mxu0 %v5902
    %6199 = vmatpush1.bf16.msra.mxu0 %v5901
    %6200 = vmatprep.subr.bf16.mxu0 %v5906
    %6201 = vmatpush1.bf16.msra.mxu0 %v5905
    %6202 = vmatprep.subr.bf16.mxu0 %v5910
    %6203 = vmatpush1.bf16.msra.mxu0 %v5909
    %6204 = vmatprep.subr.bf16.mxu0 %v5914
    %6205 = vmatpush1.bf16.msra.mxu0 %v5913
    %6206 = vmatprep.subr.bf16.mxu0 %v5918
    %6207 = vmatpush1.bf16.msra.mxu0 %v5917
    %6208 = vmatprep.subr.bf16.mxu0 %v5922
    %6209 = vmatpush1.bf16.msra.mxu0 %v5921
    %6210 = vmatprep.subr.bf16.mxu0 %v5926
    %6211 = vmatpush1.bf16.msra.mxu0 %v5925
    %6212 = vmatprep.subr.bf16.mxu0 %v5930
    %6213 = vmatpush1.bf16.msra.mxu0 %v5929
    %6214 = vmatprep.mubr.bf16.mxu0 %v5268
    %6215 = vmatmul.mubr.bf16.gmra.mrb[0].mxu0 %v5267
    %v6216 = vpop.f32.mrb[0].mxu0
    %v6217 = vadd.f32 %v6176, %v6216
    %v6218 = vpop.f32.mrb[0].mxu0
    %v6219 = vadd.f32 %v6178, %v6218
    %v6220 = vpop.f32.mrb[0].mxu0
    %v6221 = vpop.f32.mrb[0].mxu0
    %6222 = vdwg.mxu0
    %v6223 = vmax.f32 %v6135, 0.0
    %v6224 = vmax.f32 %v6137, 0.0
    %v6225 = vmax.f32 %v6217, 0.0
    %v6226 = vmax.f32 %v6219, 0.0
    %v6227 = vadd.f32 %v5215, %v6223
    %v6228 = vadd.f32 %v5231, %v6224
    %v6229 = vadd.f32 %v5247, %v6225
    %v6230 = vadd.f32 %v5263, %v6226
    %v6231 = vpack.c.bf16 %v6227, %v6227
    %v6232 = vpack.c.bf16 %v6228, %v6228
    %v6233 = vpack.c.bf16 %v6229, %v6229
    %v6234 = vpack.c.bf16 %v6230, %v6230
    %v6235 = vld [vmem:[#allocation24] sm:$0xff]
    %v6236 = vld [vmem:[#allocation24 + $0x8] sm:$0xff]
    %v6237 = vld [vmem:[#allocation24 + $0x10] sm:$0xff]
    %v6238 = vld [vmem:[#allocation24 + $0x18] sm:$0xff]
    %v6239 = vld [vmem:[#allocation24 + $0x20] sm:$0xff]
    %v6240 = vld [vmem:[#allocation24 + $0x28] sm:$0xff]
    %v6241 = vld [vmem:[#allocation24 + $0x30] sm:$0xff]
    %v6242 = vld [vmem:[#allocation24 + $0x38] sm:$0xff]
    %v6243 = vld [vmem:[#allocation24 + $0x40] sm:$0xff]
    %v6244 = vld [vmem:[#allocation24 + $0x48] sm:$0xff]
    %v6245 = vld [vmem:[#allocation24 + $0x50] sm:$0xff]
    %v6246 = vld [vmem:[#allocation24 + $0x58] sm:$0xff]
    %v6247 = vld [vmem:[#allocation24 + $0x60] sm:$0xff]
    %v6248 = vld [vmem:[#allocation24 + $0x68] sm:$0xff]
    %v6249 = vld [vmem:[#allocation24 + $0x70] sm:$0xff]
    %v6250 = vld [vmem:[#allocation24 + $0x78] sm:$0xff]
    %v6251 = vld [vmem:[#allocation24 + $0x80] sm:$0xff]
    %v6252 = vld [vmem:[#allocation24 + $0x88] sm:$0xff]
    %v6253 = vld [vmem:[#allocation24 + $0x90] sm:$0xff]
    %v6254 = vld [vmem:[#allocation24 + $0x98] sm:$0xff]
    %v6255 = vld [vmem:[#allocation24 + $0xa0] sm:$0xff]
    %v6256 = vld [vmem:[#allocation24 + $0xa8] sm:$0xff]
    %v6257 = vld [vmem:[#allocation24 + $0xb0] sm:$0xff]
    %v6258 = vld [vmem:[#allocation24 + $0xb8] sm:$0xff]
    %v6259 = vld [vmem:[#allocation24 + $0xc0] sm:$0xff]
    %v6260 = vld [vmem:[#allocation24 + $0xc8] sm:$0xff]
    %v6261 = vld [vmem:[#allocation24 + $0xd0] sm:$0xff]
    %v6262 = vld [vmem:[#allocation24 + $0xd8] sm:$0xff]
    %v6263 = vld [vmem:[#allocation24 + $0xe0] sm:$0xff]
    %v6264 = vld [vmem:[#allocation24 + $0xe8] sm:$0xff]
    %v6265 = vld [vmem:[#allocation24 + $0xf0] sm:$0xff]
    %v6266 = vld [vmem:[#allocation24 + $0xf8] sm:$0xff]
    %v6267 = vld [vmem:[#allocation24 + $0x100] sm:$0xff]
    %v6268 = vld [vmem:[#allocation24 + $0x108] sm:$0xff]
    %v6269 = vld [vmem:[#allocation24 + $0x110] sm:$0xff]
    %v6270 = vld [vmem:[#allocation24 + $0x118] sm:$0xff]
    %v6271 = vld [vmem:[#allocation24 + $0x120] sm:$0xff]
    %v6272 = vld [vmem:[#allocation24 + $0x128] sm:$0xff]
    %v6273 = vld [vmem:[#allocation24 + $0x130] sm:$0xff]
    %v6274 = vld [vmem:[#allocation24 + $0x138] sm:$0xff]
    %v6275 = vld [vmem:[#allocation24 + $0x140] sm:$0xff]
    %v6276 = vld [vmem:[#allocation24 + $0x148] sm:$0xff]
    %v6277 = vld [vmem:[#allocation24 + $0x150] sm:$0xff]
    %v6278 = vld [vmem:[#allocation24 + $0x158] sm:$0xff]
    %v6279 = vld [vmem:[#allocation24 + $0x160] sm:$0xff]
    %v6280 = vld [vmem:[#allocation24 + $0x168] sm:$0xff]
    %v6281 = vld [vmem:[#allocation24 + $0x170] sm:$0xff]
    %v6282 = vld [vmem:[#allocation24 + $0x178] sm:$0xff]
    %v6283 = vld [vmem:[#allocation24 + $0x180] sm:$0xff]
    %v6284 = vld [vmem:[#allocation24 + $0x188] sm:$0xff]
    %v6285 = vld [vmem:[#allocation24 + $0x190] sm:$0xff]
    %v6286 = vld [vmem:[#allocation24 + $0x198] sm:$0xff]
    %v6287 = vld [vmem:[#allocation24 + $0x1a0] sm:$0xff]
    %v6288 = vld [vmem:[#allocation24 + $0x1a8] sm:$0xff]
    %v6289 = vld [vmem:[#allocation24 + $0x1b0] sm:$0xff]
    %v6290 = vld [vmem:[#allocation24 + $0x1b8] sm:$0xff]
    %v6291 = vld [vmem:[#allocation24 + $0x1c0] sm:$0xff]
    %v6292 = vld [vmem:[#allocation24 + $0x1c8] sm:$0xff]
    %v6293 = vld [vmem:[#allocation24 + $0x1d0] sm:$0xff]
    %v6294 = vld [vmem:[#allocation24 + $0x1d8] sm:$0xff]
    %v6295 = vld [vmem:[#allocation24 + $0x1e0] sm:$0xff]
    %v6296 = vld [vmem:[#allocation24 + $0x1e8] sm:$0xff]
    %v6297 = vld [vmem:[#allocation24 + $0x1f0] sm:$0xff]
    %v6298 = vld [vmem:[#allocation24 + $0x1f8] sm:$0xff]
    %v6299 = vld [vmem:[#allocation24 + $0x200] sm:$0xff]
    %v6300 = vld [vmem:[#allocation24 + $0x208] sm:$0xff]
    %v6301 = vld [vmem:[#allocation24 + $0x210] sm:$0xff]
    %v6302 = vld [vmem:[#allocation24 + $0x218] sm:$0xff]
    %v6303 = vld [vmem:[#allocation24 + $0x220] sm:$0xff]
    %v6304 = vld [vmem:[#allocation24 + $0x228] sm:$0xff]
    %v6305 = vld [vmem:[#allocation24 + $0x230] sm:$0xff]
    %v6306 = vld [vmem:[#allocation24 + $0x238] sm:$0xff]
    %v6307 = vld [vmem:[#allocation24 + $0x240] sm:$0xff]
    %v6308 = vld [vmem:[#allocation24 + $0x248] sm:$0xff]
    %v6309 = vld [vmem:[#allocation24 + $0x250] sm:$0xff]
    %v6310 = vld [vmem:[#allocation24 + $0x258] sm:$0xff]
    %v6311 = vld [vmem:[#allocation24 + $0x260] sm:$0xff]
    %v6312 = vld [vmem:[#allocation24 + $0x268] sm:$0xff]
    %v6313 = vld [vmem:[#allocation24 + $0x270] sm:$0xff]
    %v6314 = vld [vmem:[#allocation24 + $0x278] sm:$0xff]
    %v6315 = vld [vmem:[#allocation24 + $0x280] sm:$0xff]
    %v6316 = vld [vmem:[#allocation24 + $0x288] sm:$0xff]
    %v6317 = vld [vmem:[#allocation24 + $0x290] sm:$0xff]
    %v6318 = vld [vmem:[#allocation24 + $0x298] sm:$0xff]
    %v6319 = vld [vmem:[#allocation24 + $0x2a0] sm:$0xff]
    %v6320 = vld [vmem:[#allocation24 + $0x2a8] sm:$0xff]
    %v6321 = vld [vmem:[#allocation24 + $0x2b0] sm:$0xff]
    %v6322 = vld [vmem:[#allocation24 + $0x2b8] sm:$0xff]
    %v6323 = vld [vmem:[#allocation24 + $0x2c0] sm:$0xff]
    %v6324 = vld [vmem:[#allocation24 + $0x2c8] sm:$0xff]
    %v6325 = vld [vmem:[#allocation24 + $0x2d0] sm:$0xff]
    %v6326 = vld [vmem:[#allocation24 + $0x2d8] sm:$0xff]
    %v6327 = vld [vmem:[#allocation24 + $0x2e0] sm:$0xff]
    %v6328 = vld [vmem:[#allocation24 + $0x2e8] sm:$0xff]
    %v6329 = vld [vmem:[#allocation24 + $0x2f0] sm:$0xff]
    %v6330 = vld [vmem:[#allocation24 + $0x2f8] sm:$0xff]
    %v6331 = vld [vmem:[#allocation24 + $0x300] sm:$0xff]
    %v6332 = vld [vmem:[#allocation24 + $0x308] sm:$0xff]
    %v6333 = vld [vmem:[#allocation24 + $0x310] sm:$0xff]
    %v6334 = vld [vmem:[#allocation24 + $0x318] sm:$0xff]
    %v6335 = vld [vmem:[#allocation24 + $0x320] sm:$0xff]
    %v6336 = vld [vmem:[#allocation24 + $0x328] sm:$0xff]
    %v6337 = vld [vmem:[#allocation24 + $0x330] sm:$0xff]
    %v6338 = vld [vmem:[#allocation24 + $0x338] sm:$0xff]
    %v6339 = vld [vmem:[#allocation24 + $0x340] sm:$0xff]
    %v6340 = vld [vmem:[#allocation24 + $0x348] sm:$0xff]
    %v6341 = vld [vmem:[#allocation24 + $0x350] sm:$0xff]
    %v6342 = vld [vmem:[#allocation24 + $0x358] sm:$0xff]
    %v6343 = vld [vmem:[#allocation24 + $0x360] sm:$0xff]
    %v6344 = vld [vmem:[#allocation24 + $0x368] sm:$0xff]
    %v6345 = vld [vmem:[#allocation24 + $0x370] sm:$0xff]
    %v6346 = vld [vmem:[#allocation24 + $0x378] sm:$0xff]
    %v6347 = vld [vmem:[#allocation24 + $0x380] sm:$0xff]
    %v6348 = vld [vmem:[#allocation24 + $0x388] sm:$0xff]
    %v6349 = vld [vmem:[#allocation24 + $0x390] sm:$0xff]
    %v6350 = vld [vmem:[#allocation24 + $0x398] sm:$0xff]
    %v6351 = vld [vmem:[#allocation24 + $0x3a0] sm:$0xff]
    %v6352 = vld [vmem:[#allocation24 + $0x3a8] sm:$0xff]
    %v6353 = vld [vmem:[#allocation24 + $0x3b0] sm:$0xff]
    %v6354 = vld [vmem:[#allocation24 + $0x3b8] sm:$0xff]
    %v6355 = vld [vmem:[#allocation24 + $0x3c0] sm:$0xff]
    %v6356 = vld [vmem:[#allocation24 + $0x3c8] sm:$0xff]
    %v6357 = vld [vmem:[#allocation24 + $0x3d0] sm:$0xff]
    %v6358 = vld [vmem:[#allocation24 + $0x3d8] sm:$0xff]
    %v6359 = vld [vmem:[#allocation24 + $0x3e0] sm:$0xff]
    %v6360 = vld [vmem:[#allocation24 + $0x3e8] sm:$0xff]
    %v6361 = vld [vmem:[#allocation24 + $0x3f0] sm:$0xff]
    %v6362 = vld [vmem:[#allocation24 + $0x3f8] sm:$0xff]
    %v6363 = vld [vmem:[%s14] sm:$0xf]
    %v6365 = vlaneseq
    %v6366 = vshrl.u32 %v6365, 7
    %v6367 = vsub.s32 0, %v6366
    %v6368 = vrot.slane %v6363, %v6367
    %v6369 = vlaneseq
    %v6370 = vshrl.u32 %v6369, 7
    %v6371 = vsub.s32 1, %v6370
    %v6372 = vrot.slane %v6363, %v6371
    %v6373 = vlaneseq
    %v6374 = vshrl.u32 %v6373, 7
    %v6375 = vsub.s32 2, %v6374
    %v6376 = vrot.slane %v6363, %v6375
    %v6377 = vlaneseq
    %v6378 = vshrl.u32 %v6377, 7
    %v6379 = vsub.s32 3, %v6378
    %v6380 = vrot.slane %v6363, %v6379
    %v6513 = vunpack.c.l.b16 %v6235
    %v6514 = vunpack.c.h.b16 %v6235
    %v6515 = vunpack.c.l.b16 %v6236
    %v6516 = vunpack.c.h.b16 %v6236
    %v6517 = vunpack.c.l.b16 %v6237
    %v6518 = vunpack.c.h.b16 %v6237
    %v6519 = vunpack.c.l.b16 %v6238
    %v6520 = vunpack.c.h.b16 %v6238
    %v6521 = vunpack.c.l.b16 %v6239
    %v6522 = vunpack.c.h.b16 %v6239
    %v6523 = vunpack.c.l.b16 %v6240
    %v6524 = vunpack.c.h.b16 %v6240
    %v6525 = vunpack.c.l.b16 %v6241
    %v6526 = vunpack.c.h.b16 %v6241
    %v6527 = vunpack.c.l.b16 %v6242
    %v6528 = vunpack.c.h.b16 %v6242
    %v6529 = vunpack.c.l.b16 %v6243
    %v6530 = vunpack.c.h.b16 %v6243
    %v6531 = vunpack.c.l.b16 %v6244
    %v6532 = vunpack.c.h.b16 %v6244
    %v6533 = vunpack.c.l.b16 %v6245
    %v6534 = vunpack.c.h.b16 %v6245
    %v6535 = vunpack.c.l.b16 %v6246
    %v6536 = vunpack.c.h.b16 %v6246
    %v6537 = vunpack.c.l.b16 %v6247
    %v6538 = vunpack.c.h.b16 %v6247
    %v6539 = vunpack.c.l.b16 %v6248
    %v6540 = vunpack.c.h.b16 %v6248
    %v6541 = vunpack.c.l.b16 %v6249
    %v6542 = vunpack.c.h.b16 %v6249
    %v6543 = vunpack.c.l.b16 %v6250
    %v6544 = vunpack.c.h.b16 %v6250
    %v6545 = vunpack.c.l.b16 %v6251
    %v6546 = vunpack.c.h.b16 %v6251
    %v6547 = vunpack.c.l.b16 %v6252
    %v6548 = vunpack.c.h.b16 %v6252
    %v6549 = vunpack.c.l.b16 %v6253
    %v6550 = vunpack.c.h.b16 %v6253
    %v6551 = vunpack.c.l.b16 %v6254
    %v6552 = vunpack.c.h.b16 %v6254
    %v6553 = vunpack.c.l.b16 %v6255
    %v6554 = vunpack.c.h.b16 %v6255
    %v6555 = vunpack.c.l.b16 %v6256
    %v6556 = vunpack.c.h.b16 %v6256
    %v6557 = vunpack.c.l.b16 %v6257
    %v6558 = vunpack.c.h.b16 %v6257
    %v6559 = vunpack.c.l.b16 %v6258
    %v6560 = vunpack.c.h.b16 %v6258
    %v6561 = vunpack.c.l.b16 %v6259
    %v6562 = vunpack.c.h.b16 %v6259
    %v6563 = vunpack.c.l.b16 %v6260
    %v6564 = vunpack.c.h.b16 %v6260
    %v6565 = vunpack.c.l.b16 %v6261
    %v6566 = vunpack.c.h.b16 %v6261
    %v6567 = vunpack.c.l.b16 %v6262
    %v6568 = vunpack.c.h.b16 %v6262
    %v6569 = vunpack.c.l.b16 %v6263
    %v6570 = vunpack.c.h.b16 %v6263
    %v6571 = vunpack.c.l.b16 %v6264
    %v6572 = vunpack.c.h.b16 %v6264
    %v6573 = vunpack.c.l.b16 %v6265
    %v6574 = vunpack.c.h.b16 %v6265
    %v6575 = vunpack.c.l.b16 %v6266
    %v6576 = vunpack.c.h.b16 %v6266
    %v6577 = vunpack.c.l.b16 %v6267
    %v6578 = vunpack.c.h.b16 %v6267
    %v6579 = vunpack.c.l.b16 %v6268
    %v6580 = vunpack.c.h.b16 %v6268
    %v6581 = vunpack.c.l.b16 %v6269
    %v6582 = vunpack.c.h.b16 %v6269
    %v6583 = vunpack.c.l.b16 %v6270
    %v6584 = vunpack.c.h.b16 %v6270
    %v6585 = vunpack.c.l.b16 %v6271
    %v6586 = vunpack.c.h.b16 %v6271
    %v6587 = vunpack.c.l.b16 %v6272
    %v6588 = vunpack.c.h.b16 %v6272
    %v6589 = vunpack.c.l.b16 %v6273
    %v6590 = vunpack.c.h.b16 %v6273
    %v6591 = vunpack.c.l.b16 %v6274
    %v6592 = vunpack.c.h.b16 %v6274
    %v6593 = vunpack.c.l.b16 %v6275
    %v6594 = vunpack.c.h.b16 %v6275
    %v6595 = vunpack.c.l.b16 %v6276
    %v6596 = vunpack.c.h.b16 %v6276
    %v6597 = vunpack.c.l.b16 %v6277
    %v6598 = vunpack.c.h.b16 %v6277
    %v6599 = vunpack.c.l.b16 %v6278
    %v6600 = vunpack.c.h.b16 %v6278
    %v6601 = vunpack.c.l.b16 %v6279
    %v6602 = vunpack.c.h.b16 %v6279
    %v6603 = vunpack.c.l.b16 %v6280
    %v6604 = vunpack.c.h.b16 %v6280
    %v6605 = vunpack.c.l.b16 %v6281
    %v6606 = vunpack.c.h.b16 %v6281
    %v6607 = vunpack.c.l.b16 %v6282
    %v6608 = vunpack.c.h.b16 %v6282
    %v6609 = vunpack.c.l.b16 %v6283
    %v6610 = vunpack.c.h.b16 %v6283
    %v6611 = vunpack.c.l.b16 %v6284
    %v6612 = vunpack.c.h.b16 %v6284
    %v6613 = vunpack.c.l.b16 %v6285
    %v6614 = vunpack.c.h.b16 %v6285
    %v6615 = vunpack.c.l.b16 %v6286
    %v6616 = vunpack.c.h.b16 %v6286
    %v6617 = vunpack.c.l.b16 %v6287
    %v6618 = vunpack.c.h.b16 %v6287
    %v6619 = vunpack.c.l.b16 %v6288
    %v6620 = vunpack.c.h.b16 %v6288
    %v6621 = vunpack.c.l.b16 %v6289
    %v6622 = vunpack.c.h.b16 %v6289
    %v6623 = vunpack.c.l.b16 %v6290
    %v6624 = vunpack.c.h.b16 %v6290
    %v6625 = vunpack.c.l.b16 %v6291
    %v6626 = vunpack.c.h.b16 %v6291
    %v6627 = vunpack.c.l.b16 %v6292
    %v6628 = vunpack.c.h.b16 %v6292
    %v6629 = vunpack.c.l.b16 %v6293
    %v6630 = vunpack.c.h.b16 %v6293
    %v6631 = vunpack.c.l.b16 %v6294
    %v6632 = vunpack.c.h.b16 %v6294
    %v6633 = vunpack.c.l.b16 %v6295
    %v6634 = vunpack.c.h.b16 %v6295
    %v6635 = vunpack.c.l.b16 %v6296
    %v6636 = vunpack.c.h.b16 %v6296
    %v6637 = vunpack.c.l.b16 %v6297
    %v6638 = vunpack.c.h.b16 %v6297
    %v6639 = vunpack.c.l.b16 %v6298
    %v6640 = vunpack.c.h.b16 %v6298
    %v6641 = vunpack.c.l.b16 %v6299
    %v6642 = vunpack.c.h.b16 %v6299
    %v6643 = vunpack.c.l.b16 %v6300
    %v6644 = vunpack.c.h.b16 %v6300
    %v6645 = vunpack.c.l.b16 %v6301
    %v6646 = vunpack.c.h.b16 %v6301
    %v6647 = vunpack.c.l.b16 %v6302
    %v6648 = vunpack.c.h.b16 %v6302
    %v6649 = vunpack.c.l.b16 %v6303
    %v6650 = vunpack.c.h.b16 %v6303
    %v6651 = vunpack.c.l.b16 %v6304
    %v6652 = vunpack.c.h.b16 %v6304
    %v6653 = vunpack.c.l.b16 %v6305
    %v6654 = vunpack.c.h.b16 %v6305
    %v6655 = vunpack.c.l.b16 %v6306
    %v6656 = vunpack.c.h.b16 %v6306
    %v6657 = vunpack.c.l.b16 %v6307
    %v6658 = vunpack.c.h.b16 %v6307
    %v6659 = vunpack.c.l.b16 %v6308
    %v6660 = vunpack.c.h.b16 %v6308
    %v6661 = vunpack.c.l.b16 %v6309
    %v6662 = vunpack.c.h.b16 %v6309
    %v6663 = vunpack.c.l.b16 %v6310
    %v6664 = vunpack.c.h.b16 %v6310
    %v6665 = vunpack.c.l.b16 %v6311
    %v6666 = vunpack.c.h.b16 %v6311
    %v6667 = vunpack.c.l.b16 %v6312
    %v6668 = vunpack.c.h.b16 %v6312
    %v6669 = vunpack.c.l.b16 %v6313
    %v6670 = vunpack.c.h.b16 %v6313
    %v6671 = vunpack.c.l.b16 %v6314
    %v6672 = vunpack.c.h.b16 %v6314
    %v6673 = vunpack.c.l.b16 %v6315
    %v6674 = vunpack.c.h.b16 %v6315
    %v6675 = vunpack.c.l.b16 %v6316
    %v6676 = vunpack.c.h.b16 %v6316
    %v6677 = vunpack.c.l.b16 %v6317
    %v6678 = vunpack.c.h.b16 %v6317
    %v6679 = vunpack.c.l.b16 %v6318
    %v6680 = vunpack.c.h.b16 %v6318
    %v6681 = vunpack.c.l.b16 %v6319
    %v6682 = vunpack.c.h.b16 %v6319
    %v6683 = vunpack.c.l.b16 %v6320
    %v6684 = vunpack.c.h.b16 %v6320
    %v6685 = vunpack.c.l.b16 %v6321
    %v6686 = vunpack.c.h.b16 %v6321
    %v6687 = vunpack.c.l.b16 %v6322
    %v6688 = vunpack.c.h.b16 %v6322
    %v6689 = vunpack.c.l.b16 %v6323
    %v6690 = vunpack.c.h.b16 %v6323
    %v6691 = vunpack.c.l.b16 %v6324
    %v6692 = vunpack.c.h.b16 %v6324
    %v6693 = vunpack.c.l.b16 %v6325
    %v6694 = vunpack.c.h.b16 %v6325
    %v6695 = vunpack.c.l.b16 %v6326
    %v6696 = vunpack.c.h.b16 %v6326
    %v6697 = vunpack.c.l.b16 %v6327
    %v6698 = vunpack.c.h.b16 %v6327
    %v6699 = vunpack.c.l.b16 %v6328
    %v6700 = vunpack.c.h.b16 %v6328
    %v6701 = vunpack.c.l.b16 %v6329
    %v6702 = vunpack.c.h.b16 %v6329
    %v6703 = vunpack.c.l.b16 %v6330
    %v6704 = vunpack.c.h.b16 %v6330
    %v6705 = vunpack.c.l.b16 %v6331
    %v6706 = vunpack.c.h.b16 %v6331
    %v6707 = vunpack.c.l.b16 %v6332
    %v6708 = vunpack.c.h.b16 %v6332
    %v6709 = vunpack.c.l.b16 %v6333
    %v6710 = vunpack.c.h.b16 %v6333
    %v6711 = vunpack.c.l.b16 %v6334
    %v6712 = vunpack.c.h.b16 %v6334
    %v6713 = vunpack.c.l.b16 %v6335
    %v6714 = vunpack.c.h.b16 %v6335
    %v6715 = vunpack.c.l.b16 %v6336
    %v6716 = vunpack.c.h.b16 %v6336
    %v6717 = vunpack.c.l.b16 %v6337
    %v6718 = vunpack.c.h.b16 %v6337
    %v6719 = vunpack.c.l.b16 %v6338
    %v6720 = vunpack.c.h.b16 %v6338
    %v6721 = vunpack.c.l.b16 %v6339
    %v6722 = vunpack.c.h.b16 %v6339
    %v6723 = vunpack.c.l.b16 %v6340
    %v6724 = vunpack.c.h.b16 %v6340
    %v6725 = vunpack.c.l.b16 %v6341
    %v6726 = vunpack.c.h.b16 %v6341
    %v6727 = vunpack.c.l.b16 %v6342
    %v6728 = vunpack.c.h.b16 %v6342
    %v6729 = vunpack.c.l.b16 %v6343
    %v6730 = vunpack.c.h.b16 %v6343
    %v6731 = vunpack.c.l.b16 %v6344
    %v6732 = vunpack.c.h.b16 %v6344
    %v6733 = vunpack.c.l.b16 %v6345
    %v6734 = vunpack.c.h.b16 %v6345
    %v6735 = vunpack.c.l.b16 %v6346
    %v6736 = vunpack.c.h.b16 %v6346
    %v6737 = vunpack.c.l.b16 %v6347
    %v6738 = vunpack.c.h.b16 %v6347
    %v6739 = vunpack.c.l.b16 %v6348
    %v6740 = vunpack.c.h.b16 %v6348
    %v6741 = vunpack.c.l.b16 %v6349
    %v6742 = vunpack.c.h.b16 %v6349
    %v6743 = vunpack.c.l.b16 %v6350
    %v6744 = vunpack.c.h.b16 %v6350
    %v6745 = vunpack.c.l.b16 %v6351
    %v6746 = vunpack.c.h.b16 %v6351
    %v6747 = vunpack.c.l.b16 %v6352
    %v6748 = vunpack.c.h.b16 %v6352
    %v6749 = vunpack.c.l.b16 %v6353
    %v6750 = vunpack.c.h.b16 %v6353
    %v6751 = vunpack.c.l.b16 %v6354
    %v6752 = vunpack.c.h.b16 %v6354
    %v6753 = vunpack.c.l.b16 %v6355
    %v6754 = vunpack.c.h.b16 %v6355
    %v6755 = vunpack.c.l.b16 %v6356
    %v6756 = vunpack.c.h.b16 %v6356
    %v6757 = vunpack.c.l.b16 %v6357
    %v6758 = vunpack.c.h.b16 %v6357
    %v6759 = vunpack.c.l.b16 %v6358
    %v6760 = vunpack.c.h.b16 %v6358
    %v6761 = vunpack.c.l.b16 %v6359
    %v6762 = vunpack.c.h.b16 %v6359
    %v6763 = vunpack.c.l.b16 %v6360
    %v6764 = vunpack.c.h.b16 %v6360
    %v6765 = vunpack.c.l.b16 %v6361
    %v6766 = vunpack.c.h.b16 %v6361
    %v6767 = vunpack.c.l.b16 %v6362
    %v6768 = vunpack.c.h.b16 %v6362
    %v6769 = vpack.c.b16 %v6517, %v6513
    %v6770 = vpack.c.b16 %v6518, %v6514
    %v6771 = vpack.c.b16 %v6519, %v6515
    %v6772 = vpack.c.b16 %v6520, %v6516
    %v6773 = vpack.c.b16 %v6525, %v6521
    %v6774 = vpack.c.b16 %v6526, %v6522
    %v6775 = vpack.c.b16 %v6527, %v6523
    %v6776 = vpack.c.b16 %v6528, %v6524
    %v6777 = vpack.c.b16 %v6533, %v6529
    %v6778 = vpack.c.b16 %v6534, %v6530
    %v6779 = vpack.c.b16 %v6535, %v6531
    %v6780 = vpack.c.b16 %v6536, %v6532
    %v6781 = vpack.c.b16 %v6541, %v6537
    %v6782 = vpack.c.b16 %v6542, %v6538
    %v6783 = vpack.c.b16 %v6543, %v6539
    %v6784 = vpack.c.b16 %v6544, %v6540
    %v6785 = vpack.c.b16 %v6549, %v6545
    %v6786 = vpack.c.b16 %v6550, %v6546
    %v6787 = vpack.c.b16 %v6551, %v6547
    %v6788 = vpack.c.b16 %v6552, %v6548
    %v6789 = vpack.c.b16 %v6557, %v6553
    %v6790 = vpack.c.b16 %v6558, %v6554
    %v6791 = vpack.c.b16 %v6559, %v6555
    %v6792 = vpack.c.b16 %v6560, %v6556
    %v6793 = vpack.c.b16 %v6565, %v6561
    %v6794 = vpack.c.b16 %v6566, %v6562
    %v6795 = vpack.c.b16 %v6567, %v6563
    %v6796 = vpack.c.b16 %v6568, %v6564
    %v6797 = vpack.c.b16 %v6573, %v6569
    %v6798 = vpack.c.b16 %v6574, %v6570
    %v6799 = vpack.c.b16 %v6575, %v6571
    %v6800 = vpack.c.b16 %v6576, %v6572
    %v6801 = vpack.c.b16 %v6581, %v6577
    %v6802 = vpack.c.b16 %v6582, %v6578
    %v6803 = vpack.c.b16 %v6583, %v6579
    %v6804 = vpack.c.b16 %v6584, %v6580
    %v6805 = vpack.c.b16 %v6589, %v6585
    %v6806 = vpack.c.b16 %v6590, %v6586
    %v6807 = vpack.c.b16 %v6591, %v6587
    %v6808 = vpack.c.b16 %v6592, %v6588
    %v6809 = vpack.c.b16 %v6597, %v6593
    %v6810 = vpack.c.b16 %v6598, %v6594
    %v6811 = vpack.c.b16 %v6599, %v6595
    %v6812 = vpack.c.b16 %v6600, %v6596
    %v6813 = vpack.c.b16 %v6605, %v6601
    %v6814 = vpack.c.b16 %v6606, %v6602
    %v6815 = vpack.c.b16 %v6607, %v6603
    %v6816 = vpack.c.b16 %v6608, %v6604
    %v6817 = vpack.c.b16 %v6613, %v6609
    %v6818 = vpack.c.b16 %v6614, %v6610
    %v6819 = vpack.c.b16 %v6615, %v6611
    %v6820 = vpack.c.b16 %v6616, %v6612
    %v6821 = vpack.c.b16 %v6621, %v6617
    %v6822 = vpack.c.b16 %v6622, %v6618
    %v6823 = vpack.c.b16 %v6623, %v6619
    %v6824 = vpack.c.b16 %v6624, %v6620
    %v6825 = vpack.c.b16 %v6629, %v6625
    %v6826 = vpack.c.b16 %v6630, %v6626
    %v6827 = vpack.c.b16 %v6631, %v6627
    %v6828 = vpack.c.b16 %v6632, %v6628
    %v6829 = vpack.c.b16 %v6637, %v6633
    %v6830 = vpack.c.b16 %v6638, %v6634
    %v6831 = vpack.c.b16 %v6639, %v6635
    %v6832 = vpack.c.b16 %v6640, %v6636
    %v6833 = vpack.c.b16 %v6645, %v6641
    %v6834 = vpack.c.b16 %v6646, %v6642
    %v6835 = vpack.c.b16 %v6647, %v6643
    %v6836 = vpack.c.b16 %v6648, %v6644
    %v6837 = vpack.c.b16 %v6653, %v6649
    %v6838 = vpack.c.b16 %v6654, %v6650
    %v6839 = vpack.c.b16 %v6655, %v6651
    %v6840 = vpack.c.b16 %v6656, %v6652
    %v6841 = vpack.c.b16 %v6661, %v6657
    %v6842 = vpack.c.b16 %v6662, %v6658
    %v6843 = vpack.c.b16 %v6663, %v6659
    %v6844 = vpack.c.b16 %v6664, %v6660
    %v6845 = vpack.c.b16 %v6669, %v6665
    %v6846 = vpack.c.b16 %v6670, %v6666
    %v6847 = vpack.c.b16 %v6671, %v6667
    %v6848 = vpack.c.b16 %v6672, %v6668
    %v6849 = vpack.c.b16 %v6677, %v6673
    %v6850 = vpack.c.b16 %v6678, %v6674
    %v6851 = vpack.c.b16 %v6679, %v6675
    %v6852 = vpack.c.b16 %v6680, %v6676
    %v6853 = vpack.c.b16 %v6685, %v6681
    %v6854 = vpack.c.b16 %v6686, %v6682
    %v6855 = vpack.c.b16 %v6687, %v6683
    %v6856 = vpack.c.b16 %v6688, %v6684
    %v6857 = vpack.c.b16 %v6693, %v6689
    %v6858 = vpack.c.b16 %v6694, %v6690
    %v6859 = vpack.c.b16 %v6695, %v6691
    %v6860 = vpack.c.b16 %v6696, %v6692
    %v6861 = vpack.c.b16 %v6701, %v6697
    %v6862 = vpack.c.b16 %v6702, %v6698
    %v6863 = vpack.c.b16 %v6703, %v6699
    %v6864 = vpack.c.b16 %v6704, %v6700
    %v6865 = vpack.c.b16 %v6709, %v6705
    %v6866 = vpack.c.b16 %v6710, %v6706
    %v6867 = vpack.c.b16 %v6711, %v6707
    %v6868 = vpack.c.b16 %v6712, %v6708
    %v6869 = vpack.c.b16 %v6717, %v6713
    %v6870 = vpack.c.b16 %v6718, %v6714
    %v6871 = vpack.c.b16 %v6719, %v6715
    %v6872 = vpack.c.b16 %v6720, %v6716
    %v6873 = vpack.c.b16 %v6725, %v6721
    %v6874 = vpack.c.b16 %v6726, %v6722
    %v6875 = vpack.c.b16 %v6727, %v6723
    %v6876 = vpack.c.b16 %v6728, %v6724
    %v6877 = vpack.c.b16 %v6733, %v6729
    %v6878 = vpack.c.b16 %v6734, %v6730
    %v6879 = vpack.c.b16 %v6735, %v6731
    %v6880 = vpack.c.b16 %v6736, %v6732
    %v6881 = vpack.c.b16 %v6741, %v6737
    %v6882 = vpack.c.b16 %v6742, %v6738
    %v6883 = vpack.c.b16 %v6743, %v6739
    %v6884 = vpack.c.b16 %v6744, %v6740
    %v6885 = vpack.c.b16 %v6749, %v6745
    %v6886 = vpack.c.b16 %v6750, %v6746
    %v6887 = vpack.c.b16 %v6751, %v6747
    %v6888 = vpack.c.b16 %v6752, %v6748
    %v6889 = vpack.c.b16 %v6757, %v6753
    %v6890 = vpack.c.b16 %v6758, %v6754
    %v6891 = vpack.c.b16 %v6759, %v6755
    %v6892 = vpack.c.b16 %v6760, %v6756
    %v6893 = vpack.c.b16 %v6765, %v6761
    %v6894 = vpack.c.b16 %v6766, %v6762
    %v6895 = vpack.c.b16 %v6767, %v6763
    %v6896 = vpack.c.b16 %v6768, %v6764
    %7025 = vmatprep.subr.bf16.mxu0 %v6770
    %7026 = vmatpush1.bf16.msra.mxu0 %v6769
    %7027 = vmatprep.subr.bf16.mxu0 %v6774
    %7028 = vmatpush1.bf16.msra.mxu0 %v6773
    %7029 = vmatprep.subr.bf16.mxu0 %v6778
    %7030 = vmatpush1.bf16.msra.mxu0 %v6777
    %7031 = vmatprep.subr.bf16.mxu0 %v6782
    %7032 = vmatpush1.bf16.msra.mxu0 %v6781
    %7033 = vmatprep.subr.bf16.mxu0 %v6786
    %7034 = vmatpush1.bf16.msra.mxu0 %v6785
    %7035 = vmatprep.subr.bf16.mxu0 %v6790
    %7036 = vmatpush1.bf16.msra.mxu0 %v6789
    %7037 = vmatprep.subr.bf16.mxu0 %v6794
    %7038 = vmatpush1.bf16.msra.mxu0 %v6793
    %7039 = vmatprep.subr.bf16.mxu0 %v6798
    %7040 = vmatpush1.bf16.msra.mxu0 %v6797
    %7041 = vmatprep.subr.bf16.mxu0 %v6802
    %7042 = vmatpush1.bf16.msra.mxu0 %v6801
    %7043 = vmatprep.subr.bf16.mxu0 %v6806
    %7044 = vmatpush1.bf16.msra.mxu0 %v6805
    %7045 = vmatprep.subr.bf16.mxu0 %v6810
    %7046 = vmatpush1.bf16.msra.mxu0 %v6809
    %7047 = vmatprep.subr.bf16.mxu0 %v6814
    %7048 = vmatpush1.bf16.msra.mxu0 %v6813
    %7049 = vmatprep.subr.bf16.mxu0 %v6818
    %7050 = vmatpush1.bf16.msra.mxu0 %v6817
    %7051 = vmatprep.subr.bf16.mxu0 %v6822
    %7052 = vmatpush1.bf16.msra.mxu0 %v6821
    %7053 = vmatprep.subr.bf16.mxu0 %v6826
    %7054 = vmatpush1.bf16.msra.mxu0 %v6825
    %7055 = vmatprep.subr.bf16.mxu0 %v6830
    %7056 = vmatpush1.bf16.msra.mxu0 %v6829
    %7057 = vmatprep.mubr.bf16.mxu0 %v6232
    %7058 = vmatmul.mubr.bf16.gmra.mrb[0].mxu0 %v6231
    %v7059 = vpop.f32.mrb[0].mxu0
    %v7060 = vadd.f32 %v6368, %v7059
    %v7061 = vpop.f32.mrb[0].mxu0
    %v7062 = vadd.f32 %v6372, %v7061
    %v7063 = vpop.f32.mrb[0].mxu0
    %v7064 = vpop.f32.mrb[0].mxu0
    %7065 = vdwg.mxu0
    %7066 = vmatprep.subr.bf16.mxu0 %v6834
    %7067 = vmatpush1.bf16.msra.mxu0 %v6833
    %7068 = vmatprep.subr.bf16.mxu0 %v6838
    %7069 = vmatpush1.bf16.msra.mxu0 %v6837
    %7070 = vmatprep.subr.bf16.mxu0 %v6842
    %7071 = vmatpush1.bf16.msra.mxu0 %v6841
    %7072 = vmatprep.subr.bf16.mxu0 %v6846
    %7073 = vmatpush1.bf16.msra.mxu0 %v6845
    %7074 = vmatprep.subr.bf16.mxu0 %v6850
    %7075 = vmatpush1.bf16.msra.mxu0 %v6849
    %7076 = vmatprep.subr.bf16.mxu0 %v6854
    %7077 = vmatpush1.bf16.msra.mxu0 %v6853
    %7078 = vmatprep.subr.bf16.mxu0 %v6858
    %7079 = vmatpush1.bf16.msra.mxu0 %v6857
    %7080 = vmatprep.subr.bf16.mxu0 %v6862
    %7081 = vmatpush1.bf16.msra.mxu0 %v6861
    %7082 = vmatprep.subr.bf16.mxu0 %v6866
    %7083 = vmatpush1.bf16.msra.mxu0 %v6865
    %7084 = vmatprep.subr.bf16.mxu0 %v6870
    %7085 = vmatpush1.bf16.msra.mxu0 %v6869
    %7086 = vmatprep.subr.bf16.mxu0 %v6874
    %7087 = vmatpush1.bf16.msra.mxu0 %v6873
    %7088 = vmatprep.subr.bf16.mxu0 %v6878
    %7089 = vmatpush1.bf16.msra.mxu0 %v6877
    %7090 = vmatprep.subr.bf16.mxu0 %v6882
    %7091 = vmatpush1.bf16.msra.mxu0 %v6881
    %7092 = vmatprep.subr.bf16.mxu0 %v6886
    %7093 = vmatpush1.bf16.msra.mxu0 %v6885
    %7094 = vmatprep.subr.bf16.mxu0 %v6890
    %7095 = vmatpush1.bf16.msra.mxu0 %v6889
    %7096 = vmatprep.subr.bf16.mxu0 %v6894
    %7097 = vmatpush1.bf16.msra.mxu0 %v6893
    %7098 = vmatprep.mubr.bf16.mxu0 %v6234
    %7099 = vmatmul.mubr.bf16.gmra.mrb[0].mxu0 %v6233
    %v7100 = vpop.f32.mrb[0].mxu0
    %v7101 = vadd.f32 %v7060, %v7100
    %v7102 = vpop.f32.mrb[0].mxu0
    %v7103 = vadd.f32 %v7062, %v7102
    %v7104 = vpop.f32.mrb[0].mxu0
    %v7105 = vpop.f32.mrb[0].mxu0
    %7106 = vdwg.mxu0
    %7107 = vmatprep.subr.bf16.mxu0 %v6772
    %7108 = vmatpush1.bf16.msra.mxu0 %v6771
    %7109 = vmatprep.subr.bf16.mxu0 %v6776
    %7110 = vmatpush1.bf16.msra.mxu0 %v6775
    %7111 = vmatprep.subr.bf16.mxu0 %v6780
    %7112 = vmatpush1.bf16.msra.mxu0 %v6779
    %7113 = vmatprep.subr.bf16.mxu0 %v6784
    %7114 = vmatpush1.bf16.msra.mxu0 %v6783
    %7115 = vmatprep.subr.bf16.mxu0 %v6788
    %7116 = vmatpush1.bf16.msra.mxu0 %v6787
    %7117 = vmatprep.subr.bf16.mxu0 %v6792
    %7118 = vmatpush1.bf16.msra.mxu0 %v6791
    %7119 = vmatprep.subr.bf16.mxu0 %v6796
    %7120 = vmatpush1.bf16.msra.mxu0 %v6795
    %7121 = vmatprep.subr.bf16.mxu0 %v6800
    %7122 = vmatpush1.bf16.msra.mxu0 %v6799
    %7123 = vmatprep.subr.bf16.mxu0 %v6804
    %7124 = vmatpush1.bf16.msra.mxu0 %v6803
    %7125 = vmatprep.subr.bf16.mxu0 %v6808
    %7126 = vmatpush1.bf16.msra.mxu0 %v6807
    %7127 = vmatprep.subr.bf16.mxu0 %v6812
    %7128 = vmatpush1.bf16.msra.mxu0 %v6811
    %7129 = vmatprep.subr.bf16.mxu0 %v6816
    %7130 = vmatpush1.bf16.msra.mxu0 %v6815
    %7131 = vmatprep.subr.bf16.mxu0 %v6820
    %7132 = vmatpush1.bf16.msra.mxu0 %v6819
    %7133 = vmatprep.subr.bf16.mxu0 %v6824
    %7134 = vmatpush1.bf16.msra.mxu0 %v6823
    %7135 = vmatprep.subr.bf16.mxu0 %v6828
    %7136 = vmatpush1.bf16.msra.mxu0 %v6827
    %7137 = vmatprep.subr.bf16.mxu0 %v6832
    %7138 = vmatpush1.bf16.msra.mxu0 %v6831
    %7139 = vmatprep.mubr.bf16.mxu0 %v6232
    %7140 = vmatmul.mubr.bf16.gmra.mrb[0].mxu0 %v6231
    %v7141 = vpop.f32.mrb[0].mxu0
    %v7142 = vadd.f32 %v6376, %v7141
    %v7143 = vpop.f32.mrb[0].mxu0
    %v7144 = vadd.f32 %v6380, %v7143
    %v7145 = vpop.f32.mrb[0].mxu0
    %v7146 = vpop.f32.mrb[0].mxu0
    %7147 = vdwg.mxu0
    %7148 = vmatprep.subr.bf16.mxu0 %v6836
    %7149 = vmatpush1.bf16.msra.mxu0 %v6835
    %7150 = vmatprep.subr.bf16.mxu0 %v6840
    %7151 = vmatpush1.bf16.msra.mxu0 %v6839
    %7152 = vmatprep.subr.bf16.mxu0 %v6844
    %7153 = vmatpush1.bf16.msra.mxu0 %v6843
    %7154 = vmatprep.subr.bf16.mxu0 %v6848
    %7155 = vmatpush1.bf16.msra.mxu0 %v6847
    %7156 = vmatprep.subr.bf16.mxu0 %v6852
    %7157 = vmatpush1.bf16.msra.mxu0 %v6851
    %7158 = vmatprep.subr.bf16.mxu0 %v6856
    %7159 = vmatpush1.bf16.msra.mxu0 %v6855
    %7160 = vmatprep.subr.bf16.mxu0 %v6860
    %7161 = vmatpush1.bf16.msra.mxu0 %v6859
    %7162 = vmatprep.subr.bf16.mxu0 %v6864
    %7163 = vmatpush1.bf16.msra.mxu0 %v6863
    %7164 = vmatprep.subr.bf16.mxu0 %v6868
    %7165 = vmatpush1.bf16.msra.mxu0 %v6867
    %7166 = vmatprep.subr.bf16.mxu0 %v6872
    %7167 = vmatpush1.bf16.msra.mxu0 %v6871
    %7168 = vmatprep.subr.bf16.mxu0 %v6876
    %7169 = vmatpush1.bf16.msra.mxu0 %v6875
    %7170 = vmatprep.subr.bf16.mxu0 %v6880
    %7171 = vmatpush1.bf16.msra.mxu0 %v6879
    %7172 = vmatprep.subr.bf16.mxu0 %v6884
    %7173 = vmatpush1.bf16.msra.mxu0 %v6883
    %7174 = vmatprep.subr.bf16.mxu0 %v6888
    %7175 = vmatpush1.bf16.msra.mxu0 %v6887
    %7176 = vmatprep.subr.bf16.mxu0 %v6892
    %7177 = vmatpush1.bf16.msra.mxu0 %v6891
    %7178 = vmatprep.subr.bf16.mxu0 %v6896
    %7179 = vmatpush1.bf16.msra.mxu0 %v6895
    %7180 = vmatprep.mubr.bf16.mxu0 %v6234
    %7181 = vmatmul.mubr.bf16.gmra.mrb[0].mxu0 %v6233
    %v7182 = vpop.f32.mrb[0].mxu0
    %v7183 = vadd.f32 %v7142, %v7182
    %v7184 = vpop.f32.mrb[0].mxu0
    %v7185 = vadd.f32 %v7144, %v7184
    %v7186 = vpop.f32.mrb[0].mxu0
    %v7187 = vpop.f32.mrb[0].mxu0
    %7188 = vdwg.mxu0
    %v7189 = vmax.f32 %v7101, 0.0
    %v7190 = vmax.f32 %v7103, 0.0
    %v7191 = vmax.f32 %v7183, 0.0
    %v7192 = vmax.f32 %v7185, 0.0
    %v7193 = vadd.f32 %v6227, %v7189
    %v7194 = vadd.f32 %v6228, %v7190
    %v7195 = vadd.f32 %v6229, %v7191
    %v7196 = vadd.f32 %v6230, %v7192
    %v7197 = vpack.c.bf16 %v7193, %v7193
    %v7198 = vpack.c.bf16 %v7194, %v7194
    %v7199 = vpack.c.bf16 %v7195, %v7195
    %v7200 = vpack.c.bf16 %v7196, %v7196
    %v7201 = vld [vmem:[#allocation25] sm:$0xf]
    %v7202 = vld [vmem:[#allocation25 + $0x4] sm:$0xf]
    %v7203 = vld [vmem:[#allocation25 + $0x8] sm:$0xf]
    %v7204 = vld [vmem:[#allocation25 + $0xc] sm:$0xf]
    %v7205 = vld [vmem:[#allocation25 + $0x10] sm:$0xf]
    %v7206 = vld [vmem:[#allocation25 + $0x14] sm:$0xf]
    %v7207 = vld [vmem:[#allocation25 + $0x18] sm:$0xf]
    %v7208 = vld [vmem:[#allocation25 + $0x1c] sm:$0xf]
    %v7209 = vld [vmem:[#allocation25 + $0x20] sm:$0xf]
    %v7210 = vld [vmem:[#allocation25 + $0x24] sm:$0xf]
    %v7211 = vld [vmem:[#allocation25 + $0x28] sm:$0xf]
    %v7212 = vld [vmem:[#allocation25 + $0x2c] sm:$0xf]
    %v7213 = vld [vmem:[#allocation25 + $0x30] sm:$0xf]
    %v7214 = vld [vmem:[#allocation25 + $0x34] sm:$0xf]
    %v7215 = vld [vmem:[#allocation25 + $0x38] sm:$0xf]
    %v7216 = vld [vmem:[#allocation25 + $0x3c] sm:$0xf]
    %v7217 = vld [vmem:[#allocation25 + $0x40] sm:$0xf]
    %v7218 = vld [vmem:[#allocation25 + $0x44] sm:$0xf]
    %v7219 = vld [vmem:[#allocation25 + $0x48] sm:$0xf]
    %v7220 = vld [vmem:[#allocation25 + $0x4c] sm:$0xf]
    %v7221 = vld [vmem:[#allocation25 + $0x50] sm:$0xf]
    %v7222 = vld [vmem:[#allocation25 + $0x54] sm:$0xf]
    %v7223 = vld [vmem:[#allocation25 + $0x58] sm:$0xf]
    %v7224 = vld [vmem:[#allocation25 + $0x5c] sm:$0xf]
    %v7225 = vld [vmem:[#allocation25 + $0x60] sm:$0xf]
    %v7226 = vld [vmem:[#allocation25 + $0x64] sm:$0xf]
    %v7227 = vld [vmem:[#allocation25 + $0x68] sm:$0xf]
    %v7228 = vld [vmem:[#allocation25 + $0x6c] sm:$0xf]
    %v7229 = vld [vmem:[#allocation25 + $0x70] sm:$0xf]
    %v7230 = vld [vmem:[#allocation25 + $0x74] sm:$0xf]
    %v7231 = vld [vmem:[#allocation25 + $0x78] sm:$0xf]
    %v7232 = vld [vmem:[#allocation25 + $0x7c] sm:$0xf]
    %v7233 = vld [vmem:[#allocation25 + $0x80] sm:$0xf]
    %v7234 = vld [vmem:[#allocation25 + $0x84] sm:$0xf]
    %v7235 = vld [vmem:[#allocation25 + $0x88] sm:$0xf]
    %v7236 = vld [vmem:[#allocation25 + $0x8c] sm:$0xf]
    %v7237 = vld [vmem:[#allocation25 + $0x90] sm:$0xf]
    %v7238 = vld [vmem:[#allocation25 + $0x94] sm:$0xf]
    %v7239 = vld [vmem:[#allocation25 + $0x98] sm:$0xf]
    %v7240 = vld [vmem:[#allocation25 + $0x9c] sm:$0xf]
    %v7241 = vld [vmem:[#allocation25 + $0xa0] sm:$0xf]
    %v7242 = vld [vmem:[#allocation25 + $0xa4] sm:$0xf]
    %v7243 = vld [vmem:[#allocation25 + $0xa8] sm:$0xf]
    %v7244 = vld [vmem:[#allocation25 + $0xac] sm:$0xf]
    %v7245 = vld [vmem:[#allocation25 + $0xb0] sm:$0xf]
    %v7246 = vld [vmem:[#allocation25 + $0xb4] sm:$0xf]
    %v7247 = vld [vmem:[#allocation25 + $0xb8] sm:$0xf]
    %v7248 = vld [vmem:[#allocation25 + $0xbc] sm:$0xf]
    %v7249 = vld [vmem:[#allocation25 + $0xc0] sm:$0xf]
    %v7250 = vld [vmem:[#allocation25 + $0xc4] sm:$0xf]
    %v7251 = vld [vmem:[#allocation25 + $0xc8] sm:$0xf]
    %v7252 = vld [vmem:[#allocation25 + $0xcc] sm:$0xf]
    %v7253 = vld [vmem:[#allocation25 + $0xd0] sm:$0xf]
    %v7254 = vld [vmem:[#allocation25 + $0xd4] sm:$0xf]
    %v7255 = vld [vmem:[#allocation25 + $0xd8] sm:$0xf]
    %v7256 = vld [vmem:[#allocation25 + $0xdc] sm:$0xf]
    %v7257 = vld [vmem:[#allocation25 + $0xe0] sm:$0xf]
    %v7258 = vld [vmem:[#allocation25 + $0xe4] sm:$0xf]
    %v7259 = vld [vmem:[#allocation25 + $0xe8] sm:$0xf]
    %v7260 = vld [vmem:[#allocation25 + $0xec] sm:$0xf]
    %v7261 = vld [vmem:[#allocation25 + $0xf0] sm:$0xf]
    %v7262 = vld [vmem:[#allocation25 + $0xf4] sm:$0xf]
    %v7263 = vld [vmem:[#allocation25 + $0xf8] sm:$0xf]
    %v7264 = vld [vmem:[#allocation25 + $0xfc] sm:$0xf]
    %v7265 = vld [vmem:[%s16] sm:$0x1]
    %v7267 = vlaneseq
    %v7268 = vshrl.u32 %v7267, 7
    %v7269 = vsub.s32 0, %v7268
    %v7270 = vrot.slane %v7265, %v7269
    %v7336 = vunpack.c.l.b16 %v7201
    %v7337 = vunpack.c.l.b16 %v7202
    %v7338 = vunpack.c.l.b16 %v7203
    %v7339 = vunpack.c.l.b16 %v7204
    %v7340 = vunpack.c.l.b16 %v7205
    %v7341 = vunpack.c.l.b16 %v7206
    %v7342 = vunpack.c.l.b16 %v7207
    %v7343 = vunpack.c.l.b16 %v7208
    %v7344 = vunpack.c.l.b16 %v7209
    %v7345 = vunpack.c.l.b16 %v7210
    %v7346 = vunpack.c.l.b16 %v7211
    %v7347 = vunpack.c.l.b16 %v7212
    %v7348 = vunpack.c.l.b16 %v7213
    %v7349 = vunpack.c.l.b16 %v7214
    %v7350 = vunpack.c.l.b16 %v7215
    %v7351 = vunpack.c.l.b16 %v7216
    %v7352 = vunpack.c.l.b16 %v7217
    %v7353 = vunpack.c.l.b16 %v7218
    %v7354 = vunpack.c.l.b16 %v7219
    %v7355 = vunpack.c.l.b16 %v7220
    %v7356 = vunpack.c.l.b16 %v7221
    %v7357 = vunpack.c.l.b16 %v7222
    %v7358 = vunpack.c.l.b16 %v7223
    %v7359 = vunpack.c.l.b16 %v7224
    %v7360 = vunpack.c.l.b16 %v7225
    %v7361 = vunpack.c.l.b16 %v7226
    %v7362 = vunpack.c.l.b16 %v7227
    %v7363 = vunpack.c.l.b16 %v7228
    %v7364 = vunpack.c.l.b16 %v7229
    %v7365 = vunpack.c.l.b16 %v7230
    %v7366 = vunpack.c.l.b16 %v7231
    %v7367 = vunpack.c.l.b16 %v7232
    %v7368 = vunpack.c.l.b16 %v7233
    %v7369 = vunpack.c.l.b16 %v7234
    %v7370 = vunpack.c.l.b16 %v7235
    %v7371 = vunpack.c.l.b16 %v7236
    %v7372 = vunpack.c.l.b16 %v7237
    %v7373 = vunpack.c.l.b16 %v7238
    %v7374 = vunpack.c.l.b16 %v7239
    %v7375 = vunpack.c.l.b16 %v7240
    %v7376 = vunpack.c.l.b16 %v7241
    %v7377 = vunpack.c.l.b16 %v7242
    %v7378 = vunpack.c.l.b16 %v7243
    %v7379 = vunpack.c.l.b16 %v7244
    %v7380 = vunpack.c.l.b16 %v7245
    %v7381 = vunpack.c.l.b16 %v7246
    %v7382 = vunpack.c.l.b16 %v7247
    %v7383 = vunpack.c.l.b16 %v7248
    %v7384 = vunpack.c.l.b16 %v7249
    %v7385 = vunpack.c.l.b16 %v7250
    %v7386 = vunpack.c.l.b16 %v7251
    %v7387 = vunpack.c.l.b16 %v7252
    %v7388 = vunpack.c.l.b16 %v7253
    %v7389 = vunpack.c.l.b16 %v7254
    %v7390 = vunpack.c.l.b16 %v7255
    %v7391 = vunpack.c.l.b16 %v7256
    %v7392 = vunpack.c.l.b16 %v7257
    %v7393 = vunpack.c.l.b16 %v7258
    %v7394 = vunpack.c.l.b16 %v7259
    %v7395 = vunpack.c.l.b16 %v7260
    %v7396 = vunpack.c.l.b16 %v7261
    %v7397 = vunpack.c.l.b16 %v7262
    %v7398 = vunpack.c.l.b16 %v7263
    %v7399 = vunpack.c.l.b16 %v7264
    %v7400 = vpack.c.b16 %v7337, %v7336
    %v7401 = vpack.c.b16 %v7339, %v7338
    %v7402 = vpack.c.b16 %v7341, %v7340
    %v7403 = vpack.c.b16 %v7343, %v7342
    %v7404 = vpack.c.b16 %v7345, %v7344
    %v7405 = vpack.c.b16 %v7347, %v7346
    %v7406 = vpack.c.b16 %v7349, %v7348
    %v7407 = vpack.c.b16 %v7351, %v7350
    %v7408 = vpack.c.b16 %v7353, %v7352
    %v7409 = vpack.c.b16 %v7355, %v7354
    %v7410 = vpack.c.b16 %v7357, %v7356
    %v7411 = vpack.c.b16 %v7359, %v7358
    %v7412 = vpack.c.b16 %v7361, %v7360
    %v7413 = vpack.c.b16 %v7363, %v7362
    %v7414 = vpack.c.b16 %v7365, %v7364
    %v7415 = vpack.c.b16 %v7367, %v7366
    %v7416 = vpack.c.b16 %v7369, %v7368
    %v7417 = vpack.c.b16 %v7371, %v7370
    %v7418 = vpack.c.b16 %v7373, %v7372
    %v7419 = vpack.c.b16 %v7375, %v7374
    %v7420 = vpack.c.b16 %v7377, %v7376
    %v7421 = vpack.c.b16 %v7379, %v7378
    %v7422 = vpack.c.b16 %v7381, %v7380
    %v7423 = vpack.c.b16 %v7383, %v7382
    %v7424 = vpack.c.b16 %v7385, %v7384
    %v7425 = vpack.c.b16 %v7387, %v7386
    %v7426 = vpack.c.b16 %v7389, %v7388
    %v7427 = vpack.c.b16 %v7391, %v7390
    %v7428 = vpack.c.b16 %v7393, %v7392
    %v7429 = vpack.c.b16 %v7395, %v7394
    %v7430 = vpack.c.b16 %v7397, %v7396
    %v7431 = vpack.c.b16 %v7399, %v7398
    %7464 = vmatprep.subr.bf16.mxu0 0
    %7465 = vmatpush1.bf16.msra.mxu0 %v7400
    %7466 = vmatprep.subr.bf16.mxu0 0
    %7467 = vmatpush1.bf16.msra.mxu0 %v7401
    %7468 = vmatprep.subr.bf16.mxu0 0
    %7469 = vmatpush1.bf16.msra.mxu0 %v7402
    %7470 = vmatprep.subr.bf16.mxu0 0
    %7471 = vmatpush1.bf16.msra.mxu0 %v7403
    %7472 = vmatprep.subr.bf16.mxu0 0
    %7473 = vmatpush1.bf16.msra.mxu0 %v7404
    %7474 = vmatprep.subr.bf16.mxu0 0
    %7475 = vmatpush1.bf16.msra.mxu0 %v7405
    %7476 = vmatprep.subr.bf16.mxu0 0
    %7477 = vmatpush1.bf16.msra.mxu0 %v7406
    %7478 = vmatprep.subr.bf16.mxu0 0
    %7479 = vmatpush1.bf16.msra.mxu0 %v7407
    %7480 = vmatprep.subr.bf16.mxu0 0
    %7481 = vmatpush1.bf16.msra.mxu0 %v7408
    %7482 = vmatprep.subr.bf16.mxu0 0
    %7483 = vmatpush1.bf16.msra.mxu0 %v7409
    %7484 = vmatprep.subr.bf16.mxu0 0
    %7485 = vmatpush1.bf16.msra.mxu0 %v7410
    %7486 = vmatprep.subr.bf16.mxu0 0
    %7487 = vmatpush1.bf16.msra.mxu0 %v7411
    %7488 = vmatprep.subr.bf16.mxu0 0
    %7489 = vmatpush1.bf16.msra.mxu0 %v7412
    %7490 = vmatprep.subr.bf16.mxu0 0
    %7491 = vmatpush1.bf16.msra.mxu0 %v7413
    %7492 = vmatprep.subr.bf16.mxu0 0
    %7493 = vmatpush1.bf16.msra.mxu0 %v7414
    %7494 = vmatprep.subr.bf16.mxu0 0
    %7495 = vmatpush1.bf16.msra.mxu0 %v7415
    %7496 = vmatprep.mubr.bf16.mxu0 %v7198
    %7497 = vmatmul.mubr.bf16.gmra.mrb[0].mxu0 %v7197
    %v7498 = vpop.f32.mrb[0].mxu0
    %v7499 = vadd.f32 %v7270, %v7498
    %v7500 = vpop.f32.mrb[0].mxu0
    %v7501 = vpop.f32.mrb[0].mxu0
    %v7502 = vpop.f32.mrb[0].mxu0
    %7503 = vdwg.mxu0
    %7504 = vmatprep.subr.bf16.mxu0 0
    %7505 = vmatpush1.bf16.msra.mxu0 %v7416
    %7506 = vmatprep.subr.bf16.mxu0 0
    %7507 = vmatpush1.bf16.msra.mxu0 %v7417
    %7508 = vmatprep.subr.bf16.mxu0 0
    %7509 = vmatpush1.bf16.msra.mxu0 %v7418
    %7510 = vmatprep.subr.bf16.mxu0 0
    %7511 = vmatpush1.bf16.msra.mxu0 %v7419
    %7512 = vmatprep.subr.bf16.mxu0 0
    %7513 = vmatpush1.bf16.msra.mxu0 %v7420
    %7514 = vmatprep.subr.bf16.mxu0 0
    %7515 = vmatpush1.bf16.msra.mxu0 %v7421
    %7516 = vmatprep.subr.bf16.mxu0 0
    %7517 = vmatpush1.bf16.msra.mxu0 %v7422
    %7518 = vmatprep.subr.bf16.mxu0 0
    %7519 = vmatpush1.bf16.msra.mxu0 %v7423
    %7520 = vmatprep.subr.bf16.mxu0 0
    %7521 = vmatpush1.bf16.msra.mxu0 %v7424
    %7522 = vmatprep.subr.bf16.mxu0 0
    %7523 = vmatpush1.bf16.msra.mxu0 %v7425
    %7524 = vmatprep.subr.bf16.mxu0 0
    %7525 = vmatpush1.bf16.msra.mxu0 %v7426
    %7526 = vmatprep.subr.bf16.mxu0 0
    %7527 = vmatpush1.bf16.msra.mxu0 %v7427
    %7528 = vmatprep.subr.bf16.mxu0 0
    %7529 = vmatpush1.bf16.msra.mxu0 %v7428
    %7530 = vmatprep.subr.bf16.mxu0 0
    %7531 = vmatpush1.bf16.msra.mxu0 %v7429
    %7532 = vmatprep.subr.bf16.mxu0 0
    %7533 = vmatpush1.bf16.msra.mxu0 %v7430
    %7534 = vmatprep.subr.bf16.mxu0 0
    %7535 = vmatpush1.bf16.msra.mxu0 %v7431
    %7536 = vmatprep.mubr.bf16.mxu0 %v7200
    %7537 = vmatmul.mubr.bf16.gmra.mrb[0].mxu0 %v7199
    %v7538 = vpop.f32.mrb[0].mxu0
    %v7539 = vadd.f32 %v7499, %v7538
    %v7540 = vpop.f32.mrb[0].mxu0
    %v7541 = vpop.f32.mrb[0].mxu0
    %v7542 = vpop.f32.mrb[0].mxu0
    %7543 = vdwg.mxu0
    %v7544 = vxor.u32 %v7539, 2147483648
    %v7545 = vmul.f32 %v7544, 1.442695
    %v7546 = vpow.pop %v7545
    %v7547 = vadd.f32 %v7546, 1.0
    %v7548 = vrcp.pop %v7547
    %v7549 = vmul.f32 1.0, %v7548
    %7550 = vst [vmem:[#allocation27] sm:$0xff] %v7549
    // Predicated region
    $region110: #{tpu_custom_call.1} parent=1 // pred_check
      _
    $region111: #{tpu_custom_call.1} parent=1 // pred_check_branch
      %7552 = sbr.rel (0) target = $region113
    $region112: #{tpu_custom_call.1} parent=1 // pred_region
      %s7554 = ssub.s32 128, 128
      %7555 = vsyncadd [#allocation12], %s7554
      %s7557 = sshll.u32 [#allocation27], 4
      %s7558 = int_to_ptr.vmem [resolvable:$true] %s7557
      %7560 = dma.vmem_to_hbm [thread:$0]  %s7558, 128, %s17, [#allocation12]
    $region113: #{tpu_custom_call.1} parent=1 // pred_fallthru
      _
    // Predicated region
    $region114: #{tpu_custom_call.1} parent=1 // pred_check
      _
    $region115: #{tpu_custom_call.1} parent=1 // pred_check_branch
      %7562 = sbr.rel (0) target = $region117
    $region116: #{tpu_custom_call.1} parent=1 // pred_region
      %7563 = dma.done [#allocation12], 128
    $region117: #{tpu_custom_call.1} parent=1 // pred_fallthru
      _
    %7564 = vsyncpa [#allocation11], 1
    %7565 = vsyncpa [#allocation14], 1
    %7566 = vsyncpa [#allocation17], 1
    %7567 = vsyncpa [#allocation20], 1
    %7568 = vsyncpa [#allocation23], 1
    %7569 = vsyncpa [#allocation26], 1
    %7570 = vsyncpa [#allocation12], 1

</llo_original>
